<compile_context>
chip_gen: v7x
topology: tpu7x:2x2x1
jax: 0.10.0
libtpu: 0.0.40
codegen_flags: <defaults>
</compile_context>

<pallas_src>
import jax
import jax.numpy as jnp
from jax.experimental import pallas as pl
from jax.experimental.pallas import tpu as pltpu

IN_DIM = 28 * 28          # 784  (multiple of 8 -> no K padding needed)
HID1 = 16 * 14 * 14       # 3136 (conv2mat output rows)
HID2 = 100
OUT_DIM = 10

# Lane-padded (multiple-of-128) feature dims for layers 2/3 and the output.
HID1_PAD = 3200
HID2_PAD = 128
OUT_PAD = 128


def _round_up(n, m):
    return (n + m - 1) // m * m


def _vmem_and_tb_max():
    """Generation-conditional VMEM budget and max batch-tile size."""
    try:
        vmem = pltpu.get_tpu_info().vmem_capacity_bytes
    except Exception:
        vmem = 64 << 20                      # conservative (v7x-like) fallback
    if vmem >= (100 << 20):                  # v5e / v6e: 128 MiB VMEM
        return 96 << 20, 512
    return 48 << 20, 256                     # v7x: 64 MiB per TensorCore


def _pad2d(a, rows, cols):
    return jnp.pad(a, ((0, rows - a.shape[0]), (0, cols - a.shape[1])))


def _mlp_kernel(x_ref, w1_ref, b1_ref, w2_ref, b2_ref, w3_ref, b3_ref, o_ref):
    # One batch tile per grid step.  Weights/biases have constant block
    # indices, so Pallas keeps them resident in VMEM across the whole grid;
    # only the (tb, 784) x tile and (tb, OUT_PAD) output tile move per step.
    x = x_ref[...].astype(jnp.bfloat16)       # f32 -> bf16 on the VPU (free)
    h1 = jnp.dot(x, w1_ref[...], preferred_element_type=jnp.float32) + b1_ref[...]
    h1 = jnp.maximum(h1, 0.0).astype(jnp.bfloat16)
    h2 = jnp.dot(h1, w2_ref[...], preferred_element_type=jnp.float32) + b2_ref[...]
    h2 = jnp.maximum(h2, 0.0).astype(jnp.bfloat16)
    o_ref[...] = (
        jnp.dot(h2, w3_ref[...], preferred_element_type=jnp.float32) + b3_ref[...]
    )


def prepare_params(params):
    """One-time pad + bf16 cast of the weights.  Call once, reuse every step.

    Zero-padded rows/columns keep logits[:, :10] exact.
    """
    w1, b1, w2, b2, w3, b3 = params
    w1p = _pad2d(w1, IN_DIM, HID1_PAD).astype(jnp.bfloat16)   # (784, 3200)
    w2p = _pad2d(w2, HID1_PAD, HID2_PAD).astype(jnp.bfloat16)  # (3200, 128)
    w3p = _pad2d(w3, HID2_PAD, OUT_PAD).astype(jnp.bfloat16)   # (128, 128)
    b1p = _pad2d(b1, 1, HID1_PAD)     # biases stay f32 (tiny)
    b2p = _pad2d(b2, 1, HID2_PAD)
    b3p = _pad2d(b3, 1, OUT_PAD)
    return tuple(jax.device_put(a) for a in (w1p, b1p, w2p, b2p, w3p, b3p))


@jax.jit
def mnist_c2f_forward(x_nchw, prepared_params):
    """x_nchw: (B, 1, 28, 28) float32. Returns logits (B, 10) float32."""
    w1p, b1p, w2p, b2p, w3p, b3p = prepared_params
    B = x_nchw.shape[0]
    x = x_nchw.reshape(B, IN_DIM)     # matches torch's x.reshape(-1, 28*28)

    vmem_limit, tb_max = _vmem_and_tb_max()

    # ---- ragged-friendly batch tiling (>= 2 tiles when B > 8 for v7x) ----
    b8 = _round_up(B, 8)
    want_tiles = 2 if B > 8 else 1
    tb = min(tb_max, _round_up(pl.cdiv(b8, want_tiles), 8))
    n_tiles = pl.cdiv(b8, tb)
    b_pad = n_tiles * tb

    # x stays f32; only batch rows are padded (the bf16 cast is in-kernel).
    xp = _pad2d(x, b_pad, IN_DIM)

    flops = 2 * b_pad * (IN_DIM * HID1_PAD + HID1_PAD * HID2_PAD + HID2_PAD * OUT_PAD)
    bytes_accessed = (
        2 * (IN_DIM * HID1_PAD + HID1_PAD * HID2_PAD + HID2_PAD * OUT_PAD)  # bf16 W
        + 4 * (HID1_PAD + HID2_PAD + OUT_PAD)                               # f32 biases
        + 4 * b_pad * (IN_DIM + OUT_PAD)                                    # f32 x, logits
    )

    const = lambda i: (0, 0)
    out = pl.pallas_call(
        _mlp_kernel,
        out_shape=jax.ShapeDtypeStruct((b_pad, OUT_PAD), jnp.float32),
        grid=(n_tiles,),
        in_specs=[
            pl.BlockSpec((tb, IN_DIM), lambda i: (i, 0)),
            pl.BlockSpec((IN_DIM, HID1_PAD), const),
            pl.BlockSpec((1, HID1_PAD), const),
            pl.BlockSpec((HID1_PAD, HID2_PAD), const),
            pl.BlockSpec((1, HID2_PAD), const),
            pl.BlockSpec((HID2_PAD, OUT_PAD), const),
            pl.BlockSpec((1, OUT_PAD), const),
        ],
        out_specs=pl.BlockSpec((tb, OUT_PAD), lambda i: (i, 0)),
        compiler_params=pltpu.CompilerParams(
            dimension_semantics=("parallel",),
            vmem_limit_bytes=vmem_limit,
        ),
        cost_estimate=pl.CostEstimate(
            flops=int(flops), transcendentals=0, bytes_accessed=int(bytes_accessed)
        ),
    )(xp, w1p, b1p, w2p, b2p, w3p, b3p)

    return out[:B, :OUT_DIM]


def init_params(key):
    """Deterministic synthetic parameters matching the nn.Linear shapes.

    PyTorch stores Linear weights as (out, in); we store the transpose
    (in, out) so the kernel computes x @ W directly.
    """
    ks = jax.random.split(key, 6)

    def linear(kw, kb, fan_in, fan_out):
        bound = 1.0 / jnp.sqrt(fan_in)
        w = jax.random.uniform(kw, (fan_in, fan_out), jnp.float32, -bound, bound)
        b = jax.random.uniform(kb, (1, fan_out), jnp.float32, -bound, bound)
        return w, b

    w1, b1 = linear(ks[0], ks[1], IN_DIM, HID1)
    w2, b2 = linear(ks[2], ks[3], HID1, HID2)
    w3, b3 = linear(ks[4], ks[5], HID2, OUT_DIM)
    return (w1, b1, w2, b2, w3, b3)


if __name__ == "__main__":
    key = jax.random.PRNGKey(0)
    k_x, k_p = jax.random.split(key)

    B = 2
    x = jax.random.normal(k_x, (B, 1, 28, 28), jnp.float32)  # MNIST-like NCHW
    params = init_params(k_p)
    prepared = prepare_params(params)   # pad + bf16 cast ONCE, outside the jit

    logits = mnist_c2f_forward(x, prepared)
    jax.block_until_ready(logits)

    # Pure-JAX reference emulating the kernel's bf16 casts (f32 accumulation).
    w1, b1, w2, b2, w3, b3 = params
    f32 = lambda a: a.astype(jnp.bfloat16).astype(jnp.float32)
    xf = f32(x.reshape(B, IN_DIM))
    h1 = f32(jnp.maximum(xf @ f32(w1) + b1, 0.0))
    h2 = f32(jnp.maximum(h1 @ f32(w2) + b2, 0.0))
    ref = h2 @ f32(w3) + b3

    assert logits.shape == (B, OUT_DIM)
    assert jnp.allclose(logits, ref, atol=2e-2, rtol=2e-2)

    print("KERNEL_OK")
</pallas_src>

<mosaic_0001>
module attributes {stable_mosaic.version = 11 : i64} {
  func.func @_mlp_kernel(%arg0: i32, %arg1: memref<8x784xf32, #tpu.memory_space<vmem>>, %arg2: memref<784x3200xbf16, #tpu.memory_space<vmem>>, %arg3: memref<1x3200xf32, #tpu.memory_space<vmem>>, %arg4: memref<3200x128xbf16, #tpu.memory_space<vmem>>, %arg5: memref<1x128xf32, #tpu.memory_space<vmem>>, %arg6: memref<128x128xbf16, #tpu.memory_space<vmem>>, %arg7: memref<1x128xf32, #tpu.memory_space<vmem>>, %arg8: memref<8x128xf32, #tpu.memory_space<vmem>>) attributes {dimension_semantics = [#tpu.dimension_semantics<parallel>], iteration_bounds = array<i64: 1>, scalar_prefetch = 0 : i64, scratch_operands = 0 : i64, tpu.core_type = #tpu.core_type<tc>, window_params = [{transform_indices = @transform_0, window_bounds = array<i64: 8, 784>}, {pipeline_mode = #tpu.pipeline_mode<synchronous>, transform_indices = @transform_1, window_bounds = array<i64: 784, 3200>}, {pipeline_mode = #tpu.pipeline_mode<synchronous>, transform_indices = @transform_2, window_bounds = array<i64: 1, 3200>}, {pipeline_mode = #tpu.pipeline_mode<synchronous>, transform_indices = @transform_3, window_bounds = array<i64: 3200, 128>}, {pipeline_mode = #tpu.pipeline_mode<synchronous>, transform_indices = @transform_4, window_bounds = array<i64: 1, 128>}, {pipeline_mode = #tpu.pipeline_mode<synchronous>, transform_indices = @transform_5, window_bounds = array<i64: 128, 128>}, {pipeline_mode = #tpu.pipeline_mode<synchronous>, transform_indices = @transform_6, window_bounds = array<i64: 1, 128>}, {transform_indices = @transform_7, window_bounds = array<i64: 8, 128>}]} {
    %c0 = arith.constant 0 : index
    %c0_0 = arith.constant 0 : index
    %0 = vector.load %arg1[%c0, %c0_0] : memref<8x784xf32, #tpu.memory_space<vmem>>, vector<8x784xf32>
    %1 = arith.truncf %0 : vector<8x784xf32> to vector<8x784xbf16>
    %c0_1 = arith.constant 0 : index
    %c0_2 = arith.constant 0 : index
    %2 = vector.load %arg2[%c0_1, %c0_2] : memref<784x3200xbf16, #tpu.memory_space<vmem>>, vector<784x3200xbf16>
    %cst = arith.constant dense<0.000000e+00> : vector<8x3200xf32>
    %3 = tpu.matmul %1, %2, %cst {dimension_numbers = #tpu.dot_dimension_numbers<[1], [0], [0], [1], [0, 0, 1, 1], [], []>} : vector<8x784xbf16>, vector<784x3200xbf16>, vector<8x3200xf32> -> vector<8x3200xf32>
    %c0_3 = arith.constant 0 : index
    %c0_4 = arith.constant 0 : index
    %4 = vector.load %arg3[%c0_3, %c0_4] : memref<1x3200xf32, #tpu.memory_space<vmem>>, vector<1x3200xf32>
    %5 = vector.broadcast %4 : vector<1x3200xf32> to vector<8x3200xf32>
    %6 = arith.addf %3, %5 : vector<8x3200xf32>
    %cst_5 = arith.constant 0.000000e+00 : f32
    %7 = vector.broadcast %cst_5 : f32 to vector<8x3200xf32>
    %8 = arith.maximumf %6, %7 : vector<8x3200xf32>
    %9 = arith.truncf %8 : vector<8x3200xf32> to vector<8x3200xbf16>
    %c0_6 = arith.constant 0 : index
    %c0_7 = arith.constant 0 : index
    %10 = vector.load %arg4[%c0_6, %c0_7] : memref<3200x128xbf16, #tpu.memory_space<vmem>>, vector<3200x128xbf16>
    %cst_8 = arith.constant dense<0.000000e+00> : vector<8x128xf32>
    %11 = tpu.matmul %9, %10, %cst_8 {dimension_numbers = #tpu.dot_dimension_numbers<[1], [0], [0], [1], [0, 0, 1, 1], [], []>} : vector<8x3200xbf16>, vector<3200x128xbf16>, vector<8x128xf32> -> vector<8x128xf32>
    %c0_9 = arith.constant 0 : index
    %c0_10 = arith.constant 0 : index
    %12 = vector.load %arg5[%c0_9, %c0_10] : memref<1x128xf32, #tpu.memory_space<vmem>>, vector<1x128xf32>
    %13 = vector.broadcast %12 : vector<1x128xf32> to vector<8x128xf32>
    %14 = arith.addf %11, %13 : vector<8x128xf32>
    %cst_11 = arith.constant 0.000000e+00 : f32
    %15 = vector.broadcast %cst_11 : f32 to vector<8x128xf32>
    %16 = arith.maximumf %14, %15 : vector<8x128xf32>
    %17 = arith.truncf %16 : vector<8x128xf32> to vector<8x128xbf16>
    %c0_12 = arith.constant 0 : index
    %c0_13 = arith.constant 0 : index
    %18 = vector.load %arg6[%c0_12, %c0_13] : memref<128x128xbf16, #tpu.memory_space<vmem>>, vector<128x128xbf16>
    %cst_14 = arith.constant dense<0.000000e+00> : vector<8x128xf32>
    %19 = tpu.matmul %17, %18, %cst_14 {dimension_numbers = #tpu.dot_dimension_numbers<[1], [0], [0], [1], [0, 0, 1, 1], [], []>} : vector<8x128xbf16>, vector<128x128xbf16>, vector<8x128xf32> -> vector<8x128xf32>
    %c0_15 = arith.constant 0 : index
    %c0_16 = arith.constant 0 : index
    %20 = vector.load %arg7[%c0_15, %c0_16] : memref<1x128xf32, #tpu.memory_space<vmem>>, vector<1x128xf32>
    %21 = vector.broadcast %20 : vector<1x128xf32> to vector<8x128xf32>
    %22 = arith.addf %19, %21 : vector<8x128xf32>
    %c0_17 = arith.constant 0 : index
    %c0_18 = arith.constant 0 : index
    %23 = vector.load %arg8[%c0_17, %c0_18] : memref<8x128xf32, #tpu.memory_space<vmem>>, vector<8x128xf32>
    tpu.vector_store %arg8[%c0_17, %c0_18], %22 {strides = array<i32>} : memref<8x128xf32, #tpu.memory_space<vmem>>, vector<8x128xf32>,
    return
  }
  func.func @transform_0(%arg0: i32) -> (i32, i32) {
    %c0_i32 = arith.constant 0 : i32
    %c0_i32_0 = arith.constant 0 : i32
    return %arg0, %c0_i32 : i32, i32
  }
  func.func @transform_1(%arg0: i32) -> (i32, i32) {
    %c0_i32 = arith.constant 0 : i32
    %c0_i32_0 = arith.constant 0 : i32
    %c0_i32_1 = arith.constant 0 : i32
    return %c0_i32, %c0_i32_0 : i32, i32
  }
  func.func @transform_2(%arg0: i32) -> (i32, i32) {
    %c0_i32 = arith.constant 0 : i32
    %c0_i32_0 = arith.constant 0 : i32
    %c0_i32_1 = arith.constant 0 : i32
    return %c0_i32, %c0_i32_0 : i32, i32
  }
  func.func @transform_3(%arg0: i32) -> (i32, i32) {
    %c0_i32 = arith.constant 0 : i32
    %c0_i32_0 = arith.constant 0 : i32
    %c0_i32_1 = arith.constant 0 : i32
    return %c0_i32, %c0_i32_0 : i32, i32
  }
  func.func @transform_4(%arg0: i32) -> (i32, i32) {
    %c0_i32 = arith.constant 0 : i32
    %c0_i32_0 = arith.constant 0 : i32
    %c0_i32_1 = arith.constant 0 : i32
    return %c0_i32, %c0_i32_0 : i32, i32
  }
  func.func @transform_5(%arg0: i32) -> (i32, i32) {
    %c0_i32 = arith.constant 0 : i32
    %c0_i32_0 = arith.constant 0 : i32
    %c0_i32_1 = arith.constant 0 : i32
    return %c0_i32, %c0_i32_0 : i32, i32
  }
  func.func @transform_6(%arg0: i32) -> (i32, i32) {
    %c0_i32 = arith.constant 0 : i32
    %c0_i32_0 = arith.constant 0 : i32
    %c0_i32_1 = arith.constant 0 : i32
    return %c0_i32, %c0_i32_0 : i32, i32
  }
  func.func @transform_7(%arg0: i32) -> (i32, i32) {
    %c0_i32 = arith.constant 0 : i32
    %c0_i32_0 = arith.constant 0 : i32
    return %arg0, %c0_i32 : i32, i32
  }
}

</mosaic_0001>

<llo_original>
// kernel: mnist_c2f_forward.1
$region0: #{mnist_c2f_forward.1}
  #allocation0 [shape = 'u32[]', space=smem, size = 0x4, offset = 0x4, fixed_abs, tag = 'smem constant byte address 0x4 - core index']
  #allocation1 [shape = 'u32[144,128]{1,0:T(1,128)}', space=vmem, size = 0x12000, scoped, tag = 'internal scratch']
  %s0 = inlined_call_operand.vmem [shape: f32[8,784], index: 0, kind: input, shape index: {}]
  %s1 = inlined_call_operand.hbm [shape: bf16[784,3200], index: 1, kind: input, shape index: {}]
  %s2 = inlined_call_operand.hbm [shape: f32[1,3200], index: 2, kind: input, shape index: {}]
  %s3 = inlined_call_operand.hbm [shape: bf16[3200,128], index: 3, kind: input, shape index: {}]
  %s4 = inlined_call_operand.hbm [shape: f32[1,128], index: 4, kind: input, shape index: {}]
  %s5 = inlined_call_operand.hbm [shape: bf16[128,128], index: 5, kind: input, shape index: {}]
  %s6 = inlined_call_operand.hbm [shape: f32[1,128], index: 6, kind: input, shape index: {}]
  %s7 = inlined_call_operand.vmem [shape: f32[8,128], index: 7, kind: output, shape index: {}]
  %s8 = sld [smem:[#allocation0]]
  $region62: #{mnist_c2f_forward.1} parent=0
    _
  %s10 = ssub.s32 1, %s8
  %s11 = scalar_select 0, %s10, %s8
  $region1: #{mnist_c2f_forward.1} parent=0
    #allocation2 [shape = 'u8[5017600]{0}', space=vmem, size = 0x4c9000, scoped, tag = 'input window, operand 1, single buffered']
    #allocation3 [shape = 's32[1]{0}', space=sflag, size = 0x4, scoped, tag = 'scoped memory for mnist_c2f_forward.1']
    #allocation4 [shape = 'u8[12800]{0}', space=vmem, size = 0x3400, scoped, tag = 'input window, operand 2, single buffered']
    #allocation5 [shape = 's32[1]{0}', space=sflag, size = 0x4, scoped, tag = 'scoped memory for mnist_c2f_forward.1']
    #allocation6 [shape = 'u8[819200]{0}', space=vmem, size = 0xc8000, scoped, tag = 'input window, operand 3, single buffered']
    #allocation7 [shape = 'u8[512]{0}', space=vmem, size = 0x400, scoped, tag = 'input window, operand 4, single buffered']
    #allocation8 [shape = 's32[1]{0}', space=sflag, size = 0x4, scoped, tag = 'scoped memory for mnist_c2f_forward.1']
    #allocation9 [shape = 'u8[32768]{0}', space=vmem, size = 0x8000, scoped, tag = 'input window, operand 5, single buffered']
    #allocation10 [shape = 'u8[512]{0}', space=vmem, size = 0x400, scoped, tag = 'input window, operand 6, single buffered']
    #allocation11 [shape = 's32[1]{0}', space=sflag, size = 0x4, scoped, tag = 'scoped memory for mnist_c2f_forward.1']
    %12 = vsyncpa [#allocation3], 0
    %13 = vsyncpa [#allocation5], 0
    %14 = vsyncpa [#allocation8], 0
    %15 = vsyncpa [#allocation11], 0
    // Predicated region
    $region2: #{mnist_c2f_forward.1} parent=1 // pred_check
      _
    $region3: #{mnist_c2f_forward.1} parent=1 // pred_check_branch
      %17 = sbr.rel (0) target = $region5
    $region4: #{mnist_c2f_forward.1} parent=1 // pred_region
      _
    $region5: #{mnist_c2f_forward.1} parent=1 // pred_fallthru
      _
    // Predicated region
    $region6: #{mnist_c2f_forward.1} parent=1 // pred_check
      _
    $region7: #{mnist_c2f_forward.1} parent=1 // pred_check_branch
      %19 = sbr.rel (0) target = $region9
    $region8: #{mnist_c2f_forward.1} parent=1 // pred_region
      %s21 = ssub.s32 156800, 156800
      %22 = vsyncadd [#allocation3], %s21
      %s23 = sshll.u32 [#allocation2], 4
      %s24 = int_to_ptr.vmem [resolvable:$true] %s23
      %29 = dma.hbm_to_vmem [thread:$0]  %s1, 156800, %s24, [#allocation3], 1600, 1600, 100
    $region9: #{mnist_c2f_forward.1} parent=1 // pred_fallthru
      _
    // Predicated region
    $region10: #{mnist_c2f_forward.1} parent=1 // pred_check
      _
    $region11: #{mnist_c2f_forward.1} parent=1 // pred_check_branch
      %31 = sbr.rel (0) target = $region13
    $region12: #{mnist_c2f_forward.1} parent=1 // pred_region
      %s33 = ssub.s32 400, 400
      %34 = vsyncadd [#allocation5], %s33
      %s36 = sshll.u32 [#allocation4], 4
      %s37 = int_to_ptr.vmem [resolvable:$true] %s36
      %39 = dma.hbm_to_vmem [thread:$0]  %s2, 400, %s37, [#allocation5]
    $region13: #{mnist_c2f_forward.1} parent=1 // pred_fallthru
      _
    // Predicated region
    $region14: #{mnist_c2f_forward.1} parent=1 // pred_check
      _
    $region15: #{mnist_c2f_forward.1} parent=1 // pred_check_branch
      %41 = sbr.rel (0) target = $region17
    $region16: #{mnist_c2f_forward.1} parent=1 // pred_region
      %s43 = ssub.s32 25600, 25600
      %44 = vsyncadd [#allocation5], %s43
      %s45 = sshll.u32 [#allocation6], 4
      %s46 = int_to_ptr.vmem [resolvable:$true] %s45
      %51 = dma.hbm_to_vmem [thread:$0]  %s3, 25600, %s46, [#allocation5], 64, 64, 4
    $region17: #{mnist_c2f_forward.1} parent=1 // pred_fallthru
      _
    // Predicated region
    $region18: #{mnist_c2f_forward.1} parent=1 // pred_check
      _
    $region19: #{mnist_c2f_forward.1} parent=1 // pred_check_branch
      %53 = sbr.rel (0) target = $region21
    $region20: #{mnist_c2f_forward.1} parent=1 // pred_region
      %s55 = ssub.s32 16, 16
      %56 = vsyncadd [#allocation8], %s55
      %s58 = sshll.u32 [#allocation7], 4
      %s59 = int_to_ptr.vmem [resolvable:$true] %s58
      %61 = dma.hbm_to_vmem [thread:$0]  %s4, 16, %s59, [#allocation8]
    $region21: #{mnist_c2f_forward.1} parent=1 // pred_fallthru
      _
    // Predicated region
    $region22: #{mnist_c2f_forward.1} parent=1 // pred_check
      _
    $region23: #{mnist_c2f_forward.1} parent=1 // pred_check_branch
      %63 = sbr.rel (0) target = $region25
    $region24: #{mnist_c2f_forward.1} parent=1 // pred_region
      %s65 = ssub.s32 1024, 1024
      %66 = vsyncadd [#allocation8], %s65
      %s67 = sshll.u32 [#allocation9], 4
      %s68 = int_to_ptr.vmem [resolvable:$true] %s67
      %73 = dma.hbm_to_vmem [thread:$0]  %s5, 1024, %s68, [#allocation8], 64, 64, 4
    $region25: #{mnist_c2f_forward.1} parent=1 // pred_fallthru
      _
    // Predicated region
    $region26: #{mnist_c2f_forward.1} parent=1 // pred_check
      _
    $region27: #{mnist_c2f_forward.1} parent=1 // pred_check_branch
      %75 = sbr.rel (0) target = $region29
    $region28: #{mnist_c2f_forward.1} parent=1 // pred_region
      %s77 = ssub.s32 16, 16
      %78 = vsyncadd [#allocation11], %s77
      %s80 = sshll.u32 [#allocation10], 4
      %s81 = int_to_ptr.vmem [resolvable:$true] %s80
      %83 = dma.hbm_to_vmem [thread:$0]  %s6, 16, %s81, [#allocation11]
    $region29: #{mnist_c2f_forward.1} parent=1 // pred_fallthru
      _
    // Predicated region
    $region30: #{mnist_c2f_forward.1} parent=1 // pred_check
      _
    $region31: #{mnist_c2f_forward.1} parent=1 // pred_check_branch
      %85 = sbr.rel (0) target = $region33
    $region32: #{mnist_c2f_forward.1} parent=1 // pred_region
      %86 = dma.done [#allocation3], 156800
    $region33: #{mnist_c2f_forward.1} parent=1 // pred_fallthru
      _
    // Predicated region
    $region34: #{mnist_c2f_forward.1} parent=1 // pred_check
      _
    $region35: #{mnist_c2f_forward.1} parent=1 // pred_check_branch
      %88 = sbr.rel (0) target = $region37
    $region36: #{mnist_c2f_forward.1} parent=1 // pred_region
      %89 = dma.done [#allocation5], 400
    $region37: #{mnist_c2f_forward.1} parent=1 // pred_fallthru
      _
    // Predicated region
    $region38: #{mnist_c2f_forward.1} parent=1 // pred_check
      _
    $region39: #{mnist_c2f_forward.1} parent=1 // pred_check_branch
      %91 = sbr.rel (0) target = $region41
    $region40: #{mnist_c2f_forward.1} parent=1 // pred_region
      %92 = dma.done [#allocation5], 25600
    $region41: #{mnist_c2f_forward.1} parent=1 // pred_fallthru
      _
    // Predicated region
    $region42: #{mnist_c2f_forward.1} parent=1 // pred_check
      _
    $region43: #{mnist_c2f_forward.1} parent=1 // pred_check_branch
      %94 = sbr.rel (0) target = $region45
    $region44: #{mnist_c2f_forward.1} parent=1 // pred_region
      %95 = dma.done [#allocation8], 16
    $region45: #{mnist_c2f_forward.1} parent=1 // pred_fallthru
      _
    // Predicated region
    $region46: #{mnist_c2f_forward.1} parent=1 // pred_check
      _
    $region47: #{mnist_c2f_forward.1} parent=1 // pred_check_branch
      %97 = sbr.rel (0) target = $region49
    $region48: #{mnist_c2f_forward.1} parent=1 // pred_region
      %98 = dma.done [#allocation8], 1024
    $region49: #{mnist_c2f_forward.1} parent=1 // pred_fallthru
      _
    // Predicated region
    $region50: #{mnist_c2f_forward.1} parent=1 // pred_check
      _
    $region51: #{mnist_c2f_forward.1} parent=1 // pred_check_branch
      %100 = sbr.rel (0) target = $region53
    $region52: #{mnist_c2f_forward.1} parent=1 // pred_region
      %101 = dma.done [#allocation11], 16
    $region53: #{mnist_c2f_forward.1} parent=1 // pred_fallthru
      _
    %v103 = vld [vmem:[%s0] sm:$0xff]
    %v104 = vld [vmem:[%s0 + $0x8] sm:$0xff]
    %v105 = vld [vmem:[%s0 + $0x10] sm:$0xff]
    %v106 = vld [vmem:[%s0 + $0x18] sm:$0xff]
    %v107 = vld [vmem:[%s0 + $0x20] sm:$0xff]
    %v108 = vld [vmem:[%s0 + $0x28] sm:$0xff]
    %v109 = vld [vmem:[%s0 + $0x30] sm:$0xff]
    %v110 = vpack.c.bf16 %v103, %v103
    %v111 = vpack.c.bf16 %v104, %v104
    %v112 = vpack.c.bf16 %v105, %v105
    %v113 = vpack.c.bf16 %v106, %v106
    %v114 = vpack.c.bf16 %v107, %v107
    %v115 = vpack.c.bf16 %v108, %v108
    %v116 = vpack.c.bf16 %v109, %v109
    %v117 = vld [vmem:[#allocation2] sm:$0xff]
    %v118 = vld [vmem:[#allocation2 + $0x8] sm:$0xff]
    %v119 = vld [vmem:[#allocation2 + $0x10] sm:$0xff]
    %v120 = vld [vmem:[#allocation2 + $0x18] sm:$0xff]
    %v121 = vld [vmem:[#allocation2 + $0x20] sm:$0xff]
    %v122 = vld [vmem:[#allocation2 + $0x28] sm:$0xff]
    %v123 = vld [vmem:[#allocation2 + $0x30] sm:$0xff]
    %v124 = vld [vmem:[#allocation2 + $0x38] sm:$0xff]
    %v125 = vld [vmem:[#allocation2 + $0x40] sm:$0xff]
    %v126 = vld [vmem:[#allocation2 + $0x48] sm:$0xff]
    %v127 = vld [vmem:[#allocation2 + $0x50] sm:$0xff]
    %v128 = vld [vmem:[#allocation2 + $0x58] sm:$0xff]
    %v129 = vld [vmem:[#allocation2 + $0x60] sm:$0xf]
    %v130 = vld [vmem:[#allocation2 + $0x64] sm:$0xff]
    %v131 = vld [vmem:[#allocation2 + $0x6c] sm:$0xff]
    %v132 = vld [vmem:[#allocation2 + $0x74] sm:$0xff]
    %v133 = vld [vmem:[#allocation2 + $0x7c] sm:$0xff]
    %v134 = vld [vmem:[#allocation2 + $0x84] sm:$0xff]
    %v135 = vld [vmem:[#allocation2 + $0x8c] sm:$0xff]
    %v136 = vld [vmem:[#allocation2 + $0x94] sm:$0xff]
    %v137 = vld [vmem:[#allocation2 + $0x9c] sm:$0xff]
    %v138 = vld [vmem:[#allocation2 + $0xa4] sm:$0xff]
    %v139 = vld [vmem:[#allocation2 + $0xac] sm:$0xff]
    %v140 = vld [vmem:[#allocation2 + $0xb4] sm:$0xff]
    %v141 = vld [vmem:[#allocation2 + $0xbc] sm:$0xff]
    %v142 = vld [vmem:[#allocation2 + $0xc4] sm:$0xf]
    %v143 = vld [vmem:[#allocation2 + $0xc8] sm:$0xff]
    %v144 = vld [vmem:[#allocation2 + $0xd0] sm:$0xff]
    %v145 = vld [vmem:[#allocation2 + $0xd8] sm:$0xff]
    %v146 = vld [vmem:[#allocation2 + $0xe0] sm:$0xff]
    %v147 = vld [vmem:[#allocation2 + $0xe8] sm:$0xff]
    %v148 = vld [vmem:[#allocation2 + $0xf0] sm:$0xff]
    %v149 = vld [vmem:[#allocation2 + $0xf8] sm:$0xff]
    %v150 = vld [vmem:[#allocation2 + $0x100] sm:$0xff]
    %v151 = vld [vmem:[#allocation2 + $0x108] sm:$0xff]
    %v152 = vld [vmem:[#allocation2 + $0x110] sm:$0xff]
    %v153 = vld [vmem:[#allocation2 + $0x118] sm:$0xff]
    %v154 = vld [vmem:[#allocation2 + $0x120] sm:$0xff]
    %v155 = vld [vmem:[#allocation2 + $0x128] sm:$0xf]
    %v156 = vld [vmem:[#allocation2 + $0x12c] sm:$0xff]
    %v157 = vld [vmem:[#allocation2 + $0x134] sm:$0xff]
    %v158 = vld [vmem:[#allocation2 + $0x13c] sm:$0xff]
    %v159 = vld [vmem:[#allocation2 + $0x144] sm:$0xff]
    %v160 = vld [vmem:[#allocation2 + $0x14c] sm:$0xff]
    %v161 = vld [vmem:[#allocation2 + $0x154] sm:$0xff]
    %v162 = vld [vmem:[#allocation2 + $0x15c] sm:$0xff]
    %v163 = vld [vmem:[#allocation2 + $0x164] sm:$0xff]
    %v164 = vld [vmem:[#allocation2 + $0x16c] sm:$0xff]
    %v165 = vld [vmem:[#allocation2 + $0x174] sm:$0xff]
    %v166 = vld [vmem:[#allocation2 + $0x17c] sm:$0xff]
    %v167 = vld [vmem:[#allocation2 + $0x184] sm:$0xff]
    %v168 = vld [vmem:[#allocation2 + $0x18c] sm:$0xf]
    %v169 = vld [vmem:[#allocation2 + $0x190] sm:$0xff]
    %v170 = vld [vmem:[#allocation2 + $0x198] sm:$0xff]
    %v171 = vld [vmem:[#allocation2 + $0x1a0] sm:$0xff]
    %v172 = vld [vmem:[#allocation2 + $0x1a8] sm:$0xff]
    %v173 = vld [vmem:[#allocation2 + $0x1b0] sm:$0xff]
    %v174 = vld [vmem:[#allocation2 + $0x1b8] sm:$0xff]
    %v175 = vld [vmem:[#allocation2 + $0x1c0] sm:$0xff]
    %v176 = vld [vmem:[#allocation2 + $0x1c8] sm:$0xff]
    %v177 = vld [vmem:[#allocation2 + $0x1d0] sm:$0xff]
    %v178 = vld [vmem:[#allocation2 + $0x1d8] sm:$0xff]
    %v179 = vld [vmem:[#allocation2 + $0x1e0] sm:$0xff]
    %v180 = vld [vmem:[#allocation2 + $0x1e8] sm:$0xff]
    %v181 = vld [vmem:[#allocation2 + $0x1f0] sm:$0xf]
    %v182 = vld [vmem:[#allocation2 + $0x1f4] sm:$0xff]
    %v183 = vld [vmem:[#allocation2 + $0x1fc] sm:$0xff]
    %v184 = vld [vmem:[#allocation2 + $0x204] sm:$0xff]
    %v185 = vld [vmem:[#allocation2 + $0x20c] sm:$0xff]
    %v186 = vld [vmem:[#allocation2 + $0x214] sm:$0xff]
    %v187 = vld [vmem:[#allocation2 + $0x21c] sm:$0xff]
    %v188 = vld [vmem:[#allocation2 + $0x224] sm:$0xff]
    %v189 = vld [vmem:[#allocation2 + $0x22c] sm:$0xff]
    %v190 = vld [vmem:[#allocation2 + $0x234] sm:$0xff]
    %v191 = vld [vmem:[#allocation2 + $0x23c] sm:$0xff]
    %v192 = vld [vmem:[#allocation2 + $0x244] sm:$0xff]
    %v193 = vld [vmem:[#allocation2 + $0x24c] sm:$0xff]
    %v194 = vld [vmem:[#allocation2 + $0x254] sm:$0xf]
    %v195 = vld [vmem:[#allocation2 + $0x258] sm:$0xff]
    %v196 = vld [vmem:[#allocation2 + $0x260] sm:$0xff]
    %v197 = vld [vmem:[#allocation2 + $0x268] sm:$0xff]
    %v198 = vld [vmem:[#allocation2 + $0x270] sm:$0xff]
    %v199 = vld [vmem:[#allocation2 + $0x278] sm:$0xff]
    %v200 = vld [vmem:[#allocation2 + $0x280] sm:$0xff]
    %v201 = vld [vmem:[#allocation2 + $0x288] sm:$0xff]
    %v202 = vld [vmem:[#allocation2 + $0x290] sm:$0xff]
    %v203 = vld [vmem:[#allocation2 + $0x298] sm:$0xff]
    %v204 = vld [vmem:[#allocation2 + $0x2a0] sm:$0xff]
    %v205 = vld [vmem:[#allocation2 + $0x2a8] sm:$0xff]
    %v206 = vld [vmem:[#allocation2 + $0x2b0] sm:$0xff]
    %v207 = vld [vmem:[#allocation2 + $0x2b8] sm:$0xf]
    %v208 = vld [vmem:[#allocation2 + $0x2bc] sm:$0xff]
    %v209 = vld [vmem:[#allocation2 + $0x2c4] sm:$0xff]
    %v210 = vld [vmem:[#allocation2 + $0x2cc] sm:$0xff]
    %v211 = vld [vmem:[#allocation2 + $0x2d4] sm:$0xff]
    %v212 = vld [vmem:[#allocation2 + $0x2dc] sm:$0xff]
    %v213 = vld [vmem:[#allocation2 + $0x2e4] sm:$0xff]
    %v214 = vld [vmem:[#allocation2 + $0x2ec] sm:$0xff]
    %v215 = vld [vmem:[#allocation2 + $0x2f4] sm:$0xff]
    %v216 = vld [vmem:[#allocation2 + $0x2fc] sm:$0xff]
    %v217 = vld [vmem:[#allocation2 + $0x304] sm:$0xff]
    %v218 = vld [vmem:[#allocation2 + $0x30c] sm:$0xff]
    %v219 = vld [vmem:[#allocation2 + $0x314] sm:$0xff]
    %v220 = vld [vmem:[#allocation2 + $0x31c] sm:$0xf]
    %v221 = vld [vmem:[#allocation2 + $0x320] sm:$0xff]
    %v222 = vld [vmem:[#allocation2 + $0x328] sm:$0xff]
    %v223 = vld [vmem:[#allocation2 + $0x330] sm:$0xff]
    %v224 = vld [vmem:[#allocation2 + $0x338] sm:$0xff]
    %v225 = vld [vmem:[#allocation2 + $0x340] sm:$0xff]
    %v226 = vld [vmem:[#allocation2 + $0x348] sm:$0xff]
    %v227 = vld [vmem:[#allocation2 + $0x350] sm:$0xff]
    %v228 = vld [vmem:[#allocation2 + $0x358] sm:$0xff]
    %v229 = vld [vmem:[#allocation2 + $0x360] sm:$0xff]
    %v230 = vld [vmem:[#allocation2 + $0x368] sm:$0xff]
    %v231 = vld [vmem:[#allocation2 + $0x370] sm:$0xff]
    %v232 = vld [vmem:[#allocation2 + $0x378] sm:$0xff]
    %v233 = vld [vmem:[#allocation2 + $0x380] sm:$0xf]
    %v234 = vld [vmem:[#allocation2 + $0x384] sm:$0xff]
    %v235 = vld [vmem:[#allocation2 + $0x38c] sm:$0xff]
    %v236 = vld [vmem:[#allocation2 + $0x394] sm:$0xff]
    %v237 = vld [vmem:[#allocation2 + $0x39c] sm:$0xff]
    %v238 = vld [vmem:[#allocation2 + $0x3a4] sm:$0xff]
    %v239 = vld [vmem:[#allocation2 + $0x3ac] sm:$0xff]
    %v240 = vld [vmem:[#allocation2 + $0x3b4] sm:$0xff]
    %v241 = vld [vmem:[#allocation2 + $0x3bc] sm:$0xff]
    %v242 = vld [vmem:[#allocation2 + $0x3c4] sm:$0xff]
    %v243 = vld [vmem:[#allocation2 + $0x3cc] sm:$0xff]
    %v244 = vld [vmem:[#allocation2 + $0x3d4] sm:$0xff]
    %v245 = vld [vmem:[#allocation2 + $0x3dc] sm:$0xff]
    %v246 = vld [vmem:[#allocation2 + $0x3e4] sm:$0xf]
    %v247 = vld [vmem:[#allocation2 + $0x3e8] sm:$0xff]
    %v248 = vld [vmem:[#allocation2 + $0x3f0] sm:$0xff]
    %v249 = vld [vmem:[#allocation2 + $0x3f8] sm:$0xff]
    %v250 = vld [vmem:[#allocation2 + $0x400] sm:$0xff]
    %v251 = vld [vmem:[#allocation2 + $0x408] sm:$0xff]
    %v252 = vld [vmem:[#allocation2 + $0x410] sm:$0xff]
    %v253 = vld [vmem:[#allocation2 + $0x418] sm:$0xff]
    %v254 = vld [vmem:[#allocation2 + $0x420] sm:$0xff]
    %v255 = vld [vmem:[#allocation2 + $0x428] sm:$0xff]
    %v256 = vld [vmem:[#allocation2 + $0x430] sm:$0xff]
    %v257 = vld [vmem:[#allocation2 + $0x438] sm:$0xff]
    %v258 = vld [vmem:[#allocation2 + $0x440] sm:$0xff]
    %v259 = vld [vmem:[#allocation2 + $0x448] sm:$0xf]
    %v260 = vld [vmem:[#allocation2 + $0x44c] sm:$0xff]
    %v261 = vld [vmem:[#allocation2 + $0x454] sm:$0xff]
    %v262 = vld [vmem:[#allocation2 + $0x45c] sm:$0xff]
    %v263 = vld [vmem:[#allocation2 + $0x464] sm:$0xff]
    %v264 = vld [vmem:[#allocation2 + $0x46c] sm:$0xff]
    %v265 = vld [vmem:[#allocation2 + $0x474] sm:$0xff]
    %v266 = vld [vmem:[#allocation2 + $0x47c] sm:$0xff]
    %v267 = vld [vmem:[#allocation2 + $0x484] sm:$0xff]
    %v268 = vld [vmem:[#allocation2 + $0x48c] sm:$0xff]
    %v269 = vld [vmem:[#allocation2 + $0x494] sm:$0xff]
    %v270 = vld [vmem:[#allocation2 + $0x49c] sm:$0xff]
    %v271 = vld [vmem:[#allocation2 + $0x4a4] sm:$0xff]
    %v272 = vld [vmem:[#allocation2 + $0x4ac] sm:$0xf]
    %v273 = vld [vmem:[#allocation2 + $0x4b0] sm:$0xff]
    %v274 = vld [vmem:[#allocation2 + $0x4b8] sm:$0xff]
    %v275 = vld [vmem:[#allocation2 + $0x4c0] sm:$0xff]
    %v276 = vld [vmem:[#allocation2 + $0x4c8] sm:$0xff]
    %v277 = vld [vmem:[#allocation2 + $0x4d0] sm:$0xff]
    %v278 = vld [vmem:[#allocation2 + $0x4d8] sm:$0xff]
    %v279 = vld [vmem:[#allocation2 + $0x4e0] sm:$0xff]
    %v280 = vld [vmem:[#allocation2 + $0x4e8] sm:$0xff]
    %v281 = vld [vmem:[#allocation2 + $0x4f0] sm:$0xff]
    %v282 = vld [vmem:[#allocation2 + $0x4f8] sm:$0xff]
    %v283 = vld [vmem:[#allocation2 + $0x500] sm:$0xff]
    %v284 = vld [vmem:[#allocation2 + $0x508] sm:$0xff]
    %v285 = vld [vmem:[#allocation2 + $0x510] sm:$0xf]
    %v286 = vld [vmem:[#allocation2 + $0x514] sm:$0xff]
    %v287 = vld [vmem:[#allocation2 + $0x51c] sm:$0xff]
    %v288 = vld [vmem:[#allocation2 + $0x524] sm:$0xff]
    %v289 = vld [vmem:[#allocation2 + $0x52c] sm:$0xff]
    %v290 = vld [vmem:[#allocation2 + $0x534] sm:$0xff]
    %v291 = vld [vmem:[#allocation2 + $0x53c] sm:$0xff]
    %v292 = vld [vmem:[#allocation2 + $0x544] sm:$0xff]
    %v293 = vld [vmem:[#allocation2 + $0x54c] sm:$0xff]
    %v294 = vld [vmem:[#allocation2 + $0x554] sm:$0xff]
    %v295 = vld [vmem:[#allocation2 + $0x55c] sm:$0xff]
    %v296 = vld [vmem:[#allocation2 + $0x564] sm:$0xff]
    %v297 = vld [vmem:[#allocation2 + $0x56c] sm:$0xff]
    %v298 = vld [vmem:[#allocation2 + $0x574] sm:$0xf]
    %v299 = vld [vmem:[#allocation2 + $0x578] sm:$0xff]
    %v300 = vld [vmem:[#allocation2 + $0x580] sm:$0xff]
    %v301 = vld [vmem:[#allocation2 + $0x588] sm:$0xff]
    %v302 = vld [vmem:[#allocation2 + $0x590] sm:$0xff]
    %v303 = vld [vmem:[#allocation2 + $0x598] sm:$0xff]
    %v304 = vld [vmem:[#allocation2 + $0x5a0] sm:$0xff]
    %v305 = vld [vmem:[#allocation2 + $0x5a8] sm:$0xff]
    %v306 = vld [vmem:[#allocation2 + $0x5b0] sm:$0xff]
    %v307 = vld [vmem:[#allocation2 + $0x5b8] sm:$0xff]
    %v308 = vld [vmem:[#allocation2 + $0x5c0] sm:$0xff]
    %v309 = vld [vmem:[#allocation2 + $0x5c8] sm:$0xff]
    %v310 = vld [vmem:[#allocation2 + $0x5d0] sm:$0xff]
    %v311 = vld [vmem:[#allocation2 + $0x5d8] sm:$0xf]
    %v312 = vld [vmem:[#allocation2 + $0x5dc] sm:$0xff]
    %v313 = vld [vmem:[#allocation2 + $0x5e4] sm:$0xff]
    %v314 = vld [vmem:[#allocation2 + $0x5ec] sm:$0xff]
    %v315 = vld [vmem:[#allocation2 + $0x5f4] sm:$0xff]
    %v316 = vld [vmem:[#allocation2 + $0x5fc] sm:$0xff]
    %v317 = vld [vmem:[#allocation2 + $0x604] sm:$0xff]
    %v318 = vld [vmem:[#allocation2 + $0x60c] sm:$0xff]
    %v319 = vld [vmem:[#allocation2 + $0x614] sm:$0xff]
    %v320 = vld [vmem:[#allocation2 + $0x61c] sm:$0xff]
    %v321 = vld [vmem:[#allocation2 + $0x624] sm:$0xff]
    %v322 = vld [vmem:[#allocation2 + $0x62c] sm:$0xff]
    %v323 = vld [vmem:[#allocation2 + $0x634] sm:$0xff]
    %v324 = vld [vmem:[#allocation2 + $0x63c] sm:$0xf]
    %v325 = vld [vmem:[#allocation2 + $0x640] sm:$0xff]
    %v326 = vld [vmem:[#allocation2 + $0x648] sm:$0xff]
    %v327 = vld [vmem:[#allocation2 + $0x650] sm:$0xff]
    %v328 = vld [vmem:[#allocation2 + $0x658] sm:$0xff]
    %v329 = vld [vmem:[#allocation2 + $0x660] sm:$0xff]
    %v330 = vld [vmem:[#allocation2 + $0x668] sm:$0xff]
    %v331 = vld [vmem:[#allocation2 + $0x670] sm:$0xff]
    %v332 = vld [vmem:[#allocation2 + $0x678] sm:$0xff]
    %v333 = vld [vmem:[#allocation2 + $0x680] sm:$0xff]
    %v334 = vld [vmem:[#allocation2 + $0x688] sm:$0xff]
    %v335 = vld [vmem:[#allocation2 + $0x690] sm:$0xff]
    %v336 = vld [vmem:[#allocation2 + $0x698] sm:$0xff]
    %v337 = vld [vmem:[#allocation2 + $0x6a0] sm:$0xf]
    %v338 = vld [vmem:[#allocation2 + $0x6a4] sm:$0xff]
    %v339 = vld [vmem:[#allocation2 + $0x6ac] sm:$0xff]
    %v340 = vld [vmem:[#allocation2 + $0x6b4] sm:$0xff]
    %v341 = vld [vmem:[#allocation2 + $0x6bc] sm:$0xff]
    %v342 = vld [vmem:[#allocation2 + $0x6c4] sm:$0xff]
    %v343 = vld [vmem:[#allocation2 + $0x6cc] sm:$0xff]
    %v344 = vld [vmem:[#allocation2 + $0x6d4] sm:$0xff]
    %v345 = vld [vmem:[#allocation2 + $0x6dc] sm:$0xff]
    %v346 = vld [vmem:[#allocation2 + $0x6e4] sm:$0xff]
    %v347 = vld [vmem:[#allocation2 + $0x6ec] sm:$0xff]
    %v348 = vld [vmem:[#allocation2 + $0x6f4] sm:$0xff]
    %v349 = vld [vmem:[#allocation2 + $0x6fc] sm:$0xff]
    %v350 = vld [vmem:[#allocation2 + $0x704] sm:$0xf]
    %v351 = vld [vmem:[#allocation2 + $0x708] sm:$0xff]
    %v352 = vld [vmem:[#allocation2 + $0x710] sm:$0xff]
    %v353 = vld [vmem:[#allocation2 + $0x718] sm:$0xff]
    %v354 = vld [vmem:[#allocation2 + $0x720] sm:$0xff]
    %v355 = vld [vmem:[#allocation2 + $0x728] sm:$0xff]
    %v356 = vld [vmem:[#allocation2 + $0x730] sm:$0xff]
    %v357 = vld [vmem:[#allocation2 + $0x738] sm:$0xff]
    %v358 = vld [vmem:[#allocation2 + $0x740] sm:$0xff]
    %v359 = vld [vmem:[#allocation2 + $0x748] sm:$0xff]
    %v360 = vld [vmem:[#allocation2 + $0x750] sm:$0xff]
    %v361 = vld [vmem:[#allocation2 + $0x758] sm:$0xff]
    %v362 = vld [vmem:[#allocation2 + $0x760] sm:$0xff]
    %v363 = vld [vmem:[#allocation2 + $0x768] sm:$0xf]
    %v364 = vld [vmem:[#allocation2 + $0x76c] sm:$0xff]
    %v365 = vld [vmem:[#allocation2 + $0x774] sm:$0xff]
    %v366 = vld [vmem:[#allocation2 + $0x77c] sm:$0xff]
    %v367 = vld [vmem:[#allocation2 + $0x784] sm:$0xff]
    %v368 = vld [vmem:[#allocation2 + $0x78c] sm:$0xff]
    %v369 = vld [vmem:[#allocation2 + $0x794] sm:$0xff]
    %v370 = vld [vmem:[#allocation2 + $0x79c] sm:$0xff]
    %v371 = vld [vmem:[#allocation2 + $0x7a4] sm:$0xff]
    %v372 = vld [vmem:[#allocation2 + $0x7ac] sm:$0xff]
    %v373 = vld [vmem:[#allocation2 + $0x7b4] sm:$0xff]
    %v374 = vld [vmem:[#allocation2 + $0x7bc] sm:$0xff]
    %v375 = vld [vmem:[#allocation2 + $0x7c4] sm:$0xff]
    %v376 = vld [vmem:[#allocation2 + $0x7cc] sm:$0xf]
    %v377 = vld [vmem:[#allocation2 + $0x7d0] sm:$0xff]
    %v378 = vld [vmem:[#allocation2 + $0x7d8] sm:$0xff]
    %v379 = vld [vmem:[#allocation2 + $0x7e0] sm:$0xff]
    %v380 = vld [vmem:[#allocation2 + $0x7e8] sm:$0xff]
    %v381 = vld [vmem:[#allocation2 + $0x7f0] sm:$0xff]
    %v382 = vld [vmem:[#allocation2 + $0x7f8] sm:$0xff]
    %v383 = vld [vmem:[#allocation2 + $0x800] sm:$0xff]
    %v384 = vld [vmem:[#allocation2 + $0x808] sm:$0xff]
    %v385 = vld [vmem:[#allocation2 + $0x810] sm:$0xff]
    %v386 = vld [vmem:[#allocation2 + $0x818] sm:$0xff]
    %v387 = vld [vmem:[#allocation2 + $0x820] sm:$0xff]
    %v388 = vld [vmem:[#allocation2 + $0x828] sm:$0xff]
    %v389 = vld [vmem:[#allocation2 + $0x830] sm:$0xf]
    %v390 = vld [vmem:[#allocation2 + $0x834] sm:$0xff]
    %v391 = vld [vmem:[#allocation2 + $0x83c] sm:$0xff]
    %v392 = vld [vmem:[#allocation2 + $0x844] sm:$0xff]
    %v393 = vld [vmem:[#allocation2 + $0x84c] sm:$0xff]
    %v394 = vld [vmem:[#allocation2 + $0x854] sm:$0xff]
    %v395 = vld [vmem:[#allocation2 + $0x85c] sm:$0xff]
    %v396 = vld [vmem:[#allocation2 + $0x864] sm:$0xff]
    %v397 = vld [vmem:[#allocation2 + $0x86c] sm:$0xff]
    %v398 = vld [vmem:[#allocation2 + $0x874] sm:$0xff]
    %v399 = vld [vmem:[#allocation2 + $0x87c] sm:$0xff]
    %v400 = vld [vmem:[#allocation2 + $0x884] sm:$0xff]
    %v401 = vld [vmem:[#allocation2 + $0x88c] sm:$0xff]
    %v402 = vld [vmem:[#allocation2 + $0x894] sm:$0xf]
    %v403 = vld [vmem:[#allocation2 + $0x898] sm:$0xff]
    %v404 = vld [vmem:[#allocation2 + $0x8a0] sm:$0xff]
    %v405 = vld [vmem:[#allocation2 + $0x8a8] sm:$0xff]
    %v406 = vld [vmem:[#allocation2 + $0x8b0] sm:$0xff]
    %v407 = vld [vmem:[#allocation2 + $0x8b8] sm:$0xff]
    %v408 = vld [vmem:[#allocation2 + $0x8c0] sm:$0xff]
    %v409 = vld [vmem:[#allocation2 + $0x8c8] sm:$0xff]
    %v410 = vld [vmem:[#allocation2 + $0x8d0] sm:$0xff]
    %v411 = vld [vmem:[#allocation2 + $0x8d8] sm:$0xff]
    %v412 = vld [vmem:[#allocation2 + $0x8e0] sm:$0xff]
    %v413 = vld [vmem:[#allocation2 + $0x8e8] sm:$0xff]
    %v414 = vld [vmem:[#allocation2 + $0x8f0] sm:$0xff]
    %v415 = vld [vmem:[#allocation2 + $0x8f8] sm:$0xf]
    %v416 = vld [vmem:[#allocation2 + $0x8fc] sm:$0xff]
    %v417 = vld [vmem:[#allocation2 + $0x904] sm:$0xff]
    %v418 = vld [vmem:[#allocation2 + $0x90c] sm:$0xff]
    %v419 = vld [vmem:[#allocation2 + $0x914] sm:$0xff]
    %v420 = vld [vmem:[#allocation2 + $0x91c] sm:$0xff]
    %v421 = vld [vmem:[#allocation2 + $0x924] sm:$0xff]
    %v422 = vld [vmem:[#allocation2 + $0x92c] sm:$0xff]
    %v423 = vld [vmem:[#allocation2 + $0x934] sm:$0xff]
    %v424 = vld [vmem:[#allocation2 + $0x93c] sm:$0xff]
    %v425 = vld [vmem:[#allocation2 + $0x944] sm:$0xff]
    %v426 = vld [vmem:[#allocation2 + $0x94c] sm:$0xff]
    %v427 = vld [vmem:[#allocation2 + $0x954] sm:$0xff]
    %v428 = vld [vmem:[#allocation2 + $0x95c] sm:$0xf]
    %v429 = vld [vmem:[#allocation2 + $0x960] sm:$0xff]
    %v430 = vld [vmem:[#allocation2 + $0x968] sm:$0xff]
    %v431 = vld [vmem:[#allocation2 + $0x970] sm:$0xff]
    %v432 = vld [vmem:[#allocation2 + $0x978] sm:$0xff]
    %v433 = vld [vmem:[#allocation2 + $0x980] sm:$0xff]
    %v434 = vld [vmem:[#allocation2 + $0x988] sm:$0xff]
    %v435 = vld [vmem:[#allocation2 + $0x990] sm:$0xff]
    %v436 = vld [vmem:[#allocation2 + $0x998] sm:$0xff]
    %v437 = vld [vmem:[#allocation2 + $0x9a0] sm:$0xff]
    %v438 = vld [vmem:[#allocation2 + $0x9a8] sm:$0xff]
    %v439 = vld [vmem:[#allocation2 + $0x9b0] sm:$0xff]
    %v440 = vld [vmem:[#allocation2 + $0x9b8] sm:$0xff]
    %v441 = vld [vmem:[#allocation2 + $0x9c0] sm:$0xf]
    %v442 = vld [vmem:[#allocation2 + $0x9c4] sm:$0xff]
    %v443 = vld [vmem:[#allocation2 + $0x9cc] sm:$0xff]
    %v444 = vld [vmem:[#allocation2 + $0x9d4] sm:$0xff]
    %v445 = vld [vmem:[#allocation2 + $0x9dc] sm:$0xff]
    %v446 = vld [vmem:[#allocation2 + $0x9e4] sm:$0xff]
    %v447 = vld [vmem:[#allocation2 + $0x9ec] sm:$0xff]
    %v448 = vld [vmem:[#allocation2 + $0x9f4] sm:$0xff]
    %v449 = vld [vmem:[#allocation2 + $0x9fc] sm:$0xff]
    %v450 = vld [vmem:[#allocation2 + $0xa04] sm:$0xff]
    %v451 = vld [vmem:[#allocation2 + $0xa0c] sm:$0xff]
    %v452 = vld [vmem:[#allocation2 + $0xa14] sm:$0xff]
    %v453 = vld [vmem:[#allocation2 + $0xa1c] sm:$0xff]
    %v454 = vld [vmem:[#allocation2 + $0xa24] sm:$0xf]
    %v455 = vld [vmem:[#allocation2 + $0xa28] sm:$0xff]
    %v456 = vld [vmem:[#allocation2 + $0xa30] sm:$0xff]
    %v457 = vld [vmem:[#allocation2 + $0xa38] sm:$0xff]
    %v458 = vld [vmem:[#allocation2 + $0xa40] sm:$0xff]
    %v459 = vld [vmem:[#allocation2 + $0xa48] sm:$0xff]
    %v460 = vld [vmem:[#allocation2 + $0xa50] sm:$0xff]
    %v461 = vld [vmem:[#allocation2 + $0xa58] sm:$0xff]
    %v462 = vld [vmem:[#allocation2 + $0xa60] sm:$0xff]
    %v463 = vld [vmem:[#allocation2 + $0xa68] sm:$0xff]
    %v464 = vld [vmem:[#allocation2 + $0xa70] sm:$0xff]
    %v465 = vld [vmem:[#allocation2 + $0xa78] sm:$0xff]
    %v466 = vld [vmem:[#allocation2 + $0xa80] sm:$0xff]
    %v467 = vld [vmem:[#allocation2 + $0xa88] sm:$0xf]
    %v468 = vld [vmem:[#allocation2 + $0xa8c] sm:$0xff]
    %v469 = vld [vmem:[#allocation2 + $0xa94] sm:$0xff]
    %v470 = vld [vmem:[#allocation2 + $0xa9c] sm:$0xff]
    %v471 = vld [vmem:[#allocation2 + $0xaa4] sm:$0xff]
    %v472 = vld [vmem:[#allocation2 + $0xaac] sm:$0xff]
    %v473 = vld [vmem:[#allocation2 + $0xab4] sm:$0xff]
    %v474 = vld [vmem:[#allocation2 + $0xabc] sm:$0xff]
    %v475 = vld [vmem:[#allocation2 + $0xac4] sm:$0xff]
    %v476 = vld [vmem:[#allocation2 + $0xacc] sm:$0xff]
    %v477 = vld [vmem:[#allocation2 + $0xad4] sm:$0xff]
    %v478 = vld [vmem:[#allocation2 + $0xadc] sm:$0xff]
    %v479 = vld [vmem:[#allocation2 + $0xae4] sm:$0xff]
    %v480 = vld [vmem:[#allocation2 + $0xaec] sm:$0xf]
    %v481 = vld [vmem:[#allocation2 + $0xaf0] sm:$0xff]
    %v482 = vld [vmem:[#allocation2 + $0xaf8] sm:$0xff]
    %v483 = vld [vmem:[#allocation2 + $0xb00] sm:$0xff]
    %v484 = vld [vmem:[#allocation2 + $0xb08] sm:$0xff]
    %v485 = vld [vmem:[#allocation2 + $0xb10] sm:$0xff]
    %v486 = vld [vmem:[#allocation2 + $0xb18] sm:$0xff]
    %v487 = vld [vmem:[#allocation2 + $0xb20] sm:$0xff]
    %v488 = vld [vmem:[#allocation2 + $0xb28] sm:$0xff]
    %v489 = vld [vmem:[#allocation2 + $0xb30] sm:$0xff]
    %v490 = vld [vmem:[#allocation2 + $0xb38] sm:$0xff]
    %v491 = vld [vmem:[#allocation2 + $0xb40] sm:$0xff]
    %v492 = vld [vmem:[#allocation2 + $0xb48] sm:$0xff]
    %v493 = vld [vmem:[#allocation2 + $0xb50] sm:$0xf]
    %v494 = vld [vmem:[#allocation2 + $0xb54] sm:$0xff]
    %v495 = vld [vmem:[#allocation2 + $0xb5c] sm:$0xff]
    %v496 = vld [vmem:[#allocation2 + $0xb64] sm:$0xff]
    %v497 = vld [vmem:[#allocation2 + $0xb6c] sm:$0xff]
    %v498 = vld [vmem:[#allocation2 + $0xb74] sm:$0xff]
    %v499 = vld [vmem:[#allocation2 + $0xb7c] sm:$0xff]
    %v500 = vld [vmem:[#allocation2 + $0xb84] sm:$0xff]
    %v501 = vld [vmem:[#allocation2 + $0xb8c] sm:$0xff]
    %v502 = vld [vmem:[#allocation2 + $0xb94] sm:$0xff]
    %v503 = vld [vmem:[#allocation2 + $0xb9c] sm:$0xff]
    %v504 = vld [vmem:[#allocation2 + $0xba4] sm:$0xff]
    %v505 = vld [vmem:[#allocation2 + $0xbac] sm:$0xff]
    %v506 = vld [vmem:[#allocation2 + $0xbb4] sm:$0xf]
    %v507 = vld [vmem:[#allocation2 + $0xbb8] sm:$0xff]
    %v508 = vld [vmem:[#allocation2 + $0xbc0] sm:$0xff]
    %v509 = vld [vmem:[#allocation2 + $0xbc8] sm:$0xff]
    %v510 = vld [vmem:[#allocation2 + $0xbd0] sm:$0xff]
    %v511 = vld [vmem:[#allocation2 + $0xbd8] sm:$0xff]
    %v512 = vld [vmem:[#allocation2 + $0xbe0] sm:$0xff]
    %v513 = vld [vmem:[#allocation2 + $0xbe8] sm:$0xff]
    %v514 = vld [vmem:[#allocation2 + $0xbf0] sm:$0xff]
    %v515 = vld [vmem:[#allocation2 + $0xbf8] sm:$0xff]
    %v516 = vld [vmem:[#allocation2 + $0xc00] sm:$0xff]
    %v517 = vld [vmem:[#allocation2 + $0xc08] sm:$0xff]
    %v518 = vld [vmem:[#allocation2 + $0xc10] sm:$0xff]
    %v519 = vld [vmem:[#allocation2 + $0xc18] sm:$0xf]
    %v520 = vld [vmem:[#allocation2 + $0xc1c] sm:$0xff]
    %v521 = vld [vmem:[#allocation2 + $0xc24] sm:$0xff]
    %v522 = vld [vmem:[#allocation2 + $0xc2c] sm:$0xff]
    %v523 = vld [vmem:[#allocation2 + $0xc34] sm:$0xff]
    %v524 = vld [vmem:[#allocation2 + $0xc3c] sm:$0xff]
    %v525 = vld [vmem:[#allocation2 + $0xc44] sm:$0xff]
    %v526 = vld [vmem:[#allocation2 + $0xc4c] sm:$0xff]
    %v527 = vld [vmem:[#allocation2 + $0xc54] sm:$0xff]
    %v528 = vld [vmem:[#allocation2 + $0xc5c] sm:$0xff]
    %v529 = vld [vmem:[#allocation2 + $0xc64] sm:$0xff]
    %v530 = vld [vmem:[#allocation2 + $0xc6c] sm:$0xff]
    %v531 = vld [vmem:[#allocation2 + $0xc74] sm:$0xff]
    %v532 = vld [vmem:[#allocation2 + $0xc7c] sm:$0xf]
    %v533 = vld [vmem:[#allocation2 + $0xc80] sm:$0xff]
    %v534 = vld [vmem:[#allocation2 + $0xc88] sm:$0xff]
    %v535 = vld [vmem:[#allocation2 + $0xc90] sm:$0xff]
    %v536 = vld [vmem:[#allocation2 + $0xc98] sm:$0xff]
    %v537 = vld [vmem:[#allocation2 + $0xca0] sm:$0xff]
    %v538 = vld [vmem:[#allocation2 + $0xca8] sm:$0xff]
    %v539 = vld [vmem:[#allocation2 + $0xcb0] sm:$0xff]
    %v540 = vld [vmem:[#allocation2 + $0xcb8] sm:$0xff]
    %v541 = vld [vmem:[#allocation2 + $0xcc0] sm:$0xff]
    %v542 = vld [vmem:[#allocation2 + $0xcc8] sm:$0xff]
    %v543 = vld [vmem:[#allocation2 + $0xcd0] sm:$0xff]
    %v544 = vld [vmem:[#allocation2 + $0xcd8] sm:$0xff]
    %v545 = vld [vmem:[#allocation2 + $0xce0] sm:$0xf]
    %v546 = vld [vmem:[#allocation2 + $0xce4] sm:$0xff]
    %v547 = vld [vmem:[#allocation2 + $0xcec] sm:$0xff]
    %v548 = vld [vmem:[#allocation2 + $0xcf4] sm:$0xff]
    %v549 = vld [vmem:[#allocation2 + $0xcfc] sm:$0xff]
    %v550 = vld [vmem:[#allocation2 + $0xd04] sm:$0xff]
    %v551 = vld [vmem:[#allocation2 + $0xd0c] sm:$0xff]
    %v552 = vld [vmem:[#allocation2 + $0xd14] sm:$0xff]
    %v553 = vld [vmem:[#allocation2 + $0xd1c] sm:$0xff]
    %v554 = vld [vmem:[#allocation2 + $0xd24] sm:$0xff]
    %v555 = vld [vmem:[#allocation2 + $0xd2c] sm:$0xff]
    %v556 = vld [vmem:[#allocation2 + $0xd34] sm:$0xff]
    %v557 = vld [vmem:[#allocation2 + $0xd3c] sm:$0xff]
    %v558 = vld [vmem:[#allocation2 + $0xd44] sm:$0xf]
    %v559 = vld [vmem:[#allocation2 + $0xd48] sm:$0xff]
    %v560 = vld [vmem:[#allocation2 + $0xd50] sm:$0xff]
    %v561 = vld [vmem:[#allocation2 + $0xd58] sm:$0xff]
    %v562 = vld [vmem:[#allocation2 + $0xd60] sm:$0xff]
    %v563 = vld [vmem:[#allocation2 + $0xd68] sm:$0xff]
    %v564 = vld [vmem:[#allocation2 + $0xd70] sm:$0xff]
    %v565 = vld [vmem:[#allocation2 + $0xd78] sm:$0xff]
    %v566 = vld [vmem:[#allocation2 + $0xd80] sm:$0xff]
    %v567 = vld [vmem:[#allocation2 + $0xd88] sm:$0xff]
    %v568 = vld [vmem:[#allocation2 + $0xd90] sm:$0xff]
    %v569 = vld [vmem:[#allocation2 + $0xd98] sm:$0xff]
    %v570 = vld [vmem:[#allocation2 + $0xda0] sm:$0xff]
    %v571 = vld [vmem:[#allocation2 + $0xda8] sm:$0xf]
    %v572 = vld [vmem:[#allocation2 + $0xdac] sm:$0xff]
    %v573 = vld [vmem:[#allocation2 + $0xdb4] sm:$0xff]
    %v574 = vld [vmem:[#allocation2 + $0xdbc] sm:$0xff]
    %v575 = vld [vmem:[#allocation2 + $0xdc4] sm:$0xff]
    %v576 = vld [vmem:[#allocation2 + $0xdcc] sm:$0xff]
    %v577 = vld [vmem:[#allocation2 + $0xdd4] sm:$0xff]
    %v578 = vld [vmem:[#allocation2 + $0xddc] sm:$0xff]
    %v579 = vld [vmem:[#allocation2 + $0xde4] sm:$0xff]
    %v580 = vld [vmem:[#allocation2 + $0xdec] sm:$0xff]
    %v581 = vld [vmem:[#allocation2 + $0xdf4] sm:$0xff]
    %v582 = vld [vmem:[#allocation2 + $0xdfc] sm:$0xff]
    %v583 = vld [vmem:[#allocation2 + $0xe04] sm:$0xff]
    %v584 = vld [vmem:[#allocation2 + $0xe0c] sm:$0xf]
    %v585 = vld [vmem:[#allocation2 + $0xe10] sm:$0xff]
    %v586 = vld [vmem:[#allocation2 + $0xe18] sm:$0xff]
    %v587 = vld [vmem:[#allocation2 + $0xe20] sm:$0xff]
    %v588 = vld [vmem:[#allocation2 + $0xe28] sm:$0xff]
    %v589 = vld [vmem:[#allocation2 + $0xe30] sm:$0xff]
    %v590 = vld [vmem:[#allocation2 + $0xe38] sm:$0xff]
    %v591 = vld [vmem:[#allocation2 + $0xe40] sm:$0xff]
    %v592 = vld [vmem:[#allocation2 + $0xe48] sm:$0xff]
    %v593 = vld [vmem:[#allocation2 + $0xe50] sm:$0xff]
    %v594 = vld [vmem:[#allocation2 + $0xe58] sm:$0xff]
    %v595 = vld [vmem:[#allocation2 + $0xe60] sm:$0xff]
    %v596 = vld [vmem:[#allocation2 + $0xe68] sm:$0xff]
    %v597 = vld [vmem:[#allocation2 + $0xe70] sm:$0xf]
    %v598 = vld [vmem:[#allocation2 + $0xe74] sm:$0xff]
    %v599 = vld [vmem:[#allocation2 + $0xe7c] sm:$0xff]
    %v600 = vld [vmem:[#allocation2 + $0xe84] sm:$0xff]
    %v601 = vld [vmem:[#allocation2 + $0xe8c] sm:$0xff]
    %v602 = vld [vmem:[#allocation2 + $0xe94] sm:$0xff]
    %v603 = vld [vmem:[#allocation2 + $0xe9c] sm:$0xff]
    %v604 = vld [vmem:[#allocation2 + $0xea4] sm:$0xff]
    %v605 = vld [vmem:[#allocation2 + $0xeac] sm:$0xff]
    %v606 = vld [vmem:[#allocation2 + $0xeb4] sm:$0xff]
    %v607 = vld [vmem:[#allocation2 + $0xebc] sm:$0xff]
    %v608 = vld [vmem:[#allocation2 + $0xec4] sm:$0xff]
    %v609 = vld [vmem:[#allocation2 + $0xecc] sm:$0xff]
    %v610 = vld [vmem:[#allocation2 + $0xed4] sm:$0xf]
    %v611 = vld [vmem:[#allocation2 + $0xed8] sm:$0xff]
    %v612 = vld [vmem:[#allocation2 + $0xee0] sm:$0xff]
    %v613 = vld [vmem:[#allocation2 + $0xee8] sm:$0xff]
    %v614 = vld [vmem:[#allocation2 + $0xef0] sm:$0xff]
    %v615 = vld [vmem:[#allocation2 + $0xef8] sm:$0xff]
    %v616 = vld [vmem:[#allocation2 + $0xf00] sm:$0xff]
    %v617 = vld [vmem:[#allocation2 + $0xf08] sm:$0xff]
    %v618 = vld [vmem:[#allocation2 + $0xf10] sm:$0xff]
    %v619 = vld [vmem:[#allocation2 + $0xf18] sm:$0xff]
    %v620 = vld [vmem:[#allocation2 + $0xf20] sm:$0xff]
    %v621 = vld [vmem:[#allocation2 + $0xf28] sm:$0xff]
    %v622 = vld [vmem:[#allocation2 + $0xf30] sm:$0xff]
    %v623 = vld [vmem:[#allocation2 + $0xf38] sm:$0xf]
    %v624 = vld [vmem:[#allocation2 + $0xf3c] sm:$0xff]
    %v625 = vld [vmem:[#allocation2 + $0xf44] sm:$0xff]
    %v626 = vld [vmem:[#allocation2 + $0xf4c] sm:$0xff]
    %v627 = vld [vmem:[#allocation2 + $0xf54] sm:$0xff]
    %v628 = vld [vmem:[#allocation2 + $0xf5c] sm:$0xff]
    %v629 = vld [vmem:[#allocation2 + $0xf64] sm:$0xff]
    %v630 = vld [vmem:[#allocation2 + $0xf6c] sm:$0xff]
    %v631 = vld [vmem:[#allocation2 + $0xf74] sm:$0xff]
    %v632 = vld [vmem:[#allocation2 + $0xf7c] sm:$0xff]
    %v633 = vld [vmem:[#allocation2 + $0xf84] sm:$0xff]
    %v634 = vld [vmem:[#allocation2 + $0xf8c] sm:$0xff]
    %v635 = vld [vmem:[#allocation2 + $0xf94] sm:$0xff]
    %v636 = vld [vmem:[#allocation2 + $0xf9c] sm:$0xf]
    %v637 = vld [vmem:[#allocation2 + $0xfa0] sm:$0xff]
    %v638 = vld [vmem:[#allocation2 + $0xfa8] sm:$0xff]
    %v639 = vld [vmem:[#allocation2 + $0xfb0] sm:$0xff]
    %v640 = vld [vmem:[#allocation2 + $0xfb8] sm:$0xff]
    %v641 = vld [vmem:[#allocation2 + $0xfc0] sm:$0xff]
    %v642 = vld [vmem:[#allocation2 + $0xfc8] sm:$0xff]
    %v643 = vld [vmem:[#allocation2 + $0xfd0] sm:$0xff]
    %v644 = vld [vmem:[#allocation2 + $0xfd8] sm:$0xff]
    %v645 = vld [vmem:[#allocation2 + $0xfe0] sm:$0xff]
    %v646 = vld [vmem:[#allocation2 + $0xfe8] sm:$0xff]
    %v647 = vld [vmem:[#allocation2 + $0xff0] sm:$0xff]
    %v648 = vld [vmem:[#allocation2 + $0xff8] sm:$0xff]
    %v649 = vld [vmem:[#allocation2 + $0x1000] sm:$0xf]
    %v650 = vld [vmem:[#allocation2 + $0x1004] sm:$0xff]
    %v651 = vld [vmem:[#allocation2 + $0x100c] sm:$0xff]
    %v652 = vld [vmem:[#allocation2 + $0x1014] sm:$0xff]
    %v653 = vld [vmem:[#allocation2 + $0x101c] sm:$0xff]
    %v654 = vld [vmem:[#allocation2 + $0x1024] sm:$0xff]
    %v655 = vld [vmem:[#allocation2 + $0x102c] sm:$0xff]
    %v656 = vld [vmem:[#allocation2 + $0x1034] sm:$0xff]
    %v657 = vld [vmem:[#allocation2 + $0x103c] sm:$0xff]
    %v658 = vld [vmem:[#allocation2 + $0x1044] sm:$0xff]
    %v659 = vld [vmem:[#allocation2 + $0x104c] sm:$0xff]
    %v660 = vld [vmem:[#allocation2 + $0x1054] sm:$0xff]
    %v661 = vld [vmem:[#allocation2 + $0x105c] sm:$0xff]
    %v662 = vld [vmem:[#allocation2 + $0x1064] sm:$0xf]
    %v663 = vld [vmem:[#allocation2 + $0x1068] sm:$0xff]
    %v664 = vld [vmem:[#allocation2 + $0x1070] sm:$0xff]
    %v665 = vld [vmem:[#allocation2 + $0x1078] sm:$0xff]
    %v666 = vld [vmem:[#allocation2 + $0x1080] sm:$0xff]
    %v667 = vld [vmem:[#allocation2 + $0x1088] sm:$0xff]
    %v668 = vld [vmem:[#allocation2 + $0x1090] sm:$0xff]
    %v669 = vld [vmem:[#allocation2 + $0x1098] sm:$0xff]
    %v670 = vld [vmem:[#allocation2 + $0x10a0] sm:$0xff]
    %v671 = vld [vmem:[#allocation2 + $0x10a8] sm:$0xff]
    %v672 = vld [vmem:[#allocation2 + $0x10b0] sm:$0xff]
    %v673 = vld [vmem:[#allocation2 + $0x10b8] sm:$0xff]
    %v674 = vld [vmem:[#allocation2 + $0x10c0] sm:$0xff]
    %v675 = vld [vmem:[#allocation2 + $0x10c8] sm:$0xf]
    %v676 = vld [vmem:[#allocation2 + $0x10cc] sm:$0xff]
    %v677 = vld [vmem:[#allocation2 + $0x10d4] sm:$0xff]
    %v678 = vld [vmem:[#allocation2 + $0x10dc] sm:$0xff]
    %v679 = vld [vmem:[#allocation2 + $0x10e4] sm:$0xff]
    %v680 = vld [vmem:[#allocation2 + $0x10ec] sm:$0xff]
    %v681 = vld [vmem:[#allocation2 + $0x10f4] sm:$0xff]
    %v682 = vld [vmem:[#allocation2 + $0x10fc] sm:$0xff]
    %v683 = vld [vmem:[#allocation2 + $0x1104] sm:$0xff]
    %v684 = vld [vmem:[#allocation2 + $0x110c] sm:$0xff]
    %v685 = vld [vmem:[#allocation2 + $0x1114] sm:$0xff]
    %v686 = vld [vmem:[#allocation2 + $0x111c] sm:$0xff]
    %v687 = vld [vmem:[#allocation2 + $0x1124] sm:$0xff]
    %v688 = vld [vmem:[#allocation2 + $0x112c] sm:$0xf]
    %v689 = vld [vmem:[#allocation2 + $0x1130] sm:$0xff]
    %v690 = vld [vmem:[#allocation2 + $0x1138] sm:$0xff]
    %v691 = vld [vmem:[#allocation2 + $0x1140] sm:$0xff]
    %v692 = vld [vmem:[#allocation2 + $0x1148] sm:$0xff]
    %v693 = vld [vmem:[#allocation2 + $0x1150] sm:$0xff]
    %v694 = vld [vmem:[#allocation2 + $0x1158] sm:$0xff]
    %v695 = vld [vmem:[#allocation2 + $0x1160] sm:$0xff]
    %v696 = vld [vmem:[#allocation2 + $0x1168] sm:$0xff]
    %v697 = vld [vmem:[#allocation2 + $0x1170] sm:$0xff]
    %v698 = vld [vmem:[#allocation2 + $0x1178] sm:$0xff]
    %v699 = vld [vmem:[#allocation2 + $0x1180] sm:$0xff]
    %v700 = vld [vmem:[#allocation2 + $0x1188] sm:$0xff]
    %v701 = vld [vmem:[#allocation2 + $0x1190] sm:$0xf]
    %v702 = vld [vmem:[#allocation2 + $0x1194] sm:$0xff]
    %v703 = vld [vmem:[#allocation2 + $0x119c] sm:$0xff]
    %v704 = vld [vmem:[#allocation2 + $0x11a4] sm:$0xff]
    %v705 = vld [vmem:[#allocation2 + $0x11ac] sm:$0xff]
    %v706 = vld [vmem:[#allocation2 + $0x11b4] sm:$0xff]
    %v707 = vld [vmem:[#allocation2 + $0x11bc] sm:$0xff]
    %v708 = vld [vmem:[#allocation2 + $0x11c4] sm:$0xff]
    %v709 = vld [vmem:[#allocation2 + $0x11cc] sm:$0xff]
    %v710 = vld [vmem:[#allocation2 + $0x11d4] sm:$0xff]
    %v711 = vld [vmem:[#allocation2 + $0x11dc] sm:$0xff]
    %v712 = vld [vmem:[#allocation2 + $0x11e4] sm:$0xff]
    %v713 = vld [vmem:[#allocation2 + $0x11ec] sm:$0xff]
    %v714 = vld [vmem:[#allocation2 + $0x11f4] sm:$0xf]
    %v715 = vld [vmem:[#allocation2 + $0x11f8] sm:$0xff]
    %v716 = vld [vmem:[#allocation2 + $0x1200] sm:$0xff]
    %v717 = vld [vmem:[#allocation2 + $0x1208] sm:$0xff]
    %v718 = vld [vmem:[#allocation2 + $0x1210] sm:$0xff]
    %v719 = vld [vmem:[#allocation2 + $0x1218] sm:$0xff]
    %v720 = vld [vmem:[#allocation2 + $0x1220] sm:$0xff]
    %v721 = vld [vmem:[#allocation2 + $0x1228] sm:$0xff]
    %v722 = vld [vmem:[#allocation2 + $0x1230] sm:$0xff]
    %v723 = vld [vmem:[#allocation2 + $0x1238] sm:$0xff]
    %v724 = vld [vmem:[#allocation2 + $0x1240] sm:$0xff]
    %v725 = vld [vmem:[#allocation2 + $0x1248] sm:$0xff]
    %v726 = vld [vmem:[#allocation2 + $0x1250] sm:$0xff]
    %v727 = vld [vmem:[#allocation2 + $0x1258] sm:$0xf]
    %v728 = vld [vmem:[#allocation2 + $0x125c] sm:$0xff]
    %v729 = vld [vmem:[#allocation2 + $0x1264] sm:$0xff]
    %v730 = vld [vmem:[#allocation2 + $0x126c] sm:$0xff]
    %v731 = vld [vmem:[#allocation2 + $0x1274] sm:$0xff]
    %v732 = vld [vmem:[#allocation2 + $0x127c] sm:$0xff]
    %v733 = vld [vmem:[#allocation2 + $0x1284] sm:$0xff]
    %v734 = vld [vmem:[#allocation2 + $0x128c] sm:$0xff]
    %v735 = vld [vmem:[#allocation2 + $0x1294] sm:$0xff]
    %v736 = vld [vmem:[#allocation2 + $0x129c] sm:$0xff]
    %v737 = vld [vmem:[#allocation2 + $0x12a4] sm:$0xff]
    %v738 = vld [vmem:[#allocation2 + $0x12ac] sm:$0xff]
    %v739 = vld [vmem:[#allocation2 + $0x12b4] sm:$0xff]
    %v740 = vld [vmem:[#allocation2 + $0x12bc] sm:$0xf]
    %v741 = vld [vmem:[#allocation2 + $0x12c0] sm:$0xff]
    %v742 = vld [vmem:[#allocation2 + $0x12c8] sm:$0xff]
    %v743 = vld [vmem:[#allocation2 + $0x12d0] sm:$0xff]
    %v744 = vld [vmem:[#allocation2 + $0x12d8] sm:$0xff]
    %v745 = vld [vmem:[#allocation2 + $0x12e0] sm:$0xff]
    %v746 = vld [vmem:[#allocation2 + $0x12e8] sm:$0xff]
    %v747 = vld [vmem:[#allocation2 + $0x12f0] sm:$0xff]
    %v748 = vld [vmem:[#allocation2 + $0x12f8] sm:$0xff]
    %v749 = vld [vmem:[#allocation2 + $0x1300] sm:$0xff]
    %v750 = vld [vmem:[#allocation2 + $0x1308] sm:$0xff]
    %v751 = vld [vmem:[#allocation2 + $0x1310] sm:$0xff]
    %v752 = vld [vmem:[#allocation2 + $0x1318] sm:$0xff]
    %v753 = vld [vmem:[#allocation2 + $0x1320] sm:$0xf]
    %v754 = vld [vmem:[#allocation2 + $0x1324] sm:$0xff]
    %v755 = vld [vmem:[#allocation2 + $0x132c] sm:$0xff]
    %v756 = vld [vmem:[#allocation2 + $0x1334] sm:$0xff]
    %v757 = vld [vmem:[#allocation2 + $0x133c] sm:$0xff]
    %v758 = vld [vmem:[#allocation2 + $0x1344] sm:$0xff]
    %v759 = vld [vmem:[#allocation2 + $0x134c] sm:$0xff]
    %v760 = vld [vmem:[#allocation2 + $0x1354] sm:$0xff]
    %v761 = vld [vmem:[#allocation2 + $0x135c] sm:$0xff]
    %v762 = vld [vmem:[#allocation2 + $0x1364] sm:$0xff]
    %v763 = vld [vmem:[#allocation2 + $0x136c] sm:$0xff]
    %v764 = vld [vmem:[#allocation2 + $0x1374] sm:$0xff]
    %v765 = vld [vmem:[#allocation2 + $0x137c] sm:$0xff]
    %v766 = vld [vmem:[#allocation2 + $0x1384] sm:$0xf]
    %v767 = vld [vmem:[#allocation2 + $0x1388] sm:$0xff]
    %v768 = vld [vmem:[#allocation2 + $0x1390] sm:$0xff]
    %v769 = vld [vmem:[#allocation2 + $0x1398] sm:$0xff]
    %v770 = vld [vmem:[#allocation2 + $0x13a0] sm:$0xff]
    %v771 = vld [vmem:[#allocation2 + $0x13a8] sm:$0xff]
    %v772 = vld [vmem:[#allocation2 + $0x13b0] sm:$0xff]
    %v773 = vld [vmem:[#allocation2 + $0x13b8] sm:$0xff]
    %v774 = vld [vmem:[#allocation2 + $0x13c0] sm:$0xff]
    %v775 = vld [vmem:[#allocation2 + $0x13c8] sm:$0xff]
    %v776 = vld [vmem:[#allocation2 + $0x13d0] sm:$0xff]
    %v777 = vld [vmem:[#allocation2 + $0x13d8] sm:$0xff]
    %v778 = vld [vmem:[#allocation2 + $0x13e0] sm:$0xff]
    %v779 = vld [vmem:[#allocation2 + $0x13e8] sm:$0xf]
    %v780 = vld [vmem:[#allocation2 + $0x13ec] sm:$0xff]
    %v781 = vld [vmem:[#allocation2 + $0x13f4] sm:$0xff]
    %v782 = vld [vmem:[#allocation2 + $0x13fc] sm:$0xff]
    %v783 = vld [vmem:[#allocation2 + $0x1404] sm:$0xff]
    %v784 = vld [vmem:[#allocation2 + $0x140c] sm:$0xff]
    %v785 = vld [vmem:[#allocation2 + $0x1414] sm:$0xff]
    %v786 = vld [vmem:[#allocation2 + $0x141c] sm:$0xff]
    %v787 = vld [vmem:[#allocation2 + $0x1424] sm:$0xff]
    %v788 = vld [vmem:[#allocation2 + $0x142c] sm:$0xff]
    %v789 = vld [vmem:[#allocation2 + $0x1434] sm:$0xff]
    %v790 = vld [vmem:[#allocation2 + $0x143c] sm:$0xff]
    %v791 = vld [vmem:[#allocation2 + $0x1444] sm:$0xff]
    %v792 = vld [vmem:[#allocation2 + $0x144c] sm:$0xf]
    %v793 = vld [vmem:[#allocation2 + $0x1450] sm:$0xff]
    %v794 = vld [vmem:[#allocation2 + $0x1458] sm:$0xff]
    %v795 = vld [vmem:[#allocation2 + $0x1460] sm:$0xff]
    %v796 = vld [vmem:[#allocation2 + $0x1468] sm:$0xff]
    %v797 = vld [vmem:[#allocation2 + $0x1470] sm:$0xff]
    %v798 = vld [vmem:[#allocation2 + $0x1478] sm:$0xff]
    %v799 = vld [vmem:[#allocation2 + $0x1480] sm:$0xff]
    %v800 = vld [vmem:[#allocation2 + $0x1488] sm:$0xff]
    %v801 = vld [vmem:[#allocation2 + $0x1490] sm:$0xff]
    %v802 = vld [vmem:[#allocation2 + $0x1498] sm:$0xff]
    %v803 = vld [vmem:[#allocation2 + $0x14a0] sm:$0xff]
    %v804 = vld [vmem:[#allocation2 + $0x14a8] sm:$0xff]
    %v805 = vld [vmem:[#allocation2 + $0x14b0] sm:$0xf]
    %v806 = vld [vmem:[#allocation2 + $0x14b4] sm:$0xff]
    %v807 = vld [vmem:[#allocation2 + $0x14bc] sm:$0xff]
    %v808 = vld [vmem:[#allocation2 + $0x14c4] sm:$0xff]
    %v809 = vld [vmem:[#allocation2 + $0x14cc] sm:$0xff]
    %v810 = vld [vmem:[#allocation2 + $0x14d4] sm:$0xff]
    %v811 = vld [vmem:[#allocation2 + $0x14dc] sm:$0xff]
    %v812 = vld [vmem:[#allocation2 + $0x14e4] sm:$0xff]
    %v813 = vld [vmem:[#allocation2 + $0x14ec] sm:$0xff]
    %v814 = vld [vmem:[#allocation2 + $0x14f4] sm:$0xff]
    %v815 = vld [vmem:[#allocation2 + $0x14fc] sm:$0xff]
    %v816 = vld [vmem:[#allocation2 + $0x1504] sm:$0xff]
    %v817 = vld [vmem:[#allocation2 + $0x150c] sm:$0xff]
    %v818 = vld [vmem:[#allocation2 + $0x1514] sm:$0xf]
    %v819 = vld [vmem:[#allocation2 + $0x1518] sm:$0xff]
    %v820 = vld [vmem:[#allocation2 + $0x1520] sm:$0xff]
    %v821 = vld [vmem:[#allocation2 + $0x1528] sm:$0xff]
    %v822 = vld [vmem:[#allocation2 + $0x1530] sm:$0xff]
    %v823 = vld [vmem:[#allocation2 + $0x1538] sm:$0xff]
    %v824 = vld [vmem:[#allocation2 + $0x1540] sm:$0xff]
    %v825 = vld [vmem:[#allocation2 + $0x1548] sm:$0xff]
    %v826 = vld [vmem:[#allocation2 + $0x1550] sm:$0xff]
    %v827 = vld [vmem:[#allocation2 + $0x1558] sm:$0xff]
    %v828 = vld [vmem:[#allocation2 + $0x1560] sm:$0xff]
    %v829 = vld [vmem:[#allocation2 + $0x1568] sm:$0xff]
    %v830 = vld [vmem:[#allocation2 + $0x1570] sm:$0xff]
    %v831 = vld [vmem:[#allocation2 + $0x1578] sm:$0xf]
    %v832 = vld [vmem:[#allocation2 + $0x157c] sm:$0xff]
    %v833 = vld [vmem:[#allocation2 + $0x1584] sm:$0xff]
    %v834 = vld [vmem:[#allocation2 + $0x158c] sm:$0xff]
    %v835 = vld [vmem:[#allocation2 + $0x1594] sm:$0xff]
    %v836 = vld [vmem:[#allocation2 + $0x159c] sm:$0xff]
    %v837 = vld [vmem:[#allocation2 + $0x15a4] sm:$0xff]
    %v838 = vld [vmem:[#allocation2 + $0x15ac] sm:$0xff]
    %v839 = vld [vmem:[#allocation2 + $0x15b4] sm:$0xff]
    %v840 = vld [vmem:[#allocation2 + $0x15bc] sm:$0xff]
    %v841 = vld [vmem:[#allocation2 + $0x15c4] sm:$0xff]
    %v842 = vld [vmem:[#allocation2 + $0x15cc] sm:$0xff]
    %v843 = vld [vmem:[#allocation2 + $0x15d4] sm:$0xff]
    %v844 = vld [vmem:[#allocation2 + $0x15dc] sm:$0xf]
    %v845 = vld [vmem:[#allocation2 + $0x15e0] sm:$0xff]
    %v846 = vld [vmem:[#allocation2 + $0x15e8] sm:$0xff]
    %v847 = vld [vmem:[#allocation2 + $0x15f0] sm:$0xff]
    %v848 = vld [vmem:[#allocation2 + $0x15f8] sm:$0xff]
    %v849 = vld [vmem:[#allocation2 + $0x1600] sm:$0xff]
    %v850 = vld [vmem:[#allocation2 + $0x1608] sm:$0xff]
    %v851 = vld [vmem:[#allocation2 + $0x1610] sm:$0xff]
    %v852 = vld [vmem:[#allocation2 + $0x1618] sm:$0xff]
    %v853 = vld [vmem:[#allocation2 + $0x1620] sm:$0xff]
    %v854 = vld [vmem:[#allocation2 + $0x1628] sm:$0xff]
    %v855 = vld [vmem:[#allocation2 + $0x1630] sm:$0xff]
    %v856 = vld [vmem:[#allocation2 + $0x1638] sm:$0xff]
    %v857 = vld [vmem:[#allocation2 + $0x1640] sm:$0xf]
    %v858 = vld [vmem:[#allocation2 + $0x1644] sm:$0xff]
    %v859 = vld [vmem:[#allocation2 + $0x164c] sm:$0xff]
    %v860 = vld [vmem:[#allocation2 + $0x1654] sm:$0xff]
    %v861 = vld [vmem:[#allocation2 + $0x165c] sm:$0xff]
    %v862 = vld [vmem:[#allocation2 + $0x1664] sm:$0xff]
    %v863 = vld [vmem:[#allocation2 + $0x166c] sm:$0xff]
    %v864 = vld [vmem:[#allocation2 + $0x1674] sm:$0xff]
    %v865 = vld [vmem:[#allocation2 + $0x167c] sm:$0xff]
    %v866 = vld [vmem:[#allocation2 + $0x1684] sm:$0xff]
    %v867 = vld [vmem:[#allocation2 + $0x168c] sm:$0xff]
    %v868 = vld [vmem:[#allocation2 + $0x1694] sm:$0xff]
    %v869 = vld [vmem:[#allocation2 + $0x169c] sm:$0xff]
    %v870 = vld [vmem:[#allocation2 + $0x16a4] sm:$0xf]
    %v871 = vld [vmem:[#allocation2 + $0x16a8] sm:$0xff]
    %v872 = vld [vmem:[#allocation2 + $0x16b0] sm:$0xff]
    %v873 = vld [vmem:[#allocation2 + $0x16b8] sm:$0xff]
    %v874 = vld [vmem:[#allocation2 + $0x16c0] sm:$0xff]
    %v875 = vld [vmem:[#allocation2 + $0x16c8] sm:$0xff]
    %v876 = vld [vmem:[#allocation2 + $0x16d0] sm:$0xff]
    %v877 = vld [vmem:[#allocation2 + $0x16d8] sm:$0xff]
    %v878 = vld [vmem:[#allocation2 + $0x16e0] sm:$0xff]
    %v879 = vld [vmem:[#allocation2 + $0x16e8] sm:$0xff]
    %v880 = vld [vmem:[#allocation2 + $0x16f0] sm:$0xff]
    %v881 = vld [vmem:[#allocation2 + $0x16f8] sm:$0xff]
    %v882 = vld [vmem:[#allocation2 + $0x1700] sm:$0xff]
    %v883 = vld [vmem:[#allocation2 + $0x1708] sm:$0xf]
    %v884 = vld [vmem:[#allocation2 + $0x170c] sm:$0xff]
    %v885 = vld [vmem:[#allocation2 + $0x1714] sm:$0xff]
    %v886 = vld [vmem:[#allocation2 + $0x171c] sm:$0xff]
    %v887 = vld [vmem:[#allocation2 + $0x1724] sm:$0xff]
    %v888 = vld [vmem:[#allocation2 + $0x172c] sm:$0xff]
    %v889 = vld [vmem:[#allocation2 + $0x1734] sm:$0xff]
    %v890 = vld [vmem:[#allocation2 + $0x173c] sm:$0xff]
    %v891 = vld [vmem:[#allocation2 + $0x1744] sm:$0xff]
    %v892 = vld [vmem:[#allocation2 + $0x174c] sm:$0xff]
    %v893 = vld [vmem:[#allocation2 + $0x1754] sm:$0xff]
    %v894 = vld [vmem:[#allocation2 + $0x175c] sm:$0xff]
    %v895 = vld [vmem:[#allocation2 + $0x1764] sm:$0xff]
    %v896 = vld [vmem:[#allocation2 + $0x176c] sm:$0xf]
    %v897 = vld [vmem:[#allocation2 + $0x1770] sm:$0xff]
    %v898 = vld [vmem:[#allocation2 + $0x1778] sm:$0xff]
    %v899 = vld [vmem:[#allocation2 + $0x1780] sm:$0xff]
    %v900 = vld [vmem:[#allocation2 + $0x1788] sm:$0xff]
    %v901 = vld [vmem:[#allocation2 + $0x1790] sm:$0xff]
    %v902 = vld [vmem:[#allocation2 + $0x1798] sm:$0xff]
    %v903 = vld [vmem:[#allocation2 + $0x17a0] sm:$0xff]
    %v904 = vld [vmem:[#allocation2 + $0x17a8] sm:$0xff]
    %v905 = vld [vmem:[#allocation2 + $0x17b0] sm:$0xff]
    %v906 = vld [vmem:[#allocation2 + $0x17b8] sm:$0xff]
    %v907 = vld [vmem:[#allocation2 + $0x17c0] sm:$0xff]
    %v908 = vld [vmem:[#allocation2 + $0x17c8] sm:$0xff]
    %v909 = vld [vmem:[#allocation2 + $0x17d0] sm:$0xf]
    %v910 = vld [vmem:[#allocation2 + $0x17d4] sm:$0xff]
    %v911 = vld [vmem:[#allocation2 + $0x17dc] sm:$0xff]
    %v912 = vld [vmem:[#allocation2 + $0x17e4] sm:$0xff]
    %v913 = vld [vmem:[#allocation2 + $0x17ec] sm:$0xff]
    %v914 = vld [vmem:[#allocation2 + $0x17f4] sm:$0xff]
    %v915 = vld [vmem:[#allocation2 + $0x17fc] sm:$0xff]
    %v916 = vld [vmem:[#allocation2 + $0x1804] sm:$0xff]
    %v917 = vld [vmem:[#allocation2 + $0x180c] sm:$0xff]
    %v918 = vld [vmem:[#allocation2 + $0x1814] sm:$0xff]
    %v919 = vld [vmem:[#allocation2 + $0x181c] sm:$0xff]
    %v920 = vld [vmem:[#allocation2 + $0x1824] sm:$0xff]
    %v921 = vld [vmem:[#allocation2 + $0x182c] sm:$0xff]
    %v922 = vld [vmem:[#allocation2 + $0x1834] sm:$0xf]
    %v923 = vld [vmem:[#allocation2 + $0x1838] sm:$0xff]
    %v924 = vld [vmem:[#allocation2 + $0x1840] sm:$0xff]
    %v925 = vld [vmem:[#allocation2 + $0x1848] sm:$0xff]
    %v926 = vld [vmem:[#allocation2 + $0x1850] sm:$0xff]
    %v927 = vld [vmem:[#allocation2 + $0x1858] sm:$0xff]
    %v928 = vld [vmem:[#allocation2 + $0x1860] sm:$0xff]
    %v929 = vld [vmem:[#allocation2 + $0x1868] sm:$0xff]
    %v930 = vld [vmem:[#allocation2 + $0x1870] sm:$0xff]
    %v931 = vld [vmem:[#allocation2 + $0x1878] sm:$0xff]
    %v932 = vld [vmem:[#allocation2 + $0x1880] sm:$0xff]
    %v933 = vld [vmem:[#allocation2 + $0x1888] sm:$0xff]
    %v934 = vld [vmem:[#allocation2 + $0x1890] sm:$0xff]
    %v935 = vld [vmem:[#allocation2 + $0x1898] sm:$0xf]
    %v936 = vld [vmem:[#allocation2 + $0x189c] sm:$0xff]
    %v937 = vld [vmem:[#allocation2 + $0x18a4] sm:$0xff]
    %v938 = vld [vmem:[#allocation2 + $0x18ac] sm:$0xff]
    %v939 = vld [vmem:[#allocation2 + $0x18b4] sm:$0xff]
    %v940 = vld [vmem:[#allocation2 + $0x18bc] sm:$0xff]
    %v941 = vld [vmem:[#allocation2 + $0x18c4] sm:$0xff]
    %v942 = vld [vmem:[#allocation2 + $0x18cc] sm:$0xff]
    %v943 = vld [vmem:[#allocation2 + $0x18d4] sm:$0xff]
    %v944 = vld [vmem:[#allocation2 + $0x18dc] sm:$0xff]
    %v945 = vld [vmem:[#allocation2 + $0x18e4] sm:$0xff]
    %v946 = vld [vmem:[#allocation2 + $0x18ec] sm:$0xff]
    %v947 = vld [vmem:[#allocation2 + $0x18f4] sm:$0xff]
    %v948 = vld [vmem:[#allocation2 + $0x18fc] sm:$0xf]
    %v949 = vld [vmem:[#allocation2 + $0x1900] sm:$0xff]
    %v950 = vld [vmem:[#allocation2 + $0x1908] sm:$0xff]
    %v951 = vld [vmem:[#allocation2 + $0x1910] sm:$0xff]
    %v952 = vld [vmem:[#allocation2 + $0x1918] sm:$0xff]
    %v953 = vld [vmem:[#allocation2 + $0x1920] sm:$0xff]
    %v954 = vld [vmem:[#allocation2 + $0x1928] sm:$0xff]
    %v955 = vld [vmem:[#allocation2 + $0x1930] sm:$0xff]
    %v956 = vld [vmem:[#allocation2 + $0x1938] sm:$0xff]
    %v957 = vld [vmem:[#allocation2 + $0x1940] sm:$0xff]
    %v958 = vld [vmem:[#allocation2 + $0x1948] sm:$0xff]
    %v959 = vld [vmem:[#allocation2 + $0x1950] sm:$0xff]
    %v960 = vld [vmem:[#allocation2 + $0x1958] sm:$0xff]
    %v961 = vld [vmem:[#allocation2 + $0x1960] sm:$0xf]
    %v962 = vld [vmem:[#allocation2 + $0x1964] sm:$0xff]
    %v963 = vld [vmem:[#allocation2 + $0x196c] sm:$0xff]
    %v964 = vld [vmem:[#allocation2 + $0x1974] sm:$0xff]
    %v965 = vld [vmem:[#allocation2 + $0x197c] sm:$0xff]
    %v966 = vld [vmem:[#allocation2 + $0x1984] sm:$0xff]
    %v967 = vld [vmem:[#allocation2 + $0x198c] sm:$0xff]
    %v968 = vld [vmem:[#allocation2 + $0x1994] sm:$0xff]
    %v969 = vld [vmem:[#allocation2 + $0x199c] sm:$0xff]
    %v970 = vld [vmem:[#allocation2 + $0x19a4] sm:$0xff]
    %v971 = vld [vmem:[#allocation2 + $0x19ac] sm:$0xff]
    %v972 = vld [vmem:[#allocation2 + $0x19b4] sm:$0xff]
    %v973 = vld [vmem:[#allocation2 + $0x19bc] sm:$0xff]
    %v974 = vld [vmem:[#allocation2 + $0x19c4] sm:$0xf]
    %v975 = vld [vmem:[#allocation2 + $0x19c8] sm:$0xff]
    %v976 = vld [vmem:[#allocation2 + $0x19d0] sm:$0xff]
    %v977 = vld [vmem:[#allocation2 + $0x19d8] sm:$0xff]
    %v978 = vld [vmem:[#allocation2 + $0x19e0] sm:$0xff]
    %v979 = vld [vmem:[#allocation2 + $0x19e8] sm:$0xff]
    %v980 = vld [vmem:[#allocation2 + $0x19f0] sm:$0xff]
    %v981 = vld [vmem:[#allocation2 + $0x19f8] sm:$0xff]
    %v982 = vld [vmem:[#allocation2 + $0x1a00] sm:$0xff]
    %v983 = vld [vmem:[#allocation2 + $0x1a08] sm:$0xff]
    %v984 = vld [vmem:[#allocation2 + $0x1a10] sm:$0xff]
    %v985 = vld [vmem:[#allocation2 + $0x1a18] sm:$0xff]
    %v986 = vld [vmem:[#allocation2 + $0x1a20] sm:$0xff]
    %v987 = vld [vmem:[#allocation2 + $0x1a28] sm:$0xf]
    %v988 = vld [vmem:[#allocation2 + $0x1a2c] sm:$0xff]
    %v989 = vld [vmem:[#allocation2 + $0x1a34] sm:$0xff]
    %v990 = vld [vmem:[#allocation2 + $0x1a3c] sm:$0xff]
    %v991 = vld [vmem:[#allocation2 + $0x1a44] sm:$0xff]
    %v992 = vld [vmem:[#allocation2 + $0x1a4c] sm:$0xff]
    %v993 = vld [vmem:[#allocation2 + $0x1a54] sm:$0xff]
    %v994 = vld [vmem:[#allocation2 + $0x1a5c] sm:$0xff]
    %v995 = vld [vmem:[#allocation2 + $0x1a64] sm:$0xff]
    %v996 = vld [vmem:[#allocation2 + $0x1a6c] sm:$0xff]
    %v997 = vld [vmem:[#allocation2 + $0x1a74] sm:$0xff]
    %v998 = vld [vmem:[#allocation2 + $0x1a7c] sm:$0xff]
    %v999 = vld [vmem:[#allocation2 + $0x1a84] sm:$0xff]
    %v1000 = vld [vmem:[#allocation2 + $0x1a8c] sm:$0xf]
    %v1001 = vld [vmem:[#allocation2 + $0x1a90] sm:$0xff]
    %v1002 = vld [vmem:[#allocation2 + $0x1a98] sm:$0xff]
    %v1003 = vld [vmem:[#allocation2 + $0x1aa0] sm:$0xff]
    %v1004 = vld [vmem:[#allocation2 + $0x1aa8] sm:$0xff]
    %v1005 = vld [vmem:[#allocation2 + $0x1ab0] sm:$0xff]
    %v1006 = vld [vmem:[#allocation2 + $0x1ab8] sm:$0xff]
    %v1007 = vld [vmem:[#allocation2 + $0x1ac0] sm:$0xff]
    %v1008 = vld [vmem:[#allocation2 + $0x1ac8] sm:$0xff]
    %v1009 = vld [vmem:[#allocation2 + $0x1ad0] sm:$0xff]
    %v1010 = vld [vmem:[#allocation2 + $0x1ad8] sm:$0xff]
    %v1011 = vld [vmem:[#allocation2 + $0x1ae0] sm:$0xff]
    %v1012 = vld [vmem:[#allocation2 + $0x1ae8] sm:$0xff]
    %v1013 = vld [vmem:[#allocation2 + $0x1af0] sm:$0xf]
    %v1014 = vld [vmem:[#allocation2 + $0x1af4] sm:$0xff]
    %v1015 = vld [vmem:[#allocation2 + $0x1afc] sm:$0xff]
    %v1016 = vld [vmem:[#allocation2 + $0x1b04] sm:$0xff]
    %v1017 = vld [vmem:[#allocation2 + $0x1b0c] sm:$0xff]
    %v1018 = vld [vmem:[#allocation2 + $0x1b14] sm:$0xff]
    %v1019 = vld [vmem:[#allocation2 + $0x1b1c] sm:$0xff]
    %v1020 = vld [vmem:[#allocation2 + $0x1b24] sm:$0xff]
    %v1021 = vld [vmem:[#allocation2 + $0x1b2c] sm:$0xff]
    %v1022 = vld [vmem:[#allocation2 + $0x1b34] sm:$0xff]
    %v1023 = vld [vmem:[#allocation2 + $0x1b3c] sm:$0xff]
    %v1024 = vld [vmem:[#allocation2 + $0x1b44] sm:$0xff]
    %v1025 = vld [vmem:[#allocation2 + $0x1b4c] sm:$0xff]
    %v1026 = vld [vmem:[#allocation2 + $0x1b54] sm:$0xf]
    %v1027 = vld [vmem:[#allocation2 + $0x1b58] sm:$0xff]
    %v1028 = vld [vmem:[#allocation2 + $0x1b60] sm:$0xff]
    %v1029 = vld [vmem:[#allocation2 + $0x1b68] sm:$0xff]
    %v1030 = vld [vmem:[#allocation2 + $0x1b70] sm:$0xff]
    %v1031 = vld [vmem:[#allocation2 + $0x1b78] sm:$0xff]
    %v1032 = vld [vmem:[#allocation2 + $0x1b80] sm:$0xff]
    %v1033 = vld [vmem:[#allocation2 + $0x1b88] sm:$0xff]
    %v1034 = vld [vmem:[#allocation2 + $0x1b90] sm:$0xff]
    %v1035 = vld [vmem:[#allocation2 + $0x1b98] sm:$0xff]
    %v1036 = vld [vmem:[#allocation2 + $0x1ba0] sm:$0xff]
    %v1037 = vld [vmem:[#allocation2 + $0x1ba8] sm:$0xff]
    %v1038 = vld [vmem:[#allocation2 + $0x1bb0] sm:$0xff]
    %v1039 = vld [vmem:[#allocation2 + $0x1bb8] sm:$0xf]
    %v1040 = vld [vmem:[#allocation2 + $0x1bbc] sm:$0xff]
    %v1041 = vld [vmem:[#allocation2 + $0x1bc4] sm:$0xff]
    %v1042 = vld [vmem:[#allocation2 + $0x1bcc] sm:$0xff]
    %v1043 = vld [vmem:[#allocation2 + $0x1bd4] sm:$0xff]
    %v1044 = vld [vmem:[#allocation2 + $0x1bdc] sm:$0xff]
    %v1045 = vld [vmem:[#allocation2 + $0x1be4] sm:$0xff]
    %v1046 = vld [vmem:[#allocation2 + $0x1bec] sm:$0xff]
    %v1047 = vld [vmem:[#allocation2 + $0x1bf4] sm:$0xff]
    %v1048 = vld [vmem:[#allocation2 + $0x1bfc] sm:$0xff]
    %v1049 = vld [vmem:[#allocation2 + $0x1c04] sm:$0xff]
    %v1050 = vld [vmem:[#allocation2 + $0x1c0c] sm:$0xff]
    %v1051 = vld [vmem:[#allocation2 + $0x1c14] sm:$0xff]
    %v1052 = vld [vmem:[#allocation2 + $0x1c1c] sm:$0xf]
    %v1053 = vld [vmem:[#allocation2 + $0x1c20] sm:$0xff]
    %v1054 = vld [vmem:[#allocation2 + $0x1c28] sm:$0xff]
    %v1055 = vld [vmem:[#allocation2 + $0x1c30] sm:$0xff]
    %v1056 = vld [vmem:[#allocation2 + $0x1c38] sm:$0xff]
    %v1057 = vld [vmem:[#allocation2 + $0x1c40] sm:$0xff]
    %v1058 = vld [vmem:[#allocation2 + $0x1c48] sm:$0xff]
    %v1059 = vld [vmem:[#allocation2 + $0x1c50] sm:$0xff]
    %v1060 = vld [vmem:[#allocation2 + $0x1c58] sm:$0xff]
    %v1061 = vld [vmem:[#allocation2 + $0x1c60] sm:$0xff]
    %v1062 = vld [vmem:[#allocation2 + $0x1c68] sm:$0xff]
    %v1063 = vld [vmem:[#allocation2 + $0x1c70] sm:$0xff]
    %v1064 = vld [vmem:[#allocation2 + $0x1c78] sm:$0xff]
    %v1065 = vld [vmem:[#allocation2 + $0x1c80] sm:$0xf]
    %v1066 = vld [vmem:[#allocation2 + $0x1c84] sm:$0xff]
    %v1067 = vld [vmem:[#allocation2 + $0x1c8c] sm:$0xff]
    %v1068 = vld [vmem:[#allocation2 + $0x1c94] sm:$0xff]
    %v1069 = vld [vmem:[#allocation2 + $0x1c9c] sm:$0xff]
    %v1070 = vld [vmem:[#allocation2 + $0x1ca4] sm:$0xff]
    %v1071 = vld [vmem:[#allocation2 + $0x1cac] sm:$0xff]
    %v1072 = vld [vmem:[#allocation2 + $0x1cb4] sm:$0xff]
    %v1073 = vld [vmem:[#allocation2 + $0x1cbc] sm:$0xff]
    %v1074 = vld [vmem:[#allocation2 + $0x1cc4] sm:$0xff]
    %v1075 = vld [vmem:[#allocation2 + $0x1ccc] sm:$0xff]
    %v1076 = vld [vmem:[#allocation2 + $0x1cd4] sm:$0xff]
    %v1077 = vld [vmem:[#allocation2 + $0x1cdc] sm:$0xff]
    %v1078 = vld [vmem:[#allocation2 + $0x1ce4] sm:$0xf]
    %v1079 = vld [vmem:[#allocation2 + $0x1ce8] sm:$0xff]
    %v1080 = vld [vmem:[#allocation2 + $0x1cf0] sm:$0xff]
    %v1081 = vld [vmem:[#allocation2 + $0x1cf8] sm:$0xff]
    %v1082 = vld [vmem:[#allocation2 + $0x1d00] sm:$0xff]
    %v1083 = vld [vmem:[#allocation2 + $0x1d08] sm:$0xff]
    %v1084 = vld [vmem:[#allocation2 + $0x1d10] sm:$0xff]
    %v1085 = vld [vmem:[#allocation2 + $0x1d18] sm:$0xff]
    %v1086 = vld [vmem:[#allocation2 + $0x1d20] sm:$0xff]
    %v1087 = vld [vmem:[#allocation2 + $0x1d28] sm:$0xff]
    %v1088 = vld [vmem:[#allocation2 + $0x1d30] sm:$0xff]
    %v1089 = vld [vmem:[#allocation2 + $0x1d38] sm:$0xff]
    %v1090 = vld [vmem:[#allocation2 + $0x1d40] sm:$0xff]
    %v1091 = vld [vmem:[#allocation2 + $0x1d48] sm:$0xf]
    %v1092 = vld [vmem:[#allocation2 + $0x1d4c] sm:$0xff]
    %v1093 = vld [vmem:[#allocation2 + $0x1d54] sm:$0xff]
    %v1094 = vld [vmem:[#allocation2 + $0x1d5c] sm:$0xff]
    %v1095 = vld [vmem:[#allocation2 + $0x1d64] sm:$0xff]
    %v1096 = vld [vmem:[#allocation2 + $0x1d6c] sm:$0xff]
    %v1097 = vld [vmem:[#allocation2 + $0x1d74] sm:$0xff]
    %v1098 = vld [vmem:[#allocation2 + $0x1d7c] sm:$0xff]
    %v1099 = vld [vmem:[#allocation2 + $0x1d84] sm:$0xff]
    %v1100 = vld [vmem:[#allocation2 + $0x1d8c] sm:$0xff]
    %v1101 = vld [vmem:[#allocation2 + $0x1d94] sm:$0xff]
    %v1102 = vld [vmem:[#allocation2 + $0x1d9c] sm:$0xff]
    %v1103 = vld [vmem:[#allocation2 + $0x1da4] sm:$0xff]
    %v1104 = vld [vmem:[#allocation2 + $0x1dac] sm:$0xf]
    %v1105 = vld [vmem:[#allocation2 + $0x1db0] sm:$0xff]
    %v1106 = vld [vmem:[#allocation2 + $0x1db8] sm:$0xff]
    %v1107 = vld [vmem:[#allocation2 + $0x1dc0] sm:$0xff]
    %v1108 = vld [vmem:[#allocation2 + $0x1dc8] sm:$0xff]
    %v1109 = vld [vmem:[#allocation2 + $0x1dd0] sm:$0xff]
    %v1110 = vld [vmem:[#allocation2 + $0x1dd8] sm:$0xff]
    %v1111 = vld [vmem:[#allocation2 + $0x1de0] sm:$0xff]
    %v1112 = vld [vmem:[#allocation2 + $0x1de8] sm:$0xff]
    %v1113 = vld [vmem:[#allocation2 + $0x1df0] sm:$0xff]
    %v1114 = vld [vmem:[#allocation2 + $0x1df8] sm:$0xff]
    %v1115 = vld [vmem:[#allocation2 + $0x1e00] sm:$0xff]
    %v1116 = vld [vmem:[#allocation2 + $0x1e08] sm:$0xff]
    %v1117 = vld [vmem:[#allocation2 + $0x1e10] sm:$0xf]
    %v1118 = vld [vmem:[#allocation2 + $0x1e14] sm:$0xff]
    %v1119 = vld [vmem:[#allocation2 + $0x1e1c] sm:$0xff]
    %v1120 = vld [vmem:[#allocation2 + $0x1e24] sm:$0xff]
    %v1121 = vld [vmem:[#allocation2 + $0x1e2c] sm:$0xff]
    %v1122 = vld [vmem:[#allocation2 + $0x1e34] sm:$0xff]
    %v1123 = vld [vmem:[#allocation2 + $0x1e3c] sm:$0xff]
    %v1124 = vld [vmem:[#allocation2 + $0x1e44] sm:$0xff]
    %v1125 = vld [vmem:[#allocation2 + $0x1e4c] sm:$0xff]
    %v1126 = vld [vmem:[#allocation2 + $0x1e54] sm:$0xff]
    %v1127 = vld [vmem:[#allocation2 + $0x1e5c] sm:$0xff]
    %v1128 = vld [vmem:[#allocation2 + $0x1e64] sm:$0xff]
    %v1129 = vld [vmem:[#allocation2 + $0x1e6c] sm:$0xff]
    %v1130 = vld [vmem:[#allocation2 + $0x1e74] sm:$0xf]
    %v1131 = vld [vmem:[#allocation2 + $0x1e78] sm:$0xff]
    %v1132 = vld [vmem:[#allocation2 + $0x1e80] sm:$0xff]
    %v1133 = vld [vmem:[#allocation2 + $0x1e88] sm:$0xff]
    %v1134 = vld [vmem:[#allocation2 + $0x1e90] sm:$0xff]
    %v1135 = vld [vmem:[#allocation2 + $0x1e98] sm:$0xff]
    %v1136 = vld [vmem:[#allocation2 + $0x1ea0] sm:$0xff]
    %v1137 = vld [vmem:[#allocation2 + $0x1ea8] sm:$0xff]
    %v1138 = vld [vmem:[#allocation2 + $0x1eb0] sm:$0xff]
    %v1139 = vld [vmem:[#allocation2 + $0x1eb8] sm:$0xff]
    %v1140 = vld [vmem:[#allocation2 + $0x1ec0] sm:$0xff]
    %v1141 = vld [vmem:[#allocation2 + $0x1ec8] sm:$0xff]
    %v1142 = vld [vmem:[#allocation2 + $0x1ed0] sm:$0xff]
    %v1143 = vld [vmem:[#allocation2 + $0x1ed8] sm:$0xf]
    %v1144 = vld [vmem:[#allocation2 + $0x1edc] sm:$0xff]
    %v1145 = vld [vmem:[#allocation2 + $0x1ee4] sm:$0xff]
    %v1146 = vld [vmem:[#allocation2 + $0x1eec] sm:$0xff]
    %v1147 = vld [vmem:[#allocation2 + $0x1ef4] sm:$0xff]
    %v1148 = vld [vmem:[#allocation2 + $0x1efc] sm:$0xff]
    %v1149 = vld [vmem:[#allocation2 + $0x1f04] sm:$0xff]
    %v1150 = vld [vmem:[#allocation2 + $0x1f0c] sm:$0xff]
    %v1151 = vld [vmem:[#allocation2 + $0x1f14] sm:$0xff]
    %v1152 = vld [vmem:[#allocation2 + $0x1f1c] sm:$0xff]
    %v1153 = vld [vmem:[#allocation2 + $0x1f24] sm:$0xff]
    %v1154 = vld [vmem:[#allocation2 + $0x1f2c] sm:$0xff]
    %v1155 = vld [vmem:[#allocation2 + $0x1f34] sm:$0xff]
    %v1156 = vld [vmem:[#allocation2 + $0x1f3c] sm:$0xf]
    %v1157 = vld [vmem:[#allocation2 + $0x1f40] sm:$0xff]
    %v1158 = vld [vmem:[#allocation2 + $0x1f48] sm:$0xff]
    %v1159 = vld [vmem:[#allocation2 + $0x1f50] sm:$0xff]
    %v1160 = vld [vmem:[#allocation2 + $0x1f58] sm:$0xff]
    %v1161 = vld [vmem:[#allocation2 + $0x1f60] sm:$0xff]
    %v1162 = vld [vmem:[#allocation2 + $0x1f68] sm:$0xff]
    %v1163 = vld [vmem:[#allocation2 + $0x1f70] sm:$0xff]
    %v1164 = vld [vmem:[#allocation2 + $0x1f78] sm:$0xff]
    %v1165 = vld [vmem:[#allocation2 + $0x1f80] sm:$0xff]
    %v1166 = vld [vmem:[#allocation2 + $0x1f88] sm:$0xff]
    %v1167 = vld [vmem:[#allocation2 + $0x1f90] sm:$0xff]
    %v1168 = vld [vmem:[#allocation2 + $0x1f98] sm:$0xff]
    %v1169 = vld [vmem:[#allocation2 + $0x1fa0] sm:$0xf]
    %v1170 = vld [vmem:[#allocation2 + $0x1fa4] sm:$0xff]
    %v1171 = vld [vmem:[#allocation2 + $0x1fac] sm:$0xff]
    %v1172 = vld [vmem:[#allocation2 + $0x1fb4] sm:$0xff]
    %v1173 = vld [vmem:[#allocation2 + $0x1fbc] sm:$0xff]
    %v1174 = vld [vmem:[#allocation2 + $0x1fc4] sm:$0xff]
    %v1175 = vld [vmem:[#allocation2 + $0x1fcc] sm:$0xff]
    %v1176 = vld [vmem:[#allocation2 + $0x1fd4] sm:$0xff]
    %v1177 = vld [vmem:[#allocation2 + $0x1fdc] sm:$0xff]
    %v1178 = vld [vmem:[#allocation2 + $0x1fe4] sm:$0xff]
    %v1179 = vld [vmem:[#allocation2 + $0x1fec] sm:$0xff]
    %v1180 = vld [vmem:[#allocation2 + $0x1ff4] sm:$0xff]
    %v1181 = vld [vmem:[#allocation2 + $0x1ffc] sm:$0xff]
    %v1182 = vld [vmem:[#allocation2 + $0x2004] sm:$0xf]
    %v1183 = vld [vmem:[#allocation2 + $0x2008] sm:$0xff]
    %v1184 = vld [vmem:[#allocation2 + $0x2010] sm:$0xff]
    %v1185 = vld [vmem:[#allocation2 + $0x2018] sm:$0xff]
    %v1186 = vld [vmem:[#allocation2 + $0x2020] sm:$0xff]
    %v1187 = vld [vmem:[#allocation2 + $0x2028] sm:$0xff]
    %v1188 = vld [vmem:[#allocation2 + $0x2030] sm:$0xff]
    %v1189 = vld [vmem:[#allocation2 + $0x2038] sm:$0xff]
    %v1190 = vld [vmem:[#allocation2 + $0x2040] sm:$0xff]
    %v1191 = vld [vmem:[#allocation2 + $0x2048] sm:$0xff]
    %v1192 = vld [vmem:[#allocation2 + $0x2050] sm:$0xff]
    %v1193 = vld [vmem:[#allocation2 + $0x2058] sm:$0xff]
    %v1194 = vld [vmem:[#allocation2 + $0x2060] sm:$0xff]
    %v1195 = vld [vmem:[#allocation2 + $0x2068] sm:$0xf]
    %v1196 = vld [vmem:[#allocation2 + $0x206c] sm:$0xff]
    %v1197 = vld [vmem:[#allocation2 + $0x2074] sm:$0xff]
    %v1198 = vld [vmem:[#allocation2 + $0x207c] sm:$0xff]
    %v1199 = vld [vmem:[#allocation2 + $0x2084] sm:$0xff]
    %v1200 = vld [vmem:[#allocation2 + $0x208c] sm:$0xff]
    %v1201 = vld [vmem:[#allocation2 + $0x2094] sm:$0xff]
    %v1202 = vld [vmem:[#allocation2 + $0x209c] sm:$0xff]
    %v1203 = vld [vmem:[#allocation2 + $0x20a4] sm:$0xff]
    %v1204 = vld [vmem:[#allocation2 + $0x20ac] sm:$0xff]
    %v1205 = vld [vmem:[#allocation2 + $0x20b4] sm:$0xff]
    %v1206 = vld [vmem:[#allocation2 + $0x20bc] sm:$0xff]
    %v1207 = vld [vmem:[#allocation2 + $0x20c4] sm:$0xff]
    %v1208 = vld [vmem:[#allocation2 + $0x20cc] sm:$0xf]
    %v1209 = vld [vmem:[#allocation2 + $0x20d0] sm:$0xff]
    %v1210 = vld [vmem:[#allocation2 + $0x20d8] sm:$0xff]
    %v1211 = vld [vmem:[#allocation2 + $0x20e0] sm:$0xff]
    %v1212 = vld [vmem:[#allocation2 + $0x20e8] sm:$0xff]
    %v1213 = vld [vmem:[#allocation2 + $0x20f0] sm:$0xff]
    %v1214 = vld [vmem:[#allocation2 + $0x20f8] sm:$0xff]
    %v1215 = vld [vmem:[#allocation2 + $0x2100] sm:$0xff]
    %v1216 = vld [vmem:[#allocation2 + $0x2108] sm:$0xff]
    %v1217 = vld [vmem:[#allocation2 + $0x2110] sm:$0xff]
    %v1218 = vld [vmem:[#allocation2 + $0x2118] sm:$0xff]
    %v1219 = vld [vmem:[#allocation2 + $0x2120] sm:$0xff]
    %v1220 = vld [vmem:[#allocation2 + $0x2128] sm:$0xff]
    %v1221 = vld [vmem:[#allocation2 + $0x2130] sm:$0xf]
    %v1222 = vld [vmem:[#allocation2 + $0x2134] sm:$0xff]
    %v1223 = vld [vmem:[#allocation2 + $0x213c] sm:$0xff]
    %v1224 = vld [vmem:[#allocation2 + $0x2144] sm:$0xff]
    %v1225 = vld [vmem:[#allocation2 + $0x214c] sm:$0xff]
    %v1226 = vld [vmem:[#allocation2 + $0x2154] sm:$0xff]
    %v1227 = vld [vmem:[#allocation2 + $0x215c] sm:$0xff]
    %v1228 = vld [vmem:[#allocation2 + $0x2164] sm:$0xff]
    %v1229 = vld [vmem:[#allocation2 + $0x216c] sm:$0xff]
    %v1230 = vld [vmem:[#allocation2 + $0x2174] sm:$0xff]
    %v1231 = vld [vmem:[#allocation2 + $0x217c] sm:$0xff]
    %v1232 = vld [vmem:[#allocation2 + $0x2184] sm:$0xff]
    %v1233 = vld [vmem:[#allocation2 + $0x218c] sm:$0xff]
    %v1234 = vld [vmem:[#allocation2 + $0x2194] sm:$0xf]
    %v1235 = vld [vmem:[#allocation2 + $0x2198] sm:$0xff]
    %v1236 = vld [vmem:[#allocation2 + $0x21a0] sm:$0xff]
    %v1237 = vld [vmem:[#allocation2 + $0x21a8] sm:$0xff]
    %v1238 = vld [vmem:[#allocation2 + $0x21b0] sm:$0xff]
    %v1239 = vld [vmem:[#allocation2 + $0x21b8] sm:$0xff]
    %v1240 = vld [vmem:[#allocation2 + $0x21c0] sm:$0xff]
    %v1241 = vld [vmem:[#allocation2 + $0x21c8] sm:$0xff]
    %v1242 = vld [vmem:[#allocation2 + $0x21d0] sm:$0xff]
    %v1243 = vld [vmem:[#allocation2 + $0x21d8] sm:$0xff]
    %v1244 = vld [vmem:[#allocation2 + $0x21e0] sm:$0xff]
    %v1245 = vld [vmem:[#allocation2 + $0x21e8] sm:$0xff]
    %v1246 = vld [vmem:[#allocation2 + $0x21f0] sm:$0xff]
    %v1247 = vld [vmem:[#allocation2 + $0x21f8] sm:$0xf]
    %v1248 = vld [vmem:[#allocation2 + $0x21fc] sm:$0xff]
    %v1249 = vld [vmem:[#allocation2 + $0x2204] sm:$0xff]
    %v1250 = vld [vmem:[#allocation2 + $0x220c] sm:$0xff]
    %v1251 = vld [vmem:[#allocation2 + $0x2214] sm:$0xff]
    %v1252 = vld [vmem:[#allocation2 + $0x221c] sm:$0xff]
    %v1253 = vld [vmem:[#allocation2 + $0x2224] sm:$0xff]
    %v1254 = vld [vmem:[#allocation2 + $0x222c] sm:$0xff]
    %v1255 = vld [vmem:[#allocation2 + $0x2234] sm:$0xff]
    %v1256 = vld [vmem:[#allocation2 + $0x223c] sm:$0xff]
    %v1257 = vld [vmem:[#allocation2 + $0x2244] sm:$0xff]
    %v1258 = vld [vmem:[#allocation2 + $0x224c] sm:$0xff]
    %v1259 = vld [vmem:[#allocation2 + $0x2254] sm:$0xff]
    %v1260 = vld [vmem:[#allocation2 + $0x225c] sm:$0xf]
    %v1261 = vld [vmem:[#allocation2 + $0x2260] sm:$0xff]
    %v1262 = vld [vmem:[#allocation2 + $0x2268] sm:$0xff]
    %v1263 = vld [vmem:[#allocation2 + $0x2270] sm:$0xff]
    %v1264 = vld [vmem:[#allocation2 + $0x2278] sm:$0xff]
    %v1265 = vld [vmem:[#allocation2 + $0x2280] sm:$0xff]
    %v1266 = vld [vmem:[#allocation2 + $0x2288] sm:$0xff]
    %v1267 = vld [vmem:[#allocation2 + $0x2290] sm:$0xff]
    %v1268 = vld [vmem:[#allocation2 + $0x2298] sm:$0xff]
    %v1269 = vld [vmem:[#allocation2 + $0x22a0] sm:$0xff]
    %v1270 = vld [vmem:[#allocation2 + $0x22a8] sm:$0xff]
    %v1271 = vld [vmem:[#allocation2 + $0x22b0] sm:$0xff]
    %v1272 = vld [vmem:[#allocation2 + $0x22b8] sm:$0xff]
    %v1273 = vld [vmem:[#allocation2 + $0x22c0] sm:$0xf]
    %v1274 = vld [vmem:[#allocation2 + $0x22c4] sm:$0xff]
    %v1275 = vld [vmem:[#allocation2 + $0x22cc] sm:$0xff]
    %v1276 = vld [vmem:[#allocation2 + $0x22d4] sm:$0xff]
    %v1277 = vld [vmem:[#allocation2 + $0x22dc] sm:$0xff]
    %v1278 = vld [vmem:[#allocation2 + $0x22e4] sm:$0xff]
    %v1279 = vld [vmem:[#allocation2 + $0x22ec] sm:$0xff]
    %v1280 = vld [vmem:[#allocation2 + $0x22f4] sm:$0xff]
    %v1281 = vld [vmem:[#allocation2 + $0x22fc] sm:$0xff]
    %v1282 = vld [vmem:[#allocation2 + $0x2304] sm:$0xff]
    %v1283 = vld [vmem:[#allocation2 + $0x230c] sm:$0xff]
    %v1284 = vld [vmem:[#allocation2 + $0x2314] sm:$0xff]
    %v1285 = vld [vmem:[#allocation2 + $0x231c] sm:$0xff]
    %v1286 = vld [vmem:[#allocation2 + $0x2324] sm:$0xf]
    %v1287 = vld [vmem:[#allocation2 + $0x2328] sm:$0xff]
    %v1288 = vld [vmem:[#allocation2 + $0x2330] sm:$0xff]
    %v1289 = vld [vmem:[#allocation2 + $0x2338] sm:$0xff]
    %v1290 = vld [vmem:[#allocation2 + $0x2340] sm:$0xff]
    %v1291 = vld [vmem:[#allocation2 + $0x2348] sm:$0xff]
    %v1292 = vld [vmem:[#allocation2 + $0x2350] sm:$0xff]
    %v1293 = vld [vmem:[#allocation2 + $0x2358] sm:$0xff]
    %v1294 = vld [vmem:[#allocation2 + $0x2360] sm:$0xff]
    %v1295 = vld [vmem:[#allocation2 + $0x2368] sm:$0xff]
    %v1296 = vld [vmem:[#allocation2 + $0x2370] sm:$0xff]
    %v1297 = vld [vmem:[#allocation2 + $0x2378] sm:$0xff]
    %v1298 = vld [vmem:[#allocation2 + $0x2380] sm:$0xff]
    %v1299 = vld [vmem:[#allocation2 + $0x2388] sm:$0xf]
    %v1300 = vld [vmem:[#allocation2 + $0x238c] sm:$0xff]
    %v1301 = vld [vmem:[#allocation2 + $0x2394] sm:$0xff]
    %v1302 = vld [vmem:[#allocation2 + $0x239c] sm:$0xff]
    %v1303 = vld [vmem:[#allocation2 + $0x23a4] sm:$0xff]
    %v1304 = vld [vmem:[#allocation2 + $0x23ac] sm:$0xff]
    %v1305 = vld [vmem:[#allocation2 + $0x23b4] sm:$0xff]
    %v1306 = vld [vmem:[#allocation2 + $0x23bc] sm:$0xff]
    %v1307 = vld [vmem:[#allocation2 + $0x23c4] sm:$0xff]
    %v1308 = vld [vmem:[#allocation2 + $0x23cc] sm:$0xff]
    %v1309 = vld [vmem:[#allocation2 + $0x23d4] sm:$0xff]
    %v1310 = vld [vmem:[#allocation2 + $0x23dc] sm:$0xff]
    %v1311 = vld [vmem:[#allocation2 + $0x23e4] sm:$0xff]
    %v1312 = vld [vmem:[#allocation2 + $0x23ec] sm:$0xf]
    %v1313 = vld [vmem:[#allocation2 + $0x23f0] sm:$0xff]
    %v1314 = vld [vmem:[#allocation2 + $0x23f8] sm:$0xff]
    %v1315 = vld [vmem:[#allocation2 + $0x2400] sm:$0xff]
    %v1316 = vld [vmem:[#allocation2 + $0x2408] sm:$0xff]
    %v1317 = vld [vmem:[#allocation2 + $0x2410] sm:$0xff]
    %v1318 = vld [vmem:[#allocation2 + $0x2418] sm:$0xff]
    %v1319 = vld [vmem:[#allocation2 + $0x2420] sm:$0xff]
    %v1320 = vld [vmem:[#allocation2 + $0x2428] sm:$0xff]
    %v1321 = vld [vmem:[#allocation2 + $0x2430] sm:$0xff]
    %v1322 = vld [vmem:[#allocation2 + $0x2438] sm:$0xff]
    %v1323 = vld [vmem:[#allocation2 + $0x2440] sm:$0xff]
    %v1324 = vld [vmem:[#allocation2 + $0x2448] sm:$0xff]
    %v1325 = vld [vmem:[#allocation2 + $0x2450] sm:$0xf]
    %v1326 = vld [vmem:[#allocation2 + $0x2454] sm:$0xff]
    %v1327 = vld [vmem:[#allocation2 + $0x245c] sm:$0xff]
    %v1328 = vld [vmem:[#allocation2 + $0x2464] sm:$0xff]
    %v1329 = vld [vmem:[#allocation2 + $0x246c] sm:$0xff]
    %v1330 = vld [vmem:[#allocation2 + $0x2474] sm:$0xff]
    %v1331 = vld [vmem:[#allocation2 + $0x247c] sm:$0xff]
    %v1332 = vld [vmem:[#allocation2 + $0x2484] sm:$0xff]
    %v1333 = vld [vmem:[#allocation2 + $0x248c] sm:$0xff]
    %v1334 = vld [vmem:[#allocation2 + $0x2494] sm:$0xff]
    %v1335 = vld [vmem:[#allocation2 + $0x249c] sm:$0xff]
    %v1336 = vld [vmem:[#allocation2 + $0x24a4] sm:$0xff]
    %v1337 = vld [vmem:[#allocation2 + $0x24ac] sm:$0xff]
    %v1338 = vld [vmem:[#allocation2 + $0x24b4] sm:$0xf]
    %v1339 = vld [vmem:[#allocation2 + $0x24b8] sm:$0xff]
    %v1340 = vld [vmem:[#allocation2 + $0x24c0] sm:$0xff]
    %v1341 = vld [vmem:[#allocation2 + $0x24c8] sm:$0xff]
    %v1342 = vld [vmem:[#allocation2 + $0x24d0] sm:$0xff]
    %v1343 = vld [vmem:[#allocation2 + $0x24d8] sm:$0xff]
    %v1344 = vld [vmem:[#allocation2 + $0x24e0] sm:$0xff]
    %v1345 = vld [vmem:[#allocation2 + $0x24e8] sm:$0xff]
    %v1346 = vld [vmem:[#allocation2 + $0x24f0] sm:$0xff]
    %v1347 = vld [vmem:[#allocation2 + $0x24f8] sm:$0xff]
    %v1348 = vld [vmem:[#allocation2 + $0x2500] sm:$0xff]
    %v1349 = vld [vmem:[#allocation2 + $0x2508] sm:$0xff]
    %v1350 = vld [vmem:[#allocation2 + $0x2510] sm:$0xff]
    %v1351 = vld [vmem:[#allocation2 + $0x2518] sm:$0xf]
    %v1352 = vld [vmem:[#allocation2 + $0x251c] sm:$0xff]
    %v1353 = vld [vmem:[#allocation2 + $0x2524] sm:$0xff]
    %v1354 = vld [vmem:[#allocation2 + $0x252c] sm:$0xff]
    %v1355 = vld [vmem:[#allocation2 + $0x2534] sm:$0xff]
    %v1356 = vld [vmem:[#allocation2 + $0x253c] sm:$0xff]
    %v1357 = vld [vmem:[#allocation2 + $0x2544] sm:$0xff]
    %v1358 = vld [vmem:[#allocation2 + $0x254c] sm:$0xff]
    %v1359 = vld [vmem:[#allocation2 + $0x2554] sm:$0xff]
    %v1360 = vld [vmem:[#allocation2 + $0x255c] sm:$0xff]
    %v1361 = vld [vmem:[#allocation2 + $0x2564] sm:$0xff]
    %v1362 = vld [vmem:[#allocation2 + $0x256c] sm:$0xff]
    %v1363 = vld [vmem:[#allocation2 + $0x2574] sm:$0xff]
    %v1364 = vld [vmem:[#allocation2 + $0x257c] sm:$0xf]
    %v1365 = vld [vmem:[#allocation2 + $0x2580] sm:$0xff]
    %v1366 = vld [vmem:[#allocation2 + $0x2588] sm:$0xff]
    %v1367 = vld [vmem:[#allocation2 + $0x2590] sm:$0xff]
    %v1368 = vld [vmem:[#allocation2 + $0x2598] sm:$0xff]
    %v1369 = vld [vmem:[#allocation2 + $0x25a0] sm:$0xff]
    %v1370 = vld [vmem:[#allocation2 + $0x25a8] sm:$0xff]
    %v1371 = vld [vmem:[#allocation2 + $0x25b0] sm:$0xff]
    %v1372 = vld [vmem:[#allocation2 + $0x25b8] sm:$0xff]
    %v1373 = vld [vmem:[#allocation2 + $0x25c0] sm:$0xff]
    %v1374 = vld [vmem:[#allocation2 + $0x25c8] sm:$0xff]
    %v1375 = vld [vmem:[#allocation2 + $0x25d0] sm:$0xff]
    %v1376 = vld [vmem:[#allocation2 + $0x25d8] sm:$0xff]
    %v1377 = vld [vmem:[#allocation2 + $0x25e0] sm:$0xf]
    %v1378 = vld [vmem:[#allocation2 + $0x25e4] sm:$0xff]
    %v1379 = vld [vmem:[#allocation2 + $0x25ec] sm:$0xff]
    %v1380 = vld [vmem:[#allocation2 + $0x25f4] sm:$0xff]
    %v1381 = vld [vmem:[#allocation2 + $0x25fc] sm:$0xff]
    %v1382 = vld [vmem:[#allocation2 + $0x2604] sm:$0xff]
    %v1383 = vld [vmem:[#allocation2 + $0x260c] sm:$0xff]
    %v1384 = vld [vmem:[#allocation2 + $0x2614] sm:$0xff]
    %v1385 = vld [vmem:[#allocation2 + $0x261c] sm:$0xff]
    %v1386 = vld [vmem:[#allocation2 + $0x2624] sm:$0xff]
    %v1387 = vld [vmem:[#allocation2 + $0x262c] sm:$0xff]
    %v1388 = vld [vmem:[#allocation2 + $0x2634] sm:$0xff]
    %v1389 = vld [vmem:[#allocation2 + $0x263c] sm:$0xff]
    %v1390 = vld [vmem:[#allocation2 + $0x2644] sm:$0xf]
    %v1391 = vld [vmem:[#allocation4] sm:$0xff]
    %v1392 = vld [vmem:[#allocation4 + $0x8] sm:$0xff]
    %v1393 = vld [vmem:[#allocation4 + $0x10] sm:$0xff]
    %v1394 = vld [vmem:[#allocation4 + $0x18] sm:$0x1]
    %v1399 = vlaneseq
    %v1400 = vshrl.u32 %v1399, 7
    %v1401 = vsub.s32 0, %v1400
    %v1402 = vrot.slane %v1391, %v1401
    %v1403 = vlaneseq
    %v1404 = vshrl.u32 %v1403, 7
    %v1405 = vsub.s32 1, %v1404
    %v1406 = vrot.slane %v1391, %v1405
    %v1407 = vlaneseq
    %v1408 = vshrl.u32 %v1407, 7
    %v1409 = vsub.s32 2, %v1408
    %v1410 = vrot.slane %v1391, %v1409
    %v1411 = vlaneseq
    %v1412 = vshrl.u32 %v1411, 7
    %v1413 = vsub.s32 3, %v1412
    %v1414 = vrot.slane %v1391, %v1413
    %v1415 = vlaneseq
    %v1416 = vshrl.u32 %v1415, 7
    %v1417 = vsub.s32 4, %v1416
    %v1418 = vrot.slane %v1391, %v1417
    %v1419 = vlaneseq
    %v1420 = vshrl.u32 %v1419, 7
    %v1421 = vsub.s32 5, %v1420
    %v1422 = vrot.slane %v1391, %v1421
    %v1423 = vlaneseq
    %v1424 = vshrl.u32 %v1423, 7
    %v1425 = vsub.s32 6, %v1424
    %v1426 = vrot.slane %v1391, %v1425
    %v1427 = vlaneseq
    %v1428 = vshrl.u32 %v1427, 7
    %v1429 = vsub.s32 7, %v1428
    %v1430 = vrot.slane %v1391, %v1429
    %v1431 = vlaneseq
    %v1432 = vshrl.u32 %v1431, 7
    %v1433 = vsub.s32 0, %v1432
    %v1434 = vrot.slane %v1392, %v1433
    %v1435 = vlaneseq
    %v1436 = vshrl.u32 %v1435, 7
    %v1437 = vsub.s32 1, %v1436
    %v1438 = vrot.slane %v1392, %v1437
    %v1439 = vlaneseq
    %v1440 = vshrl.u32 %v1439, 7
    %v1441 = vsub.s32 2, %v1440
    %v1442 = vrot.slane %v1392, %v1441
    %v1443 = vlaneseq
    %v1444 = vshrl.u32 %v1443, 7
    %v1445 = vsub.s32 3, %v1444
    %v1446 = vrot.slane %v1392, %v1445
    %v1447 = vlaneseq
    %v1448 = vshrl.u32 %v1447, 7
    %v1449 = vsub.s32 4, %v1448
    %v1450 = vrot.slane %v1392, %v1449
    %v1451 = vlaneseq
    %v1452 = vshrl.u32 %v1451, 7
    %v1453 = vsub.s32 5, %v1452
    %v1454 = vrot.slane %v1392, %v1453
    %v1455 = vlaneseq
    %v1456 = vshrl.u32 %v1455, 7
    %v1457 = vsub.s32 6, %v1456
    %v1458 = vrot.slane %v1392, %v1457
    %v1459 = vlaneseq
    %v1460 = vshrl.u32 %v1459, 7
    %v1461 = vsub.s32 7, %v1460
    %v1462 = vrot.slane %v1392, %v1461
    %v1463 = vlaneseq
    %v1464 = vshrl.u32 %v1463, 7
    %v1465 = vsub.s32 0, %v1464
    %v1466 = vrot.slane %v1393, %v1465
    %v1467 = vlaneseq
    %v1468 = vshrl.u32 %v1467, 7
    %v1469 = vsub.s32 1, %v1468
    %v1470 = vrot.slane %v1393, %v1469
    %v1471 = vlaneseq
    %v1472 = vshrl.u32 %v1471, 7
    %v1473 = vsub.s32 2, %v1472
    %v1474 = vrot.slane %v1393, %v1473
    %v1475 = vlaneseq
    %v1476 = vshrl.u32 %v1475, 7
    %v1477 = vsub.s32 3, %v1476
    %v1478 = vrot.slane %v1393, %v1477
    %v1479 = vlaneseq
    %v1480 = vshrl.u32 %v1479, 7
    %v1481 = vsub.s32 4, %v1480
    %v1482 = vrot.slane %v1393, %v1481
    %v1483 = vlaneseq
    %v1484 = vshrl.u32 %v1483, 7
    %v1485 = vsub.s32 5, %v1484
    %v1486 = vrot.slane %v1393, %v1485
    %v1487 = vlaneseq
    %v1488 = vshrl.u32 %v1487, 7
    %v1489 = vsub.s32 6, %v1488
    %v1490 = vrot.slane %v1393, %v1489
    %v1491 = vlaneseq
    %v1492 = vshrl.u32 %v1491, 7
    %v1493 = vsub.s32 7, %v1492
    %v1494 = vrot.slane %v1393, %v1493
    %v1495 = vlaneseq
    %v1496 = vshrl.u32 %v1495, 7
    %v1497 = vsub.s32 0, %v1496
    %v1498 = vrot.slane %v1394, %v1497
    %v2798 = vunpack.c.l.b16 %v117
    %v2799 = vunpack.c.h.b16 %v117
    %v2800 = vunpack.c.l.b16 %v118
    %v2801 = vunpack.c.h.b16 %v118
    %v2802 = vunpack.c.l.b16 %v119
    %v2803 = vunpack.c.h.b16 %v119
    %v2804 = vunpack.c.l.b16 %v120
    %v2805 = vunpack.c.h.b16 %v120
    %v2806 = vunpack.c.l.b16 %v121
    %v2807 = vunpack.c.h.b16 %v121
    %v2808 = vunpack.c.l.b16 %v122
    %v2809 = vunpack.c.h.b16 %v122
    %v2810 = vunpack.c.l.b16 %v123
    %v2811 = vunpack.c.h.b16 %v123
    %v2812 = vunpack.c.l.b16 %v124
    %v2813 = vunpack.c.h.b16 %v124
    %v2814 = vunpack.c.l.b16 %v125
    %v2815 = vunpack.c.h.b16 %v125
    %v2816 = vunpack.c.l.b16 %v126
    %v2817 = vunpack.c.h.b16 %v126
    %v2818 = vunpack.c.l.b16 %v127
    %v2819 = vunpack.c.h.b16 %v127
    %v2820 = vunpack.c.l.b16 %v128
    %v2821 = vunpack.c.h.b16 %v128
    %v2822 = vunpack.c.l.b16 %v129
    %v2823 = vunpack.c.l.b16 %v130
    %v2824 = vunpack.c.h.b16 %v130
    %v2825 = vunpack.c.l.b16 %v131
    %v2826 = vunpack.c.h.b16 %v131
    %v2827 = vunpack.c.l.b16 %v132
    %v2828 = vunpack.c.h.b16 %v132
    %v2829 = vunpack.c.l.b16 %v133
    %v2830 = vunpack.c.h.b16 %v133
    %v2831 = vunpack.c.l.b16 %v134
    %v2832 = vunpack.c.h.b16 %v134
    %v2833 = vunpack.c.l.b16 %v135
    %v2834 = vunpack.c.h.b16 %v135
    %v2835 = vunpack.c.l.b16 %v136
    %v2836 = vunpack.c.h.b16 %v136
    %v2837 = vunpack.c.l.b16 %v137
    %v2838 = vunpack.c.h.b16 %v137
    %v2839 = vunpack.c.l.b16 %v138
    %v2840 = vunpack.c.h.b16 %v138
    %v2841 = vunpack.c.l.b16 %v139
    %v2842 = vunpack.c.h.b16 %v139
    %v2843 = vunpack.c.l.b16 %v140
    %v2844 = vunpack.c.h.b16 %v140
    %v2845 = vunpack.c.l.b16 %v141
    %v2846 = vunpack.c.h.b16 %v141
    %v2847 = vunpack.c.l.b16 %v142
    %v2848 = vunpack.c.l.b16 %v143
    %v2849 = vunpack.c.h.b16 %v143
    %v2850 = vunpack.c.l.b16 %v144
    %v2851 = vunpack.c.h.b16 %v144
    %v2852 = vunpack.c.l.b16 %v145
    %v2853 = vunpack.c.h.b16 %v145
    %v2854 = vunpack.c.l.b16 %v146
    %v2855 = vunpack.c.h.b16 %v146
    %v2856 = vunpack.c.l.b16 %v147
    %v2857 = vunpack.c.h.b16 %v147
    %v2858 = vunpack.c.l.b16 %v148
    %v2859 = vunpack.c.h.b16 %v148
    %v2860 = vunpack.c.l.b16 %v149
    %v2861 = vunpack.c.h.b16 %v149
    %v2862 = vunpack.c.l.b16 %v150
    %v2863 = vunpack.c.h.b16 %v150
    %v2864 = vunpack.c.l.b16 %v151
    %v2865 = vunpack.c.h.b16 %v151
    %v2866 = vunpack.c.l.b16 %v152
    %v2867 = vunpack.c.h.b16 %v152
    %v2868 = vunpack.c.l.b16 %v153
    %v2869 = vunpack.c.h.b16 %v153
    %v2870 = vunpack.c.l.b16 %v154
    %v2871 = vunpack.c.h.b16 %v154
    %v2872 = vunpack.c.l.b16 %v155
    %v2873 = vunpack.c.l.b16 %v156
    %v2874 = vunpack.c.h.b16 %v156
    %v2875 = vunpack.c.l.b16 %v157
    %v2876 = vunpack.c.h.b16 %v157
    %v2877 = vunpack.c.l.b16 %v158
    %v2878 = vunpack.c.h.b16 %v158
    %v2879 = vunpack.c.l.b16 %v159
    %v2880 = vunpack.c.h.b16 %v159
    %v2881 = vunpack.c.l.b16 %v160
    %v2882 = vunpack.c.h.b16 %v160
    %v2883 = vunpack.c.l.b16 %v161
    %v2884 = vunpack.c.h.b16 %v161
    %v2885 = vunpack.c.l.b16 %v162
    %v2886 = vunpack.c.h.b16 %v162
    %v2887 = vunpack.c.l.b16 %v163
    %v2888 = vunpack.c.h.b16 %v163
    %v2889 = vunpack.c.l.b16 %v164
    %v2890 = vunpack.c.h.b16 %v164
    %v2891 = vunpack.c.l.b16 %v165
    %v2892 = vunpack.c.h.b16 %v165
    %v2893 = vunpack.c.l.b16 %v166
    %v2894 = vunpack.c.h.b16 %v166
    %v2895 = vunpack.c.l.b16 %v167
    %v2896 = vunpack.c.h.b16 %v167
    %v2897 = vunpack.c.l.b16 %v168
    %v2898 = vunpack.c.l.b16 %v169
    %v2899 = vunpack.c.h.b16 %v169
    %v2900 = vunpack.c.l.b16 %v170
    %v2901 = vunpack.c.h.b16 %v170
    %v2902 = vunpack.c.l.b16 %v171
    %v2903 = vunpack.c.h.b16 %v171
    %v2904 = vunpack.c.l.b16 %v172
    %v2905 = vunpack.c.h.b16 %v172
    %v2906 = vunpack.c.l.b16 %v173
    %v2907 = vunpack.c.h.b16 %v173
    %v2908 = vunpack.c.l.b16 %v174
    %v2909 = vunpack.c.h.b16 %v174
    %v2910 = vunpack.c.l.b16 %v175
    %v2911 = vunpack.c.h.b16 %v175
    %v2912 = vunpack.c.l.b16 %v176
    %v2913 = vunpack.c.h.b16 %v176
    %v2914 = vunpack.c.l.b16 %v177
    %v2915 = vunpack.c.h.b16 %v177
    %v2916 = vunpack.c.l.b16 %v178
    %v2917 = vunpack.c.h.b16 %v178
    %v2918 = vunpack.c.l.b16 %v179
    %v2919 = vunpack.c.h.b16 %v179
    %v2920 = vunpack.c.l.b16 %v180
    %v2921 = vunpack.c.h.b16 %v180
    %v2922 = vunpack.c.l.b16 %v181
    %v2923 = vunpack.c.l.b16 %v182
    %v2924 = vunpack.c.h.b16 %v182
    %v2925 = vunpack.c.l.b16 %v183
    %v2926 = vunpack.c.h.b16 %v183
    %v2927 = vunpack.c.l.b16 %v184
    %v2928 = vunpack.c.h.b16 %v184
    %v2929 = vunpack.c.l.b16 %v185
    %v2930 = vunpack.c.h.b16 %v185
    %v2931 = vunpack.c.l.b16 %v186
    %v2932 = vunpack.c.h.b16 %v186
    %v2933 = vunpack.c.l.b16 %v187
    %v2934 = vunpack.c.h.b16 %v187
    %v2935 = vunpack.c.l.b16 %v188
    %v2936 = vunpack.c.h.b16 %v188
    %v2937 = vunpack.c.l.b16 %v189
    %v2938 = vunpack.c.h.b16 %v189
    %v2939 = vunpack.c.l.b16 %v190
    %v2940 = vunpack.c.h.b16 %v190
    %v2941 = vunpack.c.l.b16 %v191
    %v2942 = vunpack.c.h.b16 %v191
    %v2943 = vunpack.c.l.b16 %v192
    %v2944 = vunpack.c.h.b16 %v192
    %v2945 = vunpack.c.l.b16 %v193
    %v2946 = vunpack.c.h.b16 %v193
    %v2947 = vunpack.c.l.b16 %v194
    %v2948 = vunpack.c.l.b16 %v195
    %v2949 = vunpack.c.h.b16 %v195
    %v2950 = vunpack.c.l.b16 %v196
    %v2951 = vunpack.c.h.b16 %v196
    %v2952 = vunpack.c.l.b16 %v197
    %v2953 = vunpack.c.h.b16 %v197
    %v2954 = vunpack.c.l.b16 %v198
    %v2955 = vunpack.c.h.b16 %v198
    %v2956 = vunpack.c.l.b16 %v199
    %v2957 = vunpack.c.h.b16 %v199
    %v2958 = vunpack.c.l.b16 %v200
    %v2959 = vunpack.c.h.b16 %v200
    %v2960 = vunpack.c.l.b16 %v201
    %v2961 = vunpack.c.h.b16 %v201
    %v2962 = vunpack.c.l.b16 %v202
    %v2963 = vunpack.c.h.b16 %v202
    %v2964 = vunpack.c.l.b16 %v203
    %v2965 = vunpack.c.h.b16 %v203
    %v2966 = vunpack.c.l.b16 %v204
    %v2967 = vunpack.c.h.b16 %v204
    %v2968 = vunpack.c.l.b16 %v205
    %v2969 = vunpack.c.h.b16 %v205
    %v2970 = vunpack.c.l.b16 %v206
    %v2971 = vunpack.c.h.b16 %v206
    %v2972 = vunpack.c.l.b16 %v207
    %v2973 = vunpack.c.l.b16 %v208
    %v2974 = vunpack.c.h.b16 %v208
    %v2975 = vunpack.c.l.b16 %v209
    %v2976 = vunpack.c.h.b16 %v209
    %v2977 = vunpack.c.l.b16 %v210
    %v2978 = vunpack.c.h.b16 %v210
    %v2979 = vunpack.c.l.b16 %v211
    %v2980 = vunpack.c.h.b16 %v211
    %v2981 = vunpack.c.l.b16 %v212
    %v2982 = vunpack.c.h.b16 %v212
    %v2983 = vunpack.c.l.b16 %v213
    %v2984 = vunpack.c.h.b16 %v213
    %v2985 = vunpack.c.l.b16 %v214
    %v2986 = vunpack.c.h.b16 %v214
    %v2987 = vunpack.c.l.b16 %v215
    %v2988 = vunpack.c.h.b16 %v215
    %v2989 = vunpack.c.l.b16 %v216
    %v2990 = vunpack.c.h.b16 %v216
    %v2991 = vunpack.c.l.b16 %v217
    %v2992 = vunpack.c.h.b16 %v217
    %v2993 = vunpack.c.l.b16 %v218
    %v2994 = vunpack.c.h.b16 %v218
    %v2995 = vunpack.c.l.b16 %v219
    %v2996 = vunpack.c.h.b16 %v219
    %v2997 = vunpack.c.l.b16 %v220
    %v2998 = vunpack.c.l.b16 %v221
    %v2999 = vunpack.c.h.b16 %v221
    %v3000 = vunpack.c.l.b16 %v222
    %v3001 = vunpack.c.h.b16 %v222
    %v3002 = vunpack.c.l.b16 %v223
    %v3003 = vunpack.c.h.b16 %v223
    %v3004 = vunpack.c.l.b16 %v224
    %v3005 = vunpack.c.h.b16 %v224
    %v3006 = vunpack.c.l.b16 %v225
    %v3007 = vunpack.c.h.b16 %v225
    %v3008 = vunpack.c.l.b16 %v226
    %v3009 = vunpack.c.h.b16 %v226
    %v3010 = vunpack.c.l.b16 %v227
    %v3011 = vunpack.c.h.b16 %v227
    %v3012 = vunpack.c.l.b16 %v228
    %v3013 = vunpack.c.h.b16 %v228
    %v3014 = vunpack.c.l.b16 %v229
    %v3015 = vunpack.c.h.b16 %v229
    %v3016 = vunpack.c.l.b16 %v230
    %v3017 = vunpack.c.h.b16 %v230
    %v3018 = vunpack.c.l.b16 %v231
    %v3019 = vunpack.c.h.b16 %v231
    %v3020 = vunpack.c.l.b16 %v232
    %v3021 = vunpack.c.h.b16 %v232
    %v3022 = vunpack.c.l.b16 %v233
    %v3023 = vunpack.c.l.b16 %v234
    %v3024 = vunpack.c.h.b16 %v234
    %v3025 = vunpack.c.l.b16 %v235
    %v3026 = vunpack.c.h.b16 %v235
    %v3027 = vunpack.c.l.b16 %v236
    %v3028 = vunpack.c.h.b16 %v236
    %v3029 = vunpack.c.l.b16 %v237
    %v3030 = vunpack.c.h.b16 %v237
    %v3031 = vunpack.c.l.b16 %v238
    %v3032 = vunpack.c.h.b16 %v238
    %v3033 = vunpack.c.l.b16 %v239
    %v3034 = vunpack.c.h.b16 %v239
    %v3035 = vunpack.c.l.b16 %v240
    %v3036 = vunpack.c.h.b16 %v240
    %v3037 = vunpack.c.l.b16 %v241
    %v3038 = vunpack.c.h.b16 %v241
    %v3039 = vunpack.c.l.b16 %v242
    %v3040 = vunpack.c.h.b16 %v242
    %v3041 = vunpack.c.l.b16 %v243
    %v3042 = vunpack.c.h.b16 %v243
    %v3043 = vunpack.c.l.b16 %v244
    %v3044 = vunpack.c.h.b16 %v244
    %v3045 = vunpack.c.l.b16 %v245
    %v3046 = vunpack.c.h.b16 %v245
    %v3047 = vunpack.c.l.b16 %v246
    %v3048 = vunpack.c.l.b16 %v247
    %v3049 = vunpack.c.h.b16 %v247
    %v3050 = vunpack.c.l.b16 %v248
    %v3051 = vunpack.c.h.b16 %v248
    %v3052 = vunpack.c.l.b16 %v249
    %v3053 = vunpack.c.h.b16 %v249
    %v3054 = vunpack.c.l.b16 %v250
    %v3055 = vunpack.c.h.b16 %v250
    %v3056 = vunpack.c.l.b16 %v251
    %v3057 = vunpack.c.h.b16 %v251
    %v3058 = vunpack.c.l.b16 %v252
    %v3059 = vunpack.c.h.b16 %v252
    %v3060 = vunpack.c.l.b16 %v253
    %v3061 = vunpack.c.h.b16 %v253
    %v3062 = vunpack.c.l.b16 %v254
    %v3063 = vunpack.c.h.b16 %v254
    %v3064 = vunpack.c.l.b16 %v255
    %v3065 = vunpack.c.h.b16 %v255
    %v3066 = vunpack.c.l.b16 %v256
    %v3067 = vunpack.c.h.b16 %v256
    %v3068 = vunpack.c.l.b16 %v257
    %v3069 = vunpack.c.h.b16 %v257
    %v3070 = vunpack.c.l.b16 %v258
    %v3071 = vunpack.c.h.b16 %v258
    %v3072 = vunpack.c.l.b16 %v259
    %v3073 = vunpack.c.l.b16 %v260
    %v3074 = vunpack.c.h.b16 %v260
    %v3075 = vunpack.c.l.b16 %v261
    %v3076 = vunpack.c.h.b16 %v261
    %v3077 = vunpack.c.l.b16 %v262
    %v3078 = vunpack.c.h.b16 %v262
    %v3079 = vunpack.c.l.b16 %v263
    %v3080 = vunpack.c.h.b16 %v263
    %v3081 = vunpack.c.l.b16 %v264
    %v3082 = vunpack.c.h.b16 %v264
    %v3083 = vunpack.c.l.b16 %v265
    %v3084 = vunpack.c.h.b16 %v265
    %v3085 = vunpack.c.l.b16 %v266
    %v3086 = vunpack.c.h.b16 %v266
    %v3087 = vunpack.c.l.b16 %v267
    %v3088 = vunpack.c.h.b16 %v267
    %v3089 = vunpack.c.l.b16 %v268
    %v3090 = vunpack.c.h.b16 %v268
    %v3091 = vunpack.c.l.b16 %v269
    %v3092 = vunpack.c.h.b16 %v269
    %v3093 = vunpack.c.l.b16 %v270
    %v3094 = vunpack.c.h.b16 %v270
    %v3095 = vunpack.c.l.b16 %v271
    %v3096 = vunpack.c.h.b16 %v271
    %v3097 = vunpack.c.l.b16 %v272
    %v3098 = vunpack.c.l.b16 %v273
    %v3099 = vunpack.c.h.b16 %v273
    %v3100 = vunpack.c.l.b16 %v274
    %v3101 = vunpack.c.h.b16 %v274
    %v3102 = vunpack.c.l.b16 %v275
    %v3103 = vunpack.c.h.b16 %v275
    %v3104 = vunpack.c.l.b16 %v276
    %v3105 = vunpack.c.h.b16 %v276
    %v3106 = vunpack.c.l.b16 %v277
    %v3107 = vunpack.c.h.b16 %v277
    %v3108 = vunpack.c.l.b16 %v278
    %v3109 = vunpack.c.h.b16 %v278
    %v3110 = vunpack.c.l.b16 %v279
    %v3111 = vunpack.c.h.b16 %v279
    %v3112 = vunpack.c.l.b16 %v280
    %v3113 = vunpack.c.h.b16 %v280
    %v3114 = vunpack.c.l.b16 %v281
    %v3115 = vunpack.c.h.b16 %v281
    %v3116 = vunpack.c.l.b16 %v282
    %v3117 = vunpack.c.h.b16 %v282
    %v3118 = vunpack.c.l.b16 %v283
    %v3119 = vunpack.c.h.b16 %v283
    %v3120 = vunpack.c.l.b16 %v284
    %v3121 = vunpack.c.h.b16 %v284
    %v3122 = vunpack.c.l.b16 %v285
    %v3123 = vunpack.c.l.b16 %v286
    %v3124 = vunpack.c.h.b16 %v286
    %v3125 = vunpack.c.l.b16 %v287
    %v3126 = vunpack.c.h.b16 %v287
    %v3127 = vunpack.c.l.b16 %v288
    %v3128 = vunpack.c.h.b16 %v288
    %v3129 = vunpack.c.l.b16 %v289
    %v3130 = vunpack.c.h.b16 %v289
    %v3131 = vunpack.c.l.b16 %v290
    %v3132 = vunpack.c.h.b16 %v290
    %v3133 = vunpack.c.l.b16 %v291
    %v3134 = vunpack.c.h.b16 %v291
    %v3135 = vunpack.c.l.b16 %v292
    %v3136 = vunpack.c.h.b16 %v292
    %v3137 = vunpack.c.l.b16 %v293
    %v3138 = vunpack.c.h.b16 %v293
    %v3139 = vunpack.c.l.b16 %v294
    %v3140 = vunpack.c.h.b16 %v294
    %v3141 = vunpack.c.l.b16 %v295
    %v3142 = vunpack.c.h.b16 %v295
    %v3143 = vunpack.c.l.b16 %v296
    %v3144 = vunpack.c.h.b16 %v296
    %v3145 = vunpack.c.l.b16 %v297
    %v3146 = vunpack.c.h.b16 %v297
    %v3147 = vunpack.c.l.b16 %v298
    %v3148 = vunpack.c.l.b16 %v299
    %v3149 = vunpack.c.h.b16 %v299
    %v3150 = vunpack.c.l.b16 %v300
    %v3151 = vunpack.c.h.b16 %v300
    %v3152 = vunpack.c.l.b16 %v301
    %v3153 = vunpack.c.h.b16 %v301
    %v3154 = vunpack.c.l.b16 %v302
    %v3155 = vunpack.c.h.b16 %v302
    %v3156 = vunpack.c.l.b16 %v303
    %v3157 = vunpack.c.h.b16 %v303
    %v3158 = vunpack.c.l.b16 %v304
    %v3159 = vunpack.c.h.b16 %v304
    %v3160 = vunpack.c.l.b16 %v305
    %v3161 = vunpack.c.h.b16 %v305
    %v3162 = vunpack.c.l.b16 %v306
    %v3163 = vunpack.c.h.b16 %v306
    %v3164 = vunpack.c.l.b16 %v307
    %v3165 = vunpack.c.h.b16 %v307
    %v3166 = vunpack.c.l.b16 %v308
    %v3167 = vunpack.c.h.b16 %v308
    %v3168 = vunpack.c.l.b16 %v309
    %v3169 = vunpack.c.h.b16 %v309
    %v3170 = vunpack.c.l.b16 %v310
    %v3171 = vunpack.c.h.b16 %v310
    %v3172 = vunpack.c.l.b16 %v311
    %v3173 = vunpack.c.l.b16 %v312
    %v3174 = vunpack.c.h.b16 %v312
    %v3175 = vunpack.c.l.b16 %v313
    %v3176 = vunpack.c.h.b16 %v313
    %v3177 = vunpack.c.l.b16 %v314
    %v3178 = vunpack.c.h.b16 %v314
    %v3179 = vunpack.c.l.b16 %v315
    %v3180 = vunpack.c.h.b16 %v315
    %v3181 = vunpack.c.l.b16 %v316
    %v3182 = vunpack.c.h.b16 %v316
    %v3183 = vunpack.c.l.b16 %v317
    %v3184 = vunpack.c.h.b16 %v317
    %v3185 = vunpack.c.l.b16 %v318
    %v3186 = vunpack.c.h.b16 %v318
    %v3187 = vunpack.c.l.b16 %v319
    %v3188 = vunpack.c.h.b16 %v319
    %v3189 = vunpack.c.l.b16 %v320
    %v3190 = vunpack.c.h.b16 %v320
    %v3191 = vunpack.c.l.b16 %v321
    %v3192 = vunpack.c.h.b16 %v321
    %v3193 = vunpack.c.l.b16 %v322
    %v3194 = vunpack.c.h.b16 %v322
    %v3195 = vunpack.c.l.b16 %v323
    %v3196 = vunpack.c.h.b16 %v323
    %v3197 = vunpack.c.l.b16 %v324
    %v3198 = vunpack.c.l.b16 %v325
    %v3199 = vunpack.c.h.b16 %v325
    %v3200 = vunpack.c.l.b16 %v326
    %v3201 = vunpack.c.h.b16 %v326
    %v3202 = vunpack.c.l.b16 %v327
    %v3203 = vunpack.c.h.b16 %v327
    %v3204 = vunpack.c.l.b16 %v328
    %v3205 = vunpack.c.h.b16 %v328
    %v3206 = vunpack.c.l.b16 %v329
    %v3207 = vunpack.c.h.b16 %v329
    %v3208 = vunpack.c.l.b16 %v330
    %v3209 = vunpack.c.h.b16 %v330
    %v3210 = vunpack.c.l.b16 %v331
    %v3211 = vunpack.c.h.b16 %v331
    %v3212 = vunpack.c.l.b16 %v332
    %v3213 = vunpack.c.h.b16 %v332
    %v3214 = vunpack.c.l.b16 %v333
    %v3215 = vunpack.c.h.b16 %v333
    %v3216 = vunpack.c.l.b16 %v334
    %v3217 = vunpack.c.h.b16 %v334
    %v3218 = vunpack.c.l.b16 %v335
    %v3219 = vunpack.c.h.b16 %v335
    %v3220 = vunpack.c.l.b16 %v336
    %v3221 = vunpack.c.h.b16 %v336
    %v3222 = vunpack.c.l.b16 %v337
    %v3223 = vunpack.c.l.b16 %v338
    %v3224 = vunpack.c.h.b16 %v338
    %v3225 = vunpack.c.l.b16 %v339
    %v3226 = vunpack.c.h.b16 %v339
    %v3227 = vunpack.c.l.b16 %v340
    %v3228 = vunpack.c.h.b16 %v340
    %v3229 = vunpack.c.l.b16 %v341
    %v3230 = vunpack.c.h.b16 %v341
    %v3231 = vunpack.c.l.b16 %v342
    %v3232 = vunpack.c.h.b16 %v342
    %v3233 = vunpack.c.l.b16 %v343
    %v3234 = vunpack.c.h.b16 %v343
    %v3235 = vunpack.c.l.b16 %v344
    %v3236 = vunpack.c.h.b16 %v344
    %v3237 = vunpack.c.l.b16 %v345
    %v3238 = vunpack.c.h.b16 %v345
    %v3239 = vunpack.c.l.b16 %v346
    %v3240 = vunpack.c.h.b16 %v346
    %v3241 = vunpack.c.l.b16 %v347
    %v3242 = vunpack.c.h.b16 %v347
    %v3243 = vunpack.c.l.b16 %v348
    %v3244 = vunpack.c.h.b16 %v348
    %v3245 = vunpack.c.l.b16 %v349
    %v3246 = vunpack.c.h.b16 %v349
    %v3247 = vunpack.c.l.b16 %v350
    %v3248 = vunpack.c.l.b16 %v351
    %v3249 = vunpack.c.h.b16 %v351
    %v3250 = vunpack.c.l.b16 %v352
    %v3251 = vunpack.c.h.b16 %v352
    %v3252 = vunpack.c.l.b16 %v353
    %v3253 = vunpack.c.h.b16 %v353
    %v3254 = vunpack.c.l.b16 %v354
    %v3255 = vunpack.c.h.b16 %v354
    %v3256 = vunpack.c.l.b16 %v355
    %v3257 = vunpack.c.h.b16 %v355
    %v3258 = vunpack.c.l.b16 %v356
    %v3259 = vunpack.c.h.b16 %v356
    %v3260 = vunpack.c.l.b16 %v357
    %v3261 = vunpack.c.h.b16 %v357
    %v3262 = vunpack.c.l.b16 %v358
    %v3263 = vunpack.c.h.b16 %v358
    %v3264 = vunpack.c.l.b16 %v359
    %v3265 = vunpack.c.h.b16 %v359
    %v3266 = vunpack.c.l.b16 %v360
    %v3267 = vunpack.c.h.b16 %v360
    %v3268 = vunpack.c.l.b16 %v361
    %v3269 = vunpack.c.h.b16 %v361
    %v3270 = vunpack.c.l.b16 %v362
    %v3271 = vunpack.c.h.b16 %v362
    %v3272 = vunpack.c.l.b16 %v363
    %v3273 = vunpack.c.l.b16 %v364
    %v3274 = vunpack.c.h.b16 %v364
    %v3275 = vunpack.c.l.b16 %v365
    %v3276 = vunpack.c.h.b16 %v365
    %v3277 = vunpack.c.l.b16 %v366
    %v3278 = vunpack.c.h.b16 %v366
    %v3279 = vunpack.c.l.b16 %v367
    %v3280 = vunpack.c.h.b16 %v367
    %v3281 = vunpack.c.l.b16 %v368
    %v3282 = vunpack.c.h.b16 %v368
    %v3283 = vunpack.c.l.b16 %v369
    %v3284 = vunpack.c.h.b16 %v369
    %v3285 = vunpack.c.l.b16 %v370
    %v3286 = vunpack.c.h.b16 %v370
    %v3287 = vunpack.c.l.b16 %v371
    %v3288 = vunpack.c.h.b16 %v371
    %v3289 = vunpack.c.l.b16 %v372
    %v3290 = vunpack.c.h.b16 %v372
    %v3291 = vunpack.c.l.b16 %v373
    %v3292 = vunpack.c.h.b16 %v373
    %v3293 = vunpack.c.l.b16 %v374
    %v3294 = vunpack.c.h.b16 %v374
    %v3295 = vunpack.c.l.b16 %v375
    %v3296 = vunpack.c.h.b16 %v375
    %v3297 = vunpack.c.l.b16 %v376
    %v3298 = vunpack.c.l.b16 %v377
    %v3299 = vunpack.c.h.b16 %v377
    %v3300 = vunpack.c.l.b16 %v378
    %v3301 = vunpack.c.h.b16 %v378
    %v3302 = vunpack.c.l.b16 %v379
    %v3303 = vunpack.c.h.b16 %v379
    %v3304 = vunpack.c.l.b16 %v380
    %v3305 = vunpack.c.h.b16 %v380
    %v3306 = vunpack.c.l.b16 %v381
    %v3307 = vunpack.c.h.b16 %v381
    %v3308 = vunpack.c.l.b16 %v382
    %v3309 = vunpack.c.h.b16 %v382
    %v3310 = vunpack.c.l.b16 %v383
    %v3311 = vunpack.c.h.b16 %v383
    %v3312 = vunpack.c.l.b16 %v384
    %v3313 = vunpack.c.h.b16 %v384
    %v3314 = vunpack.c.l.b16 %v385
    %v3315 = vunpack.c.h.b16 %v385
    %v3316 = vunpack.c.l.b16 %v386
    %v3317 = vunpack.c.h.b16 %v386
    %v3318 = vunpack.c.l.b16 %v387
    %v3319 = vunpack.c.h.b16 %v387
    %v3320 = vunpack.c.l.b16 %v388
    %v3321 = vunpack.c.h.b16 %v388
    %v3322 = vunpack.c.l.b16 %v389
    %v3323 = vunpack.c.l.b16 %v390
    %v3324 = vunpack.c.h.b16 %v390
    %v3325 = vunpack.c.l.b16 %v391
    %v3326 = vunpack.c.h.b16 %v391
    %v3327 = vunpack.c.l.b16 %v392
    %v3328 = vunpack.c.h.b16 %v392
    %v3329 = vunpack.c.l.b16 %v393
    %v3330 = vunpack.c.h.b16 %v393
    %v3331 = vunpack.c.l.b16 %v394
    %v3332 = vunpack.c.h.b16 %v394
    %v3333 = vunpack.c.l.b16 %v395
    %v3334 = vunpack.c.h.b16 %v395
    %v3335 = vunpack.c.l.b16 %v396
    %v3336 = vunpack.c.h.b16 %v396
    %v3337 = vunpack.c.l.b16 %v397
    %v3338 = vunpack.c.h.b16 %v397
    %v3339 = vunpack.c.l.b16 %v398
    %v3340 = vunpack.c.h.b16 %v398
    %v3341 = vunpack.c.l.b16 %v399
    %v3342 = vunpack.c.h.b16 %v399
    %v3343 = vunpack.c.l.b16 %v400
    %v3344 = vunpack.c.h.b16 %v400
    %v3345 = vunpack.c.l.b16 %v401
    %v3346 = vunpack.c.h.b16 %v401
    %v3347 = vunpack.c.l.b16 %v402
    %v3348 = vunpack.c.l.b16 %v403
    %v3349 = vunpack.c.h.b16 %v403
    %v3350 = vunpack.c.l.b16 %v404
    %v3351 = vunpack.c.h.b16 %v404
    %v3352 = vunpack.c.l.b16 %v405
    %v3353 = vunpack.c.h.b16 %v405
    %v3354 = vunpack.c.l.b16 %v406
    %v3355 = vunpack.c.h.b16 %v406
    %v3356 = vunpack.c.l.b16 %v407
    %v3357 = vunpack.c.h.b16 %v407
    %v3358 = vunpack.c.l.b16 %v408
    %v3359 = vunpack.c.h.b16 %v408
    %v3360 = vunpack.c.l.b16 %v409
    %v3361 = vunpack.c.h.b16 %v409
    %v3362 = vunpack.c.l.b16 %v410
    %v3363 = vunpack.c.h.b16 %v410
    %v3364 = vunpack.c.l.b16 %v411
    %v3365 = vunpack.c.h.b16 %v411
    %v3366 = vunpack.c.l.b16 %v412
    %v3367 = vunpack.c.h.b16 %v412
    %v3368 = vunpack.c.l.b16 %v413
    %v3369 = vunpack.c.h.b16 %v413
    %v3370 = vunpack.c.l.b16 %v414
    %v3371 = vunpack.c.h.b16 %v414
    %v3372 = vunpack.c.l.b16 %v415
    %v3373 = vunpack.c.l.b16 %v416
    %v3374 = vunpack.c.h.b16 %v416
    %v3375 = vunpack.c.l.b16 %v417
    %v3376 = vunpack.c.h.b16 %v417
    %v3377 = vunpack.c.l.b16 %v418
    %v3378 = vunpack.c.h.b16 %v418
    %v3379 = vunpack.c.l.b16 %v419
    %v3380 = vunpack.c.h.b16 %v419
    %v3381 = vunpack.c.l.b16 %v420
    %v3382 = vunpack.c.h.b16 %v420
    %v3383 = vunpack.c.l.b16 %v421
    %v3384 = vunpack.c.h.b16 %v421
    %v3385 = vunpack.c.l.b16 %v422
    %v3386 = vunpack.c.h.b16 %v422
    %v3387 = vunpack.c.l.b16 %v423
    %v3388 = vunpack.c.h.b16 %v423
    %v3389 = vunpack.c.l.b16 %v424
    %v3390 = vunpack.c.h.b16 %v424
    %v3391 = vunpack.c.l.b16 %v425
    %v3392 = vunpack.c.h.b16 %v425
    %v3393 = vunpack.c.l.b16 %v426
    %v3394 = vunpack.c.h.b16 %v426
    %v3395 = vunpack.c.l.b16 %v427
    %v3396 = vunpack.c.h.b16 %v427
    %v3397 = vunpack.c.l.b16 %v428
    %v3398 = vunpack.c.l.b16 %v429
    %v3399 = vunpack.c.h.b16 %v429
    %v3400 = vunpack.c.l.b16 %v430
    %v3401 = vunpack.c.h.b16 %v430
    %v3402 = vunpack.c.l.b16 %v431
    %v3403 = vunpack.c.h.b16 %v431
    %v3404 = vunpack.c.l.b16 %v432
    %v3405 = vunpack.c.h.b16 %v432
    %v3406 = vunpack.c.l.b16 %v433
    %v3407 = vunpack.c.h.b16 %v433
    %v3408 = vunpack.c.l.b16 %v434
    %v3409 = vunpack.c.h.b16 %v434
    %v3410 = vunpack.c.l.b16 %v435
    %v3411 = vunpack.c.h.b16 %v435
    %v3412 = vunpack.c.l.b16 %v436
    %v3413 = vunpack.c.h.b16 %v436
    %v3414 = vunpack.c.l.b16 %v437
    %v3415 = vunpack.c.h.b16 %v437
    %v3416 = vunpack.c.l.b16 %v438
    %v3417 = vunpack.c.h.b16 %v438
    %v3418 = vunpack.c.l.b16 %v439
    %v3419 = vunpack.c.h.b16 %v439
    %v3420 = vunpack.c.l.b16 %v440
    %v3421 = vunpack.c.h.b16 %v440
    %v3422 = vunpack.c.l.b16 %v441
    %v3423 = vunpack.c.l.b16 %v442
    %v3424 = vunpack.c.h.b16 %v442
    %v3425 = vunpack.c.l.b16 %v443
    %v3426 = vunpack.c.h.b16 %v443
    %v3427 = vunpack.c.l.b16 %v444
    %v3428 = vunpack.c.h.b16 %v444
    %v3429 = vunpack.c.l.b16 %v445
    %v3430 = vunpack.c.h.b16 %v445
    %v3431 = vunpack.c.l.b16 %v446
    %v3432 = vunpack.c.h.b16 %v446
    %v3433 = vunpack.c.l.b16 %v447
    %v3434 = vunpack.c.h.b16 %v447
    %v3435 = vunpack.c.l.b16 %v448
    %v3436 = vunpack.c.h.b16 %v448
    %v3437 = vunpack.c.l.b16 %v449
    %v3438 = vunpack.c.h.b16 %v449
    %v3439 = vunpack.c.l.b16 %v450
    %v3440 = vunpack.c.h.b16 %v450
    %v3441 = vunpack.c.l.b16 %v451
    %v3442 = vunpack.c.h.b16 %v451
    %v3443 = vunpack.c.l.b16 %v452
    %v3444 = vunpack.c.h.b16 %v452
    %v3445 = vunpack.c.l.b16 %v453
    %v3446 = vunpack.c.h.b16 %v453
    %v3447 = vunpack.c.l.b16 %v454
    %v3448 = vunpack.c.l.b16 %v455
    %v3449 = vunpack.c.h.b16 %v455
    %v3450 = vunpack.c.l.b16 %v456
    %v3451 = vunpack.c.h.b16 %v456
    %v3452 = vunpack.c.l.b16 %v457
    %v3453 = vunpack.c.h.b16 %v457
    %v3454 = vunpack.c.l.b16 %v458
    %v3455 = vunpack.c.h.b16 %v458
    %v3456 = vunpack.c.l.b16 %v459
    %v3457 = vunpack.c.h.b16 %v459
    %v3458 = vunpack.c.l.b16 %v460
    %v3459 = vunpack.c.h.b16 %v460
    %v3460 = vunpack.c.l.b16 %v461
    %v3461 = vunpack.c.h.b16 %v461
    %v3462 = vunpack.c.l.b16 %v462
    %v3463 = vunpack.c.h.b16 %v462
    %v3464 = vunpack.c.l.b16 %v463
    %v3465 = vunpack.c.h.b16 %v463
    %v3466 = vunpack.c.l.b16 %v464
    %v3467 = vunpack.c.h.b16 %v464
    %v3468 = vunpack.c.l.b16 %v465
    %v3469 = vunpack.c.h.b16 %v465
    %v3470 = vunpack.c.l.b16 %v466
    %v3471 = vunpack.c.h.b16 %v466
    %v3472 = vunpack.c.l.b16 %v467
    %v3473 = vunpack.c.l.b16 %v468
    %v3474 = vunpack.c.h.b16 %v468
    %v3475 = vunpack.c.l.b16 %v469
    %v3476 = vunpack.c.h.b16 %v469
    %v3477 = vunpack.c.l.b16 %v470
    %v3478 = vunpack.c.h.b16 %v470
    %v3479 = vunpack.c.l.b16 %v471
    %v3480 = vunpack.c.h.b16 %v471
    %v3481 = vunpack.c.l.b16 %v472
    %v3482 = vunpack.c.h.b16 %v472
    %v3483 = vunpack.c.l.b16 %v473
    %v3484 = vunpack.c.h.b16 %v473
    %v3485 = vunpack.c.l.b16 %v474
    %v3486 = vunpack.c.h.b16 %v474
    %v3487 = vunpack.c.l.b16 %v475
    %v3488 = vunpack.c.h.b16 %v475
    %v3489 = vunpack.c.l.b16 %v476
    %v3490 = vunpack.c.h.b16 %v476
    %v3491 = vunpack.c.l.b16 %v477
    %v3492 = vunpack.c.h.b16 %v477
    %v3493 = vunpack.c.l.b16 %v478
    %v3494 = vunpack.c.h.b16 %v478
    %v3495 = vunpack.c.l.b16 %v479
    %v3496 = vunpack.c.h.b16 %v479
    %v3497 = vunpack.c.l.b16 %v480
    %v3498 = vunpack.c.l.b16 %v481
    %v3499 = vunpack.c.h.b16 %v481
    %v3500 = vunpack.c.l.b16 %v482
    %v3501 = vunpack.c.h.b16 %v482
    %v3502 = vunpack.c.l.b16 %v483
    %v3503 = vunpack.c.h.b16 %v483
    %v3504 = vunpack.c.l.b16 %v484
    %v3505 = vunpack.c.h.b16 %v484
    %v3506 = vunpack.c.l.b16 %v485
    %v3507 = vunpack.c.h.b16 %v485
    %v3508 = vunpack.c.l.b16 %v486
    %v3509 = vunpack.c.h.b16 %v486
    %v3510 = vunpack.c.l.b16 %v487
    %v3511 = vunpack.c.h.b16 %v487
    %v3512 = vunpack.c.l.b16 %v488
    %v3513 = vunpack.c.h.b16 %v488
    %v3514 = vunpack.c.l.b16 %v489
    %v3515 = vunpack.c.h.b16 %v489
    %v3516 = vunpack.c.l.b16 %v490
    %v3517 = vunpack.c.h.b16 %v490
    %v3518 = vunpack.c.l.b16 %v491
    %v3519 = vunpack.c.h.b16 %v491
    %v3520 = vunpack.c.l.b16 %v492
    %v3521 = vunpack.c.h.b16 %v492
    %v3522 = vunpack.c.l.b16 %v493
    %v3523 = vunpack.c.l.b16 %v494
    %v3524 = vunpack.c.h.b16 %v494
    %v3525 = vunpack.c.l.b16 %v495
    %v3526 = vunpack.c.h.b16 %v495
    %v3527 = vunpack.c.l.b16 %v496
    %v3528 = vunpack.c.h.b16 %v496
    %v3529 = vunpack.c.l.b16 %v497
    %v3530 = vunpack.c.h.b16 %v497
    %v3531 = vunpack.c.l.b16 %v498
    %v3532 = vunpack.c.h.b16 %v498
    %v3533 = vunpack.c.l.b16 %v499
    %v3534 = vunpack.c.h.b16 %v499
    %v3535 = vunpack.c.l.b16 %v500
    %v3536 = vunpack.c.h.b16 %v500
    %v3537 = vunpack.c.l.b16 %v501
    %v3538 = vunpack.c.h.b16 %v501
    %v3539 = vunpack.c.l.b16 %v502
    %v3540 = vunpack.c.h.b16 %v502
    %v3541 = vunpack.c.l.b16 %v503
    %v3542 = vunpack.c.h.b16 %v503
    %v3543 = vunpack.c.l.b16 %v504
    %v3544 = vunpack.c.h.b16 %v504
    %v3545 = vunpack.c.l.b16 %v505
    %v3546 = vunpack.c.h.b16 %v505
    %v3547 = vunpack.c.l.b16 %v506
    %v3548 = vunpack.c.l.b16 %v507
    %v3549 = vunpack.c.h.b16 %v507
    %v3550 = vunpack.c.l.b16 %v508
    %v3551 = vunpack.c.h.b16 %v508
    %v3552 = vunpack.c.l.b16 %v509
    %v3553 = vunpack.c.h.b16 %v509
    %v3554 = vunpack.c.l.b16 %v510
    %v3555 = vunpack.c.h.b16 %v510
    %v3556 = vunpack.c.l.b16 %v511
    %v3557 = vunpack.c.h.b16 %v511
    %v3558 = vunpack.c.l.b16 %v512
    %v3559 = vunpack.c.h.b16 %v512
    %v3560 = vunpack.c.l.b16 %v513
    %v3561 = vunpack.c.h.b16 %v513
    %v3562 = vunpack.c.l.b16 %v514
    %v3563 = vunpack.c.h.b16 %v514
    %v3564 = vunpack.c.l.b16 %v515
    %v3565 = vunpack.c.h.b16 %v515
    %v3566 = vunpack.c.l.b16 %v516
    %v3567 = vunpack.c.h.b16 %v516
    %v3568 = vunpack.c.l.b16 %v517
    %v3569 = vunpack.c.h.b16 %v517
    %v3570 = vunpack.c.l.b16 %v518
    %v3571 = vunpack.c.h.b16 %v518
    %v3572 = vunpack.c.l.b16 %v519
    %v3573 = vunpack.c.l.b16 %v520
    %v3574 = vunpack.c.h.b16 %v520
    %v3575 = vunpack.c.l.b16 %v521
    %v3576 = vunpack.c.h.b16 %v521
    %v3577 = vunpack.c.l.b16 %v522
    %v3578 = vunpack.c.h.b16 %v522
    %v3579 = vunpack.c.l.b16 %v523
    %v3580 = vunpack.c.h.b16 %v523
    %v3581 = vunpack.c.l.b16 %v524
    %v3582 = vunpack.c.h.b16 %v524
    %v3583 = vunpack.c.l.b16 %v525
    %v3584 = vunpack.c.h.b16 %v525
    %v3585 = vunpack.c.l.b16 %v526
    %v3586 = vunpack.c.h.b16 %v526
    %v3587 = vunpack.c.l.b16 %v527
    %v3588 = vunpack.c.h.b16 %v527
    %v3589 = vunpack.c.l.b16 %v528
    %v3590 = vunpack.c.h.b16 %v528
    %v3591 = vunpack.c.l.b16 %v529
    %v3592 = vunpack.c.h.b16 %v529
    %v3593 = vunpack.c.l.b16 %v530
    %v3594 = vunpack.c.h.b16 %v530
    %v3595 = vunpack.c.l.b16 %v531
    %v3596 = vunpack.c.h.b16 %v531
    %v3597 = vunpack.c.l.b16 %v532
    %v3598 = vunpack.c.l.b16 %v533
    %v3599 = vunpack.c.h.b16 %v533
    %v3600 = vunpack.c.l.b16 %v534
    %v3601 = vunpack.c.h.b16 %v534
    %v3602 = vunpack.c.l.b16 %v535
    %v3603 = vunpack.c.h.b16 %v535
    %v3604 = vunpack.c.l.b16 %v536
    %v3605 = vunpack.c.h.b16 %v536
    %v3606 = vunpack.c.l.b16 %v537
    %v3607 = vunpack.c.h.b16 %v537
    %v3608 = vunpack.c.l.b16 %v538
    %v3609 = vunpack.c.h.b16 %v538
    %v3610 = vunpack.c.l.b16 %v539
    %v3611 = vunpack.c.h.b16 %v539
    %v3612 = vunpack.c.l.b16 %v540
    %v3613 = vunpack.c.h.b16 %v540
    %v3614 = vunpack.c.l.b16 %v541
    %v3615 = vunpack.c.h.b16 %v541
    %v3616 = vunpack.c.l.b16 %v542
    %v3617 = vunpack.c.h.b16 %v542
    %v3618 = vunpack.c.l.b16 %v543
    %v3619 = vunpack.c.h.b16 %v543
    %v3620 = vunpack.c.l.b16 %v544
    %v3621 = vunpack.c.h.b16 %v544
    %v3622 = vunpack.c.l.b16 %v545
    %v3623 = vunpack.c.l.b16 %v546
    %v3624 = vunpack.c.h.b16 %v546
    %v3625 = vunpack.c.l.b16 %v547
    %v3626 = vunpack.c.h.b16 %v547
    %v3627 = vunpack.c.l.b16 %v548
    %v3628 = vunpack.c.h.b16 %v548
    %v3629 = vunpack.c.l.b16 %v549
    %v3630 = vunpack.c.h.b16 %v549
    %v3631 = vunpack.c.l.b16 %v550
    %v3632 = vunpack.c.h.b16 %v550
    %v3633 = vunpack.c.l.b16 %v551
    %v3634 = vunpack.c.h.b16 %v551
    %v3635 = vunpack.c.l.b16 %v552
    %v3636 = vunpack.c.h.b16 %v552
    %v3637 = vunpack.c.l.b16 %v553
    %v3638 = vunpack.c.h.b16 %v553
    %v3639 = vunpack.c.l.b16 %v554
    %v3640 = vunpack.c.h.b16 %v554
    %v3641 = vunpack.c.l.b16 %v555
    %v3642 = vunpack.c.h.b16 %v555
    %v3643 = vunpack.c.l.b16 %v556
    %v3644 = vunpack.c.h.b16 %v556
    %v3645 = vunpack.c.l.b16 %v557
    %v3646 = vunpack.c.h.b16 %v557
    %v3647 = vunpack.c.l.b16 %v558
    %v3648 = vunpack.c.l.b16 %v559
    %v3649 = vunpack.c.h.b16 %v559
    %v3650 = vunpack.c.l.b16 %v560
    %v3651 = vunpack.c.h.b16 %v560
    %v3652 = vunpack.c.l.b16 %v561
    %v3653 = vunpack.c.h.b16 %v561
    %v3654 = vunpack.c.l.b16 %v562
    %v3655 = vunpack.c.h.b16 %v562
    %v3656 = vunpack.c.l.b16 %v563
    %v3657 = vunpack.c.h.b16 %v563
    %v3658 = vunpack.c.l.b16 %v564
    %v3659 = vunpack.c.h.b16 %v564
    %v3660 = vunpack.c.l.b16 %v565
    %v3661 = vunpack.c.h.b16 %v565
    %v3662 = vunpack.c.l.b16 %v566
    %v3663 = vunpack.c.h.b16 %v566
    %v3664 = vunpack.c.l.b16 %v567
    %v3665 = vunpack.c.h.b16 %v567
    %v3666 = vunpack.c.l.b16 %v568
    %v3667 = vunpack.c.h.b16 %v568
    %v3668 = vunpack.c.l.b16 %v569
    %v3669 = vunpack.c.h.b16 %v569
    %v3670 = vunpack.c.l.b16 %v570
    %v3671 = vunpack.c.h.b16 %v570
    %v3672 = vunpack.c.l.b16 %v571
    %v3673 = vunpack.c.l.b16 %v572
    %v3674 = vunpack.c.h.b16 %v572
    %v3675 = vunpack.c.l.b16 %v573
    %v3676 = vunpack.c.h.b16 %v573
    %v3677 = vunpack.c.l.b16 %v574
    %v3678 = vunpack.c.h.b16 %v574
    %v3679 = vunpack.c.l.b16 %v575
    %v3680 = vunpack.c.h.b16 %v575
    %v3681 = vunpack.c.l.b16 %v576
    %v3682 = vunpack.c.h.b16 %v576
    %v3683 = vunpack.c.l.b16 %v577
    %v3684 = vunpack.c.h.b16 %v577
    %v3685 = vunpack.c.l.b16 %v578
    %v3686 = vunpack.c.h.b16 %v578
    %v3687 = vunpack.c.l.b16 %v579
    %v3688 = vunpack.c.h.b16 %v579
    %v3689 = vunpack.c.l.b16 %v580
    %v3690 = vunpack.c.h.b16 %v580
    %v3691 = vunpack.c.l.b16 %v581
    %v3692 = vunpack.c.h.b16 %v581
    %v3693 = vunpack.c.l.b16 %v582
    %v3694 = vunpack.c.h.b16 %v582
    %v3695 = vunpack.c.l.b16 %v583
    %v3696 = vunpack.c.h.b16 %v583
    %v3697 = vunpack.c.l.b16 %v584
    %v3698 = vunpack.c.l.b16 %v585
    %v3699 = vunpack.c.h.b16 %v585
    %v3700 = vunpack.c.l.b16 %v586
    %v3701 = vunpack.c.h.b16 %v586
    %v3702 = vunpack.c.l.b16 %v587
    %v3703 = vunpack.c.h.b16 %v587
    %v3704 = vunpack.c.l.b16 %v588
    %v3705 = vunpack.c.h.b16 %v588
    %v3706 = vunpack.c.l.b16 %v589
    %v3707 = vunpack.c.h.b16 %v589
    %v3708 = vunpack.c.l.b16 %v590
    %v3709 = vunpack.c.h.b16 %v590
    %v3710 = vunpack.c.l.b16 %v591
    %v3711 = vunpack.c.h.b16 %v591
    %v3712 = vunpack.c.l.b16 %v592
    %v3713 = vunpack.c.h.b16 %v592
    %v3714 = vunpack.c.l.b16 %v593
    %v3715 = vunpack.c.h.b16 %v593
    %v3716 = vunpack.c.l.b16 %v594
    %v3717 = vunpack.c.h.b16 %v594
    %v3718 = vunpack.c.l.b16 %v595
    %v3719 = vunpack.c.h.b16 %v595
    %v3720 = vunpack.c.l.b16 %v596
    %v3721 = vunpack.c.h.b16 %v596
    %v3722 = vunpack.c.l.b16 %v597
    %v3723 = vunpack.c.l.b16 %v598
    %v3724 = vunpack.c.h.b16 %v598
    %v3725 = vunpack.c.l.b16 %v599
    %v3726 = vunpack.c.h.b16 %v599
    %v3727 = vunpack.c.l.b16 %v600
    %v3728 = vunpack.c.h.b16 %v600
    %v3729 = vunpack.c.l.b16 %v601
    %v3730 = vunpack.c.h.b16 %v601
    %v3731 = vunpack.c.l.b16 %v602
    %v3732 = vunpack.c.h.b16 %v602
    %v3733 = vunpack.c.l.b16 %v603
    %v3734 = vunpack.c.h.b16 %v603
    %v3735 = vunpack.c.l.b16 %v604
    %v3736 = vunpack.c.h.b16 %v604
    %v3737 = vunpack.c.l.b16 %v605
    %v3738 = vunpack.c.h.b16 %v605
    %v3739 = vunpack.c.l.b16 %v606
    %v3740 = vunpack.c.h.b16 %v606
    %v3741 = vunpack.c.l.b16 %v607
    %v3742 = vunpack.c.h.b16 %v607
    %v3743 = vunpack.c.l.b16 %v608
    %v3744 = vunpack.c.h.b16 %v608
    %v3745 = vunpack.c.l.b16 %v609
    %v3746 = vunpack.c.h.b16 %v609
    %v3747 = vunpack.c.l.b16 %v610
    %v3748 = vunpack.c.l.b16 %v611
    %v3749 = vunpack.c.h.b16 %v611
    %v3750 = vunpack.c.l.b16 %v612
    %v3751 = vunpack.c.h.b16 %v612
    %v3752 = vunpack.c.l.b16 %v613
    %v3753 = vunpack.c.h.b16 %v613
    %v3754 = vunpack.c.l.b16 %v614
    %v3755 = vunpack.c.h.b16 %v614
    %v3756 = vunpack.c.l.b16 %v615
    %v3757 = vunpack.c.h.b16 %v615
    %v3758 = vunpack.c.l.b16 %v616
    %v3759 = vunpack.c.h.b16 %v616
    %v3760 = vunpack.c.l.b16 %v617
    %v3761 = vunpack.c.h.b16 %v617
    %v3762 = vunpack.c.l.b16 %v618
    %v3763 = vunpack.c.h.b16 %v618
    %v3764 = vunpack.c.l.b16 %v619
    %v3765 = vunpack.c.h.b16 %v619
    %v3766 = vunpack.c.l.b16 %v620
    %v3767 = vunpack.c.h.b16 %v620
    %v3768 = vunpack.c.l.b16 %v621
    %v3769 = vunpack.c.h.b16 %v621
    %v3770 = vunpack.c.l.b16 %v622
    %v3771 = vunpack.c.h.b16 %v622
    %v3772 = vunpack.c.l.b16 %v623
    %v3773 = vunpack.c.l.b16 %v624
    %v3774 = vunpack.c.h.b16 %v624
    %v3775 = vunpack.c.l.b16 %v625
    %v3776 = vunpack.c.h.b16 %v625
    %v3777 = vunpack.c.l.b16 %v626
    %v3778 = vunpack.c.h.b16 %v626
    %v3779 = vunpack.c.l.b16 %v627
    %v3780 = vunpack.c.h.b16 %v627
    %v3781 = vunpack.c.l.b16 %v628
    %v3782 = vunpack.c.h.b16 %v628
    %v3783 = vunpack.c.l.b16 %v629
    %v3784 = vunpack.c.h.b16 %v629
    %v3785 = vunpack.c.l.b16 %v630
    %v3786 = vunpack.c.h.b16 %v630
    %v3787 = vunpack.c.l.b16 %v631
    %v3788 = vunpack.c.h.b16 %v631
    %v3789 = vunpack.c.l.b16 %v632
    %v3790 = vunpack.c.h.b16 %v632
    %v3791 = vunpack.c.l.b16 %v633
    %v3792 = vunpack.c.h.b16 %v633
    %v3793 = vunpack.c.l.b16 %v634
    %v3794 = vunpack.c.h.b16 %v634
    %v3795 = vunpack.c.l.b16 %v635
    %v3796 = vunpack.c.h.b16 %v635
    %v3797 = vunpack.c.l.b16 %v636
    %v3798 = vunpack.c.l.b16 %v637
    %v3799 = vunpack.c.h.b16 %v637
    %v3800 = vunpack.c.l.b16 %v638
    %v3801 = vunpack.c.h.b16 %v638
    %v3802 = vunpack.c.l.b16 %v639
    %v3803 = vunpack.c.h.b16 %v639
    %v3804 = vunpack.c.l.b16 %v640
    %v3805 = vunpack.c.h.b16 %v640
    %v3806 = vunpack.c.l.b16 %v641
    %v3807 = vunpack.c.h.b16 %v641
    %v3808 = vunpack.c.l.b16 %v642
    %v3809 = vunpack.c.h.b16 %v642
    %v3810 = vunpack.c.l.b16 %v643
    %v3811 = vunpack.c.h.b16 %v643
    %v3812 = vunpack.c.l.b16 %v644
    %v3813 = vunpack.c.h.b16 %v644
    %v3814 = vunpack.c.l.b16 %v645
    %v3815 = vunpack.c.h.b16 %v645
    %v3816 = vunpack.c.l.b16 %v646
    %v3817 = vunpack.c.h.b16 %v646
    %v3818 = vunpack.c.l.b16 %v647
    %v3819 = vunpack.c.h.b16 %v647
    %v3820 = vunpack.c.l.b16 %v648
    %v3821 = vunpack.c.h.b16 %v648
    %v3822 = vunpack.c.l.b16 %v649
    %v3823 = vunpack.c.l.b16 %v650
    %v3824 = vunpack.c.h.b16 %v650
    %v3825 = vunpack.c.l.b16 %v651
    %v3826 = vunpack.c.h.b16 %v651
    %v3827 = vunpack.c.l.b16 %v652
    %v3828 = vunpack.c.h.b16 %v652
    %v3829 = vunpack.c.l.b16 %v653
    %v3830 = vunpack.c.h.b16 %v653
    %v3831 = vunpack.c.l.b16 %v654
    %v3832 = vunpack.c.h.b16 %v654
    %v3833 = vunpack.c.l.b16 %v655
    %v3834 = vunpack.c.h.b16 %v655
    %v3835 = vunpack.c.l.b16 %v656
    %v3836 = vunpack.c.h.b16 %v656
    %v3837 = vunpack.c.l.b16 %v657
    %v3838 = vunpack.c.h.b16 %v657
    %v3839 = vunpack.c.l.b16 %v658
    %v3840 = vunpack.c.h.b16 %v658
    %v3841 = vunpack.c.l.b16 %v659
    %v3842 = vunpack.c.h.b16 %v659
    %v3843 = vunpack.c.l.b16 %v660
    %v3844 = vunpack.c.h.b16 %v660
    %v3845 = vunpack.c.l.b16 %v661
    %v3846 = vunpack.c.h.b16 %v661
    %v3847 = vunpack.c.l.b16 %v662
    %v3848 = vunpack.c.l.b16 %v663
    %v3849 = vunpack.c.h.b16 %v663
    %v3850 = vunpack.c.l.b16 %v664
    %v3851 = vunpack.c.h.b16 %v664
    %v3852 = vunpack.c.l.b16 %v665
    %v3853 = vunpack.c.h.b16 %v665
    %v3854 = vunpack.c.l.b16 %v666
    %v3855 = vunpack.c.h.b16 %v666
    %v3856 = vunpack.c.l.b16 %v667
    %v3857 = vunpack.c.h.b16 %v667
    %v3858 = vunpack.c.l.b16 %v668
    %v3859 = vunpack.c.h.b16 %v668
    %v3860 = vunpack.c.l.b16 %v669
    %v3861 = vunpack.c.h.b16 %v669
    %v3862 = vunpack.c.l.b16 %v670
    %v3863 = vunpack.c.h.b16 %v670
    %v3864 = vunpack.c.l.b16 %v671
    %v3865 = vunpack.c.h.b16 %v671
    %v3866 = vunpack.c.l.b16 %v672
    %v3867 = vunpack.c.h.b16 %v672
    %v3868 = vunpack.c.l.b16 %v673
    %v3869 = vunpack.c.h.b16 %v673
    %v3870 = vunpack.c.l.b16 %v674
    %v3871 = vunpack.c.h.b16 %v674
    %v3872 = vunpack.c.l.b16 %v675
    %v3873 = vunpack.c.l.b16 %v676
    %v3874 = vunpack.c.h.b16 %v676
    %v3875 = vunpack.c.l.b16 %v677
    %v3876 = vunpack.c.h.b16 %v677
    %v3877 = vunpack.c.l.b16 %v678
    %v3878 = vunpack.c.h.b16 %v678
    %v3879 = vunpack.c.l.b16 %v679
    %v3880 = vunpack.c.h.b16 %v679
    %v3881 = vunpack.c.l.b16 %v680
    %v3882 = vunpack.c.h.b16 %v680
    %v3883 = vunpack.c.l.b16 %v681
    %v3884 = vunpack.c.h.b16 %v681
    %v3885 = vunpack.c.l.b16 %v682
    %v3886 = vunpack.c.h.b16 %v682
    %v3887 = vunpack.c.l.b16 %v683
    %v3888 = vunpack.c.h.b16 %v683
    %v3889 = vunpack.c.l.b16 %v684
    %v3890 = vunpack.c.h.b16 %v684
    %v3891 = vunpack.c.l.b16 %v685
    %v3892 = vunpack.c.h.b16 %v685
    %v3893 = vunpack.c.l.b16 %v686
    %v3894 = vunpack.c.h.b16 %v686
    %v3895 = vunpack.c.l.b16 %v687
    %v3896 = vunpack.c.h.b16 %v687
    %v3897 = vunpack.c.l.b16 %v688
    %v3898 = vunpack.c.l.b16 %v689
    %v3899 = vunpack.c.h.b16 %v689
    %v3900 = vunpack.c.l.b16 %v690
    %v3901 = vunpack.c.h.b16 %v690
    %v3902 = vunpack.c.l.b16 %v691
    %v3903 = vunpack.c.h.b16 %v691
    %v3904 = vunpack.c.l.b16 %v692
    %v3905 = vunpack.c.h.b16 %v692
    %v3906 = vunpack.c.l.b16 %v693
    %v3907 = vunpack.c.h.b16 %v693
    %v3908 = vunpack.c.l.b16 %v694
    %v3909 = vunpack.c.h.b16 %v694
    %v3910 = vunpack.c.l.b16 %v695
    %v3911 = vunpack.c.h.b16 %v695
    %v3912 = vunpack.c.l.b16 %v696
    %v3913 = vunpack.c.h.b16 %v696
    %v3914 = vunpack.c.l.b16 %v697
    %v3915 = vunpack.c.h.b16 %v697
    %v3916 = vunpack.c.l.b16 %v698
    %v3917 = vunpack.c.h.b16 %v698
    %v3918 = vunpack.c.l.b16 %v699
    %v3919 = vunpack.c.h.b16 %v699
    %v3920 = vunpack.c.l.b16 %v700
    %v3921 = vunpack.c.h.b16 %v700
    %v3922 = vunpack.c.l.b16 %v701
    %v3923 = vunpack.c.l.b16 %v702
    %v3924 = vunpack.c.h.b16 %v702
    %v3925 = vunpack.c.l.b16 %v703
    %v3926 = vunpack.c.h.b16 %v703
    %v3927 = vunpack.c.l.b16 %v704
    %v3928 = vunpack.c.h.b16 %v704
    %v3929 = vunpack.c.l.b16 %v705
    %v3930 = vunpack.c.h.b16 %v705
    %v3931 = vunpack.c.l.b16 %v706
    %v3932 = vunpack.c.h.b16 %v706
    %v3933 = vunpack.c.l.b16 %v707
    %v3934 = vunpack.c.h.b16 %v707
    %v3935 = vunpack.c.l.b16 %v708
    %v3936 = vunpack.c.h.b16 %v708
    %v3937 = vunpack.c.l.b16 %v709
    %v3938 = vunpack.c.h.b16 %v709
    %v3939 = vunpack.c.l.b16 %v710
    %v3940 = vunpack.c.h.b16 %v710
    %v3941 = vunpack.c.l.b16 %v711
    %v3942 = vunpack.c.h.b16 %v711
    %v3943 = vunpack.c.l.b16 %v712
    %v3944 = vunpack.c.h.b16 %v712
    %v3945 = vunpack.c.l.b16 %v713
    %v3946 = vunpack.c.h.b16 %v713
    %v3947 = vunpack.c.l.b16 %v714
    %v3948 = vunpack.c.l.b16 %v715
    %v3949 = vunpack.c.h.b16 %v715
    %v3950 = vunpack.c.l.b16 %v716
    %v3951 = vunpack.c.h.b16 %v716
    %v3952 = vunpack.c.l.b16 %v717
    %v3953 = vunpack.c.h.b16 %v717
    %v3954 = vunpack.c.l.b16 %v718
    %v3955 = vunpack.c.h.b16 %v718
    %v3956 = vunpack.c.l.b16 %v719
    %v3957 = vunpack.c.h.b16 %v719
    %v3958 = vunpack.c.l.b16 %v720
    %v3959 = vunpack.c.h.b16 %v720
    %v3960 = vunpack.c.l.b16 %v721
    %v3961 = vunpack.c.h.b16 %v721
    %v3962 = vunpack.c.l.b16 %v722
    %v3963 = vunpack.c.h.b16 %v722
    %v3964 = vunpack.c.l.b16 %v723
    %v3965 = vunpack.c.h.b16 %v723
    %v3966 = vunpack.c.l.b16 %v724
    %v3967 = vunpack.c.h.b16 %v724
    %v3968 = vunpack.c.l.b16 %v725
    %v3969 = vunpack.c.h.b16 %v725
    %v3970 = vunpack.c.l.b16 %v726
    %v3971 = vunpack.c.h.b16 %v726
    %v3972 = vunpack.c.l.b16 %v727
    %v3973 = vunpack.c.l.b16 %v728
    %v3974 = vunpack.c.h.b16 %v728
    %v3975 = vunpack.c.l.b16 %v729
    %v3976 = vunpack.c.h.b16 %v729
    %v3977 = vunpack.c.l.b16 %v730
    %v3978 = vunpack.c.h.b16 %v730
    %v3979 = vunpack.c.l.b16 %v731
    %v3980 = vunpack.c.h.b16 %v731
    %v3981 = vunpack.c.l.b16 %v732
    %v3982 = vunpack.c.h.b16 %v732
    %v3983 = vunpack.c.l.b16 %v733
    %v3984 = vunpack.c.h.b16 %v733
    %v3985 = vunpack.c.l.b16 %v734
    %v3986 = vunpack.c.h.b16 %v734
    %v3987 = vunpack.c.l.b16 %v735
    %v3988 = vunpack.c.h.b16 %v735
    %v3989 = vunpack.c.l.b16 %v736
    %v3990 = vunpack.c.h.b16 %v736
    %v3991 = vunpack.c.l.b16 %v737
    %v3992 = vunpack.c.h.b16 %v737
    %v3993 = vunpack.c.l.b16 %v738
    %v3994 = vunpack.c.h.b16 %v738
    %v3995 = vunpack.c.l.b16 %v739
    %v3996 = vunpack.c.h.b16 %v739
    %v3997 = vunpack.c.l.b16 %v740
    %v3998 = vunpack.c.l.b16 %v741
    %v3999 = vunpack.c.h.b16 %v741
    %v4000 = vunpack.c.l.b16 %v742
    %v4001 = vunpack.c.h.b16 %v742
    %v4002 = vunpack.c.l.b16 %v743
    %v4003 = vunpack.c.h.b16 %v743
    %v4004 = vunpack.c.l.b16 %v744
    %v4005 = vunpack.c.h.b16 %v744
    %v4006 = vunpack.c.l.b16 %v745
    %v4007 = vunpack.c.h.b16 %v745
    %v4008 = vunpack.c.l.b16 %v746
    %v4009 = vunpack.c.h.b16 %v746
    %v4010 = vunpack.c.l.b16 %v747
    %v4011 = vunpack.c.h.b16 %v747
    %v4012 = vunpack.c.l.b16 %v748
    %v4013 = vunpack.c.h.b16 %v748
    %v4014 = vunpack.c.l.b16 %v749
    %v4015 = vunpack.c.h.b16 %v749
    %v4016 = vunpack.c.l.b16 %v750
    %v4017 = vunpack.c.h.b16 %v750
    %v4018 = vunpack.c.l.b16 %v751
    %v4019 = vunpack.c.h.b16 %v751
    %v4020 = vunpack.c.l.b16 %v752
    %v4021 = vunpack.c.h.b16 %v752
    %v4022 = vunpack.c.l.b16 %v753
    %v4023 = vunpack.c.l.b16 %v754
    %v4024 = vunpack.c.h.b16 %v754
    %v4025 = vunpack.c.l.b16 %v755
    %v4026 = vunpack.c.h.b16 %v755
    %v4027 = vunpack.c.l.b16 %v756
    %v4028 = vunpack.c.h.b16 %v756
    %v4029 = vunpack.c.l.b16 %v757
    %v4030 = vunpack.c.h.b16 %v757
    %v4031 = vunpack.c.l.b16 %v758
    %v4032 = vunpack.c.h.b16 %v758
    %v4033 = vunpack.c.l.b16 %v759
    %v4034 = vunpack.c.h.b16 %v759
    %v4035 = vunpack.c.l.b16 %v760
    %v4036 = vunpack.c.h.b16 %v760
    %v4037 = vunpack.c.l.b16 %v761
    %v4038 = vunpack.c.h.b16 %v761
    %v4039 = vunpack.c.l.b16 %v762
    %v4040 = vunpack.c.h.b16 %v762
    %v4041 = vunpack.c.l.b16 %v763
    %v4042 = vunpack.c.h.b16 %v763
    %v4043 = vunpack.c.l.b16 %v764
    %v4044 = vunpack.c.h.b16 %v764
    %v4045 = vunpack.c.l.b16 %v765
    %v4046 = vunpack.c.h.b16 %v765
    %v4047 = vunpack.c.l.b16 %v766
    %v4048 = vunpack.c.l.b16 %v767
    %v4049 = vunpack.c.h.b16 %v767
    %v4050 = vunpack.c.l.b16 %v768
    %v4051 = vunpack.c.h.b16 %v768
    %v4052 = vunpack.c.l.b16 %v769
    %v4053 = vunpack.c.h.b16 %v769
    %v4054 = vunpack.c.l.b16 %v770
    %v4055 = vunpack.c.h.b16 %v770
    %v4056 = vunpack.c.l.b16 %v771
    %v4057 = vunpack.c.h.b16 %v771
    %v4058 = vunpack.c.l.b16 %v772
    %v4059 = vunpack.c.h.b16 %v772
    %v4060 = vunpack.c.l.b16 %v773
    %v4061 = vunpack.c.h.b16 %v773
    %v4062 = vunpack.c.l.b16 %v774
    %v4063 = vunpack.c.h.b16 %v774
    %v4064 = vunpack.c.l.b16 %v775
    %v4065 = vunpack.c.h.b16 %v775
    %v4066 = vunpack.c.l.b16 %v776
    %v4067 = vunpack.c.h.b16 %v776
    %v4068 = vunpack.c.l.b16 %v777
    %v4069 = vunpack.c.h.b16 %v777
    %v4070 = vunpack.c.l.b16 %v778
    %v4071 = vunpack.c.h.b16 %v778
    %v4072 = vunpack.c.l.b16 %v779
    %v4073 = vunpack.c.l.b16 %v780
    %v4074 = vunpack.c.h.b16 %v780
    %v4075 = vunpack.c.l.b16 %v781
    %v4076 = vunpack.c.h.b16 %v781
    %v4077 = vunpack.c.l.b16 %v782
    %v4078 = vunpack.c.h.b16 %v782
    %v4079 = vunpack.c.l.b16 %v783
    %v4080 = vunpack.c.h.b16 %v783
    %v4081 = vunpack.c.l.b16 %v784
    %v4082 = vunpack.c.h.b16 %v784
    %v4083 = vunpack.c.l.b16 %v785
    %v4084 = vunpack.c.h.b16 %v785
    %v4085 = vunpack.c.l.b16 %v786
    %v4086 = vunpack.c.h.b16 %v786
    %v4087 = vunpack.c.l.b16 %v787
    %v4088 = vunpack.c.h.b16 %v787
    %v4089 = vunpack.c.l.b16 %v788
    %v4090 = vunpack.c.h.b16 %v788
    %v4091 = vunpack.c.l.b16 %v789
    %v4092 = vunpack.c.h.b16 %v789
    %v4093 = vunpack.c.l.b16 %v790
    %v4094 = vunpack.c.h.b16 %v790
    %v4095 = vunpack.c.l.b16 %v791
    %v4096 = vunpack.c.h.b16 %v791
    %v4097 = vunpack.c.l.b16 %v792
    %v4098 = vunpack.c.l.b16 %v793
    %v4099 = vunpack.c.h.b16 %v793
    %v4100 = vunpack.c.l.b16 %v794
    %v4101 = vunpack.c.h.b16 %v794
    %v4102 = vunpack.c.l.b16 %v795
    %v4103 = vunpack.c.h.b16 %v795
    %v4104 = vunpack.c.l.b16 %v796
    %v4105 = vunpack.c.h.b16 %v796
    %v4106 = vunpack.c.l.b16 %v797
    %v4107 = vunpack.c.h.b16 %v797
    %v4108 = vunpack.c.l.b16 %v798
    %v4109 = vunpack.c.h.b16 %v798
    %v4110 = vunpack.c.l.b16 %v799
    %v4111 = vunpack.c.h.b16 %v799
    %v4112 = vunpack.c.l.b16 %v800
    %v4113 = vunpack.c.h.b16 %v800
    %v4114 = vunpack.c.l.b16 %v801
    %v4115 = vunpack.c.h.b16 %v801
    %v4116 = vunpack.c.l.b16 %v802
    %v4117 = vunpack.c.h.b16 %v802
    %v4118 = vunpack.c.l.b16 %v803
    %v4119 = vunpack.c.h.b16 %v803
    %v4120 = vunpack.c.l.b16 %v804
    %v4121 = vunpack.c.h.b16 %v804
    %v4122 = vunpack.c.l.b16 %v805
    %v4123 = vunpack.c.l.b16 %v806
    %v4124 = vunpack.c.h.b16 %v806
    %v4125 = vunpack.c.l.b16 %v807
    %v4126 = vunpack.c.h.b16 %v807
    %v4127 = vunpack.c.l.b16 %v808
    %v4128 = vunpack.c.h.b16 %v808
    %v4129 = vunpack.c.l.b16 %v809
    %v4130 = vunpack.c.h.b16 %v809
    %v4131 = vunpack.c.l.b16 %v810
    %v4132 = vunpack.c.h.b16 %v810
    %v4133 = vunpack.c.l.b16 %v811
    %v4134 = vunpack.c.h.b16 %v811
    %v4135 = vunpack.c.l.b16 %v812
    %v4136 = vunpack.c.h.b16 %v812
    %v4137 = vunpack.c.l.b16 %v813
    %v4138 = vunpack.c.h.b16 %v813
    %v4139 = vunpack.c.l.b16 %v814
    %v4140 = vunpack.c.h.b16 %v814
    %v4141 = vunpack.c.l.b16 %v815
    %v4142 = vunpack.c.h.b16 %v815
    %v4143 = vunpack.c.l.b16 %v816
    %v4144 = vunpack.c.h.b16 %v816
    %v4145 = vunpack.c.l.b16 %v817
    %v4146 = vunpack.c.h.b16 %v817
    %v4147 = vunpack.c.l.b16 %v818
    %v4148 = vunpack.c.l.b16 %v819
    %v4149 = vunpack.c.h.b16 %v819
    %v4150 = vunpack.c.l.b16 %v820
    %v4151 = vunpack.c.h.b16 %v820
    %v4152 = vunpack.c.l.b16 %v821
    %v4153 = vunpack.c.h.b16 %v821
    %v4154 = vunpack.c.l.b16 %v822
    %v4155 = vunpack.c.h.b16 %v822
    %v4156 = vunpack.c.l.b16 %v823
    %v4157 = vunpack.c.h.b16 %v823
    %v4158 = vunpack.c.l.b16 %v824
    %v4159 = vunpack.c.h.b16 %v824
    %v4160 = vunpack.c.l.b16 %v825
    %v4161 = vunpack.c.h.b16 %v825
    %v4162 = vunpack.c.l.b16 %v826
    %v4163 = vunpack.c.h.b16 %v826
    %v4164 = vunpack.c.l.b16 %v827
    %v4165 = vunpack.c.h.b16 %v827
    %v4166 = vunpack.c.l.b16 %v828
    %v4167 = vunpack.c.h.b16 %v828
    %v4168 = vunpack.c.l.b16 %v829
    %v4169 = vunpack.c.h.b16 %v829
    %v4170 = vunpack.c.l.b16 %v830
    %v4171 = vunpack.c.h.b16 %v830
    %v4172 = vunpack.c.l.b16 %v831
    %v4173 = vunpack.c.l.b16 %v832
    %v4174 = vunpack.c.h.b16 %v832
    %v4175 = vunpack.c.l.b16 %v833
    %v4176 = vunpack.c.h.b16 %v833
    %v4177 = vunpack.c.l.b16 %v834
    %v4178 = vunpack.c.h.b16 %v834
    %v4179 = vunpack.c.l.b16 %v835
    %v4180 = vunpack.c.h.b16 %v835
    %v4181 = vunpack.c.l.b16 %v836
    %v4182 = vunpack.c.h.b16 %v836
    %v4183 = vunpack.c.l.b16 %v837
    %v4184 = vunpack.c.h.b16 %v837
    %v4185 = vunpack.c.l.b16 %v838
    %v4186 = vunpack.c.h.b16 %v838
    %v4187 = vunpack.c.l.b16 %v839
    %v4188 = vunpack.c.h.b16 %v839
    %v4189 = vunpack.c.l.b16 %v840
    %v4190 = vunpack.c.h.b16 %v840
    %v4191 = vunpack.c.l.b16 %v841
    %v4192 = vunpack.c.h.b16 %v841
    %v4193 = vunpack.c.l.b16 %v842
    %v4194 = vunpack.c.h.b16 %v842
    %v4195 = vunpack.c.l.b16 %v843
    %v4196 = vunpack.c.h.b16 %v843
    %v4197 = vunpack.c.l.b16 %v844
    %v4198 = vunpack.c.l.b16 %v845
    %v4199 = vunpack.c.h.b16 %v845
    %v4200 = vunpack.c.l.b16 %v846
    %v4201 = vunpack.c.h.b16 %v846
    %v4202 = vunpack.c.l.b16 %v847
    %v4203 = vunpack.c.h.b16 %v847
    %v4204 = vunpack.c.l.b16 %v848
    %v4205 = vunpack.c.h.b16 %v848
    %v4206 = vunpack.c.l.b16 %v849
    %v4207 = vunpack.c.h.b16 %v849
    %v4208 = vunpack.c.l.b16 %v850
    %v4209 = vunpack.c.h.b16 %v850
    %v4210 = vunpack.c.l.b16 %v851
    %v4211 = vunpack.c.h.b16 %v851
    %v4212 = vunpack.c.l.b16 %v852
    %v4213 = vunpack.c.h.b16 %v852
    %v4214 = vunpack.c.l.b16 %v853
    %v4215 = vunpack.c.h.b16 %v853
    %v4216 = vunpack.c.l.b16 %v854
    %v4217 = vunpack.c.h.b16 %v854
    %v4218 = vunpack.c.l.b16 %v855
    %v4219 = vunpack.c.h.b16 %v855
    %v4220 = vunpack.c.l.b16 %v856
    %v4221 = vunpack.c.h.b16 %v856
    %v4222 = vunpack.c.l.b16 %v857
    %v4223 = vunpack.c.l.b16 %v858
    %v4224 = vunpack.c.h.b16 %v858
    %v4225 = vunpack.c.l.b16 %v859
    %v4226 = vunpack.c.h.b16 %v859
    %v4227 = vunpack.c.l.b16 %v860
    %v4228 = vunpack.c.h.b16 %v860
    %v4229 = vunpack.c.l.b16 %v861
    %v4230 = vunpack.c.h.b16 %v861
    %v4231 = vunpack.c.l.b16 %v862
    %v4232 = vunpack.c.h.b16 %v862
    %v4233 = vunpack.c.l.b16 %v863
    %v4234 = vunpack.c.h.b16 %v863
    %v4235 = vunpack.c.l.b16 %v864
    %v4236 = vunpack.c.h.b16 %v864
    %v4237 = vunpack.c.l.b16 %v865
    %v4238 = vunpack.c.h.b16 %v865
    %v4239 = vunpack.c.l.b16 %v866
    %v4240 = vunpack.c.h.b16 %v866
    %v4241 = vunpack.c.l.b16 %v867
    %v4242 = vunpack.c.h.b16 %v867
    %v4243 = vunpack.c.l.b16 %v868
    %v4244 = vunpack.c.h.b16 %v868
    %v4245 = vunpack.c.l.b16 %v869
    %v4246 = vunpack.c.h.b16 %v869
    %v4247 = vunpack.c.l.b16 %v870
    %v4248 = vunpack.c.l.b16 %v871
    %v4249 = vunpack.c.h.b16 %v871
    %v4250 = vunpack.c.l.b16 %v872
    %v4251 = vunpack.c.h.b16 %v872
    %v4252 = vunpack.c.l.b16 %v873
    %v4253 = vunpack.c.h.b16 %v873
    %v4254 = vunpack.c.l.b16 %v874
    %v4255 = vunpack.c.h.b16 %v874
    %v4256 = vunpack.c.l.b16 %v875
    %v4257 = vunpack.c.h.b16 %v875
    %v4258 = vunpack.c.l.b16 %v876
    %v4259 = vunpack.c.h.b16 %v876
    %v4260 = vunpack.c.l.b16 %v877
    %v4261 = vunpack.c.h.b16 %v877
    %v4262 = vunpack.c.l.b16 %v878
    %v4263 = vunpack.c.h.b16 %v878
    %v4264 = vunpack.c.l.b16 %v879
    %v4265 = vunpack.c.h.b16 %v879
    %v4266 = vunpack.c.l.b16 %v880
    %v4267 = vunpack.c.h.b16 %v880
    %v4268 = vunpack.c.l.b16 %v881
    %v4269 = vunpack.c.h.b16 %v881
    %v4270 = vunpack.c.l.b16 %v882
    %v4271 = vunpack.c.h.b16 %v882
    %v4272 = vunpack.c.l.b16 %v883
    %v4273 = vunpack.c.l.b16 %v884
    %v4274 = vunpack.c.h.b16 %v884
    %v4275 = vunpack.c.l.b16 %v885
    %v4276 = vunpack.c.h.b16 %v885
    %v4277 = vunpack.c.l.b16 %v886
    %v4278 = vunpack.c.h.b16 %v886
    %v4279 = vunpack.c.l.b16 %v887
    %v4280 = vunpack.c.h.b16 %v887
    %v4281 = vunpack.c.l.b16 %v888
    %v4282 = vunpack.c.h.b16 %v888
    %v4283 = vunpack.c.l.b16 %v889
    %v4284 = vunpack.c.h.b16 %v889
    %v4285 = vunpack.c.l.b16 %v890
    %v4286 = vunpack.c.h.b16 %v890
    %v4287 = vunpack.c.l.b16 %v891
    %v4288 = vunpack.c.h.b16 %v891
    %v4289 = vunpack.c.l.b16 %v892
    %v4290 = vunpack.c.h.b16 %v892
    %v4291 = vunpack.c.l.b16 %v893
    %v4292 = vunpack.c.h.b16 %v893
    %v4293 = vunpack.c.l.b16 %v894
    %v4294 = vunpack.c.h.b16 %v894
    %v4295 = vunpack.c.l.b16 %v895
    %v4296 = vunpack.c.h.b16 %v895
    %v4297 = vunpack.c.l.b16 %v896
    %v4298 = vunpack.c.l.b16 %v897
    %v4299 = vunpack.c.h.b16 %v897
    %v4300 = vunpack.c.l.b16 %v898
    %v4301 = vunpack.c.h.b16 %v898
    %v4302 = vunpack.c.l.b16 %v899
    %v4303 = vunpack.c.h.b16 %v899
    %v4304 = vunpack.c.l.b16 %v900
    %v4305 = vunpack.c.h.b16 %v900
    %v4306 = vunpack.c.l.b16 %v901
    %v4307 = vunpack.c.h.b16 %v901
    %v4308 = vunpack.c.l.b16 %v902
    %v4309 = vunpack.c.h.b16 %v902
    %v4310 = vunpack.c.l.b16 %v903
    %v4311 = vunpack.c.h.b16 %v903
    %v4312 = vunpack.c.l.b16 %v904
    %v4313 = vunpack.c.h.b16 %v904
    %v4314 = vunpack.c.l.b16 %v905
    %v4315 = vunpack.c.h.b16 %v905
    %v4316 = vunpack.c.l.b16 %v906
    %v4317 = vunpack.c.h.b16 %v906
    %v4318 = vunpack.c.l.b16 %v907
    %v4319 = vunpack.c.h.b16 %v907
    %v4320 = vunpack.c.l.b16 %v908
    %v4321 = vunpack.c.h.b16 %v908
    %v4322 = vunpack.c.l.b16 %v909
    %v4323 = vunpack.c.l.b16 %v910
    %v4324 = vunpack.c.h.b16 %v910
    %v4325 = vunpack.c.l.b16 %v911
    %v4326 = vunpack.c.h.b16 %v911
    %v4327 = vunpack.c.l.b16 %v912
    %v4328 = vunpack.c.h.b16 %v912
    %v4329 = vunpack.c.l.b16 %v913
    %v4330 = vunpack.c.h.b16 %v913
    %v4331 = vunpack.c.l.b16 %v914
    %v4332 = vunpack.c.h.b16 %v914
    %v4333 = vunpack.c.l.b16 %v915
    %v4334 = vunpack.c.h.b16 %v915
    %v4335 = vunpack.c.l.b16 %v916
    %v4336 = vunpack.c.h.b16 %v916
    %v4337 = vunpack.c.l.b16 %v917
    %v4338 = vunpack.c.h.b16 %v917
    %v4339 = vunpack.c.l.b16 %v918
    %v4340 = vunpack.c.h.b16 %v918
    %v4341 = vunpack.c.l.b16 %v919
    %v4342 = vunpack.c.h.b16 %v919
    %v4343 = vunpack.c.l.b16 %v920
    %v4344 = vunpack.c.h.b16 %v920
    %v4345 = vunpack.c.l.b16 %v921
    %v4346 = vunpack.c.h.b16 %v921
    %v4347 = vunpack.c.l.b16 %v922
    %v4348 = vunpack.c.l.b16 %v923
    %v4349 = vunpack.c.h.b16 %v923
    %v4350 = vunpack.c.l.b16 %v924
    %v4351 = vunpack.c.h.b16 %v924
    %v4352 = vunpack.c.l.b16 %v925
    %v4353 = vunpack.c.h.b16 %v925
    %v4354 = vunpack.c.l.b16 %v926
    %v4355 = vunpack.c.h.b16 %v926
    %v4356 = vunpack.c.l.b16 %v927
    %v4357 = vunpack.c.h.b16 %v927
    %v4358 = vunpack.c.l.b16 %v928
    %v4359 = vunpack.c.h.b16 %v928
    %v4360 = vunpack.c.l.b16 %v929
    %v4361 = vunpack.c.h.b16 %v929
    %v4362 = vunpack.c.l.b16 %v930
    %v4363 = vunpack.c.h.b16 %v930
    %v4364 = vunpack.c.l.b16 %v931
    %v4365 = vunpack.c.h.b16 %v931
    %v4366 = vunpack.c.l.b16 %v932
    %v4367 = vunpack.c.h.b16 %v932
    %v4368 = vunpack.c.l.b16 %v933
    %v4369 = vunpack.c.h.b16 %v933
    %v4370 = vunpack.c.l.b16 %v934
    %v4371 = vunpack.c.h.b16 %v934
    %v4372 = vunpack.c.l.b16 %v935
    %v4373 = vunpack.c.l.b16 %v936
    %v4374 = vunpack.c.h.b16 %v936
    %v4375 = vunpack.c.l.b16 %v937
    %v4376 = vunpack.c.h.b16 %v937
    %v4377 = vunpack.c.l.b16 %v938
    %v4378 = vunpack.c.h.b16 %v938
    %v4379 = vunpack.c.l.b16 %v939
    %v4380 = vunpack.c.h.b16 %v939
    %v4381 = vunpack.c.l.b16 %v940
    %v4382 = vunpack.c.h.b16 %v940
    %v4383 = vunpack.c.l.b16 %v941
    %v4384 = vunpack.c.h.b16 %v941
    %v4385 = vunpack.c.l.b16 %v942
    %v4386 = vunpack.c.h.b16 %v942
    %v4387 = vunpack.c.l.b16 %v943
    %v4388 = vunpack.c.h.b16 %v943
    %v4389 = vunpack.c.l.b16 %v944
    %v4390 = vunpack.c.h.b16 %v944
    %v4391 = vunpack.c.l.b16 %v945
    %v4392 = vunpack.c.h.b16 %v945
    %v4393 = vunpack.c.l.b16 %v946
    %v4394 = vunpack.c.h.b16 %v946
    %v4395 = vunpack.c.l.b16 %v947
    %v4396 = vunpack.c.h.b16 %v947
    %v4397 = vunpack.c.l.b16 %v948
    %v4398 = vunpack.c.l.b16 %v949
    %v4399 = vunpack.c.h.b16 %v949
    %v4400 = vunpack.c.l.b16 %v950
    %v4401 = vunpack.c.h.b16 %v950
    %v4402 = vunpack.c.l.b16 %v951
    %v4403 = vunpack.c.h.b16 %v951
    %v4404 = vunpack.c.l.b16 %v952
    %v4405 = vunpack.c.h.b16 %v952
    %v4406 = vunpack.c.l.b16 %v953
    %v4407 = vunpack.c.h.b16 %v953
    %v4408 = vunpack.c.l.b16 %v954
    %v4409 = vunpack.c.h.b16 %v954
    %v4410 = vunpack.c.l.b16 %v955
    %v4411 = vunpack.c.h.b16 %v955
    %v4412 = vunpack.c.l.b16 %v956
    %v4413 = vunpack.c.h.b16 %v956
    %v4414 = vunpack.c.l.b16 %v957
    %v4415 = vunpack.c.h.b16 %v957
    %v4416 = vunpack.c.l.b16 %v958
    %v4417 = vunpack.c.h.b16 %v958
    %v4418 = vunpack.c.l.b16 %v959
    %v4419 = vunpack.c.h.b16 %v959
    %v4420 = vunpack.c.l.b16 %v960
    %v4421 = vunpack.c.h.b16 %v960
    %v4422 = vunpack.c.l.b16 %v961
    %v4423 = vunpack.c.l.b16 %v962
    %v4424 = vunpack.c.h.b16 %v962
    %v4425 = vunpack.c.l.b16 %v963
    %v4426 = vunpack.c.h.b16 %v963
    %v4427 = vunpack.c.l.b16 %v964
    %v4428 = vunpack.c.h.b16 %v964
    %v4429 = vunpack.c.l.b16 %v965
    %v4430 = vunpack.c.h.b16 %v965
    %v4431 = vunpack.c.l.b16 %v966
    %v4432 = vunpack.c.h.b16 %v966
    %v4433 = vunpack.c.l.b16 %v967
    %v4434 = vunpack.c.h.b16 %v967
    %v4435 = vunpack.c.l.b16 %v968
    %v4436 = vunpack.c.h.b16 %v968
    %v4437 = vunpack.c.l.b16 %v969
    %v4438 = vunpack.c.h.b16 %v969
    %v4439 = vunpack.c.l.b16 %v970
    %v4440 = vunpack.c.h.b16 %v970
    %v4441 = vunpack.c.l.b16 %v971
    %v4442 = vunpack.c.h.b16 %v971
    %v4443 = vunpack.c.l.b16 %v972
    %v4444 = vunpack.c.h.b16 %v972
    %v4445 = vunpack.c.l.b16 %v973
    %v4446 = vunpack.c.h.b16 %v973
    %v4447 = vunpack.c.l.b16 %v974
    %v4448 = vunpack.c.l.b16 %v975
    %v4449 = vunpack.c.h.b16 %v975
    %v4450 = vunpack.c.l.b16 %v976
    %v4451 = vunpack.c.h.b16 %v976
    %v4452 = vunpack.c.l.b16 %v977
    %v4453 = vunpack.c.h.b16 %v977
    %v4454 = vunpack.c.l.b16 %v978
    %v4455 = vunpack.c.h.b16 %v978
    %v4456 = vunpack.c.l.b16 %v979
    %v4457 = vunpack.c.h.b16 %v979
    %v4458 = vunpack.c.l.b16 %v980
    %v4459 = vunpack.c.h.b16 %v980
    %v4460 = vunpack.c.l.b16 %v981
    %v4461 = vunpack.c.h.b16 %v981
    %v4462 = vunpack.c.l.b16 %v982
    %v4463 = vunpack.c.h.b16 %v982
    %v4464 = vunpack.c.l.b16 %v983
    %v4465 = vunpack.c.h.b16 %v983
    %v4466 = vunpack.c.l.b16 %v984
    %v4467 = vunpack.c.h.b16 %v984
    %v4468 = vunpack.c.l.b16 %v985
    %v4469 = vunpack.c.h.b16 %v985
    %v4470 = vunpack.c.l.b16 %v986
    %v4471 = vunpack.c.h.b16 %v986
    %v4472 = vunpack.c.l.b16 %v987
    %v4473 = vunpack.c.l.b16 %v988
    %v4474 = vunpack.c.h.b16 %v988
    %v4475 = vunpack.c.l.b16 %v989
    %v4476 = vunpack.c.h.b16 %v989
    %v4477 = vunpack.c.l.b16 %v990
    %v4478 = vunpack.c.h.b16 %v990
    %v4479 = vunpack.c.l.b16 %v991
    %v4480 = vunpack.c.h.b16 %v991
    %v4481 = vunpack.c.l.b16 %v992
    %v4482 = vunpack.c.h.b16 %v992
    %v4483 = vunpack.c.l.b16 %v993
    %v4484 = vunpack.c.h.b16 %v993
    %v4485 = vunpack.c.l.b16 %v994
    %v4486 = vunpack.c.h.b16 %v994
    %v4487 = vunpack.c.l.b16 %v995
    %v4488 = vunpack.c.h.b16 %v995
    %v4489 = vunpack.c.l.b16 %v996
    %v4490 = vunpack.c.h.b16 %v996
    %v4491 = vunpack.c.l.b16 %v997
    %v4492 = vunpack.c.h.b16 %v997
    %v4493 = vunpack.c.l.b16 %v998
    %v4494 = vunpack.c.h.b16 %v998
    %v4495 = vunpack.c.l.b16 %v999
    %v4496 = vunpack.c.h.b16 %v999
    %v4497 = vunpack.c.l.b16 %v1000
    %v4498 = vunpack.c.l.b16 %v1001
    %v4499 = vunpack.c.h.b16 %v1001
    %v4500 = vunpack.c.l.b16 %v1002
    %v4501 = vunpack.c.h.b16 %v1002
    %v4502 = vunpack.c.l.b16 %v1003
    %v4503 = vunpack.c.h.b16 %v1003
    %v4504 = vunpack.c.l.b16 %v1004
    %v4505 = vunpack.c.h.b16 %v1004
    %v4506 = vunpack.c.l.b16 %v1005
    %v4507 = vunpack.c.h.b16 %v1005
    %v4508 = vunpack.c.l.b16 %v1006
    %v4509 = vunpack.c.h.b16 %v1006
    %v4510 = vunpack.c.l.b16 %v1007
    %v4511 = vunpack.c.h.b16 %v1007
    %v4512 = vunpack.c.l.b16 %v1008
    %v4513 = vunpack.c.h.b16 %v1008
    %v4514 = vunpack.c.l.b16 %v1009
    %v4515 = vunpack.c.h.b16 %v1009
    %v4516 = vunpack.c.l.b16 %v1010
    %v4517 = vunpack.c.h.b16 %v1010
    %v4518 = vunpack.c.l.b16 %v1011
    %v4519 = vunpack.c.h.b16 %v1011
    %v4520 = vunpack.c.l.b16 %v1012
    %v4521 = vunpack.c.h.b16 %v1012
    %v4522 = vunpack.c.l.b16 %v1013
    %v4523 = vunpack.c.l.b16 %v1014
    %v4524 = vunpack.c.h.b16 %v1014
    %v4525 = vunpack.c.l.b16 %v1015
    %v4526 = vunpack.c.h.b16 %v1015
    %v4527 = vunpack.c.l.b16 %v1016
    %v4528 = vunpack.c.h.b16 %v1016
    %v4529 = vunpack.c.l.b16 %v1017
    %v4530 = vunpack.c.h.b16 %v1017
    %v4531 = vunpack.c.l.b16 %v1018
    %v4532 = vunpack.c.h.b16 %v1018
    %v4533 = vunpack.c.l.b16 %v1019
    %v4534 = vunpack.c.h.b16 %v1019
    %v4535 = vunpack.c.l.b16 %v1020
    %v4536 = vunpack.c.h.b16 %v1020
    %v4537 = vunpack.c.l.b16 %v1021
    %v4538 = vunpack.c.h.b16 %v1021
    %v4539 = vunpack.c.l.b16 %v1022
    %v4540 = vunpack.c.h.b16 %v1022
    %v4541 = vunpack.c.l.b16 %v1023
    %v4542 = vunpack.c.h.b16 %v1023
    %v4543 = vunpack.c.l.b16 %v1024
    %v4544 = vunpack.c.h.b16 %v1024
    %v4545 = vunpack.c.l.b16 %v1025
    %v4546 = vunpack.c.h.b16 %v1025
    %v4547 = vunpack.c.l.b16 %v1026
    %v4548 = vunpack.c.l.b16 %v1027
    %v4549 = vunpack.c.h.b16 %v1027
    %v4550 = vunpack.c.l.b16 %v1028
    %v4551 = vunpack.c.h.b16 %v1028
    %v4552 = vunpack.c.l.b16 %v1029
    %v4553 = vunpack.c.h.b16 %v1029
    %v4554 = vunpack.c.l.b16 %v1030
    %v4555 = vunpack.c.h.b16 %v1030
    %v4556 = vunpack.c.l.b16 %v1031
    %v4557 = vunpack.c.h.b16 %v1031
    %v4558 = vunpack.c.l.b16 %v1032
    %v4559 = vunpack.c.h.b16 %v1032
    %v4560 = vunpack.c.l.b16 %v1033
    %v4561 = vunpack.c.h.b16 %v1033
    %v4562 = vunpack.c.l.b16 %v1034
    %v4563 = vunpack.c.h.b16 %v1034
    %v4564 = vunpack.c.l.b16 %v1035
    %v4565 = vunpack.c.h.b16 %v1035
    %v4566 = vunpack.c.l.b16 %v1036
    %v4567 = vunpack.c.h.b16 %v1036
    %v4568 = vunpack.c.l.b16 %v1037
    %v4569 = vunpack.c.h.b16 %v1037
    %v4570 = vunpack.c.l.b16 %v1038
    %v4571 = vunpack.c.h.b16 %v1038
    %v4572 = vunpack.c.l.b16 %v1039
    %v4573 = vunpack.c.l.b16 %v1040
    %v4574 = vunpack.c.h.b16 %v1040
    %v4575 = vunpack.c.l.b16 %v1041
    %v4576 = vunpack.c.h.b16 %v1041
    %v4577 = vunpack.c.l.b16 %v1042
    %v4578 = vunpack.c.h.b16 %v1042
    %v4579 = vunpack.c.l.b16 %v1043
    %v4580 = vunpack.c.h.b16 %v1043
    %v4581 = vunpack.c.l.b16 %v1044
    %v4582 = vunpack.c.h.b16 %v1044
    %v4583 = vunpack.c.l.b16 %v1045
    %v4584 = vunpack.c.h.b16 %v1045
    %v4585 = vunpack.c.l.b16 %v1046
    %v4586 = vunpack.c.h.b16 %v1046
    %v4587 = vunpack.c.l.b16 %v1047
    %v4588 = vunpack.c.h.b16 %v1047
    %v4589 = vunpack.c.l.b16 %v1048
    %v4590 = vunpack.c.h.b16 %v1048
    %v4591 = vunpack.c.l.b16 %v1049
    %v4592 = vunpack.c.h.b16 %v1049
    %v4593 = vunpack.c.l.b16 %v1050
    %v4594 = vunpack.c.h.b16 %v1050
    %v4595 = vunpack.c.l.b16 %v1051
    %v4596 = vunpack.c.h.b16 %v1051
    %v4597 = vunpack.c.l.b16 %v1052
    %v4598 = vunpack.c.l.b16 %v1053
    %v4599 = vunpack.c.h.b16 %v1053
    %v4600 = vunpack.c.l.b16 %v1054
    %v4601 = vunpack.c.h.b16 %v1054
    %v4602 = vunpack.c.l.b16 %v1055
    %v4603 = vunpack.c.h.b16 %v1055
    %v4604 = vunpack.c.l.b16 %v1056
    %v4605 = vunpack.c.h.b16 %v1056
    %v4606 = vunpack.c.l.b16 %v1057
    %v4607 = vunpack.c.h.b16 %v1057
    %v4608 = vunpack.c.l.b16 %v1058
    %v4609 = vunpack.c.h.b16 %v1058
    %v4610 = vunpack.c.l.b16 %v1059
    %v4611 = vunpack.c.h.b16 %v1059
    %v4612 = vunpack.c.l.b16 %v1060
    %v4613 = vunpack.c.h.b16 %v1060
    %v4614 = vunpack.c.l.b16 %v1061
    %v4615 = vunpack.c.h.b16 %v1061
    %v4616 = vunpack.c.l.b16 %v1062
    %v4617 = vunpack.c.h.b16 %v1062
    %v4618 = vunpack.c.l.b16 %v1063
    %v4619 = vunpack.c.h.b16 %v1063
    %v4620 = vunpack.c.l.b16 %v1064
    %v4621 = vunpack.c.h.b16 %v1064
    %v4622 = vunpack.c.l.b16 %v1065
    %v4623 = vunpack.c.l.b16 %v1066
    %v4624 = vunpack.c.h.b16 %v1066
    %v4625 = vunpack.c.l.b16 %v1067
    %v4626 = vunpack.c.h.b16 %v1067
    %v4627 = vunpack.c.l.b16 %v1068
    %v4628 = vunpack.c.h.b16 %v1068
    %v4629 = vunpack.c.l.b16 %v1069
    %v4630 = vunpack.c.h.b16 %v1069
    %v4631 = vunpack.c.l.b16 %v1070
    %v4632 = vunpack.c.h.b16 %v1070
    %v4633 = vunpack.c.l.b16 %v1071
    %v4634 = vunpack.c.h.b16 %v1071
    %v4635 = vunpack.c.l.b16 %v1072
    %v4636 = vunpack.c.h.b16 %v1072
    %v4637 = vunpack.c.l.b16 %v1073
    %v4638 = vunpack.c.h.b16 %v1073
    %v4639 = vunpack.c.l.b16 %v1074
    %v4640 = vunpack.c.h.b16 %v1074
    %v4641 = vunpack.c.l.b16 %v1075
    %v4642 = vunpack.c.h.b16 %v1075
    %v4643 = vunpack.c.l.b16 %v1076
    %v4644 = vunpack.c.h.b16 %v1076
    %v4645 = vunpack.c.l.b16 %v1077
    %v4646 = vunpack.c.h.b16 %v1077
    %v4647 = vunpack.c.l.b16 %v1078
    %v4648 = vunpack.c.l.b16 %v1079
    %v4649 = vunpack.c.h.b16 %v1079
    %v4650 = vunpack.c.l.b16 %v1080
    %v4651 = vunpack.c.h.b16 %v1080
    %v4652 = vunpack.c.l.b16 %v1081
    %v4653 = vunpack.c.h.b16 %v1081
    %v4654 = vunpack.c.l.b16 %v1082
    %v4655 = vunpack.c.h.b16 %v1082
    %v4656 = vunpack.c.l.b16 %v1083
    %v4657 = vunpack.c.h.b16 %v1083
    %v4658 = vunpack.c.l.b16 %v1084
    %v4659 = vunpack.c.h.b16 %v1084
    %v4660 = vunpack.c.l.b16 %v1085
    %v4661 = vunpack.c.h.b16 %v1085
    %v4662 = vunpack.c.l.b16 %v1086
    %v4663 = vunpack.c.h.b16 %v1086
    %v4664 = vunpack.c.l.b16 %v1087
    %v4665 = vunpack.c.h.b16 %v1087
    %v4666 = vunpack.c.l.b16 %v1088
    %v4667 = vunpack.c.h.b16 %v1088
    %v4668 = vunpack.c.l.b16 %v1089
    %v4669 = vunpack.c.h.b16 %v1089
    %v4670 = vunpack.c.l.b16 %v1090
    %v4671 = vunpack.c.h.b16 %v1090
    %v4672 = vunpack.c.l.b16 %v1091
    %v4673 = vunpack.c.l.b16 %v1092
    %v4674 = vunpack.c.h.b16 %v1092
    %v4675 = vunpack.c.l.b16 %v1093
    %v4676 = vunpack.c.h.b16 %v1093
    %v4677 = vunpack.c.l.b16 %v1094
    %v4678 = vunpack.c.h.b16 %v1094
    %v4679 = vunpack.c.l.b16 %v1095
    %v4680 = vunpack.c.h.b16 %v1095
    %v4681 = vunpack.c.l.b16 %v1096
    %v4682 = vunpack.c.h.b16 %v1096
    %v4683 = vunpack.c.l.b16 %v1097
    %v4684 = vunpack.c.h.b16 %v1097
    %v4685 = vunpack.c.l.b16 %v1098
    %v4686 = vunpack.c.h.b16 %v1098
    %v4687 = vunpack.c.l.b16 %v1099
    %v4688 = vunpack.c.h.b16 %v1099
    %v4689 = vunpack.c.l.b16 %v1100
    %v4690 = vunpack.c.h.b16 %v1100
    %v4691 = vunpack.c.l.b16 %v1101
    %v4692 = vunpack.c.h.b16 %v1101
    %v4693 = vunpack.c.l.b16 %v1102
    %v4694 = vunpack.c.h.b16 %v1102
    %v4695 = vunpack.c.l.b16 %v1103
    %v4696 = vunpack.c.h.b16 %v1103
    %v4697 = vunpack.c.l.b16 %v1104
    %v4698 = vunpack.c.l.b16 %v1105
    %v4699 = vunpack.c.h.b16 %v1105
    %v4700 = vunpack.c.l.b16 %v1106
    %v4701 = vunpack.c.h.b16 %v1106
    %v4702 = vunpack.c.l.b16 %v1107
    %v4703 = vunpack.c.h.b16 %v1107
    %v4704 = vunpack.c.l.b16 %v1108
    %v4705 = vunpack.c.h.b16 %v1108
    %v4706 = vunpack.c.l.b16 %v1109
    %v4707 = vunpack.c.h.b16 %v1109
    %v4708 = vunpack.c.l.b16 %v1110
    %v4709 = vunpack.c.h.b16 %v1110
    %v4710 = vunpack.c.l.b16 %v1111
    %v4711 = vunpack.c.h.b16 %v1111
    %v4712 = vunpack.c.l.b16 %v1112
    %v4713 = vunpack.c.h.b16 %v1112
    %v4714 = vunpack.c.l.b16 %v1113
    %v4715 = vunpack.c.h.b16 %v1113
    %v4716 = vunpack.c.l.b16 %v1114
    %v4717 = vunpack.c.h.b16 %v1114
    %v4718 = vunpack.c.l.b16 %v1115
    %v4719 = vunpack.c.h.b16 %v1115
    %v4720 = vunpack.c.l.b16 %v1116
    %v4721 = vunpack.c.h.b16 %v1116
    %v4722 = vunpack.c.l.b16 %v1117
    %v4723 = vunpack.c.l.b16 %v1118
    %v4724 = vunpack.c.h.b16 %v1118
    %v4725 = vunpack.c.l.b16 %v1119
    %v4726 = vunpack.c.h.b16 %v1119
    %v4727 = vunpack.c.l.b16 %v1120
    %v4728 = vunpack.c.h.b16 %v1120
    %v4729 = vunpack.c.l.b16 %v1121
    %v4730 = vunpack.c.h.b16 %v1121
    %v4731 = vunpack.c.l.b16 %v1122
    %v4732 = vunpack.c.h.b16 %v1122
    %v4733 = vunpack.c.l.b16 %v1123
    %v4734 = vunpack.c.h.b16 %v1123
    %v4735 = vunpack.c.l.b16 %v1124
    %v4736 = vunpack.c.h.b16 %v1124
    %v4737 = vunpack.c.l.b16 %v1125
    %v4738 = vunpack.c.h.b16 %v1125
    %v4739 = vunpack.c.l.b16 %v1126
    %v4740 = vunpack.c.h.b16 %v1126
    %v4741 = vunpack.c.l.b16 %v1127
    %v4742 = vunpack.c.h.b16 %v1127
    %v4743 = vunpack.c.l.b16 %v1128
    %v4744 = vunpack.c.h.b16 %v1128
    %v4745 = vunpack.c.l.b16 %v1129
    %v4746 = vunpack.c.h.b16 %v1129
    %v4747 = vunpack.c.l.b16 %v1130
    %v4748 = vunpack.c.l.b16 %v1131
    %v4749 = vunpack.c.h.b16 %v1131
    %v4750 = vunpack.c.l.b16 %v1132
    %v4751 = vunpack.c.h.b16 %v1132
    %v4752 = vunpack.c.l.b16 %v1133
    %v4753 = vunpack.c.h.b16 %v1133
    %v4754 = vunpack.c.l.b16 %v1134
    %v4755 = vunpack.c.h.b16 %v1134
    %v4756 = vunpack.c.l.b16 %v1135
    %v4757 = vunpack.c.h.b16 %v1135
    %v4758 = vunpack.c.l.b16 %v1136
    %v4759 = vunpack.c.h.b16 %v1136
    %v4760 = vunpack.c.l.b16 %v1137
    %v4761 = vunpack.c.h.b16 %v1137
    %v4762 = vunpack.c.l.b16 %v1138
    %v4763 = vunpack.c.h.b16 %v1138
    %v4764 = vunpack.c.l.b16 %v1139
    %v4765 = vunpack.c.h.b16 %v1139
    %v4766 = vunpack.c.l.b16 %v1140
    %v4767 = vunpack.c.h.b16 %v1140
    %v4768 = vunpack.c.l.b16 %v1141
    %v4769 = vunpack.c.h.b16 %v1141
    %v4770 = vunpack.c.l.b16 %v1142
    %v4771 = vunpack.c.h.b16 %v1142
    %v4772 = vunpack.c.l.b16 %v1143
    %v4773 = vunpack.c.l.b16 %v1144
    %v4774 = vunpack.c.h.b16 %v1144
    %v4775 = vunpack.c.l.b16 %v1145
    %v4776 = vunpack.c.h.b16 %v1145
    %v4777 = vunpack.c.l.b16 %v1146
    %v4778 = vunpack.c.h.b16 %v1146
    %v4779 = vunpack.c.l.b16 %v1147
    %v4780 = vunpack.c.h.b16 %v1147
    %v4781 = vunpack.c.l.b16 %v1148
    %v4782 = vunpack.c.h.b16 %v1148
    %v4783 = vunpack.c.l.b16 %v1149
    %v4784 = vunpack.c.h.b16 %v1149
    %v4785 = vunpack.c.l.b16 %v1150
    %v4786 = vunpack.c.h.b16 %v1150
    %v4787 = vunpack.c.l.b16 %v1151
    %v4788 = vunpack.c.h.b16 %v1151
    %v4789 = vunpack.c.l.b16 %v1152
    %v4790 = vunpack.c.h.b16 %v1152
    %v4791 = vunpack.c.l.b16 %v1153
    %v4792 = vunpack.c.h.b16 %v1153
    %v4793 = vunpack.c.l.b16 %v1154
    %v4794 = vunpack.c.h.b16 %v1154
    %v4795 = vunpack.c.l.b16 %v1155
    %v4796 = vunpack.c.h.b16 %v1155
    %v4797 = vunpack.c.l.b16 %v1156
    %v4798 = vunpack.c.l.b16 %v1157
    %v4799 = vunpack.c.h.b16 %v1157
    %v4800 = vunpack.c.l.b16 %v1158
    %v4801 = vunpack.c.h.b16 %v1158
    %v4802 = vunpack.c.l.b16 %v1159
    %v4803 = vunpack.c.h.b16 %v1159
    %v4804 = vunpack.c.l.b16 %v1160
    %v4805 = vunpack.c.h.b16 %v1160
    %v4806 = vunpack.c.l.b16 %v1161
    %v4807 = vunpack.c.h.b16 %v1161
    %v4808 = vunpack.c.l.b16 %v1162
    %v4809 = vunpack.c.h.b16 %v1162
    %v4810 = vunpack.c.l.b16 %v1163
    %v4811 = vunpack.c.h.b16 %v1163
    %v4812 = vunpack.c.l.b16 %v1164
    %v4813 = vunpack.c.h.b16 %v1164
    %v4814 = vunpack.c.l.b16 %v1165
    %v4815 = vunpack.c.h.b16 %v1165
    %v4816 = vunpack.c.l.b16 %v1166
    %v4817 = vunpack.c.h.b16 %v1166
    %v4818 = vunpack.c.l.b16 %v1167
    %v4819 = vunpack.c.h.b16 %v1167
    %v4820 = vunpack.c.l.b16 %v1168
    %v4821 = vunpack.c.h.b16 %v1168
    %v4822 = vunpack.c.l.b16 %v1169
    %v4823 = vunpack.c.l.b16 %v1170
    %v4824 = vunpack.c.h.b16 %v1170
    %v4825 = vunpack.c.l.b16 %v1171
    %v4826 = vunpack.c.h.b16 %v1171
    %v4827 = vunpack.c.l.b16 %v1172
    %v4828 = vunpack.c.h.b16 %v1172
    %v4829 = vunpack.c.l.b16 %v1173
    %v4830 = vunpack.c.h.b16 %v1173
    %v4831 = vunpack.c.l.b16 %v1174
    %v4832 = vunpack.c.h.b16 %v1174
    %v4833 = vunpack.c.l.b16 %v1175
    %v4834 = vunpack.c.h.b16 %v1175
    %v4835 = vunpack.c.l.b16 %v1176
    %v4836 = vunpack.c.h.b16 %v1176
    %v4837 = vunpack.c.l.b16 %v1177
    %v4838 = vunpack.c.h.b16 %v1177
    %v4839 = vunpack.c.l.b16 %v1178
    %v4840 = vunpack.c.h.b16 %v1178
    %v4841 = vunpack.c.l.b16 %v1179
    %v4842 = vunpack.c.h.b16 %v1179
    %v4843 = vunpack.c.l.b16 %v1180
    %v4844 = vunpack.c.h.b16 %v1180
    %v4845 = vunpack.c.l.b16 %v1181
    %v4846 = vunpack.c.h.b16 %v1181
    %v4847 = vunpack.c.l.b16 %v1182
    %v4848 = vunpack.c.l.b16 %v1183
    %v4849 = vunpack.c.h.b16 %v1183
    %v4850 = vunpack.c.l.b16 %v1184
    %v4851 = vunpack.c.h.b16 %v1184
    %v4852 = vunpack.c.l.b16 %v1185
    %v4853 = vunpack.c.h.b16 %v1185
    %v4854 = vunpack.c.l.b16 %v1186
    %v4855 = vunpack.c.h.b16 %v1186
    %v4856 = vunpack.c.l.b16 %v1187
    %v4857 = vunpack.c.h.b16 %v1187
    %v4858 = vunpack.c.l.b16 %v1188
    %v4859 = vunpack.c.h.b16 %v1188
    %v4860 = vunpack.c.l.b16 %v1189
    %v4861 = vunpack.c.h.b16 %v1189
    %v4862 = vunpack.c.l.b16 %v1190
    %v4863 = vunpack.c.h.b16 %v1190
    %v4864 = vunpack.c.l.b16 %v1191
    %v4865 = vunpack.c.h.b16 %v1191
    %v4866 = vunpack.c.l.b16 %v1192
    %v4867 = vunpack.c.h.b16 %v1192
    %v4868 = vunpack.c.l.b16 %v1193
    %v4869 = vunpack.c.h.b16 %v1193
    %v4870 = vunpack.c.l.b16 %v1194
    %v4871 = vunpack.c.h.b16 %v1194
    %v4872 = vunpack.c.l.b16 %v1195
    %v4873 = vunpack.c.l.b16 %v1196
    %v4874 = vunpack.c.h.b16 %v1196
    %v4875 = vunpack.c.l.b16 %v1197
    %v4876 = vunpack.c.h.b16 %v1197
    %v4877 = vunpack.c.l.b16 %v1198
    %v4878 = vunpack.c.h.b16 %v1198
    %v4879 = vunpack.c.l.b16 %v1199
    %v4880 = vunpack.c.h.b16 %v1199
    %v4881 = vunpack.c.l.b16 %v1200
    %v4882 = vunpack.c.h.b16 %v1200
    %v4883 = vunpack.c.l.b16 %v1201
    %v4884 = vunpack.c.h.b16 %v1201
    %v4885 = vunpack.c.l.b16 %v1202
    %v4886 = vunpack.c.h.b16 %v1202
    %v4887 = vunpack.c.l.b16 %v1203
    %v4888 = vunpack.c.h.b16 %v1203
    %v4889 = vunpack.c.l.b16 %v1204
    %v4890 = vunpack.c.h.b16 %v1204
    %v4891 = vunpack.c.l.b16 %v1205
    %v4892 = vunpack.c.h.b16 %v1205
    %v4893 = vunpack.c.l.b16 %v1206
    %v4894 = vunpack.c.h.b16 %v1206
    %v4895 = vunpack.c.l.b16 %v1207
    %v4896 = vunpack.c.h.b16 %v1207
    %v4897 = vunpack.c.l.b16 %v1208
    %v4898 = vunpack.c.l.b16 %v1209
    %v4899 = vunpack.c.h.b16 %v1209
    %v4900 = vunpack.c.l.b16 %v1210
    %v4901 = vunpack.c.h.b16 %v1210
    %v4902 = vunpack.c.l.b16 %v1211
    %v4903 = vunpack.c.h.b16 %v1211
    %v4904 = vunpack.c.l.b16 %v1212
    %v4905 = vunpack.c.h.b16 %v1212
    %v4906 = vunpack.c.l.b16 %v1213
    %v4907 = vunpack.c.h.b16 %v1213
    %v4908 = vunpack.c.l.b16 %v1214
    %v4909 = vunpack.c.h.b16 %v1214
    %v4910 = vunpack.c.l.b16 %v1215
    %v4911 = vunpack.c.h.b16 %v1215
    %v4912 = vunpack.c.l.b16 %v1216
    %v4913 = vunpack.c.h.b16 %v1216
    %v4914 = vunpack.c.l.b16 %v1217
    %v4915 = vunpack.c.h.b16 %v1217
    %v4916 = vunpack.c.l.b16 %v1218
    %v4917 = vunpack.c.h.b16 %v1218
    %v4918 = vunpack.c.l.b16 %v1219
    %v4919 = vunpack.c.h.b16 %v1219
    %v4920 = vunpack.c.l.b16 %v1220
    %v4921 = vunpack.c.h.b16 %v1220
    %v4922 = vunpack.c.l.b16 %v1221
    %v4923 = vunpack.c.l.b16 %v1222
    %v4924 = vunpack.c.h.b16 %v1222
    %v4925 = vunpack.c.l.b16 %v1223
    %v4926 = vunpack.c.h.b16 %v1223
    %v4927 = vunpack.c.l.b16 %v1224
    %v4928 = vunpack.c.h.b16 %v1224
    %v4929 = vunpack.c.l.b16 %v1225
    %v4930 = vunpack.c.h.b16 %v1225
    %v4931 = vunpack.c.l.b16 %v1226
    %v4932 = vunpack.c.h.b16 %v1226
    %v4933 = vunpack.c.l.b16 %v1227
    %v4934 = vunpack.c.h.b16 %v1227
    %v4935 = vunpack.c.l.b16 %v1228
    %v4936 = vunpack.c.h.b16 %v1228
    %v4937 = vunpack.c.l.b16 %v1229
    %v4938 = vunpack.c.h.b16 %v1229
    %v4939 = vunpack.c.l.b16 %v1230
    %v4940 = vunpack.c.h.b16 %v1230
    %v4941 = vunpack.c.l.b16 %v1231
    %v4942 = vunpack.c.h.b16 %v1231
    %v4943 = vunpack.c.l.b16 %v1232
    %v4944 = vunpack.c.h.b16 %v1232
    %v4945 = vunpack.c.l.b16 %v1233
    %v4946 = vunpack.c.h.b16 %v1233
    %v4947 = vunpack.c.l.b16 %v1234
    %v4948 = vunpack.c.l.b16 %v1235
    %v4949 = vunpack.c.h.b16 %v1235
    %v4950 = vunpack.c.l.b16 %v1236
    %v4951 = vunpack.c.h.b16 %v1236
    %v4952 = vunpack.c.l.b16 %v1237
    %v4953 = vunpack.c.h.b16 %v1237
    %v4954 = vunpack.c.l.b16 %v1238
    %v4955 = vunpack.c.h.b16 %v1238
    %v4956 = vunpack.c.l.b16 %v1239
    %v4957 = vunpack.c.h.b16 %v1239
    %v4958 = vunpack.c.l.b16 %v1240
    %v4959 = vunpack.c.h.b16 %v1240
    %v4960 = vunpack.c.l.b16 %v1241
    %v4961 = vunpack.c.h.b16 %v1241
    %v4962 = vunpack.c.l.b16 %v1242
    %v4963 = vunpack.c.h.b16 %v1242
    %v4964 = vunpack.c.l.b16 %v1243
    %v4965 = vunpack.c.h.b16 %v1243
    %v4966 = vunpack.c.l.b16 %v1244
    %v4967 = vunpack.c.h.b16 %v1244
    %v4968 = vunpack.c.l.b16 %v1245
    %v4969 = vunpack.c.h.b16 %v1245
    %v4970 = vunpack.c.l.b16 %v1246
    %v4971 = vunpack.c.h.b16 %v1246
    %v4972 = vunpack.c.l.b16 %v1247
    %v4973 = vunpack.c.l.b16 %v1248
    %v4974 = vunpack.c.h.b16 %v1248
    %v4975 = vunpack.c.l.b16 %v1249
    %v4976 = vunpack.c.h.b16 %v1249
    %v4977 = vunpack.c.l.b16 %v1250
    %v4978 = vunpack.c.h.b16 %v1250
    %v4979 = vunpack.c.l.b16 %v1251
    %v4980 = vunpack.c.h.b16 %v1251
    %v4981 = vunpack.c.l.b16 %v1252
    %v4982 = vunpack.c.h.b16 %v1252
    %v4983 = vunpack.c.l.b16 %v1253
    %v4984 = vunpack.c.h.b16 %v1253
    %v4985 = vunpack.c.l.b16 %v1254
    %v4986 = vunpack.c.h.b16 %v1254
    %v4987 = vunpack.c.l.b16 %v1255
    %v4988 = vunpack.c.h.b16 %v1255
    %v4989 = vunpack.c.l.b16 %v1256
    %v4990 = vunpack.c.h.b16 %v1256
    %v4991 = vunpack.c.l.b16 %v1257
    %v4992 = vunpack.c.h.b16 %v1257
    %v4993 = vunpack.c.l.b16 %v1258
    %v4994 = vunpack.c.h.b16 %v1258
    %v4995 = vunpack.c.l.b16 %v1259
    %v4996 = vunpack.c.h.b16 %v1259
    %v4997 = vunpack.c.l.b16 %v1260
    %v4998 = vunpack.c.l.b16 %v1261
    %v4999 = vunpack.c.h.b16 %v1261
    %v5000 = vunpack.c.l.b16 %v1262
    %v5001 = vunpack.c.h.b16 %v1262
    %v5002 = vunpack.c.l.b16 %v1263
    %v5003 = vunpack.c.h.b16 %v1263
    %v5004 = vunpack.c.l.b16 %v1264
    %v5005 = vunpack.c.h.b16 %v1264
    %v5006 = vunpack.c.l.b16 %v1265
    %v5007 = vunpack.c.h.b16 %v1265
    %v5008 = vunpack.c.l.b16 %v1266
    %v5009 = vunpack.c.h.b16 %v1266
    %v5010 = vunpack.c.l.b16 %v1267
    %v5011 = vunpack.c.h.b16 %v1267
    %v5012 = vunpack.c.l.b16 %v1268
    %v5013 = vunpack.c.h.b16 %v1268
    %v5014 = vunpack.c.l.b16 %v1269
    %v5015 = vunpack.c.h.b16 %v1269
    %v5016 = vunpack.c.l.b16 %v1270
    %v5017 = vunpack.c.h.b16 %v1270
    %v5018 = vunpack.c.l.b16 %v1271
    %v5019 = vunpack.c.h.b16 %v1271
    %v5020 = vunpack.c.l.b16 %v1272
    %v5021 = vunpack.c.h.b16 %v1272
    %v5022 = vunpack.c.l.b16 %v1273
    %v5023 = vunpack.c.l.b16 %v1274
    %v5024 = vunpack.c.h.b16 %v1274
    %v5025 = vunpack.c.l.b16 %v1275
    %v5026 = vunpack.c.h.b16 %v1275
    %v5027 = vunpack.c.l.b16 %v1276
    %v5028 = vunpack.c.h.b16 %v1276
    %v5029 = vunpack.c.l.b16 %v1277
    %v5030 = vunpack.c.h.b16 %v1277
    %v5031 = vunpack.c.l.b16 %v1278
    %v5032 = vunpack.c.h.b16 %v1278
    %v5033 = vunpack.c.l.b16 %v1279
    %v5034 = vunpack.c.h.b16 %v1279
    %v5035 = vunpack.c.l.b16 %v1280
    %v5036 = vunpack.c.h.b16 %v1280
    %v5037 = vunpack.c.l.b16 %v1281
    %v5038 = vunpack.c.h.b16 %v1281
    %v5039 = vunpack.c.l.b16 %v1282
    %v5040 = vunpack.c.h.b16 %v1282
    %v5041 = vunpack.c.l.b16 %v1283
    %v5042 = vunpack.c.h.b16 %v1283
    %v5043 = vunpack.c.l.b16 %v1284
    %v5044 = vunpack.c.h.b16 %v1284
    %v5045 = vunpack.c.l.b16 %v1285
    %v5046 = vunpack.c.h.b16 %v1285
    %v5047 = vunpack.c.l.b16 %v1286
    %v5048 = vunpack.c.l.b16 %v1287
    %v5049 = vunpack.c.h.b16 %v1287
    %v5050 = vunpack.c.l.b16 %v1288
    %v5051 = vunpack.c.h.b16 %v1288
    %v5052 = vunpack.c.l.b16 %v1289
    %v5053 = vunpack.c.h.b16 %v1289
    %v5054 = vunpack.c.l.b16 %v1290
    %v5055 = vunpack.c.h.b16 %v1290
    %v5056 = vunpack.c.l.b16 %v1291
    %v5057 = vunpack.c.h.b16 %v1291
    %v5058 = vunpack.c.l.b16 %v1292
    %v5059 = vunpack.c.h.b16 %v1292
    %v5060 = vunpack.c.l.b16 %v1293
    %v5061 = vunpack.c.h.b16 %v1293
    %v5062 = vunpack.c.l.b16 %v1294
    %v5063 = vunpack.c.h.b16 %v1294
    %v5064 = vunpack.c.l.b16 %v1295
    %v5065 = vunpack.c.h.b16 %v1295
    %v5066 = vunpack.c.l.b16 %v1296
    %v5067 = vunpack.c.h.b16 %v1296
    %v5068 = vunpack.c.l.b16 %v1297
    %v5069 = vunpack.c.h.b16 %v1297
    %v5070 = vunpack.c.l.b16 %v1298
    %v5071 = vunpack.c.h.b16 %v1298
    %v5072 = vunpack.c.l.b16 %v1299
    %v5073 = vunpack.c.l.b16 %v1300
    %v5074 = vunpack.c.h.b16 %v1300
    %v5075 = vunpack.c.l.b16 %v1301
    %v5076 = vunpack.c.h.b16 %v1301
    %v5077 = vunpack.c.l.b16 %v1302
    %v5078 = vunpack.c.h.b16 %v1302
    %v5079 = vunpack.c.l.b16 %v1303
    %v5080 = vunpack.c.h.b16 %v1303
    %v5081 = vunpack.c.l.b16 %v1304
    %v5082 = vunpack.c.h.b16 %v1304
    %v5083 = vunpack.c.l.b16 %v1305
    %v5084 = vunpack.c.h.b16 %v1305
    %v5085 = vunpack.c.l.b16 %v1306
    %v5086 = vunpack.c.h.b16 %v1306
    %v5087 = vunpack.c.l.b16 %v1307
    %v5088 = vunpack.c.h.b16 %v1307
    %v5089 = vunpack.c.l.b16 %v1308
    %v5090 = vunpack.c.h.b16 %v1308
    %v5091 = vunpack.c.l.b16 %v1309
    %v5092 = vunpack.c.h.b16 %v1309
    %v5093 = vunpack.c.l.b16 %v1310
    %v5094 = vunpack.c.h.b16 %v1310
    %v5095 = vunpack.c.l.b16 %v1311
    %v5096 = vunpack.c.h.b16 %v1311
    %v5097 = vunpack.c.l.b16 %v1312
    %v5098 = vunpack.c.l.b16 %v1313
    %v5099 = vunpack.c.h.b16 %v1313
    %v5100 = vunpack.c.l.b16 %v1314
    %v5101 = vunpack.c.h.b16 %v1314
    %v5102 = vunpack.c.l.b16 %v1315
    %v5103 = vunpack.c.h.b16 %v1315
    %v5104 = vunpack.c.l.b16 %v1316
    %v5105 = vunpack.c.h.b16 %v1316
    %v5106 = vunpack.c.l.b16 %v1317
    %v5107 = vunpack.c.h.b16 %v1317
    %v5108 = vunpack.c.l.b16 %v1318
    %v5109 = vunpack.c.h.b16 %v1318
    %v5110 = vunpack.c.l.b16 %v1319
    %v5111 = vunpack.c.h.b16 %v1319
    %v5112 = vunpack.c.l.b16 %v1320
    %v5113 = vunpack.c.h.b16 %v1320
    %v5114 = vunpack.c.l.b16 %v1321
    %v5115 = vunpack.c.h.b16 %v1321
    %v5116 = vunpack.c.l.b16 %v1322
    %v5117 = vunpack.c.h.b16 %v1322
    %v5118 = vunpack.c.l.b16 %v1323
    %v5119 = vunpack.c.h.b16 %v1323
    %v5120 = vunpack.c.l.b16 %v1324
    %v5121 = vunpack.c.h.b16 %v1324
    %v5122 = vunpack.c.l.b16 %v1325
    %v5123 = vunpack.c.l.b16 %v1326
    %v5124 = vunpack.c.h.b16 %v1326
    %v5125 = vunpack.c.l.b16 %v1327
    %v5126 = vunpack.c.h.b16 %v1327
    %v5127 = vunpack.c.l.b16 %v1328
    %v5128 = vunpack.c.h.b16 %v1328
    %v5129 = vunpack.c.l.b16 %v1329
    %v5130 = vunpack.c.h.b16 %v1329
    %v5131 = vunpack.c.l.b16 %v1330
    %v5132 = vunpack.c.h.b16 %v1330
    %v5133 = vunpack.c.l.b16 %v1331
    %v5134 = vunpack.c.h.b16 %v1331
    %v5135 = vunpack.c.l.b16 %v1332
    %v5136 = vunpack.c.h.b16 %v1332
    %v5137 = vunpack.c.l.b16 %v1333
    %v5138 = vunpack.c.h.b16 %v1333
    %v5139 = vunpack.c.l.b16 %v1334
    %v5140 = vunpack.c.h.b16 %v1334
    %v5141 = vunpack.c.l.b16 %v1335
    %v5142 = vunpack.c.h.b16 %v1335
    %v5143 = vunpack.c.l.b16 %v1336
    %v5144 = vunpack.c.h.b16 %v1336
    %v5145 = vunpack.c.l.b16 %v1337
    %v5146 = vunpack.c.h.b16 %v1337
    %v5147 = vunpack.c.l.b16 %v1338
    %v5148 = vunpack.c.l.b16 %v1339
    %v5149 = vunpack.c.h.b16 %v1339
    %v5150 = vunpack.c.l.b16 %v1340
    %v5151 = vunpack.c.h.b16 %v1340
    %v5152 = vunpack.c.l.b16 %v1341
    %v5153 = vunpack.c.h.b16 %v1341
    %v5154 = vunpack.c.l.b16 %v1342
    %v5155 = vunpack.c.h.b16 %v1342
    %v5156 = vunpack.c.l.b16 %v1343
    %v5157 = vunpack.c.h.b16 %v1343
    %v5158 = vunpack.c.l.b16 %v1344
    %v5159 = vunpack.c.h.b16 %v1344
    %v5160 = vunpack.c.l.b16 %v1345
    %v5161 = vunpack.c.h.b16 %v1345
    %v5162 = vunpack.c.l.b16 %v1346
    %v5163 = vunpack.c.h.b16 %v1346
    %v5164 = vunpack.c.l.b16 %v1347
    %v5165 = vunpack.c.h.b16 %v1347
    %v5166 = vunpack.c.l.b16 %v1348
    %v5167 = vunpack.c.h.b16 %v1348
    %v5168 = vunpack.c.l.b16 %v1349
    %v5169 = vunpack.c.h.b16 %v1349
    %v5170 = vunpack.c.l.b16 %v1350
    %v5171 = vunpack.c.h.b16 %v1350
    %v5172 = vunpack.c.l.b16 %v1351
    %v5173 = vunpack.c.l.b16 %v1352
    %v5174 = vunpack.c.h.b16 %v1352
    %v5175 = vunpack.c.l.b16 %v1353
    %v5176 = vunpack.c.h.b16 %v1353
    %v5177 = vunpack.c.l.b16 %v1354
    %v5178 = vunpack.c.h.b16 %v1354
    %v5179 = vunpack.c.l.b16 %v1355
    %v5180 = vunpack.c.h.b16 %v1355
    %v5181 = vunpack.c.l.b16 %v1356
    %v5182 = vunpack.c.h.b16 %v1356
    %v5183 = vunpack.c.l.b16 %v1357
    %v5184 = vunpack.c.h.b16 %v1357
    %v5185 = vunpack.c.l.b16 %v1358
    %v5186 = vunpack.c.h.b16 %v1358
    %v5187 = vunpack.c.l.b16 %v1359
    %v5188 = vunpack.c.h.b16 %v1359
    %v5189 = vunpack.c.l.b16 %v1360
    %v5190 = vunpack.c.h.b16 %v1360
    %v5191 = vunpack.c.l.b16 %v1361
    %v5192 = vunpack.c.h.b16 %v1361
    %v5193 = vunpack.c.l.b16 %v1362
    %v5194 = vunpack.c.h.b16 %v1362
    %v5195 = vunpack.c.l.b16 %v1363
    %v5196 = vunpack.c.h.b16 %v1363
    %v5197 = vunpack.c.l.b16 %v1364
    %v5198 = vunpack.c.l.b16 %v1365
    %v5199 = vunpack.c.h.b16 %v1365
    %v5200 = vunpack.c.l.b16 %v1366
    %v5201 = vunpack.c.h.b16 %v1366
    %v5202 = vunpack.c.l.b16 %v1367
    %v5203 = vunpack.c.h.b16 %v1367
    %v5204 = vunpack.c.l.b16 %v1368
    %v5205 = vunpack.c.h.b16 %v1368
    %v5206 = vunpack.c.l.b16 %v1369
    %v5207 = vunpack.c.h.b16 %v1369
    %v5208 = vunpack.c.l.b16 %v1370
    %v5209 = vunpack.c.h.b16 %v1370
    %v5210 = vunpack.c.l.b16 %v1371
    %v5211 = vunpack.c.h.b16 %v1371
    %v5212 = vunpack.c.l.b16 %v1372
    %v5213 = vunpack.c.h.b16 %v1372
    %v5214 = vunpack.c.l.b16 %v1373
    %v5215 = vunpack.c.h.b16 %v1373
    %v5216 = vunpack.c.l.b16 %v1374
    %v5217 = vunpack.c.h.b16 %v1374
    %v5218 = vunpack.c.l.b16 %v1375
    %v5219 = vunpack.c.h.b16 %v1375
    %v5220 = vunpack.c.l.b16 %v1376
    %v5221 = vunpack.c.h.b16 %v1376
    %v5222 = vunpack.c.l.b16 %v1377
    %v5223 = vunpack.c.l.b16 %v1378
    %v5224 = vunpack.c.h.b16 %v1378
    %v5225 = vunpack.c.l.b16 %v1379
    %v5226 = vunpack.c.h.b16 %v1379
    %v5227 = vunpack.c.l.b16 %v1380
    %v5228 = vunpack.c.h.b16 %v1380
    %v5229 = vunpack.c.l.b16 %v1381
    %v5230 = vunpack.c.h.b16 %v1381
    %v5231 = vunpack.c.l.b16 %v1382
    %v5232 = vunpack.c.h.b16 %v1382
    %v5233 = vunpack.c.l.b16 %v1383
    %v5234 = vunpack.c.h.b16 %v1383
    %v5235 = vunpack.c.l.b16 %v1384
    %v5236 = vunpack.c.h.b16 %v1384
    %v5237 = vunpack.c.l.b16 %v1385
    %v5238 = vunpack.c.h.b16 %v1385
    %v5239 = vunpack.c.l.b16 %v1386
    %v5240 = vunpack.c.h.b16 %v1386
    %v5241 = vunpack.c.l.b16 %v1387
    %v5242 = vunpack.c.h.b16 %v1387
    %v5243 = vunpack.c.l.b16 %v1388
    %v5244 = vunpack.c.h.b16 %v1388
    %v5245 = vunpack.c.l.b16 %v1389
    %v5246 = vunpack.c.h.b16 %v1389
    %v5247 = vunpack.c.l.b16 %v1390
    %v5248 = vpack.c.b16 %v2823, %v2798
    %v5249 = vpack.c.b16 %v2824, %v2799
    %v5250 = vpack.c.b16 %v2825, %v2800
    %v5251 = vpack.c.b16 %v2826, %v2801
    %v5252 = vpack.c.b16 %v2827, %v2802
    %v5253 = vpack.c.b16 %v2828, %v2803
    %v5254 = vpack.c.b16 %v2829, %v2804
    %v5255 = vpack.c.b16 %v2830, %v2805
    %v5256 = vpack.c.b16 %v2831, %v2806
    %v5257 = vpack.c.b16 %v2832, %v2807
    %v5258 = vpack.c.b16 %v2833, %v2808
    %v5259 = vpack.c.b16 %v2834, %v2809
    %v5260 = vpack.c.b16 %v2835, %v2810
    %v5261 = vpack.c.b16 %v2836, %v2811
    %v5262 = vpack.c.b16 %v2837, %v2812
    %v5263 = vpack.c.b16 %v2838, %v2813
    %v5264 = vpack.c.b16 %v2839, %v2814
    %v5265 = vpack.c.b16 %v2840, %v2815
    %v5266 = vpack.c.b16 %v2841, %v2816
    %v5267 = vpack.c.b16 %v2842, %v2817
    %v5268 = vpack.c.b16 %v2843, %v2818
    %v5269 = vpack.c.b16 %v2844, %v2819
    %v5270 = vpack.c.b16 %v2845, %v2820
    %v5271 = vpack.c.b16 %v2846, %v2821
    %v5272 = vpack.c.b16 %v2847, %v2822
    %v5273 = vpack.c.b16 %v2873, %v2848
    %v5274 = vpack.c.b16 %v2874, %v2849
    %v5275 = vpack.c.b16 %v2875, %v2850
    %v5276 = vpack.c.b16 %v2876, %v2851
    %v5277 = vpack.c.b16 %v2877, %v2852
    %v5278 = vpack.c.b16 %v2878, %v2853
    %v5279 = vpack.c.b16 %v2879, %v2854
    %v5280 = vpack.c.b16 %v2880, %v2855
    %v5281 = vpack.c.b16 %v2881, %v2856
    %v5282 = vpack.c.b16 %v2882, %v2857
    %v5283 = vpack.c.b16 %v2883, %v2858
    %v5284 = vpack.c.b16 %v2884, %v2859
    %v5285 = vpack.c.b16 %v2885, %v2860
    %v5286 = vpack.c.b16 %v2886, %v2861
    %v5287 = vpack.c.b16 %v2887, %v2862
    %v5288 = vpack.c.b16 %v2888, %v2863
    %v5289 = vpack.c.b16 %v2889, %v2864
    %v5290 = vpack.c.b16 %v2890, %v2865
    %v5291 = vpack.c.b16 %v2891, %v2866
    %v5292 = vpack.c.b16 %v2892, %v2867
    %v5293 = vpack.c.b16 %v2893, %v2868
    %v5294 = vpack.c.b16 %v2894, %v2869
    %v5295 = vpack.c.b16 %v2895, %v2870
    %v5296 = vpack.c.b16 %v2896, %v2871
    %v5297 = vpack.c.b16 %v2897, %v2872
    %v5298 = vpack.c.b16 %v2923, %v2898
    %v5299 = vpack.c.b16 %v2924, %v2899
    %v5300 = vpack.c.b16 %v2925, %v2900
    %v5301 = vpack.c.b16 %v2926, %v2901
    %v5302 = vpack.c.b16 %v2927, %v2902
    %v5303 = vpack.c.b16 %v2928, %v2903
    %v5304 = vpack.c.b16 %v2929, %v2904
    %v5305 = vpack.c.b16 %v2930, %v2905
    %v5306 = vpack.c.b16 %v2931, %v2906
    %v5307 = vpack.c.b16 %v2932, %v2907
    %v5308 = vpack.c.b16 %v2933, %v2908
    %v5309 = vpack.c.b16 %v2934, %v2909
    %v5310 = vpack.c.b16 %v2935, %v2910
    %v5311 = vpack.c.b16 %v2936, %v2911
    %v5312 = vpack.c.b16 %v2937, %v2912
    %v5313 = vpack.c.b16 %v2938, %v2913
    %v5314 = vpack.c.b16 %v2939, %v2914
    %v5315 = vpack.c.b16 %v2940, %v2915
    %v5316 = vpack.c.b16 %v2941, %v2916
    %v5317 = vpack.c.b16 %v2942, %v2917
    %v5318 = vpack.c.b16 %v2943, %v2918
    %v5319 = vpack.c.b16 %v2944, %v2919
    %v5320 = vpack.c.b16 %v2945, %v2920
    %v5321 = vpack.c.b16 %v2946, %v2921
    %v5322 = vpack.c.b16 %v2947, %v2922
    %v5323 = vpack.c.b16 %v2973, %v2948
    %v5324 = vpack.c.b16 %v2974, %v2949
    %v5325 = vpack.c.b16 %v2975, %v2950
    %v5326 = vpack.c.b16 %v2976, %v2951
    %v5327 = vpack.c.b16 %v2977, %v2952
    %v5328 = vpack.c.b16 %v2978, %v2953
    %v5329 = vpack.c.b16 %v2979, %v2954
    %v5330 = vpack.c.b16 %v2980, %v2955
    %v5331 = vpack.c.b16 %v2981, %v2956
    %v5332 = vpack.c.b16 %v2982, %v2957
    %v5333 = vpack.c.b16 %v2983, %v2958
    %v5334 = vpack.c.b16 %v2984, %v2959
    %v5335 = vpack.c.b16 %v2985, %v2960
    %v5336 = vpack.c.b16 %v2986, %v2961
    %v5337 = vpack.c.b16 %v2987, %v2962
    %v5338 = vpack.c.b16 %v2988, %v2963
    %v5339 = vpack.c.b16 %v2989, %v2964
    %v5340 = vpack.c.b16 %v2990, %v2965
    %v5341 = vpack.c.b16 %v2991, %v2966
    %v5342 = vpack.c.b16 %v2992, %v2967
    %v5343 = vpack.c.b16 %v2993, %v2968
    %v5344 = vpack.c.b16 %v2994, %v2969
    %v5345 = vpack.c.b16 %v2995, %v2970
    %v5346 = vpack.c.b16 %v2996, %v2971
    %v5347 = vpack.c.b16 %v2997, %v2972
    %v5348 = vpack.c.b16 %v3023, %v2998
    %v5349 = vpack.c.b16 %v3024, %v2999
    %v5350 = vpack.c.b16 %v3025, %v3000
    %v5351 = vpack.c.b16 %v3026, %v3001
    %v5352 = vpack.c.b16 %v3027, %v3002
    %v5353 = vpack.c.b16 %v3028, %v3003
    %v5354 = vpack.c.b16 %v3029, %v3004
    %v5355 = vpack.c.b16 %v3030, %v3005
    %v5356 = vpack.c.b16 %v3031, %v3006
    %v5357 = vpack.c.b16 %v3032, %v3007
    %v5358 = vpack.c.b16 %v3033, %v3008
    %v5359 = vpack.c.b16 %v3034, %v3009
    %v5360 = vpack.c.b16 %v3035, %v3010
    %v5361 = vpack.c.b16 %v3036, %v3011
    %v5362 = vpack.c.b16 %v3037, %v3012
    %v5363 = vpack.c.b16 %v3038, %v3013
    %v5364 = vpack.c.b16 %v3039, %v3014
    %v5365 = vpack.c.b16 %v3040, %v3015
    %v5366 = vpack.c.b16 %v3041, %v3016
    %v5367 = vpack.c.b16 %v3042, %v3017
    %v5368 = vpack.c.b16 %v3043, %v3018
    %v5369 = vpack.c.b16 %v3044, %v3019
    %v5370 = vpack.c.b16 %v3045, %v3020
    %v5371 = vpack.c.b16 %v3046, %v3021
    %v5372 = vpack.c.b16 %v3047, %v3022
    %v5373 = vpack.c.b16 %v3073, %v3048
    %v5374 = vpack.c.b16 %v3074, %v3049
    %v5375 = vpack.c.b16 %v3075, %v3050
    %v5376 = vpack.c.b16 %v3076, %v3051
    %v5377 = vpack.c.b16 %v3077, %v3052
    %v5378 = vpack.c.b16 %v3078, %v3053
    %v5379 = vpack.c.b16 %v3079, %v3054
    %v5380 = vpack.c.b16 %v3080, %v3055
    %v5381 = vpack.c.b16 %v3081, %v3056
    %v5382 = vpack.c.b16 %v3082, %v3057
    %v5383 = vpack.c.b16 %v3083, %v3058
    %v5384 = vpack.c.b16 %v3084, %v3059
    %v5385 = vpack.c.b16 %v3085, %v3060
    %v5386 = vpack.c.b16 %v3086, %v3061
    %v5387 = vpack.c.b16 %v3087, %v3062
    %v5388 = vpack.c.b16 %v3088, %v3063
    %v5389 = vpack.c.b16 %v3089, %v3064
    %v5390 = vpack.c.b16 %v3090, %v3065
    %v5391 = vpack.c.b16 %v3091, %v3066
    %v5392 = vpack.c.b16 %v3092, %v3067
    %v5393 = vpack.c.b16 %v3093, %v3068
    %v5394 = vpack.c.b16 %v3094, %v3069
    %v5395 = vpack.c.b16 %v3095, %v3070
    %v5396 = vpack.c.b16 %v3096, %v3071
    %v5397 = vpack.c.b16 %v3097, %v3072
    %v5398 = vpack.c.b16 %v3123, %v3098
    %v5399 = vpack.c.b16 %v3124, %v3099
    %v5400 = vpack.c.b16 %v3125, %v3100
    %v5401 = vpack.c.b16 %v3126, %v3101
    %v5402 = vpack.c.b16 %v3127, %v3102
    %v5403 = vpack.c.b16 %v3128, %v3103
    %v5404 = vpack.c.b16 %v3129, %v3104
    %v5405 = vpack.c.b16 %v3130, %v3105
    %v5406 = vpack.c.b16 %v3131, %v3106
    %v5407 = vpack.c.b16 %v3132, %v3107
    %v5408 = vpack.c.b16 %v3133, %v3108
    %v5409 = vpack.c.b16 %v3134, %v3109
    %v5410 = vpack.c.b16 %v3135, %v3110
    %v5411 = vpack.c.b16 %v3136, %v3111
    %v5412 = vpack.c.b16 %v3137, %v3112
    %v5413 = vpack.c.b16 %v3138, %v3113
    %v5414 = vpack.c.b16 %v3139, %v3114
    %v5415 = vpack.c.b16 %v3140, %v3115
    %v5416 = vpack.c.b16 %v3141, %v3116
    %v5417 = vpack.c.b16 %v3142, %v3117
    %v5418 = vpack.c.b16 %v3143, %v3118
    %v5419 = vpack.c.b16 %v3144, %v3119
    %v5420 = vpack.c.b16 %v3145, %v3120
    %v5421 = vpack.c.b16 %v3146, %v3121
    %v5422 = vpack.c.b16 %v3147, %v3122
    %v5423 = vpack.c.b16 %v3173, %v3148
    %v5424 = vpack.c.b16 %v3174, %v3149
    %v5425 = vpack.c.b16 %v3175, %v3150
    %v5426 = vpack.c.b16 %v3176, %v3151
    %v5427 = vpack.c.b16 %v3177, %v3152
    %v5428 = vpack.c.b16 %v3178, %v3153
    %v5429 = vpack.c.b16 %v3179, %v3154
    %v5430 = vpack.c.b16 %v3180, %v3155
    %v5431 = vpack.c.b16 %v3181, %v3156
    %v5432 = vpack.c.b16 %v3182, %v3157
    %v5433 = vpack.c.b16 %v3183, %v3158
    %v5434 = vpack.c.b16 %v3184, %v3159
    %v5435 = vpack.c.b16 %v3185, %v3160
    %v5436 = vpack.c.b16 %v3186, %v3161
    %v5437 = vpack.c.b16 %v3187, %v3162
    %v5438 = vpack.c.b16 %v3188, %v3163
    %v5439 = vpack.c.b16 %v3189, %v3164
    %v5440 = vpack.c.b16 %v3190, %v3165
    %v5441 = vpack.c.b16 %v3191, %v3166
    %v5442 = vpack.c.b16 %v3192, %v3167
    %v5443 = vpack.c.b16 %v3193, %v3168
    %v5444 = vpack.c.b16 %v3194, %v3169
    %v5445 = vpack.c.b16 %v3195, %v3170
    %v5446 = vpack.c.b16 %v3196, %v3171
    %v5447 = vpack.c.b16 %v3197, %v3172
    %v5448 = vpack.c.b16 %v3223, %v3198
    %v5449 = vpack.c.b16 %v3224, %v3199
    %v5450 = vpack.c.b16 %v3225, %v3200
    %v5451 = vpack.c.b16 %v3226, %v3201
    %v5452 = vpack.c.b16 %v3227, %v3202
    %v5453 = vpack.c.b16 %v3228, %v3203
    %v5454 = vpack.c.b16 %v3229, %v3204
    %v5455 = vpack.c.b16 %v3230, %v3205
    %v5456 = vpack.c.b16 %v3231, %v3206
    %v5457 = vpack.c.b16 %v3232, %v3207
    %v5458 = vpack.c.b16 %v3233, %v3208
    %v5459 = vpack.c.b16 %v3234, %v3209
    %v5460 = vpack.c.b16 %v3235, %v3210
    %v5461 = vpack.c.b16 %v3236, %v3211
    %v5462 = vpack.c.b16 %v3237, %v3212
    %v5463 = vpack.c.b16 %v3238, %v3213
    %v5464 = vpack.c.b16 %v3239, %v3214
    %v5465 = vpack.c.b16 %v3240, %v3215
    %v5466 = vpack.c.b16 %v3241, %v3216
    %v5467 = vpack.c.b16 %v3242, %v3217
    %v5468 = vpack.c.b16 %v3243, %v3218
    %v5469 = vpack.c.b16 %v3244, %v3219
    %v5470 = vpack.c.b16 %v3245, %v3220
    %v5471 = vpack.c.b16 %v3246, %v3221
    %v5472 = vpack.c.b16 %v3247, %v3222
    %v5473 = vpack.c.b16 %v3273, %v3248
    %v5474 = vpack.c.b16 %v3274, %v3249
    %v5475 = vpack.c.b16 %v3275, %v3250
    %v5476 = vpack.c.b16 %v3276, %v3251
    %v5477 = vpack.c.b16 %v3277, %v3252
    %v5478 = vpack.c.b16 %v3278, %v3253
    %v5479 = vpack.c.b16 %v3279, %v3254
    %v5480 = vpack.c.b16 %v3280, %v3255
    %v5481 = vpack.c.b16 %v3281, %v3256
    %v5482 = vpack.c.b16 %v3282, %v3257
    %v5483 = vpack.c.b16 %v3283, %v3258
    %v5484 = vpack.c.b16 %v3284, %v3259
    %v5485 = vpack.c.b16 %v3285, %v3260
    %v5486 = vpack.c.b16 %v3286, %v3261
    %v5487 = vpack.c.b16 %v3287, %v3262
    %v5488 = vpack.c.b16 %v3288, %v3263
    %v5489 = vpack.c.b16 %v3289, %v3264
    %v5490 = vpack.c.b16 %v3290, %v3265
    %v5491 = vpack.c.b16 %v3291, %v3266
    %v5492 = vpack.c.b16 %v3292, %v3267
    %v5493 = vpack.c.b16 %v3293, %v3268
    %v5494 = vpack.c.b16 %v3294, %v3269
    %v5495 = vpack.c.b16 %v3295, %v3270
    %v5496 = vpack.c.b16 %v3296, %v3271
    %v5497 = vpack.c.b16 %v3297, %v3272
    %v5498 = vpack.c.b16 %v3323, %v3298
    %v5499 = vpack.c.b16 %v3324, %v3299
    %v5500 = vpack.c.b16 %v3325, %v3300
    %v5501 = vpack.c.b16 %v3326, %v3301
    %v5502 = vpack.c.b16 %v3327, %v3302
    %v5503 = vpack.c.b16 %v3328, %v3303
    %v5504 = vpack.c.b16 %v3329, %v3304
    %v5505 = vpack.c.b16 %v3330, %v3305
    %v5506 = vpack.c.b16 %v3331, %v3306
    %v5507 = vpack.c.b16 %v3332, %v3307
    %v5508 = vpack.c.b16 %v3333, %v3308
    %v5509 = vpack.c.b16 %v3334, %v3309
    %v5510 = vpack.c.b16 %v3335, %v3310
    %v5511 = vpack.c.b16 %v3336, %v3311
    %v5512 = vpack.c.b16 %v3337, %v3312
    %v5513 = vpack.c.b16 %v3338, %v3313
    %v5514 = vpack.c.b16 %v3339, %v3314
    %v5515 = vpack.c.b16 %v3340, %v3315
    %v5516 = vpack.c.b16 %v3341, %v3316
    %v5517 = vpack.c.b16 %v3342, %v3317
    %v5518 = vpack.c.b16 %v3343, %v3318
    %v5519 = vpack.c.b16 %v3344, %v3319
    %v5520 = vpack.c.b16 %v3345, %v3320
    %v5521 = vpack.c.b16 %v3346, %v3321
    %v5522 = vpack.c.b16 %v3347, %v3322
    %v5523 = vpack.c.b16 %v3373, %v3348
    %v5524 = vpack.c.b16 %v3374, %v3349
    %v5525 = vpack.c.b16 %v3375, %v3350
    %v5526 = vpack.c.b16 %v3376, %v3351
    %v5527 = vpack.c.b16 %v3377, %v3352
    %v5528 = vpack.c.b16 %v3378, %v3353
    %v5529 = vpack.c.b16 %v3379, %v3354
    %v5530 = vpack.c.b16 %v3380, %v3355
    %v5531 = vpack.c.b16 %v3381, %v3356
    %v5532 = vpack.c.b16 %v3382, %v3357
    %v5533 = vpack.c.b16 %v3383, %v3358
    %v5534 = vpack.c.b16 %v3384, %v3359
    %v5535 = vpack.c.b16 %v3385, %v3360
    %v5536 = vpack.c.b16 %v3386, %v3361
    %v5537 = vpack.c.b16 %v3387, %v3362
    %v5538 = vpack.c.b16 %v3388, %v3363
    %v5539 = vpack.c.b16 %v3389, %v3364
    %v5540 = vpack.c.b16 %v3390, %v3365
    %v5541 = vpack.c.b16 %v3391, %v3366
    %v5542 = vpack.c.b16 %v3392, %v3367
    %v5543 = vpack.c.b16 %v3393, %v3368
    %v5544 = vpack.c.b16 %v3394, %v3369
    %v5545 = vpack.c.b16 %v3395, %v3370
    %v5546 = vpack.c.b16 %v3396, %v3371
    %v5547 = vpack.c.b16 %v3397, %v3372
    %v5548 = vpack.c.b16 %v3423, %v3398
    %v5549 = vpack.c.b16 %v3424, %v3399
    %v5550 = vpack.c.b16 %v3425, %v3400
    %v5551 = vpack.c.b16 %v3426, %v3401
    %v5552 = vpack.c.b16 %v3427, %v3402
    %v5553 = vpack.c.b16 %v3428, %v3403
    %v5554 = vpack.c.b16 %v3429, %v3404
    %v5555 = vpack.c.b16 %v3430, %v3405
    %v5556 = vpack.c.b16 %v3431, %v3406
    %v5557 = vpack.c.b16 %v3432, %v3407
    %v5558 = vpack.c.b16 %v3433, %v3408
    %v5559 = vpack.c.b16 %v3434, %v3409
    %v5560 = vpack.c.b16 %v3435, %v3410
    %v5561 = vpack.c.b16 %v3436, %v3411
    %v5562 = vpack.c.b16 %v3437, %v3412
    %v5563 = vpack.c.b16 %v3438, %v3413
    %v5564 = vpack.c.b16 %v3439, %v3414
    %v5565 = vpack.c.b16 %v3440, %v3415
    %v5566 = vpack.c.b16 %v3441, %v3416
    %v5567 = vpack.c.b16 %v3442, %v3417
    %v5568 = vpack.c.b16 %v3443, %v3418
    %v5569 = vpack.c.b16 %v3444, %v3419
    %v5570 = vpack.c.b16 %v3445, %v3420
    %v5571 = vpack.c.b16 %v3446, %v3421
    %v5572 = vpack.c.b16 %v3447, %v3422
    %v5573 = vpack.c.b16 %v3473, %v3448
    %v5574 = vpack.c.b16 %v3474, %v3449
    %v5575 = vpack.c.b16 %v3475, %v3450
    %v5576 = vpack.c.b16 %v3476, %v3451
    %v5577 = vpack.c.b16 %v3477, %v3452
    %v5578 = vpack.c.b16 %v3478, %v3453
    %v5579 = vpack.c.b16 %v3479, %v3454
    %v5580 = vpack.c.b16 %v3480, %v3455
    %v5581 = vpack.c.b16 %v3481, %v3456
    %v5582 = vpack.c.b16 %v3482, %v3457
    %v5583 = vpack.c.b16 %v3483, %v3458
    %v5584 = vpack.c.b16 %v3484, %v3459
    %v5585 = vpack.c.b16 %v3485, %v3460
    %v5586 = vpack.c.b16 %v3486, %v3461
    %v5587 = vpack.c.b16 %v3487, %v3462
    %v5588 = vpack.c.b16 %v3488, %v3463
    %v5589 = vpack.c.b16 %v3489, %v3464
    %v5590 = vpack.c.b16 %v3490, %v3465
    %v5591 = vpack.c.b16 %v3491, %v3466
    %v5592 = vpack.c.b16 %v3492, %v3467
    %v5593 = vpack.c.b16 %v3493, %v3468
    %v5594 = vpack.c.b16 %v3494, %v3469
    %v5595 = vpack.c.b16 %v3495, %v3470
    %v5596 = vpack.c.b16 %v3496, %v3471
    %v5597 = vpack.c.b16 %v3497, %v3472
    %v5598 = vpack.c.b16 %v3523, %v3498
    %v5599 = vpack.c.b16 %v3524, %v3499
    %v5600 = vpack.c.b16 %v3525, %v3500
    %v5601 = vpack.c.b16 %v3526, %v3501
    %v5602 = vpack.c.b16 %v3527, %v3502
    %v5603 = vpack.c.b16 %v3528, %v3503
    %v5604 = vpack.c.b16 %v3529, %v3504
    %v5605 = vpack.c.b16 %v3530, %v3505
    %v5606 = vpack.c.b16 %v3531, %v3506
    %v5607 = vpack.c.b16 %v3532, %v3507
    %v5608 = vpack.c.b16 %v3533, %v3508
    %v5609 = vpack.c.b16 %v3534, %v3509
    %v5610 = vpack.c.b16 %v3535, %v3510
    %v5611 = vpack.c.b16 %v3536, %v3511
    %v5612 = vpack.c.b16 %v3537, %v3512
    %v5613 = vpack.c.b16 %v3538, %v3513
    %v5614 = vpack.c.b16 %v3539, %v3514
    %v5615 = vpack.c.b16 %v3540, %v3515
    %v5616 = vpack.c.b16 %v3541, %v3516
    %v5617 = vpack.c.b16 %v3542, %v3517
    %v5618 = vpack.c.b16 %v3543, %v3518
    %v5619 = vpack.c.b16 %v3544, %v3519
    %v5620 = vpack.c.b16 %v3545, %v3520
    %v5621 = vpack.c.b16 %v3546, %v3521
    %v5622 = vpack.c.b16 %v3547, %v3522
    %v5623 = vpack.c.b16 %v3573, %v3548
    %v5624 = vpack.c.b16 %v3574, %v3549
    %v5625 = vpack.c.b16 %v3575, %v3550
    %v5626 = vpack.c.b16 %v3576, %v3551
    %v5627 = vpack.c.b16 %v3577, %v3552
    %v5628 = vpack.c.b16 %v3578, %v3553
    %v5629 = vpack.c.b16 %v3579, %v3554
    %v5630 = vpack.c.b16 %v3580, %v3555
    %v5631 = vpack.c.b16 %v3581, %v3556
    %v5632 = vpack.c.b16 %v3582, %v3557
    %v5633 = vpack.c.b16 %v3583, %v3558
    %v5634 = vpack.c.b16 %v3584, %v3559
    %v5635 = vpack.c.b16 %v3585, %v3560
    %v5636 = vpack.c.b16 %v3586, %v3561
    %v5637 = vpack.c.b16 %v3587, %v3562
    %v5638 = vpack.c.b16 %v3588, %v3563
    %v5639 = vpack.c.b16 %v3589, %v3564
    %v5640 = vpack.c.b16 %v3590, %v3565
    %v5641 = vpack.c.b16 %v3591, %v3566
    %v5642 = vpack.c.b16 %v3592, %v3567
    %v5643 = vpack.c.b16 %v3593, %v3568
    %v5644 = vpack.c.b16 %v3594, %v3569
    %v5645 = vpack.c.b16 %v3595, %v3570
    %v5646 = vpack.c.b16 %v3596, %v3571
    %v5647 = vpack.c.b16 %v3597, %v3572
    %v5648 = vpack.c.b16 %v3623, %v3598
    %v5649 = vpack.c.b16 %v3624, %v3599
    %v5650 = vpack.c.b16 %v3625, %v3600
    %v5651 = vpack.c.b16 %v3626, %v3601
    %v5652 = vpack.c.b16 %v3627, %v3602
    %v5653 = vpack.c.b16 %v3628, %v3603
    %v5654 = vpack.c.b16 %v3629, %v3604
    %v5655 = vpack.c.b16 %v3630, %v3605
    %v5656 = vpack.c.b16 %v3631, %v3606
    %v5657 = vpack.c.b16 %v3632, %v3607
    %v5658 = vpack.c.b16 %v3633, %v3608
    %v5659 = vpack.c.b16 %v3634, %v3609
    %v5660 = vpack.c.b16 %v3635, %v3610
    %v5661 = vpack.c.b16 %v3636, %v3611
    %v5662 = vpack.c.b16 %v3637, %v3612
    %v5663 = vpack.c.b16 %v3638, %v3613
    %v5664 = vpack.c.b16 %v3639, %v3614
    %v5665 = vpack.c.b16 %v3640, %v3615
    %v5666 = vpack.c.b16 %v3641, %v3616
    %v5667 = vpack.c.b16 %v3642, %v3617
    %v5668 = vpack.c.b16 %v3643, %v3618
    %v5669 = vpack.c.b16 %v3644, %v3619
    %v5670 = vpack.c.b16 %v3645, %v3620
    %v5671 = vpack.c.b16 %v3646, %v3621
    %v5672 = vpack.c.b16 %v3647, %v3622
    %v5673 = vpack.c.b16 %v3673, %v3648
    %v5674 = vpack.c.b16 %v3674, %v3649
    %v5675 = vpack.c.b16 %v3675, %v3650
    %v5676 = vpack.c.b16 %v3676, %v3651
    %v5677 = vpack.c.b16 %v3677, %v3652
    %v5678 = vpack.c.b16 %v3678, %v3653
    %v5679 = vpack.c.b16 %v3679, %v3654
    %v5680 = vpack.c.b16 %v3680, %v3655
    %v5681 = vpack.c.b16 %v3681, %v3656
    %v5682 = vpack.c.b16 %v3682, %v3657
    %v5683 = vpack.c.b16 %v3683, %v3658
    %v5684 = vpack.c.b16 %v3684, %v3659
    %v5685 = vpack.c.b16 %v3685, %v3660
    %v5686 = vpack.c.b16 %v3686, %v3661
    %v5687 = vpack.c.b16 %v3687, %v3662
    %v5688 = vpack.c.b16 %v3688, %v3663
    %v5689 = vpack.c.b16 %v3689, %v3664
    %v5690 = vpack.c.b16 %v3690, %v3665
    %v5691 = vpack.c.b16 %v3691, %v3666
    %v5692 = vpack.c.b16 %v3692, %v3667
    %v5693 = vpack.c.b16 %v3693, %v3668
    %v5694 = vpack.c.b16 %v3694, %v3669
    %v5695 = vpack.c.b16 %v3695, %v3670
    %v5696 = vpack.c.b16 %v3696, %v3671
    %v5697 = vpack.c.b16 %v3697, %v3672
    %v5698 = vpack.c.b16 %v3723, %v3698
    %v5699 = vpack.c.b16 %v3724, %v3699
    %v5700 = vpack.c.b16 %v3725, %v3700
    %v5701 = vpack.c.b16 %v3726, %v3701
    %v5702 = vpack.c.b16 %v3727, %v3702
    %v5703 = vpack.c.b16 %v3728, %v3703
    %v5704 = vpack.c.b16 %v3729, %v3704
    %v5705 = vpack.c.b16 %v3730, %v3705
    %v5706 = vpack.c.b16 %v3731, %v3706
    %v5707 = vpack.c.b16 %v3732, %v3707
    %v5708 = vpack.c.b16 %v3733, %v3708
    %v5709 = vpack.c.b16 %v3734, %v3709
    %v5710 = vpack.c.b16 %v3735, %v3710
    %v5711 = vpack.c.b16 %v3736, %v3711
    %v5712 = vpack.c.b16 %v3737, %v3712
    %v5713 = vpack.c.b16 %v3738, %v3713
    %v5714 = vpack.c.b16 %v3739, %v3714
    %v5715 = vpack.c.b16 %v3740, %v3715
    %v5716 = vpack.c.b16 %v3741, %v3716
    %v5717 = vpack.c.b16 %v3742, %v3717
    %v5718 = vpack.c.b16 %v3743, %v3718
    %v5719 = vpack.c.b16 %v3744, %v3719
    %v5720 = vpack.c.b16 %v3745, %v3720
    %v5721 = vpack.c.b16 %v3746, %v3721
    %v5722 = vpack.c.b16 %v3747, %v3722
    %v5723 = vpack.c.b16 %v3773, %v3748
    %v5724 = vpack.c.b16 %v3774, %v3749
    %v5725 = vpack.c.b16 %v3775, %v3750
    %v5726 = vpack.c.b16 %v3776, %v3751
    %v5727 = vpack.c.b16 %v3777, %v3752
    %v5728 = vpack.c.b16 %v3778, %v3753
    %v5729 = vpack.c.b16 %v3779, %v3754
    %v5730 = vpack.c.b16 %v3780, %v3755
    %v5731 = vpack.c.b16 %v3781, %v3756
    %v5732 = vpack.c.b16 %v3782, %v3757
    %v5733 = vpack.c.b16 %v3783, %v3758
    %v5734 = vpack.c.b16 %v3784, %v3759
    %v5735 = vpack.c.b16 %v3785, %v3760
    %v5736 = vpack.c.b16 %v3786, %v3761
    %v5737 = vpack.c.b16 %v3787, %v3762
    %v5738 = vpack.c.b16 %v3788, %v3763
    %v5739 = vpack.c.b16 %v3789, %v3764
    %v5740 = vpack.c.b16 %v3790, %v3765
    %v5741 = vpack.c.b16 %v3791, %v3766
    %v5742 = vpack.c.b16 %v3792, %v3767
    %v5743 = vpack.c.b16 %v3793, %v3768
    %v5744 = vpack.c.b16 %v3794, %v3769
    %v5745 = vpack.c.b16 %v3795, %v3770
    %v5746 = vpack.c.b16 %v3796, %v3771
    %v5747 = vpack.c.b16 %v3797, %v3772
    %v5748 = vpack.c.b16 %v3823, %v3798
    %v5749 = vpack.c.b16 %v3824, %v3799
    %v5750 = vpack.c.b16 %v3825, %v3800
    %v5751 = vpack.c.b16 %v3826, %v3801
    %v5752 = vpack.c.b16 %v3827, %v3802
    %v5753 = vpack.c.b16 %v3828, %v3803
    %v5754 = vpack.c.b16 %v3829, %v3804
    %v5755 = vpack.c.b16 %v3830, %v3805
    %v5756 = vpack.c.b16 %v3831, %v3806
    %v5757 = vpack.c.b16 %v3832, %v3807
    %v5758 = vpack.c.b16 %v3833, %v3808
    %v5759 = vpack.c.b16 %v3834, %v3809
    %v5760 = vpack.c.b16 %v3835, %v3810
    %v5761 = vpack.c.b16 %v3836, %v3811
    %v5762 = vpack.c.b16 %v3837, %v3812
    %v5763 = vpack.c.b16 %v3838, %v3813
    %v5764 = vpack.c.b16 %v3839, %v3814
    %v5765 = vpack.c.b16 %v3840, %v3815
    %v5766 = vpack.c.b16 %v3841, %v3816
    %v5767 = vpack.c.b16 %v3842, %v3817
    %v5768 = vpack.c.b16 %v3843, %v3818
    %v5769 = vpack.c.b16 %v3844, %v3819
    %v5770 = vpack.c.b16 %v3845, %v3820
    %v5771 = vpack.c.b16 %v3846, %v3821
    %v5772 = vpack.c.b16 %v3847, %v3822
    %v5773 = vpack.c.b16 %v3873, %v3848
    %v5774 = vpack.c.b16 %v3874, %v3849
    %v5775 = vpack.c.b16 %v3875, %v3850
    %v5776 = vpack.c.b16 %v3876, %v3851
    %v5777 = vpack.c.b16 %v3877, %v3852
    %v5778 = vpack.c.b16 %v3878, %v3853
    %v5779 = vpack.c.b16 %v3879, %v3854
    %v5780 = vpack.c.b16 %v3880, %v3855
    %v5781 = vpack.c.b16 %v3881, %v3856
    %v5782 = vpack.c.b16 %v3882, %v3857
    %v5783 = vpack.c.b16 %v3883, %v3858
    %v5784 = vpack.c.b16 %v3884, %v3859
    %v5785 = vpack.c.b16 %v3885, %v3860
    %v5786 = vpack.c.b16 %v3886, %v3861
    %v5787 = vpack.c.b16 %v3887, %v3862
    %v5788 = vpack.c.b16 %v3888, %v3863
    %v5789 = vpack.c.b16 %v3889, %v3864
    %v5790 = vpack.c.b16 %v3890, %v3865
    %v5791 = vpack.c.b16 %v3891, %v3866
    %v5792 = vpack.c.b16 %v3892, %v3867
    %v5793 = vpack.c.b16 %v3893, %v3868
    %v5794 = vpack.c.b16 %v3894, %v3869
    %v5795 = vpack.c.b16 %v3895, %v3870
    %v5796 = vpack.c.b16 %v3896, %v3871
    %v5797 = vpack.c.b16 %v3897, %v3872
    %v5798 = vpack.c.b16 %v3923, %v3898
    %v5799 = vpack.c.b16 %v3924, %v3899
    %v5800 = vpack.c.b16 %v3925, %v3900
    %v5801 = vpack.c.b16 %v3926, %v3901
    %v5802 = vpack.c.b16 %v3927, %v3902
    %v5803 = vpack.c.b16 %v3928, %v3903
    %v5804 = vpack.c.b16 %v3929, %v3904
    %v5805 = vpack.c.b16 %v3930, %v3905
    %v5806 = vpack.c.b16 %v3931, %v3906
    %v5807 = vpack.c.b16 %v3932, %v3907
    %v5808 = vpack.c.b16 %v3933, %v3908
    %v5809 = vpack.c.b16 %v3934, %v3909
    %v5810 = vpack.c.b16 %v3935, %v3910
    %v5811 = vpack.c.b16 %v3936, %v3911
    %v5812 = vpack.c.b16 %v3937, %v3912
    %v5813 = vpack.c.b16 %v3938, %v3913
    %v5814 = vpack.c.b16 %v3939, %v3914
    %v5815 = vpack.c.b16 %v3940, %v3915
    %v5816 = vpack.c.b16 %v3941, %v3916
    %v5817 = vpack.c.b16 %v3942, %v3917
    %v5818 = vpack.c.b16 %v3943, %v3918
    %v5819 = vpack.c.b16 %v3944, %v3919
    %v5820 = vpack.c.b16 %v3945, %v3920
    %v5821 = vpack.c.b16 %v3946, %v3921
    %v5822 = vpack.c.b16 %v3947, %v3922
    %v5823 = vpack.c.b16 %v3973, %v3948
    %v5824 = vpack.c.b16 %v3974, %v3949
    %v5825 = vpack.c.b16 %v3975, %v3950
    %v5826 = vpack.c.b16 %v3976, %v3951
    %v5827 = vpack.c.b16 %v3977, %v3952
    %v5828 = vpack.c.b16 %v3978, %v3953
    %v5829 = vpack.c.b16 %v3979, %v3954
    %v5830 = vpack.c.b16 %v3980, %v3955
    %v5831 = vpack.c.b16 %v3981, %v3956
    %v5832 = vpack.c.b16 %v3982, %v3957
    %v5833 = vpack.c.b16 %v3983, %v3958
    %v5834 = vpack.c.b16 %v3984, %v3959
    %v5835 = vpack.c.b16 %v3985, %v3960
    %v5836 = vpack.c.b16 %v3986, %v3961
    %v5837 = vpack.c.b16 %v3987, %v3962
    %v5838 = vpack.c.b16 %v3988, %v3963
    %v5839 = vpack.c.b16 %v3989, %v3964
    %v5840 = vpack.c.b16 %v3990, %v3965
    %v5841 = vpack.c.b16 %v3991, %v3966
    %v5842 = vpack.c.b16 %v3992, %v3967
    %v5843 = vpack.c.b16 %v3993, %v3968
    %v5844 = vpack.c.b16 %v3994, %v3969
    %v5845 = vpack.c.b16 %v3995, %v3970
    %v5846 = vpack.c.b16 %v3996, %v3971
    %v5847 = vpack.c.b16 %v3997, %v3972
    %v5848 = vpack.c.b16 %v4023, %v3998
    %v5849 = vpack.c.b16 %v4024, %v3999
    %v5850 = vpack.c.b16 %v4025, %v4000
    %v5851 = vpack.c.b16 %v4026, %v4001
    %v5852 = vpack.c.b16 %v4027, %v4002
    %v5853 = vpack.c.b16 %v4028, %v4003
    %v5854 = vpack.c.b16 %v4029, %v4004
    %v5855 = vpack.c.b16 %v4030, %v4005
    %v5856 = vpack.c.b16 %v4031, %v4006
    %v5857 = vpack.c.b16 %v4032, %v4007
    %v5858 = vpack.c.b16 %v4033, %v4008
    %v5859 = vpack.c.b16 %v4034, %v4009
    %v5860 = vpack.c.b16 %v4035, %v4010
    %v5861 = vpack.c.b16 %v4036, %v4011
    %v5862 = vpack.c.b16 %v4037, %v4012
    %v5863 = vpack.c.b16 %v4038, %v4013
    %v5864 = vpack.c.b16 %v4039, %v4014
    %v5865 = vpack.c.b16 %v4040, %v4015
    %v5866 = vpack.c.b16 %v4041, %v4016
    %v5867 = vpack.c.b16 %v4042, %v4017
    %v5868 = vpack.c.b16 %v4043, %v4018
    %v5869 = vpack.c.b16 %v4044, %v4019
    %v5870 = vpack.c.b16 %v4045, %v4020
    %v5871 = vpack.c.b16 %v4046, %v4021
    %v5872 = vpack.c.b16 %v4047, %v4022
    %v5873 = vpack.c.b16 %v4073, %v4048
    %v5874 = vpack.c.b16 %v4074, %v4049
    %v5875 = vpack.c.b16 %v4075, %v4050
    %v5876 = vpack.c.b16 %v4076, %v4051
    %v5877 = vpack.c.b16 %v4077, %v4052
    %v5878 = vpack.c.b16 %v4078, %v4053
    %v5879 = vpack.c.b16 %v4079, %v4054
    %v5880 = vpack.c.b16 %v4080, %v4055
    %v5881 = vpack.c.b16 %v4081, %v4056
    %v5882 = vpack.c.b16 %v4082, %v4057
    %v5883 = vpack.c.b16 %v4083, %v4058
    %v5884 = vpack.c.b16 %v4084, %v4059
    %v5885 = vpack.c.b16 %v4085, %v4060
    %v5886 = vpack.c.b16 %v4086, %v4061
    %v5887 = vpack.c.b16 %v4087, %v4062
    %v5888 = vpack.c.b16 %v4088, %v4063
    %v5889 = vpack.c.b16 %v4089, %v4064
    %v5890 = vpack.c.b16 %v4090, %v4065
    %v5891 = vpack.c.b16 %v4091, %v4066
    %v5892 = vpack.c.b16 %v4092, %v4067
    %v5893 = vpack.c.b16 %v4093, %v4068
    %v5894 = vpack.c.b16 %v4094, %v4069
    %v5895 = vpack.c.b16 %v4095, %v4070
    %v5896 = vpack.c.b16 %v4096, %v4071
    %v5897 = vpack.c.b16 %v4097, %v4072
    %v5898 = vpack.c.b16 %v4123, %v4098
    %v5899 = vpack.c.b16 %v4124, %v4099
    %v5900 = vpack.c.b16 %v4125, %v4100
    %v5901 = vpack.c.b16 %v4126, %v4101
    %v5902 = vpack.c.b16 %v4127, %v4102
    %v5903 = vpack.c.b16 %v4128, %v4103
    %v5904 = vpack.c.b16 %v4129, %v4104
    %v5905 = vpack.c.b16 %v4130, %v4105
    %v5906 = vpack.c.b16 %v4131, %v4106
    %v5907 = vpack.c.b16 %v4132, %v4107
    %v5908 = vpack.c.b16 %v4133, %v4108
    %v5909 = vpack.c.b16 %v4134, %v4109
    %v5910 = vpack.c.b16 %v4135, %v4110
    %v5911 = vpack.c.b16 %v4136, %v4111
    %v5912 = vpack.c.b16 %v4137, %v4112
    %v5913 = vpack.c.b16 %v4138, %v4113
    %v5914 = vpack.c.b16 %v4139, %v4114
    %v5915 = vpack.c.b16 %v4140, %v4115
    %v5916 = vpack.c.b16 %v4141, %v4116
    %v5917 = vpack.c.b16 %v4142, %v4117
    %v5918 = vpack.c.b16 %v4143, %v4118
    %v5919 = vpack.c.b16 %v4144, %v4119
    %v5920 = vpack.c.b16 %v4145, %v4120
    %v5921 = vpack.c.b16 %v4146, %v4121
    %v5922 = vpack.c.b16 %v4147, %v4122
    %v5923 = vpack.c.b16 %v4173, %v4148
    %v5924 = vpack.c.b16 %v4174, %v4149
    %v5925 = vpack.c.b16 %v4175, %v4150
    %v5926 = vpack.c.b16 %v4176, %v4151
    %v5927 = vpack.c.b16 %v4177, %v4152
    %v5928 = vpack.c.b16 %v4178, %v4153
    %v5929 = vpack.c.b16 %v4179, %v4154
    %v5930 = vpack.c.b16 %v4180, %v4155
    %v5931 = vpack.c.b16 %v4181, %v4156
    %v5932 = vpack.c.b16 %v4182, %v4157
    %v5933 = vpack.c.b16 %v4183, %v4158
    %v5934 = vpack.c.b16 %v4184, %v4159
    %v5935 = vpack.c.b16 %v4185, %v4160
    %v5936 = vpack.c.b16 %v4186, %v4161
    %v5937 = vpack.c.b16 %v4187, %v4162
    %v5938 = vpack.c.b16 %v4188, %v4163
    %v5939 = vpack.c.b16 %v4189, %v4164
    %v5940 = vpack.c.b16 %v4190, %v4165
    %v5941 = vpack.c.b16 %v4191, %v4166
    %v5942 = vpack.c.b16 %v4192, %v4167
    %v5943 = vpack.c.b16 %v4193, %v4168
    %v5944 = vpack.c.b16 %v4194, %v4169
    %v5945 = vpack.c.b16 %v4195, %v4170
    %v5946 = vpack.c.b16 %v4196, %v4171
    %v5947 = vpack.c.b16 %v4197, %v4172
    %v5948 = vpack.c.b16 %v4223, %v4198
    %v5949 = vpack.c.b16 %v4224, %v4199
    %v5950 = vpack.c.b16 %v4225, %v4200
    %v5951 = vpack.c.b16 %v4226, %v4201
    %v5952 = vpack.c.b16 %v4227, %v4202
    %v5953 = vpack.c.b16 %v4228, %v4203
    %v5954 = vpack.c.b16 %v4229, %v4204
    %v5955 = vpack.c.b16 %v4230, %v4205
    %v5956 = vpack.c.b16 %v4231, %v4206
    %v5957 = vpack.c.b16 %v4232, %v4207
    %v5958 = vpack.c.b16 %v4233, %v4208
    %v5959 = vpack.c.b16 %v4234, %v4209
    %v5960 = vpack.c.b16 %v4235, %v4210
    %v5961 = vpack.c.b16 %v4236, %v4211
    %v5962 = vpack.c.b16 %v4237, %v4212
    %v5963 = vpack.c.b16 %v4238, %v4213
    %v5964 = vpack.c.b16 %v4239, %v4214
    %v5965 = vpack.c.b16 %v4240, %v4215
    %v5966 = vpack.c.b16 %v4241, %v4216
    %v5967 = vpack.c.b16 %v4242, %v4217
    %v5968 = vpack.c.b16 %v4243, %v4218
    %v5969 = vpack.c.b16 %v4244, %v4219
    %v5970 = vpack.c.b16 %v4245, %v4220
    %v5971 = vpack.c.b16 %v4246, %v4221
    %v5972 = vpack.c.b16 %v4247, %v4222
    %v5973 = vpack.c.b16 %v4273, %v4248
    %v5974 = vpack.c.b16 %v4274, %v4249
    %v5975 = vpack.c.b16 %v4275, %v4250
    %v5976 = vpack.c.b16 %v4276, %v4251
    %v5977 = vpack.c.b16 %v4277, %v4252
    %v5978 = vpack.c.b16 %v4278, %v4253
    %v5979 = vpack.c.b16 %v4279, %v4254
    %v5980 = vpack.c.b16 %v4280, %v4255
    %v5981 = vpack.c.b16 %v4281, %v4256
    %v5982 = vpack.c.b16 %v4282, %v4257
    %v5983 = vpack.c.b16 %v4283, %v4258
    %v5984 = vpack.c.b16 %v4284, %v4259
    %v5985 = vpack.c.b16 %v4285, %v4260
    %v5986 = vpack.c.b16 %v4286, %v4261
    %v5987 = vpack.c.b16 %v4287, %v4262
    %v5988 = vpack.c.b16 %v4288, %v4263
    %v5989 = vpack.c.b16 %v4289, %v4264
    %v5990 = vpack.c.b16 %v4290, %v4265
    %v5991 = vpack.c.b16 %v4291, %v4266
    %v5992 = vpack.c.b16 %v4292, %v4267
    %v5993 = vpack.c.b16 %v4293, %v4268
    %v5994 = vpack.c.b16 %v4294, %v4269
    %v5995 = vpack.c.b16 %v4295, %v4270
    %v5996 = vpack.c.b16 %v4296, %v4271
    %v5997 = vpack.c.b16 %v4297, %v4272
    %v5998 = vpack.c.b16 %v4323, %v4298
    %v5999 = vpack.c.b16 %v4324, %v4299
    %v6000 = vpack.c.b16 %v4325, %v4300
    %v6001 = vpack.c.b16 %v4326, %v4301
    %v6002 = vpack.c.b16 %v4327, %v4302
    %v6003 = vpack.c.b16 %v4328, %v4303
    %v6004 = vpack.c.b16 %v4329, %v4304
    %v6005 = vpack.c.b16 %v4330, %v4305
    %v6006 = vpack.c.b16 %v4331, %v4306
    %v6007 = vpack.c.b16 %v4332, %v4307
    %v6008 = vpack.c.b16 %v4333, %v4308
    %v6009 = vpack.c.b16 %v4334, %v4309
    %v6010 = vpack.c.b16 %v4335, %v4310
    %v6011 = vpack.c.b16 %v4336, %v4311
    %v6012 = vpack.c.b16 %v4337, %v4312
    %v6013 = vpack.c.b16 %v4338, %v4313
    %v6014 = vpack.c.b16 %v4339, %v4314
    %v6015 = vpack.c.b16 %v4340, %v4315
    %v6016 = vpack.c.b16 %v4341, %v4316
    %v6017 = vpack.c.b16 %v4342, %v4317
    %v6018 = vpack.c.b16 %v4343, %v4318
    %v6019 = vpack.c.b16 %v4344, %v4319
    %v6020 = vpack.c.b16 %v4345, %v4320
    %v6021 = vpack.c.b16 %v4346, %v4321
    %v6022 = vpack.c.b16 %v4347, %v4322
    %v6023 = vpack.c.b16 %v4373, %v4348
    %v6024 = vpack.c.b16 %v4374, %v4349
    %v6025 = vpack.c.b16 %v4375, %v4350
    %v6026 = vpack.c.b16 %v4376, %v4351
    %v6027 = vpack.c.b16 %v4377, %v4352
    %v6028 = vpack.c.b16 %v4378, %v4353
    %v6029 = vpack.c.b16 %v4379, %v4354
    %v6030 = vpack.c.b16 %v4380, %v4355
    %v6031 = vpack.c.b16 %v4381, %v4356
    %v6032 = vpack.c.b16 %v4382, %v4357
    %v6033 = vpack.c.b16 %v4383, %v4358
    %v6034 = vpack.c.b16 %v4384, %v4359
    %v6035 = vpack.c.b16 %v4385, %v4360
    %v6036 = vpack.c.b16 %v4386, %v4361
    %v6037 = vpack.c.b16 %v4387, %v4362
    %v6038 = vpack.c.b16 %v4388, %v4363
    %v6039 = vpack.c.b16 %v4389, %v4364
    %v6040 = vpack.c.b16 %v4390, %v4365
    %v6041 = vpack.c.b16 %v4391, %v4366
    %v6042 = vpack.c.b16 %v4392, %v4367
    %v6043 = vpack.c.b16 %v4393, %v4368
    %v6044 = vpack.c.b16 %v4394, %v4369
    %v6045 = vpack.c.b16 %v4395, %v4370
    %v6046 = vpack.c.b16 %v4396, %v4371
    %v6047 = vpack.c.b16 %v4397, %v4372
    %v6048 = vpack.c.b16 %v4423, %v4398
    %v6049 = vpack.c.b16 %v4424, %v4399
    %v6050 = vpack.c.b16 %v4425, %v4400
    %v6051 = vpack.c.b16 %v4426, %v4401
    %v6052 = vpack.c.b16 %v4427, %v4402
    %v6053 = vpack.c.b16 %v4428, %v4403
    %v6054 = vpack.c.b16 %v4429, %v4404
    %v6055 = vpack.c.b16 %v4430, %v4405
    %v6056 = vpack.c.b16 %v4431, %v4406
    %v6057 = vpack.c.b16 %v4432, %v4407
    %v6058 = vpack.c.b16 %v4433, %v4408
    %v6059 = vpack.c.b16 %v4434, %v4409
    %v6060 = vpack.c.b16 %v4435, %v4410
    %v6061 = vpack.c.b16 %v4436, %v4411
    %v6062 = vpack.c.b16 %v4437, %v4412
    %v6063 = vpack.c.b16 %v4438, %v4413
    %v6064 = vpack.c.b16 %v4439, %v4414
    %v6065 = vpack.c.b16 %v4440, %v4415
    %v6066 = vpack.c.b16 %v4441, %v4416
    %v6067 = vpack.c.b16 %v4442, %v4417
    %v6068 = vpack.c.b16 %v4443, %v4418
    %v6069 = vpack.c.b16 %v4444, %v4419
    %v6070 = vpack.c.b16 %v4445, %v4420
    %v6071 = vpack.c.b16 %v4446, %v4421
    %v6072 = vpack.c.b16 %v4447, %v4422
    %v6073 = vpack.c.b16 %v4473, %v4448
    %v6074 = vpack.c.b16 %v4474, %v4449
    %v6075 = vpack.c.b16 %v4475, %v4450
    %v6076 = vpack.c.b16 %v4476, %v4451
    %v6077 = vpack.c.b16 %v4477, %v4452
    %v6078 = vpack.c.b16 %v4478, %v4453
    %v6079 = vpack.c.b16 %v4479, %v4454
    %v6080 = vpack.c.b16 %v4480, %v4455
    %v6081 = vpack.c.b16 %v4481, %v4456
    %v6082 = vpack.c.b16 %v4482, %v4457
    %v6083 = vpack.c.b16 %v4483, %v4458
    %v6084 = vpack.c.b16 %v4484, %v4459
    %v6085 = vpack.c.b16 %v4485, %v4460
    %v6086 = vpack.c.b16 %v4486, %v4461
    %v6087 = vpack.c.b16 %v4487, %v4462
    %v6088 = vpack.c.b16 %v4488, %v4463
    %v6089 = vpack.c.b16 %v4489, %v4464
    %v6090 = vpack.c.b16 %v4490, %v4465
    %v6091 = vpack.c.b16 %v4491, %v4466
    %v6092 = vpack.c.b16 %v4492, %v4467
    %v6093 = vpack.c.b16 %v4493, %v4468
    %v6094 = vpack.c.b16 %v4494, %v4469
    %v6095 = vpack.c.b16 %v4495, %v4470
    %v6096 = vpack.c.b16 %v4496, %v4471
    %v6097 = vpack.c.b16 %v4497, %v4472
    %v6098 = vpack.c.b16 %v4523, %v4498
    %v6099 = vpack.c.b16 %v4524, %v4499
    %v6100 = vpack.c.b16 %v4525, %v4500
    %v6101 = vpack.c.b16 %v4526, %v4501
    %v6102 = vpack.c.b16 %v4527, %v4502
    %v6103 = vpack.c.b16 %v4528, %v4503
    %v6104 = vpack.c.b16 %v4529, %v4504
    %v6105 = vpack.c.b16 %v4530, %v4505
    %v6106 = vpack.c.b16 %v4531, %v4506
    %v6107 = vpack.c.b16 %v4532, %v4507
    %v6108 = vpack.c.b16 %v4533, %v4508
    %v6109 = vpack.c.b16 %v4534, %v4509
    %v6110 = vpack.c.b16 %v4535, %v4510
    %v6111 = vpack.c.b16 %v4536, %v4511
    %v6112 = vpack.c.b16 %v4537, %v4512
    %v6113 = vpack.c.b16 %v4538, %v4513
    %v6114 = vpack.c.b16 %v4539, %v4514
    %v6115 = vpack.c.b16 %v4540, %v4515
    %v6116 = vpack.c.b16 %v4541, %v4516
    %v6117 = vpack.c.b16 %v4542, %v4517
    %v6118 = vpack.c.b16 %v4543, %v4518
    %v6119 = vpack.c.b16 %v4544, %v4519
    %v6120 = vpack.c.b16 %v4545, %v4520
    %v6121 = vpack.c.b16 %v4546, %v4521
    %v6122 = vpack.c.b16 %v4547, %v4522
    %v6123 = vpack.c.b16 %v4573, %v4548
    %v6124 = vpack.c.b16 %v4574, %v4549
    %v6125 = vpack.c.b16 %v4575, %v4550
    %v6126 = vpack.c.b16 %v4576, %v4551
    %v6127 = vpack.c.b16 %v4577, %v4552
    %v6128 = vpack.c.b16 %v4578, %v4553
    %v6129 = vpack.c.b16 %v4579, %v4554
    %v6130 = vpack.c.b16 %v4580, %v4555
    %v6131 = vpack.c.b16 %v4581, %v4556
    %v6132 = vpack.c.b16 %v4582, %v4557
    %v6133 = vpack.c.b16 %v4583, %v4558
    %v6134 = vpack.c.b16 %v4584, %v4559
    %v6135 = vpack.c.b16 %v4585, %v4560
    %v6136 = vpack.c.b16 %v4586, %v4561
    %v6137 = vpack.c.b16 %v4587, %v4562
    %v6138 = vpack.c.b16 %v4588, %v4563
    %v6139 = vpack.c.b16 %v4589, %v4564
    %v6140 = vpack.c.b16 %v4590, %v4565
    %v6141 = vpack.c.b16 %v4591, %v4566
    %v6142 = vpack.c.b16 %v4592, %v4567
    %v6143 = vpack.c.b16 %v4593, %v4568
    %v6144 = vpack.c.b16 %v4594, %v4569
    %v6145 = vpack.c.b16 %v4595, %v4570
    %v6146 = vpack.c.b16 %v4596, %v4571
    %v6147 = vpack.c.b16 %v4597, %v4572
    %v6148 = vpack.c.b16 %v4623, %v4598
    %v6149 = vpack.c.b16 %v4624, %v4599
    %v6150 = vpack.c.b16 %v4625, %v4600
    %v6151 = vpack.c.b16 %v4626, %v4601
    %v6152 = vpack.c.b16 %v4627, %v4602
    %v6153 = vpack.c.b16 %v4628, %v4603
    %v6154 = vpack.c.b16 %v4629, %v4604
    %v6155 = vpack.c.b16 %v4630, %v4605
    %v6156 = vpack.c.b16 %v4631, %v4606
    %v6157 = vpack.c.b16 %v4632, %v4607
    %v6158 = vpack.c.b16 %v4633, %v4608
    %v6159 = vpack.c.b16 %v4634, %v4609
    %v6160 = vpack.c.b16 %v4635, %v4610
    %v6161 = vpack.c.b16 %v4636, %v4611
    %v6162 = vpack.c.b16 %v4637, %v4612
    %v6163 = vpack.c.b16 %v4638, %v4613
    %v6164 = vpack.c.b16 %v4639, %v4614
    %v6165 = vpack.c.b16 %v4640, %v4615
    %v6166 = vpack.c.b16 %v4641, %v4616
    %v6167 = vpack.c.b16 %v4642, %v4617
    %v6168 = vpack.c.b16 %v4643, %v4618
    %v6169 = vpack.c.b16 %v4644, %v4619
    %v6170 = vpack.c.b16 %v4645, %v4620
    %v6171 = vpack.c.b16 %v4646, %v4621
    %v6172 = vpack.c.b16 %v4647, %v4622
    %v6173 = vpack.c.b16 %v4673, %v4648
    %v6174 = vpack.c.b16 %v4674, %v4649
    %v6175 = vpack.c.b16 %v4675, %v4650
    %v6176 = vpack.c.b16 %v4676, %v4651
    %v6177 = vpack.c.b16 %v4677, %v4652
    %v6178 = vpack.c.b16 %v4678, %v4653
    %v6179 = vpack.c.b16 %v4679, %v4654
    %v6180 = vpack.c.b16 %v4680, %v4655
    %v6181 = vpack.c.b16 %v4681, %v4656
    %v6182 = vpack.c.b16 %v4682, %v4657
    %v6183 = vpack.c.b16 %v4683, %v4658
    %v6184 = vpack.c.b16 %v4684, %v4659
    %v6185 = vpack.c.b16 %v4685, %v4660
    %v6186 = vpack.c.b16 %v4686, %v4661
    %v6187 = vpack.c.b16 %v4687, %v4662
    %v6188 = vpack.c.b16 %v4688, %v4663
    %v6189 = vpack.c.b16 %v4689, %v4664
    %v6190 = vpack.c.b16 %v4690, %v4665
    %v6191 = vpack.c.b16 %v4691, %v4666
    %v6192 = vpack.c.b16 %v4692, %v4667
    %v6193 = vpack.c.b16 %v4693, %v4668
    %v6194 = vpack.c.b16 %v4694, %v4669
    %v6195 = vpack.c.b16 %v4695, %v4670
    %v6196 = vpack.c.b16 %v4696, %v4671
    %v6197 = vpack.c.b16 %v4697, %v4672
    %v6198 = vpack.c.b16 %v4723, %v4698
    %v6199 = vpack.c.b16 %v4724, %v4699
    %v6200 = vpack.c.b16 %v4725, %v4700
    %v6201 = vpack.c.b16 %v4726, %v4701
    %v6202 = vpack.c.b16 %v4727, %v4702
    %v6203 = vpack.c.b16 %v4728, %v4703
    %v6204 = vpack.c.b16 %v4729, %v4704
    %v6205 = vpack.c.b16 %v4730, %v4705
    %v6206 = vpack.c.b16 %v4731, %v4706
    %v6207 = vpack.c.b16 %v4732, %v4707
    %v6208 = vpack.c.b16 %v4733, %v4708
    %v6209 = vpack.c.b16 %v4734, %v4709
    %v6210 = vpack.c.b16 %v4735, %v4710
    %v6211 = vpack.c.b16 %v4736, %v4711
    %v6212 = vpack.c.b16 %v4737, %v4712
    %v6213 = vpack.c.b16 %v4738, %v4713
    %v6214 = vpack.c.b16 %v4739, %v4714
    %v6215 = vpack.c.b16 %v4740, %v4715
    %v6216 = vpack.c.b16 %v4741, %v4716
    %v6217 = vpack.c.b16 %v4742, %v4717
    %v6218 = vpack.c.b16 %v4743, %v4718
    %v6219 = vpack.c.b16 %v4744, %v4719
    %v6220 = vpack.c.b16 %v4745, %v4720
    %v6221 = vpack.c.b16 %v4746, %v4721
    %v6222 = vpack.c.b16 %v4747, %v4722
    %v6223 = vpack.c.b16 %v4773, %v4748
    %v6224 = vpack.c.b16 %v4774, %v4749
    %v6225 = vpack.c.b16 %v4775, %v4750
    %v6226 = vpack.c.b16 %v4776, %v4751
    %v6227 = vpack.c.b16 %v4777, %v4752
    %v6228 = vpack.c.b16 %v4778, %v4753
    %v6229 = vpack.c.b16 %v4779, %v4754
    %v6230 = vpack.c.b16 %v4780, %v4755
    %v6231 = vpack.c.b16 %v4781, %v4756
    %v6232 = vpack.c.b16 %v4782, %v4757
    %v6233 = vpack.c.b16 %v4783, %v4758
    %v6234 = vpack.c.b16 %v4784, %v4759
    %v6235 = vpack.c.b16 %v4785, %v4760
    %v6236 = vpack.c.b16 %v4786, %v4761
    %v6237 = vpack.c.b16 %v4787, %v4762
    %v6238 = vpack.c.b16 %v4788, %v4763
    %v6239 = vpack.c.b16 %v4789, %v4764
    %v6240 = vpack.c.b16 %v4790, %v4765
    %v6241 = vpack.c.b16 %v4791, %v4766
    %v6242 = vpack.c.b16 %v4792, %v4767
    %v6243 = vpack.c.b16 %v4793, %v4768
    %v6244 = vpack.c.b16 %v4794, %v4769
    %v6245 = vpack.c.b16 %v4795, %v4770
    %v6246 = vpack.c.b16 %v4796, %v4771
    %v6247 = vpack.c.b16 %v4797, %v4772
    %v6248 = vpack.c.b16 %v4823, %v4798
    %v6249 = vpack.c.b16 %v4824, %v4799
    %v6250 = vpack.c.b16 %v4825, %v4800
    %v6251 = vpack.c.b16 %v4826, %v4801
    %v6252 = vpack.c.b16 %v4827, %v4802
    %v6253 = vpack.c.b16 %v4828, %v4803
    %v6254 = vpack.c.b16 %v4829, %v4804
    %v6255 = vpack.c.b16 %v4830, %v4805
    %v6256 = vpack.c.b16 %v4831, %v4806
    %v6257 = vpack.c.b16 %v4832, %v4807
    %v6258 = vpack.c.b16 %v4833, %v4808
    %v6259 = vpack.c.b16 %v4834, %v4809
    %v6260 = vpack.c.b16 %v4835, %v4810
    %v6261 = vpack.c.b16 %v4836, %v4811
    %v6262 = vpack.c.b16 %v4837, %v4812
    %v6263 = vpack.c.b16 %v4838, %v4813
    %v6264 = vpack.c.b16 %v4839, %v4814
    %v6265 = vpack.c.b16 %v4840, %v4815
    %v6266 = vpack.c.b16 %v4841, %v4816
    %v6267 = vpack.c.b16 %v4842, %v4817
    %v6268 = vpack.c.b16 %v4843, %v4818
    %v6269 = vpack.c.b16 %v4844, %v4819
    %v6270 = vpack.c.b16 %v4845, %v4820
    %v6271 = vpack.c.b16 %v4846, %v4821
    %v6272 = vpack.c.b16 %v4847, %v4822
    %v6273 = vpack.c.b16 %v4873, %v4848
    %v6274 = vpack.c.b16 %v4874, %v4849
    %v6275 = vpack.c.b16 %v4875, %v4850
    %v6276 = vpack.c.b16 %v4876, %v4851
    %v6277 = vpack.c.b16 %v4877, %v4852
    %v6278 = vpack.c.b16 %v4878, %v4853
    %v6279 = vpack.c.b16 %v4879, %v4854
    %v6280 = vpack.c.b16 %v4880, %v4855
    %v6281 = vpack.c.b16 %v4881, %v4856
    %v6282 = vpack.c.b16 %v4882, %v4857
    %v6283 = vpack.c.b16 %v4883, %v4858
    %v6284 = vpack.c.b16 %v4884, %v4859
    %v6285 = vpack.c.b16 %v4885, %v4860
    %v6286 = vpack.c.b16 %v4886, %v4861
    %v6287 = vpack.c.b16 %v4887, %v4862
    %v6288 = vpack.c.b16 %v4888, %v4863
    %v6289 = vpack.c.b16 %v4889, %v4864
    %v6290 = vpack.c.b16 %v4890, %v4865
    %v6291 = vpack.c.b16 %v4891, %v4866
    %v6292 = vpack.c.b16 %v4892, %v4867
    %v6293 = vpack.c.b16 %v4893, %v4868
    %v6294 = vpack.c.b16 %v4894, %v4869
    %v6295 = vpack.c.b16 %v4895, %v4870
    %v6296 = vpack.c.b16 %v4896, %v4871
    %v6297 = vpack.c.b16 %v4897, %v4872
    %v6298 = vpack.c.b16 %v4923, %v4898
    %v6299 = vpack.c.b16 %v4924, %v4899
    %v6300 = vpack.c.b16 %v4925, %v4900
    %v6301 = vpack.c.b16 %v4926, %v4901
    %v6302 = vpack.c.b16 %v4927, %v4902
    %v6303 = vpack.c.b16 %v4928, %v4903
    %v6304 = vpack.c.b16 %v4929, %v4904
    %v6305 = vpack.c.b16 %v4930, %v4905
    %v6306 = vpack.c.b16 %v4931, %v4906
    %v6307 = vpack.c.b16 %v4932, %v4907
    %v6308 = vpack.c.b16 %v4933, %v4908
    %v6309 = vpack.c.b16 %v4934, %v4909
    %v6310 = vpack.c.b16 %v4935, %v4910
    %v6311 = vpack.c.b16 %v4936, %v4911
    %v6312 = vpack.c.b16 %v4937, %v4912
    %v6313 = vpack.c.b16 %v4938, %v4913
    %v6314 = vpack.c.b16 %v4939, %v4914
    %v6315 = vpack.c.b16 %v4940, %v4915
    %v6316 = vpack.c.b16 %v4941, %v4916
    %v6317 = vpack.c.b16 %v4942, %v4917
    %v6318 = vpack.c.b16 %v4943, %v4918
    %v6319 = vpack.c.b16 %v4944, %v4919
    %v6320 = vpack.c.b16 %v4945, %v4920
    %v6321 = vpack.c.b16 %v4946, %v4921
    %v6322 = vpack.c.b16 %v4947, %v4922
    %v6323 = vpack.c.b16 %v4973, %v4948
    %v6324 = vpack.c.b16 %v4974, %v4949
    %v6325 = vpack.c.b16 %v4975, %v4950
    %v6326 = vpack.c.b16 %v4976, %v4951
    %v6327 = vpack.c.b16 %v4977, %v4952
    %v6328 = vpack.c.b16 %v4978, %v4953
    %v6329 = vpack.c.b16 %v4979, %v4954
    %v6330 = vpack.c.b16 %v4980, %v4955
    %v6331 = vpack.c.b16 %v4981, %v4956
    %v6332 = vpack.c.b16 %v4982, %v4957
    %v6333 = vpack.c.b16 %v4983, %v4958
    %v6334 = vpack.c.b16 %v4984, %v4959
    %v6335 = vpack.c.b16 %v4985, %v4960
    %v6336 = vpack.c.b16 %v4986, %v4961
    %v6337 = vpack.c.b16 %v4987, %v4962
    %v6338 = vpack.c.b16 %v4988, %v4963
    %v6339 = vpack.c.b16 %v4989, %v4964
    %v6340 = vpack.c.b16 %v4990, %v4965
    %v6341 = vpack.c.b16 %v4991, %v4966
    %v6342 = vpack.c.b16 %v4992, %v4967
    %v6343 = vpack.c.b16 %v4993, %v4968
    %v6344 = vpack.c.b16 %v4994, %v4969
    %v6345 = vpack.c.b16 %v4995, %v4970
    %v6346 = vpack.c.b16 %v4996, %v4971
    %v6347 = vpack.c.b16 %v4997, %v4972
    %v6348 = vpack.c.b16 %v5023, %v4998
    %v6349 = vpack.c.b16 %v5024, %v4999
    %v6350 = vpack.c.b16 %v5025, %v5000
    %v6351 = vpack.c.b16 %v5026, %v5001
    %v6352 = vpack.c.b16 %v5027, %v5002
    %v6353 = vpack.c.b16 %v5028, %v5003
    %v6354 = vpack.c.b16 %v5029, %v5004
    %v6355 = vpack.c.b16 %v5030, %v5005
    %v6356 = vpack.c.b16 %v5031, %v5006
    %v6357 = vpack.c.b16 %v5032, %v5007
    %v6358 = vpack.c.b16 %v5033, %v5008
    %v6359 = vpack.c.b16 %v5034, %v5009
    %v6360 = vpack.c.b16 %v5035, %v5010
    %v6361 = vpack.c.b16 %v5036, %v5011
    %v6362 = vpack.c.b16 %v5037, %v5012
    %v6363 = vpack.c.b16 %v5038, %v5013
    %v6364 = vpack.c.b16 %v5039, %v5014
    %v6365 = vpack.c.b16 %v5040, %v5015
    %v6366 = vpack.c.b16 %v5041, %v5016
    %v6367 = vpack.c.b16 %v5042, %v5017
    %v6368 = vpack.c.b16 %v5043, %v5018
    %v6369 = vpack.c.b16 %v5044, %v5019
    %v6370 = vpack.c.b16 %v5045, %v5020
    %v6371 = vpack.c.b16 %v5046, %v5021
    %v6372 = vpack.c.b16 %v5047, %v5022
    %v6373 = vpack.c.b16 %v5073, %v5048
    %v6374 = vpack.c.b16 %v5074, %v5049
    %v6375 = vpack.c.b16 %v5075, %v5050
    %v6376 = vpack.c.b16 %v5076, %v5051
    %v6377 = vpack.c.b16 %v5077, %v5052
    %v6378 = vpack.c.b16 %v5078, %v5053
    %v6379 = vpack.c.b16 %v5079, %v5054
    %v6380 = vpack.c.b16 %v5080, %v5055
    %v6381 = vpack.c.b16 %v5081, %v5056
    %v6382 = vpack.c.b16 %v5082, %v5057
    %v6383 = vpack.c.b16 %v5083, %v5058
    %v6384 = vpack.c.b16 %v5084, %v5059
    %v6385 = vpack.c.b16 %v5085, %v5060
    %v6386 = vpack.c.b16 %v5086, %v5061
    %v6387 = vpack.c.b16 %v5087, %v5062
    %v6388 = vpack.c.b16 %v5088, %v5063
    %v6389 = vpack.c.b16 %v5089, %v5064
    %v6390 = vpack.c.b16 %v5090, %v5065
    %v6391 = vpack.c.b16 %v5091, %v5066
    %v6392 = vpack.c.b16 %v5092, %v5067
    %v6393 = vpack.c.b16 %v5093, %v5068
    %v6394 = vpack.c.b16 %v5094, %v5069
    %v6395 = vpack.c.b16 %v5095, %v5070
    %v6396 = vpack.c.b16 %v5096, %v5071
    %v6397 = vpack.c.b16 %v5097, %v5072
    %v6398 = vpack.c.b16 %v5123, %v5098
    %v6399 = vpack.c.b16 %v5124, %v5099
    %v6400 = vpack.c.b16 %v5125, %v5100
    %v6401 = vpack.c.b16 %v5126, %v5101
    %v6402 = vpack.c.b16 %v5127, %v5102
    %v6403 = vpack.c.b16 %v5128, %v5103
    %v6404 = vpack.c.b16 %v5129, %v5104
    %v6405 = vpack.c.b16 %v5130, %v5105
    %v6406 = vpack.c.b16 %v5131, %v5106
    %v6407 = vpack.c.b16 %v5132, %v5107
    %v6408 = vpack.c.b16 %v5133, %v5108
    %v6409 = vpack.c.b16 %v5134, %v5109
    %v6410 = vpack.c.b16 %v5135, %v5110
    %v6411 = vpack.c.b16 %v5136, %v5111
    %v6412 = vpack.c.b16 %v5137, %v5112
    %v6413 = vpack.c.b16 %v5138, %v5113
    %v6414 = vpack.c.b16 %v5139, %v5114
    %v6415 = vpack.c.b16 %v5140, %v5115
    %v6416 = vpack.c.b16 %v5141, %v5116
    %v6417 = vpack.c.b16 %v5142, %v5117
    %v6418 = vpack.c.b16 %v5143, %v5118
    %v6419 = vpack.c.b16 %v5144, %v5119
    %v6420 = vpack.c.b16 %v5145, %v5120
    %v6421 = vpack.c.b16 %v5146, %v5121
    %v6422 = vpack.c.b16 %v5147, %v5122
    %v6423 = vpack.c.b16 %v5173, %v5148
    %v6424 = vpack.c.b16 %v5174, %v5149
    %v6425 = vpack.c.b16 %v5175, %v5150
    %v6426 = vpack.c.b16 %v5176, %v5151
    %v6427 = vpack.c.b16 %v5177, %v5152
    %v6428 = vpack.c.b16 %v5178, %v5153
    %v6429 = vpack.c.b16 %v5179, %v5154
    %v6430 = vpack.c.b16 %v5180, %v5155
    %v6431 = vpack.c.b16 %v5181, %v5156
    %v6432 = vpack.c.b16 %v5182, %v5157
    %v6433 = vpack.c.b16 %v5183, %v5158
    %v6434 = vpack.c.b16 %v5184, %v5159
    %v6435 = vpack.c.b16 %v5185, %v5160
    %v6436 = vpack.c.b16 %v5186, %v5161
    %v6437 = vpack.c.b16 %v5187, %v5162
    %v6438 = vpack.c.b16 %v5188, %v5163
    %v6439 = vpack.c.b16 %v5189, %v5164
    %v6440 = vpack.c.b16 %v5190, %v5165
    %v6441 = vpack.c.b16 %v5191, %v5166
    %v6442 = vpack.c.b16 %v5192, %v5167
    %v6443 = vpack.c.b16 %v5193, %v5168
    %v6444 = vpack.c.b16 %v5194, %v5169
    %v6445 = vpack.c.b16 %v5195, %v5170
    %v6446 = vpack.c.b16 %v5196, %v5171
    %v6447 = vpack.c.b16 %v5197, %v5172
    %v6448 = vpack.c.b16 %v5223, %v5198
    %v6449 = vpack.c.b16 %v5224, %v5199
    %v6450 = vpack.c.b16 %v5225, %v5200
    %v6451 = vpack.c.b16 %v5226, %v5201
    %v6452 = vpack.c.b16 %v5227, %v5202
    %v6453 = vpack.c.b16 %v5228, %v5203
    %v6454 = vpack.c.b16 %v5229, %v5204
    %v6455 = vpack.c.b16 %v5230, %v5205
    %v6456 = vpack.c.b16 %v5231, %v5206
    %v6457 = vpack.c.b16 %v5232, %v5207
    %v6458 = vpack.c.b16 %v5233, %v5208
    %v6459 = vpack.c.b16 %v5234, %v5209
    %v6460 = vpack.c.b16 %v5235, %v5210
    %v6461 = vpack.c.b16 %v5236, %v5211
    %v6462 = vpack.c.b16 %v5237, %v5212
    %v6463 = vpack.c.b16 %v5238, %v5213
    %v6464 = vpack.c.b16 %v5239, %v5214
    %v6465 = vpack.c.b16 %v5240, %v5215
    %v6466 = vpack.c.b16 %v5241, %v5216
    %v6467 = vpack.c.b16 %v5242, %v5217
    %v6468 = vpack.c.b16 %v5243, %v5218
    %v6469 = vpack.c.b16 %v5244, %v5219
    %v6470 = vpack.c.b16 %v5245, %v5220
    %v6471 = vpack.c.b16 %v5246, %v5221
    %v6472 = vpack.c.b16 %v5247, %v5222
    %vm7698 = vcmask 130048
    %v7700 = vsel %vm7698, %v116, 0
    %7702 = vmatprep.subr.bf16.mxu0 %v5249
    %7703 = vmatpush1.bf16.msra.mxu0 %v5248
    %7704 = vmatprep.subr.bf16.mxu0 %v5274
    %7705 = vmatpush1.bf16.msra.mxu0 %v5273
    %7706 = vmatprep.subr.bf16.mxu0 %v5299
    %7707 = vmatpush1.bf16.msra.mxu0 %v5298
    %7708 = vmatprep.subr.bf16.mxu0 %v5324
    %7709 = vmatpush1.bf16.msra.mxu0 %v5323
    %7710 = vmatprep.subr.bf16.mxu0 %v5349
    %7711 = vmatpush1.bf16.msra.mxu0 %v5348
    %7712 = vmatprep.subr.bf16.mxu0 %v5374
    %7713 = vmatpush1.bf16.msra.mxu0 %v5373
    %7714 = vmatprep.subr.bf16.mxu0 %v5399
    %7715 = vmatpush1.bf16.msra.mxu0 %v5398
    %7716 = vmatprep.subr.bf16.mxu0 %v5424
    %7717 = vmatpush1.bf16.msra.mxu0 %v5423
    %7718 = vmatprep.subr.bf16.mxu0 %v5449
    %7719 = vmatpush1.bf16.msra.mxu0 %v5448
    %7720 = vmatprep.subr.bf16.mxu0 %v5474
    %7721 = vmatpush1.bf16.msra.mxu0 %v5473
    %7722 = vmatprep.subr.bf16.mxu0 %v5499
    %7723 = vmatpush1.bf16.msra.mxu0 %v5498
    %7724 = vmatprep.subr.bf16.mxu0 %v5524
    %7725 = vmatpush1.bf16.msra.mxu0 %v5523
    %7726 = vmatprep.subr.bf16.mxu0 %v5549
    %7727 = vmatpush1.bf16.msra.mxu0 %v5548
    %7728 = vmatprep.subr.bf16.mxu0 %v5574
    %7729 = vmatpush1.bf16.msra.mxu0 %v5573
    %7730 = vmatprep.subr.bf16.mxu0 %v5599
    %7731 = vmatpush1.bf16.msra.mxu0 %v5598
    %7732 = vmatprep.subr.bf16.mxu0 %v5624
    %7733 = vmatpush1.bf16.msra.mxu0 %v5623
    %7734 = vmatprep.mubr.bf16.mxu0 %v111
    %7735 = vmatmul.mubr.bf16.gmra.mrb[0].mxu0 %v110
    %v7736 = vpop.f32.mrb[0].mxu0
    %v7737 = vadd.f32 %v1402, %v7736
    %v7738 = vpop.f32.mrb[0].mxu0
    %v7739 = vadd.f32 %v1406, %v7738
    %v7740 = vpop.f32.mrb[0].mxu0
    %v7741 = vpop.f32.mrb[0].mxu0
    %7742 = vdwg.mxu0
    %7743 = vmatprep.subr.bf16.mxu0 %v5649
    %7744 = vmatpush1.bf16.msra.mxu0 %v5648
    %7745 = vmatprep.subr.bf16.mxu0 %v5674
    %7746 = vmatpush1.bf16.msra.mxu0 %v5673
    %7747 = vmatprep.subr.bf16.mxu0 %v5699
    %7748 = vmatpush1.bf16.msra.mxu0 %v5698
    %7749 = vmatprep.subr.bf16.mxu0 %v5724
    %7750 = vmatpush1.bf16.msra.mxu0 %v5723
    %7751 = vmatprep.subr.bf16.mxu0 %v5749
    %7752 = vmatpush1.bf16.msra.mxu0 %v5748
    %7753 = vmatprep.subr.bf16.mxu0 %v5774
    %7754 = vmatpush1.bf16.msra.mxu0 %v5773
    %7755 = vmatprep.subr.bf16.mxu0 %v5799
    %7756 = vmatpush1.bf16.msra.mxu0 %v5798
    %7757 = vmatprep.subr.bf16.mxu0 %v5824
    %7758 = vmatpush1.bf16.msra.mxu0 %v5823
    %7759 = vmatprep.subr.bf16.mxu0 %v5849
    %7760 = vmatpush1.bf16.msra.mxu0 %v5848
    %7761 = vmatprep.subr.bf16.mxu0 %v5874
    %7762 = vmatpush1.bf16.msra.mxu0 %v5873
    %7763 = vmatprep.subr.bf16.mxu0 %v5899
    %7764 = vmatpush1.bf16.msra.mxu0 %v5898
    %7765 = vmatprep.subr.bf16.mxu0 %v5924
    %7766 = vmatpush1.bf16.msra.mxu0 %v5923
    %7767 = vmatprep.subr.bf16.mxu0 %v5949
    %7768 = vmatpush1.bf16.msra.mxu0 %v5948
    %7769 = vmatprep.subr.bf16.mxu0 %v5974
    %7770 = vmatpush1.bf16.msra.mxu0 %v5973
    %7771 = vmatprep.subr.bf16.mxu0 %v5999
    %7772 = vmatpush1.bf16.msra.mxu0 %v5998
    %7773 = vmatprep.subr.bf16.mxu0 %v6024
    %7774 = vmatpush1.bf16.msra.mxu0 %v6023
    %7775 = vmatprep.mubr.bf16.mxu0 %v113
    %7776 = vmatmul.mubr.bf16.gmra.mrb[0].mxu0 %v112
    %v7777 = vpop.f32.mrb[0].mxu0
    %v7778 = vadd.f32 %v7737, %v7777
    %v7779 = vpop.f32.mrb[0].mxu0
    %v7780 = vadd.f32 %v7739, %v7779
    %v7781 = vpop.f32.mrb[0].mxu0
    %v7782 = vpop.f32.mrb[0].mxu0
    %7783 = vdwg.mxu0
    %7784 = vmatprep.subr.bf16.mxu0 %v6049
    %7785 = vmatpush1.bf16.msra.mxu0 %v6048
    %7786 = vmatprep.subr.bf16.mxu0 %v6074
    %7787 = vmatpush1.bf16.msra.mxu0 %v6073
    %7788 = vmatprep.subr.bf16.mxu0 %v6099
    %7789 = vmatpush1.bf16.msra.mxu0 %v6098
    %7790 = vmatprep.subr.bf16.mxu0 %v6124
    %7791 = vmatpush1.bf16.msra.mxu0 %v6123
    %7792 = vmatprep.subr.bf16.mxu0 %v6149
    %7793 = vmatpush1.bf16.msra.mxu0 %v6148
    %7794 = vmatprep.subr.bf16.mxu0 %v6174
    %7795 = vmatpush1.bf16.msra.mxu0 %v6173
    %7796 = vmatprep.subr.bf16.mxu0 %v6199
    %7797 = vmatpush1.bf16.msra.mxu0 %v6198
    %7798 = vmatprep.subr.bf16.mxu0 %v6224
    %7799 = vmatpush1.bf16.msra.mxu0 %v6223
    %7800 = vmatprep.subr.bf16.mxu0 %v6249
    %7801 = vmatpush1.bf16.msra.mxu0 %v6248
    %7802 = vmatprep.subr.bf16.mxu0 %v6274
    %7803 = vmatpush1.bf16.msra.mxu0 %v6273
    %7804 = vmatprep.subr.bf16.mxu0 %v6299
    %7805 = vmatpush1.bf16.msra.mxu0 %v6298
    %7806 = vmatprep.subr.bf16.mxu0 %v6324
    %7807 = vmatpush1.bf16.msra.mxu0 %v6323
    %7808 = vmatprep.subr.bf16.mxu0 %v6349
    %7809 = vmatpush1.bf16.msra.mxu0 %v6348
    %7810 = vmatprep.subr.bf16.mxu0 %v6374
    %7811 = vmatpush1.bf16.msra.mxu0 %v6373
    %7812 = vmatprep.subr.bf16.mxu0 %v6399
    %7813 = vmatpush1.bf16.msra.mxu0 %v6398
    %7814 = vmatprep.subr.bf16.mxu0 %v6424
    %7815 = vmatpush1.bf16.msra.mxu0 %v6423
    %7816 = vmatprep.mubr.bf16.mxu0 %v115
    %7817 = vmatmul.mubr.bf16.gmra.mrb[0].mxu0 %v114
    %v7818 = vpop.f32.mrb[0].mxu0
    %v7819 = vadd.f32 %v7778, %v7818
    %v7820 = vpop.f32.mrb[0].mxu0
    %v7821 = vadd.f32 %v7780, %v7820
    %v7822 = vpop.f32.mrb[0].mxu0
    %v7823 = vpop.f32.mrb[0].mxu0
    %7824 = vdwg.mxu0
    %7825 = vmatprep.subr.bf16.mxu0 %v6449
    %7826 = vmatpush1.bf16.msra.mxu0 %v6448
    %7827 = vmatprep.subr.bf16.mxu0 0
    %7828 = vmatpush1.bf16.msra.mxu0 0
    %7829 = vmatprep.subr.bf16.mxu0 0
    %7830 = vmatpush1.bf16.msra.mxu0 0
    %7831 = vmatprep.subr.bf16.mxu0 0
    %7832 = vmatpush1.bf16.msra.mxu0 0
    %7833 = vmatprep.subr.bf16.mxu0 0
    %7834 = vmatpush1.bf16.msra.mxu0 0
    %7835 = vmatprep.subr.bf16.mxu0 0
    %7836 = vmatpush1.bf16.msra.mxu0 0
    %7837 = vmatprep.subr.bf16.mxu0 0
    %7838 = vmatpush1.bf16.msra.mxu0 0
    %7839 = vmatprep.subr.bf16.mxu0 0
    %7840 = vmatpush1.bf16.msra.mxu0 0
    %7841 = vmatprep.subr.bf16.mxu0 0
    %7842 = vmatpush1.bf16.msra.mxu0 0
    %7843 = vmatprep.subr.bf16.mxu0 0
    %7844 = vmatpush1.bf16.msra.mxu0 0
    %7845 = vmatprep.subr.bf16.mxu0 0
    %7846 = vmatpush1.bf16.msra.mxu0 0
    %7847 = vmatprep.subr.bf16.mxu0 0
    %7848 = vmatpush1.bf16.msra.mxu0 0
    %7849 = vmatprep.subr.bf16.mxu0 0
    %7850 = vmatpush1.bf16.msra.mxu0 0
    %7851 = vmatprep.subr.bf16.mxu0 0
    %7852 = vmatpush1.bf16.msra.mxu0 0
    %7853 = vmatprep.subr.bf16.mxu0 0
    %7854 = vmatpush1.bf16.msra.mxu0 0
    %7855 = vmatprep.subr.bf16.mxu0 0
    %7856 = vmatpush1.bf16.msra.mxu0 0
    %7857 = vmatprep.mubr.bf16.mxu0 0
    %7858 = vmatmul.mubr.bf16.gmra.mrb[0].mxu0 %v7700
    %v7859 = vpop.f32.mrb[0].mxu0
    %v7860 = vadd.f32 %v7819, %v7859
    %v7861 = vpop.f32.mrb[0].mxu0
    %v7862 = vadd.f32 %v7821, %v7861
    %v7863 = vpop.f32.mrb[0].mxu0
    %v7864 = vpop.f32.mrb[0].mxu0
    %7865 = vdwg.mxu0
    %7866 = vmatprep.subr.bf16.mxu0 %v5251
    %7867 = vmatpush1.bf16.msra.mxu0 %v5250
    %7868 = vmatprep.subr.bf16.mxu0 %v5276
    %7869 = vmatpush1.bf16.msra.mxu0 %v5275
    %7870 = vmatprep.subr.bf16.mxu0 %v5301
    %7871 = vmatpush1.bf16.msra.mxu0 %v5300
    %7872 = vmatprep.subr.bf16.mxu0 %v5326
    %7873 = vmatpush1.bf16.msra.mxu0 %v5325
    %7874 = vmatprep.subr.bf16.mxu0 %v5351
    %7875 = vmatpush1.bf16.msra.mxu0 %v5350
    %7876 = vmatprep.subr.bf16.mxu0 %v5376
    %7877 = vmatpush1.bf16.msra.mxu0 %v5375
    %7878 = vmatprep.subr.bf16.mxu0 %v5401
    %7879 = vmatpush1.bf16.msra.mxu0 %v5400
    %7880 = vmatprep.subr.bf16.mxu0 %v5426
    %7881 = vmatpush1.bf16.msra.mxu0 %v5425
    %7882 = vmatprep.subr.bf16.mxu0 %v5451
    %7883 = vmatpush1.bf16.msra.mxu0 %v5450
    %7884 = vmatprep.subr.bf16.mxu0 %v5476
    %7885 = vmatpush1.bf16.msra.mxu0 %v5475
    %7886 = vmatprep.subr.bf16.mxu0 %v5501
    %7887 = vmatpush1.bf16.msra.mxu0 %v5500
    %7888 = vmatprep.subr.bf16.mxu0 %v5526
    %7889 = vmatpush1.bf16.msra.mxu0 %v5525
    %7890 = vmatprep.subr.bf16.mxu0 %v5551
    %7891 = vmatpush1.bf16.msra.mxu0 %v5550
    %7892 = vmatprep.subr.bf16.mxu0 %v5576
    %7893 = vmatpush1.bf16.msra.mxu0 %v5575
    %7894 = vmatprep.subr.bf16.mxu0 %v5601
    %7895 = vmatpush1.bf16.msra.mxu0 %v5600
    %7896 = vmatprep.subr.bf16.mxu0 %v5626
    %7897 = vmatpush1.bf16.msra.mxu0 %v5625
    %7898 = vmatprep.mubr.bf16.mxu0 %v111
    %7899 = vmatmul.mubr.bf16.gmra.mrb[0].mxu0 %v110
    %v7900 = vpop.f32.mrb[0].mxu0
    %v7901 = vadd.f32 %v1410, %v7900
    %v7902 = vpop.f32.mrb[0].mxu0
    %v7903 = vadd.f32 %v1414, %v7902
    %v7904 = vpop.f32.mrb[0].mxu0
    %v7905 = vpop.f32.mrb[0].mxu0
    %7906 = vdwg.mxu0
    %7907 = vmatprep.subr.bf16.mxu0 %v5651
    %7908 = vmatpush1.bf16.msra.mxu0 %v5650
    %7909 = vmatprep.subr.bf16.mxu0 %v5676
    %7910 = vmatpush1.bf16.msra.mxu0 %v5675
    %7911 = vmatprep.subr.bf16.mxu0 %v5701
    %7912 = vmatpush1.bf16.msra.mxu0 %v5700
    %7913 = vmatprep.subr.bf16.mxu0 %v5726
    %7914 = vmatpush1.bf16.msra.mxu0 %v5725
    %7915 = vmatprep.subr.bf16.mxu0 %v5751
    %7916 = vmatpush1.bf16.msra.mxu0 %v5750
    %7917 = vmatprep.subr.bf16.mxu0 %v5776
    %7918 = vmatpush1.bf16.msra.mxu0 %v5775
    %7919 = vmatprep.subr.bf16.mxu0 %v5801
    %7920 = vmatpush1.bf16.msra.mxu0 %v5800
    %7921 = vmatprep.subr.bf16.mxu0 %v5826
    %7922 = vmatpush1.bf16.msra.mxu0 %v5825
    %7923 = vmatprep.subr.bf16.mxu0 %v5851
    %7924 = vmatpush1.bf16.msra.mxu0 %v5850
    %7925 = vmatprep.subr.bf16.mxu0 %v5876
    %7926 = vmatpush1.bf16.msra.mxu0 %v5875
    %7927 = vmatprep.subr.bf16.mxu0 %v5901
    %7928 = vmatpush1.bf16.msra.mxu0 %v5900
    %7929 = vmatprep.subr.bf16.mxu0 %v5926
    %7930 = vmatpush1.bf16.msra.mxu0 %v5925
    %7931 = vmatprep.subr.bf16.mxu0 %v5951
    %7932 = vmatpush1.bf16.msra.mxu0 %v5950
    %7933 = vmatprep.subr.bf16.mxu0 %v5976
    %7934 = vmatpush1.bf16.msra.mxu0 %v5975
    %7935 = vmatprep.subr.bf16.mxu0 %v6001
    %7936 = vmatpush1.bf16.msra.mxu0 %v6000
    %7937 = vmatprep.subr.bf16.mxu0 %v6026
    %7938 = vmatpush1.bf16.msra.mxu0 %v6025
    %7939 = vmatprep.mubr.bf16.mxu0 %v113
    %7940 = vmatmul.mubr.bf16.gmra.mrb[0].mxu0 %v112
    %v7941 = vpop.f32.mrb[0].mxu0
    %v7942 = vadd.f32 %v7901, %v7941
    %v7943 = vpop.f32.mrb[0].mxu0
    %v7944 = vadd.f32 %v7903, %v7943
    %v7945 = vpop.f32.mrb[0].mxu0
    %v7946 = vpop.f32.mrb[0].mxu0
    %7947 = vdwg.mxu0
    %7948 = vmatprep.subr.bf16.mxu0 %v6051
    %7949 = vmatpush1.bf16.msra.mxu0 %v6050
    %7950 = vmatprep.subr.bf16.mxu0 %v6076
    %7951 = vmatpush1.bf16.msra.mxu0 %v6075
    %7952 = vmatprep.subr.bf16.mxu0 %v6101
    %7953 = vmatpush1.bf16.msra.mxu0 %v6100
    %7954 = vmatprep.subr.bf16.mxu0 %v6126
    %7955 = vmatpush1.bf16.msra.mxu0 %v6125
    %7956 = vmatprep.subr.bf16.mxu0 %v6151
    %7957 = vmatpush1.bf16.msra.mxu0 %v6150
    %7958 = vmatprep.subr.bf16.mxu0 %v6176
    %7959 = vmatpush1.bf16.msra.mxu0 %v6175
    %7960 = vmatprep.subr.bf16.mxu0 %v6201
    %7961 = vmatpush1.bf16.msra.mxu0 %v6200
    %7962 = vmatprep.subr.bf16.mxu0 %v6226
    %7963 = vmatpush1.bf16.msra.mxu0 %v6225
    %7964 = vmatprep.subr.bf16.mxu0 %v6251
    %7965 = vmatpush1.bf16.msra.mxu0 %v6250
    %7966 = vmatprep.subr.bf16.mxu0 %v6276
    %7967 = vmatpush1.bf16.msra.mxu0 %v6275
    %7968 = vmatprep.subr.bf16.mxu0 %v6301
    %7969 = vmatpush1.bf16.msra.mxu0 %v6300
    %7970 = vmatprep.subr.bf16.mxu0 %v6326
    %7971 = vmatpush1.bf16.msra.mxu0 %v6325
    %7972 = vmatprep.subr.bf16.mxu0 %v6351
    %7973 = vmatpush1.bf16.msra.mxu0 %v6350
    %7974 = vmatprep.subr.bf16.mxu0 %v6376
    %7975 = vmatpush1.bf16.msra.mxu0 %v6375
    %7976 = vmatprep.subr.bf16.mxu0 %v6401
    %7977 = vmatpush1.bf16.msra.mxu0 %v6400
    %7978 = vmatprep.subr.bf16.mxu0 %v6426
    %7979 = vmatpush1.bf16.msra.mxu0 %v6425
    %7980 = vmatprep.mubr.bf16.mxu0 %v115
    %7981 = vmatmul.mubr.bf16.gmra.mrb[0].mxu0 %v114
    %v7982 = vpop.f32.mrb[0].mxu0
    %v7983 = vadd.f32 %v7942, %v7982
    %v7984 = vpop.f32.mrb[0].mxu0
    %v7985 = vadd.f32 %v7944, %v7984
    %v7986 = vpop.f32.mrb[0].mxu0
    %v7987 = vpop.f32.mrb[0].mxu0
    %7988 = vdwg.mxu0
    %7989 = vmatprep.subr.bf16.mxu0 %v6451
    %7990 = vmatpush1.bf16.msra.mxu0 %v6450
    %7991 = vmatprep.subr.bf16.mxu0 0
    %7992 = vmatpush1.bf16.msra.mxu0 0
    %7993 = vmatprep.subr.bf16.mxu0 0
    %7994 = vmatpush1.bf16.msra.mxu0 0
    %7995 = vmatprep.subr.bf16.mxu0 0
    %7996 = vmatpush1.bf16.msra.mxu0 0
    %7997 = vmatprep.subr.bf16.mxu0 0
    %7998 = vmatpush1.bf16.msra.mxu0 0
    %7999 = vmatprep.subr.bf16.mxu0 0
    %8000 = vmatpush1.bf16.msra.mxu0 0
    %8001 = vmatprep.subr.bf16.mxu0 0
    %8002 = vmatpush1.bf16.msra.mxu0 0
    %8003 = vmatprep.subr.bf16.mxu0 0
    %8004 = vmatpush1.bf16.msra.mxu0 0
    %8005 = vmatprep.subr.bf16.mxu0 0
    %8006 = vmatpush1.bf16.msra.mxu0 0
    %8007 = vmatprep.subr.bf16.mxu0 0
    %8008 = vmatpush1.bf16.msra.mxu0 0
    %8009 = vmatprep.subr.bf16.mxu0 0
    %8010 = vmatpush1.bf16.msra.mxu0 0
    %8011 = vmatprep.subr.bf16.mxu0 0
    %8012 = vmatpush1.bf16.msra.mxu0 0
    %8013 = vmatprep.subr.bf16.mxu0 0
    %8014 = vmatpush1.bf16.msra.mxu0 0
    %8015 = vmatprep.subr.bf16.mxu0 0
    %8016 = vmatpush1.bf16.msra.mxu0 0
    %8017 = vmatprep.subr.bf16.mxu0 0
    %8018 = vmatpush1.bf16.msra.mxu0 0
    %8019 = vmatprep.subr.bf16.mxu0 0
    %8020 = vmatpush1.bf16.msra.mxu0 0
    %8021 = vmatprep.mubr.bf16.mxu0 0
    %8022 = vmatmul.mubr.bf16.gmra.mrb[0].mxu0 %v7700
    %v8023 = vpop.f32.mrb[0].mxu0
    %v8024 = vadd.f32 %v7983, %v8023
    %v8025 = vpop.f32.mrb[0].mxu0
    %v8026 = vadd.f32 %v7985, %v8025
    %v8027 = vpop.f32.mrb[0].mxu0
    %v8028 = vpop.f32.mrb[0].mxu0
    %8029 = vdwg.mxu0
    %8030 = vmatprep.subr.bf16.mxu0 %v5253
    %8031 = vmatpush1.bf16.msra.mxu0 %v5252
    %8032 = vmatprep.subr.bf16.mxu0 %v5278
    %8033 = vmatpush1.bf16.msra.mxu0 %v5277
    %8034 = vmatprep.subr.bf16.mxu0 %v5303
    %8035 = vmatpush1.bf16.msra.mxu0 %v5302
    %8036 = vmatprep.subr.bf16.mxu0 %v5328
    %8037 = vmatpush1.bf16.msra.mxu0 %v5327
    %8038 = vmatprep.subr.bf16.mxu0 %v5353
    %8039 = vmatpush1.bf16.msra.mxu0 %v5352
    %8040 = vmatprep.subr.bf16.mxu0 %v5378
    %8041 = vmatpush1.bf16.msra.mxu0 %v5377
    %8042 = vmatprep.subr.bf16.mxu0 %v5403
    %8043 = vmatpush1.bf16.msra.mxu0 %v5402
    %8044 = vmatprep.subr.bf16.mxu0 %v5428
    %8045 = vmatpush1.bf16.msra.mxu0 %v5427
    %8046 = vmatprep.subr.bf16.mxu0 %v5453
    %8047 = vmatpush1.bf16.msra.mxu0 %v5452
    %8048 = vmatprep.subr.bf16.mxu0 %v5478
    %8049 = vmatpush1.bf16.msra.mxu0 %v5477
    %8050 = vmatprep.subr.bf16.mxu0 %v5503
    %8051 = vmatpush1.bf16.msra.mxu0 %v5502
    %8052 = vmatprep.subr.bf16.mxu0 %v5528
    %8053 = vmatpush1.bf16.msra.mxu0 %v5527
    %8054 = vmatprep.subr.bf16.mxu0 %v5553
    %8055 = vmatpush1.bf16.msra.mxu0 %v5552
    %8056 = vmatprep.subr.bf16.mxu0 %v5578
    %8057 = vmatpush1.bf16.msra.mxu0 %v5577
    %8058 = vmatprep.subr.bf16.mxu0 %v5603
    %8059 = vmatpush1.bf16.msra.mxu0 %v5602
    %8060 = vmatprep.subr.bf16.mxu0 %v5628
    %8061 = vmatpush1.bf16.msra.mxu0 %v5627
    %8062 = vmatprep.mubr.bf16.mxu0 %v111
    %8063 = vmatmul.mubr.bf16.gmra.mrb[0].mxu0 %v110
    %v8064 = vpop.f32.mrb[0].mxu0
    %v8065 = vadd.f32 %v1418, %v8064
    %v8066 = vpop.f32.mrb[0].mxu0
    %v8067 = vadd.f32 %v1422, %v8066
    %v8068 = vpop.f32.mrb[0].mxu0
    %v8069 = vpop.f32.mrb[0].mxu0
    %8070 = vdwg.mxu0
    %8071 = vmatprep.subr.bf16.mxu0 %v5653
    %8072 = vmatpush1.bf16.msra.mxu0 %v5652
    %8073 = vmatprep.subr.bf16.mxu0 %v5678
    %8074 = vmatpush1.bf16.msra.mxu0 %v5677
    %8075 = vmatprep.subr.bf16.mxu0 %v5703
    %8076 = vmatpush1.bf16.msra.mxu0 %v5702
    %8077 = vmatprep.subr.bf16.mxu0 %v5728
    %8078 = vmatpush1.bf16.msra.mxu0 %v5727
    %8079 = vmatprep.subr.bf16.mxu0 %v5753
    %8080 = vmatpush1.bf16.msra.mxu0 %v5752
    %8081 = vmatprep.subr.bf16.mxu0 %v5778
    %8082 = vmatpush1.bf16.msra.mxu0 %v5777
    %8083 = vmatprep.subr.bf16.mxu0 %v5803
    %8084 = vmatpush1.bf16.msra.mxu0 %v5802
    %8085 = vmatprep.subr.bf16.mxu0 %v5828
    %8086 = vmatpush1.bf16.msra.mxu0 %v5827
    %8087 = vmatprep.subr.bf16.mxu0 %v5853
    %8088 = vmatpush1.bf16.msra.mxu0 %v5852
    %8089 = vmatprep.subr.bf16.mxu0 %v5878
    %8090 = vmatpush1.bf16.msra.mxu0 %v5877
    %8091 = vmatprep.subr.bf16.mxu0 %v5903
    %8092 = vmatpush1.bf16.msra.mxu0 %v5902
    %8093 = vmatprep.subr.bf16.mxu0 %v5928
    %8094 = vmatpush1.bf16.msra.mxu0 %v5927
    %8095 = vmatprep.subr.bf16.mxu0 %v5953
    %8096 = vmatpush1.bf16.msra.mxu0 %v5952
    %8097 = vmatprep.subr.bf16.mxu0 %v5978
    %8098 = vmatpush1.bf16.msra.mxu0 %v5977
    %8099 = vmatprep.subr.bf16.mxu0 %v6003
    %8100 = vmatpush1.bf16.msra.mxu0 %v6002
    %8101 = vmatprep.subr.bf16.mxu0 %v6028
    %8102 = vmatpush1.bf16.msra.mxu0 %v6027
    %8103 = vmatprep.mubr.bf16.mxu0 %v113
    %8104 = vmatmul.mubr.bf16.gmra.mrb[0].mxu0 %v112
    %v8105 = vpop.f32.mrb[0].mxu0
    %v8106 = vadd.f32 %v8065, %v8105
    %v8107 = vpop.f32.mrb[0].mxu0
    %v8108 = vadd.f32 %v8067, %v8107
    %v8109 = vpop.f32.mrb[0].mxu0
    %v8110 = vpop.f32.mrb[0].mxu0
    %8111 = vdwg.mxu0
    %8112 = vmatprep.subr.bf16.mxu0 %v6053
    %8113 = vmatpush1.bf16.msra.mxu0 %v6052
    %8114 = vmatprep.subr.bf16.mxu0 %v6078
    %8115 = vmatpush1.bf16.msra.mxu0 %v6077
    %8116 = vmatprep.subr.bf16.mxu0 %v6103
    %8117 = vmatpush1.bf16.msra.mxu0 %v6102
    %8118 = vmatprep.subr.bf16.mxu0 %v6128
    %8119 = vmatpush1.bf16.msra.mxu0 %v6127
    %8120 = vmatprep.subr.bf16.mxu0 %v6153
    %8121 = vmatpush1.bf16.msra.mxu0 %v6152
    %8122 = vmatprep.subr.bf16.mxu0 %v6178
    %8123 = vmatpush1.bf16.msra.mxu0 %v6177
    %8124 = vmatprep.subr.bf16.mxu0 %v6203
    %8125 = vmatpush1.bf16.msra.mxu0 %v6202
    %8126 = vmatprep.subr.bf16.mxu0 %v6228
    %8127 = vmatpush1.bf16.msra.mxu0 %v6227
    %8128 = vmatprep.subr.bf16.mxu0 %v6253
    %8129 = vmatpush1.bf16.msra.mxu0 %v6252
    %8130 = vmatprep.subr.bf16.mxu0 %v6278
    %8131 = vmatpush1.bf16.msra.mxu0 %v6277
    %8132 = vmatprep.subr.bf16.mxu0 %v6303
    %8133 = vmatpush1.bf16.msra.mxu0 %v6302
    %8134 = vmatprep.subr.bf16.mxu0 %v6328
    %8135 = vmatpush1.bf16.msra.mxu0 %v6327
    %8136 = vmatprep.subr.bf16.mxu0 %v6353
    %8137 = vmatpush1.bf16.msra.mxu0 %v6352
    %8138 = vmatprep.subr.bf16.mxu0 %v6378
    %8139 = vmatpush1.bf16.msra.mxu0 %v6377
    %8140 = vmatprep.subr.bf16.mxu0 %v6403
    %8141 = vmatpush1.bf16.msra.mxu0 %v6402
    %8142 = vmatprep.subr.bf16.mxu0 %v6428
    %8143 = vmatpush1.bf16.msra.mxu0 %v6427
    %8144 = vmatprep.mubr.bf16.mxu0 %v115
    %8145 = vmatmul.mubr.bf16.gmra.mrb[0].mxu0 %v114
    %v8146 = vpop.f32.mrb[0].mxu0
    %v8147 = vadd.f32 %v8106, %v8146
    %v8148 = vpop.f32.mrb[0].mxu0
    %v8149 = vadd.f32 %v8108, %v8148
    %v8150 = vpop.f32.mrb[0].mxu0
    %v8151 = vpop.f32.mrb[0].mxu0
    %8152 = vdwg.mxu0
    %8153 = vmatprep.subr.bf16.mxu0 %v6453
    %8154 = vmatpush1.bf16.msra.mxu0 %v6452
    %8155 = vmatprep.subr.bf16.mxu0 0
    %8156 = vmatpush1.bf16.msra.mxu0 0
    %8157 = vmatprep.subr.bf16.mxu0 0
    %8158 = vmatpush1.bf16.msra.mxu0 0
    %8159 = vmatprep.subr.bf16.mxu0 0
    %8160 = vmatpush1.bf16.msra.mxu0 0
    %8161 = vmatprep.subr.bf16.mxu0 0
    %8162 = vmatpush1.bf16.msra.mxu0 0
    %8163 = vmatprep.subr.bf16.mxu0 0
    %8164 = vmatpush1.bf16.msra.mxu0 0
    %8165 = vmatprep.subr.bf16.mxu0 0
    %8166 = vmatpush1.bf16.msra.mxu0 0
    %8167 = vmatprep.subr.bf16.mxu0 0
    %8168 = vmatpush1.bf16.msra.mxu0 0
    %8169 = vmatprep.subr.bf16.mxu0 0
    %8170 = vmatpush1.bf16.msra.mxu0 0
    %8171 = vmatprep.subr.bf16.mxu0 0
    %8172 = vmatpush1.bf16.msra.mxu0 0
    %8173 = vmatprep.subr.bf16.mxu0 0
    %8174 = vmatpush1.bf16.msra.mxu0 0
    %8175 = vmatprep.subr.bf16.mxu0 0
    %8176 = vmatpush1.bf16.msra.mxu0 0
    %8177 = vmatprep.subr.bf16.mxu0 0
    %8178 = vmatpush1.bf16.msra.mxu0 0
    %8179 = vmatprep.subr.bf16.mxu0 0
    %8180 = vmatpush1.bf16.msra.mxu0 0
    %8181 = vmatprep.subr.bf16.mxu0 0
    %8182 = vmatpush1.bf16.msra.mxu0 0
    %8183 = vmatprep.subr.bf16.mxu0 0
    %8184 = vmatpush1.bf16.msra.mxu0 0
    %8185 = vmatprep.mubr.bf16.mxu0 0
    %8186 = vmatmul.mubr.bf16.gmra.mrb[0].mxu0 %v7700
    %v8187 = vpop.f32.mrb[0].mxu0
    %v8188 = vadd.f32 %v8147, %v8187
    %v8189 = vpop.f32.mrb[0].mxu0
    %v8190 = vadd.f32 %v8149, %v8189
    %v8191 = vpop.f32.mrb[0].mxu0
    %v8192 = vpop.f32.mrb[0].mxu0
    %8193 = vdwg.mxu0
    %8194 = vmatprep.subr.bf16.mxu0 %v5255
    %8195 = vmatpush1.bf16.msra.mxu0 %v5254
    %8196 = vmatprep.subr.bf16.mxu0 %v5280
    %8197 = vmatpush1.bf16.msra.mxu0 %v5279
    %8198 = vmatprep.subr.bf16.mxu0 %v5305
    %8199 = vmatpush1.bf16.msra.mxu0 %v5304
    %8200 = vmatprep.subr.bf16.mxu0 %v5330
    %8201 = vmatpush1.bf16.msra.mxu0 %v5329
    %8202 = vmatprep.subr.bf16.mxu0 %v5355
    %8203 = vmatpush1.bf16.msra.mxu0 %v5354
    %8204 = vmatprep.subr.bf16.mxu0 %v5380
    %8205 = vmatpush1.bf16.msra.mxu0 %v5379
    %8206 = vmatprep.subr.bf16.mxu0 %v5405
    %8207 = vmatpush1.bf16.msra.mxu0 %v5404
    %8208 = vmatprep.subr.bf16.mxu0 %v5430
    %8209 = vmatpush1.bf16.msra.mxu0 %v5429
    %8210 = vmatprep.subr.bf16.mxu0 %v5455
    %8211 = vmatpush1.bf16.msra.mxu0 %v5454
    %8212 = vmatprep.subr.bf16.mxu0 %v5480
    %8213 = vmatpush1.bf16.msra.mxu0 %v5479
    %8214 = vmatprep.subr.bf16.mxu0 %v5505
    %8215 = vmatpush1.bf16.msra.mxu0 %v5504
    %8216 = vmatprep.subr.bf16.mxu0 %v5530
    %8217 = vmatpush1.bf16.msra.mxu0 %v5529
    %8218 = vmatprep.subr.bf16.mxu0 %v5555
    %8219 = vmatpush1.bf16.msra.mxu0 %v5554
    %8220 = vmatprep.subr.bf16.mxu0 %v5580
    %8221 = vmatpush1.bf16.msra.mxu0 %v5579
    %8222 = vmatprep.subr.bf16.mxu0 %v5605
    %8223 = vmatpush1.bf16.msra.mxu0 %v5604
    %8224 = vmatprep.subr.bf16.mxu0 %v5630
    %8225 = vmatpush1.bf16.msra.mxu0 %v5629
    %8226 = vmatprep.mubr.bf16.mxu0 %v111
    %8227 = vmatmul.mubr.bf16.gmra.mrb[0].mxu0 %v110
    %v8228 = vpop.f32.mrb[0].mxu0
    %v8229 = vadd.f32 %v1426, %v8228
    %v8230 = vpop.f32.mrb[0].mxu0
    %v8231 = vadd.f32 %v1430, %v8230
    %v8232 = vpop.f32.mrb[0].mxu0
    %v8233 = vpop.f32.mrb[0].mxu0
    %8234 = vdwg.mxu0
    %8235 = vmatprep.subr.bf16.mxu0 %v5655
    %8236 = vmatpush1.bf16.msra.mxu0 %v5654
    %8237 = vmatprep.subr.bf16.mxu0 %v5680
    %8238 = vmatpush1.bf16.msra.mxu0 %v5679
    %8239 = vmatprep.subr.bf16.mxu0 %v5705
    %8240 = vmatpush1.bf16.msra.mxu0 %v5704
    %8241 = vmatprep.subr.bf16.mxu0 %v5730
    %8242 = vmatpush1.bf16.msra.mxu0 %v5729
    %8243 = vmatprep.subr.bf16.mxu0 %v5755
    %8244 = vmatpush1.bf16.msra.mxu0 %v5754
    %8245 = vmatprep.subr.bf16.mxu0 %v5780
    %8246 = vmatpush1.bf16.msra.mxu0 %v5779
    %8247 = vmatprep.subr.bf16.mxu0 %v5805
    %8248 = vmatpush1.bf16.msra.mxu0 %v5804
    %8249 = vmatprep.subr.bf16.mxu0 %v5830
    %8250 = vmatpush1.bf16.msra.mxu0 %v5829
    %8251 = vmatprep.subr.bf16.mxu0 %v5855
    %8252 = vmatpush1.bf16.msra.mxu0 %v5854
    %8253 = vmatprep.subr.bf16.mxu0 %v5880
    %8254 = vmatpush1.bf16.msra.mxu0 %v5879
    %8255 = vmatprep.subr.bf16.mxu0 %v5905
    %8256 = vmatpush1.bf16.msra.mxu0 %v5904
    %8257 = vmatprep.subr.bf16.mxu0 %v5930
    %8258 = vmatpush1.bf16.msra.mxu0 %v5929
    %8259 = vmatprep.subr.bf16.mxu0 %v5955
    %8260 = vmatpush1.bf16.msra.mxu0 %v5954
    %8261 = vmatprep.subr.bf16.mxu0 %v5980
    %8262 = vmatpush1.bf16.msra.mxu0 %v5979
    %8263 = vmatprep.subr.bf16.mxu0 %v6005
    %8264 = vmatpush1.bf16.msra.mxu0 %v6004
    %8265 = vmatprep.subr.bf16.mxu0 %v6030
    %8266 = vmatpush1.bf16.msra.mxu0 %v6029
    %8267 = vmatprep.mubr.bf16.mxu0 %v113
    %8268 = vmatmul.mubr.bf16.gmra.mrb[0].mxu0 %v112
    %v8269 = vpop.f32.mrb[0].mxu0
    %v8270 = vadd.f32 %v8229, %v8269
    %v8271 = vpop.f32.mrb[0].mxu0
    %v8272 = vadd.f32 %v8231, %v8271
    %v8273 = vpop.f32.mrb[0].mxu0
    %v8274 = vpop.f32.mrb[0].mxu0
    %8275 = vdwg.mxu0
    %8276 = vmatprep.subr.bf16.mxu0 %v6055
    %8277 = vmatpush1.bf16.msra.mxu0 %v6054
    %8278 = vmatprep.subr.bf16.mxu0 %v6080
    %8279 = vmatpush1.bf16.msra.mxu0 %v6079
    %8280 = vmatprep.subr.bf16.mxu0 %v6105
    %8281 = vmatpush1.bf16.msra.mxu0 %v6104
    %8282 = vmatprep.subr.bf16.mxu0 %v6130
    %8283 = vmatpush1.bf16.msra.mxu0 %v6129
    %8284 = vmatprep.subr.bf16.mxu0 %v6155
    %8285 = vmatpush1.bf16.msra.mxu0 %v6154
    %8286 = vmatprep.subr.bf16.mxu0 %v6180
    %8287 = vmatpush1.bf16.msra.mxu0 %v6179
    %8288 = vmatprep.subr.bf16.mxu0 %v6205
    %8289 = vmatpush1.bf16.msra.mxu0 %v6204
    %8290 = vmatprep.subr.bf16.mxu0 %v6230
    %8291 = vmatpush1.bf16.msra.mxu0 %v6229
    %8292 = vmatprep.subr.bf16.mxu0 %v6255
    %8293 = vmatpush1.bf16.msra.mxu0 %v6254
    %8294 = vmatprep.subr.bf16.mxu0 %v6280
    %8295 = vmatpush1.bf16.msra.mxu0 %v6279
    %8296 = vmatprep.subr.bf16.mxu0 %v6305
    %8297 = vmatpush1.bf16.msra.mxu0 %v6304
    %8298 = vmatprep.subr.bf16.mxu0 %v6330
    %8299 = vmatpush1.bf16.msra.mxu0 %v6329
    %8300 = vmatprep.subr.bf16.mxu0 %v6355
    %8301 = vmatpush1.bf16.msra.mxu0 %v6354
    %8302 = vmatprep.subr.bf16.mxu0 %v6380
    %8303 = vmatpush1.bf16.msra.mxu0 %v6379
    %8304 = vmatprep.subr.bf16.mxu0 %v6405
    %8305 = vmatpush1.bf16.msra.mxu0 %v6404
    %8306 = vmatprep.subr.bf16.mxu0 %v6430
    %8307 = vmatpush1.bf16.msra.mxu0 %v6429
    %8308 = vmatprep.mubr.bf16.mxu0 %v115
    %8309 = vmatmul.mubr.bf16.gmra.mrb[0].mxu0 %v114
    %v8310 = vpop.f32.mrb[0].mxu0
    %v8311 = vadd.f32 %v8270, %v8310
    %v8312 = vpop.f32.mrb[0].mxu0
    %v8313 = vadd.f32 %v8272, %v8312
    %v8314 = vpop.f32.mrb[0].mxu0
    %v8315 = vpop.f32.mrb[0].mxu0
    %8316 = vdwg.mxu0
    %8317 = vmatprep.subr.bf16.mxu0 %v6455
    %8318 = vmatpush1.bf16.msra.mxu0 %v6454
    %8319 = vmatprep.subr.bf16.mxu0 0
    %8320 = vmatpush1.bf16.msra.mxu0 0
    %8321 = vmatprep.subr.bf16.mxu0 0
    %8322 = vmatpush1.bf16.msra.mxu0 0
    %8323 = vmatprep.subr.bf16.mxu0 0
    %8324 = vmatpush1.bf16.msra.mxu0 0
    %8325 = vmatprep.subr.bf16.mxu0 0
    %8326 = vmatpush1.bf16.msra.mxu0 0
    %8327 = vmatprep.subr.bf16.mxu0 0
    %8328 = vmatpush1.bf16.msra.mxu0 0
    %8329 = vmatprep.subr.bf16.mxu0 0
    %8330 = vmatpush1.bf16.msra.mxu0 0
    %8331 = vmatprep.subr.bf16.mxu0 0
    %8332 = vmatpush1.bf16.msra.mxu0 0
    %8333 = vmatprep.subr.bf16.mxu0 0
    %8334 = vmatpush1.bf16.msra.mxu0 0
    %8335 = vmatprep.subr.bf16.mxu0 0
    %8336 = vmatpush1.bf16.msra.mxu0 0
    %8337 = vmatprep.subr.bf16.mxu0 0
    %8338 = vmatpush1.bf16.msra.mxu0 0
    %8339 = vmatprep.subr.bf16.mxu0 0
    %8340 = vmatpush1.bf16.msra.mxu0 0
    %8341 = vmatprep.subr.bf16.mxu0 0
    %8342 = vmatpush1.bf16.msra.mxu0 0
    %8343 = vmatprep.subr.bf16.mxu0 0
    %8344 = vmatpush1.bf16.msra.mxu0 0
    %8345 = vmatprep.subr.bf16.mxu0 0
    %8346 = vmatpush1.bf16.msra.mxu0 0
    %8347 = vmatprep.subr.bf16.mxu0 0
    %8348 = vmatpush1.bf16.msra.mxu0 0
    %8349 = vmatprep.mubr.bf16.mxu0 0
    %8350 = vmatmul.mubr.bf16.gmra.mrb[0].mxu0 %v7700
    %v8351 = vpop.f32.mrb[0].mxu0
    %v8352 = vadd.f32 %v8311, %v8351
    %v8353 = vpop.f32.mrb[0].mxu0
    %v8354 = vadd.f32 %v8313, %v8353
    %v8355 = vpop.f32.mrb[0].mxu0
    %v8356 = vpop.f32.mrb[0].mxu0
    %8357 = vdwg.mxu0
    %8358 = vmatprep.subr.bf16.mxu0 %v5257
    %8359 = vmatpush1.bf16.msra.mxu0 %v5256
    %8360 = vmatprep.subr.bf16.mxu0 %v5282
    %8361 = vmatpush1.bf16.msra.mxu0 %v5281
    %8362 = vmatprep.subr.bf16.mxu0 %v5307
    %8363 = vmatpush1.bf16.msra.mxu0 %v5306
    %8364 = vmatprep.subr.bf16.mxu0 %v5332
    %8365 = vmatpush1.bf16.msra.mxu0 %v5331
    %8366 = vmatprep.subr.bf16.mxu0 %v5357
    %8367 = vmatpush1.bf16.msra.mxu0 %v5356
    %8368 = vmatprep.subr.bf16.mxu0 %v5382
    %8369 = vmatpush1.bf16.msra.mxu0 %v5381
    %8370 = vmatprep.subr.bf16.mxu0 %v5407
    %8371 = vmatpush1.bf16.msra.mxu0 %v5406
    %8372 = vmatprep.subr.bf16.mxu0 %v5432
    %8373 = vmatpush1.bf16.msra.mxu0 %v5431
    %8374 = vmatprep.subr.bf16.mxu0 %v5457
    %8375 = vmatpush1.bf16.msra.mxu0 %v5456
    %8376 = vmatprep.subr.bf16.mxu0 %v5482
    %8377 = vmatpush1.bf16.msra.mxu0 %v5481
    %8378 = vmatprep.subr.bf16.mxu0 %v5507
    %8379 = vmatpush1.bf16.msra.mxu0 %v5506
    %8380 = vmatprep.subr.bf16.mxu0 %v5532
    %8381 = vmatpush1.bf16.msra.mxu0 %v5531
    %8382 = vmatprep.subr.bf16.mxu0 %v5557
    %8383 = vmatpush1.bf16.msra.mxu0 %v5556
    %8384 = vmatprep.subr.bf16.mxu0 %v5582
    %8385 = vmatpush1.bf16.msra.mxu0 %v5581
    %8386 = vmatprep.subr.bf16.mxu0 %v5607
    %8387 = vmatpush1.bf16.msra.mxu0 %v5606
    %8388 = vmatprep.subr.bf16.mxu0 %v5632
    %8389 = vmatpush1.bf16.msra.mxu0 %v5631
    %8390 = vmatprep.mubr.bf16.mxu0 %v111
    %8391 = vmatmul.mubr.bf16.gmra.mrb[0].mxu0 %v110
    %v8392 = vpop.f32.mrb[0].mxu0
    %v8393 = vadd.f32 %v1434, %v8392
    %v8394 = vpop.f32.mrb[0].mxu0
    %v8395 = vadd.f32 %v1438, %v8394
    %v8396 = vpop.f32.mrb[0].mxu0
    %v8397 = vpop.f32.mrb[0].mxu0
    %8398 = vdwg.mxu0
    %8399 = vmatprep.subr.bf16.mxu0 %v5657
    %8400 = vmatpush1.bf16.msra.mxu0 %v5656
    %8401 = vmatprep.subr.bf16.mxu0 %v5682
    %8402 = vmatpush1.bf16.msra.mxu0 %v5681
    %8403 = vmatprep.subr.bf16.mxu0 %v5707
    %8404 = vmatpush1.bf16.msra.mxu0 %v5706
    %8405 = vmatprep.subr.bf16.mxu0 %v5732
    %8406 = vmatpush1.bf16.msra.mxu0 %v5731
    %8407 = vmatprep.subr.bf16.mxu0 %v5757
    %8408 = vmatpush1.bf16.msra.mxu0 %v5756
    %8409 = vmatprep.subr.bf16.mxu0 %v5782
    %8410 = vmatpush1.bf16.msra.mxu0 %v5781
    %8411 = vmatprep.subr.bf16.mxu0 %v5807
    %8412 = vmatpush1.bf16.msra.mxu0 %v5806
    %8413 = vmatprep.subr.bf16.mxu0 %v5832
    %8414 = vmatpush1.bf16.msra.mxu0 %v5831
    %8415 = vmatprep.subr.bf16.mxu0 %v5857
    %8416 = vmatpush1.bf16.msra.mxu0 %v5856
    %8417 = vmatprep.subr.bf16.mxu0 %v5882
    %8418 = vmatpush1.bf16.msra.mxu0 %v5881
    %8419 = vmatprep.subr.bf16.mxu0 %v5907
    %8420 = vmatpush1.bf16.msra.mxu0 %v5906
    %8421 = vmatprep.subr.bf16.mxu0 %v5932
    %8422 = vmatpush1.bf16.msra.mxu0 %v5931
    %8423 = vmatprep.subr.bf16.mxu0 %v5957
    %8424 = vmatpush1.bf16.msra.mxu0 %v5956
    %8425 = vmatprep.subr.bf16.mxu0 %v5982
    %8426 = vmatpush1.bf16.msra.mxu0 %v5981
    %8427 = vmatprep.subr.bf16.mxu0 %v6007
    %8428 = vmatpush1.bf16.msra.mxu0 %v6006
    %8429 = vmatprep.subr.bf16.mxu0 %v6032
    %8430 = vmatpush1.bf16.msra.mxu0 %v6031
    %8431 = vmatprep.mubr.bf16.mxu0 %v113
    %8432 = vmatmul.mubr.bf16.gmra.mrb[0].mxu0 %v112
    %v8433 = vpop.f32.mrb[0].mxu0
    %v8434 = vadd.f32 %v8393, %v8433
    %v8435 = vpop.f32.mrb[0].mxu0
    %v8436 = vadd.f32 %v8395, %v8435
    %v8437 = vpop.f32.mrb[0].mxu0
    %v8438 = vpop.f32.mrb[0].mxu0
    %8439 = vdwg.mxu0
    %8440 = vmatprep.subr.bf16.mxu0 %v6057
    %8441 = vmatpush1.bf16.msra.mxu0 %v6056
    %8442 = vmatprep.subr.bf16.mxu0 %v6082
    %8443 = vmatpush1.bf16.msra.mxu0 %v6081
    %8444 = vmatprep.subr.bf16.mxu0 %v6107
    %8445 = vmatpush1.bf16.msra.mxu0 %v6106
    %8446 = vmatprep.subr.bf16.mxu0 %v6132
    %8447 = vmatpush1.bf16.msra.mxu0 %v6131
    %8448 = vmatprep.subr.bf16.mxu0 %v6157
    %8449 = vmatpush1.bf16.msra.mxu0 %v6156
    %8450 = vmatprep.subr.bf16.mxu0 %v6182
    %8451 = vmatpush1.bf16.msra.mxu0 %v6181
    %8452 = vmatprep.subr.bf16.mxu0 %v6207
    %8453 = vmatpush1.bf16.msra.mxu0 %v6206
    %8454 = vmatprep.subr.bf16.mxu0 %v6232
    %8455 = vmatpush1.bf16.msra.mxu0 %v6231
    %8456 = vmatprep.subr.bf16.mxu0 %v6257
    %8457 = vmatpush1.bf16.msra.mxu0 %v6256
    %8458 = vmatprep.subr.bf16.mxu0 %v6282
    %8459 = vmatpush1.bf16.msra.mxu0 %v6281
    %8460 = vmatprep.subr.bf16.mxu0 %v6307
    %8461 = vmatpush1.bf16.msra.mxu0 %v6306
    %8462 = vmatprep.subr.bf16.mxu0 %v6332
    %8463 = vmatpush1.bf16.msra.mxu0 %v6331
    %8464 = vmatprep.subr.bf16.mxu0 %v6357
    %8465 = vmatpush1.bf16.msra.mxu0 %v6356
    %8466 = vmatprep.subr.bf16.mxu0 %v6382
    %8467 = vmatpush1.bf16.msra.mxu0 %v6381
    %8468 = vmatprep.subr.bf16.mxu0 %v6407
    %8469 = vmatpush1.bf16.msra.mxu0 %v6406
    %8470 = vmatprep.subr.bf16.mxu0 %v6432
    %8471 = vmatpush1.bf16.msra.mxu0 %v6431
    %8472 = vmatprep.mubr.bf16.mxu0 %v115
    %8473 = vmatmul.mubr.bf16.gmra.mrb[0].mxu0 %v114
    %v8474 = vpop.f32.mrb[0].mxu0
    %v8475 = vadd.f32 %v8434, %v8474
    %v8476 = vpop.f32.mrb[0].mxu0
    %v8477 = vadd.f32 %v8436, %v8476
    %v8478 = vpop.f32.mrb[0].mxu0
    %v8479 = vpop.f32.mrb[0].mxu0
    %8480 = vdwg.mxu0
    %8481 = vmatprep.subr.bf16.mxu0 %v6457
    %8482 = vmatpush1.bf16.msra.mxu0 %v6456
    %8483 = vmatprep.subr.bf16.mxu0 0
    %8484 = vmatpush1.bf16.msra.mxu0 0
    %8485 = vmatprep.subr.bf16.mxu0 0
    %8486 = vmatpush1.bf16.msra.mxu0 0
    %8487 = vmatprep.subr.bf16.mxu0 0
    %8488 = vmatpush1.bf16.msra.mxu0 0
    %8489 = vmatprep.subr.bf16.mxu0 0
    %8490 = vmatpush1.bf16.msra.mxu0 0
    %8491 = vmatprep.subr.bf16.mxu0 0
    %8492 = vmatpush1.bf16.msra.mxu0 0
    %8493 = vmatprep.subr.bf16.mxu0 0
    %8494 = vmatpush1.bf16.msra.mxu0 0
    %8495 = vmatprep.subr.bf16.mxu0 0
    %8496 = vmatpush1.bf16.msra.mxu0 0
    %8497 = vmatprep.subr.bf16.mxu0 0
    %8498 = vmatpush1.bf16.msra.mxu0 0
    %8499 = vmatprep.subr.bf16.mxu0 0
    %8500 = vmatpush1.bf16.msra.mxu0 0
    %8501 = vmatprep.subr.bf16.mxu0 0
    %8502 = vmatpush1.bf16.msra.mxu0 0
    %8503 = vmatprep.subr.bf16.mxu0 0
    %8504 = vmatpush1.bf16.msra.mxu0 0
    %8505 = vmatprep.subr.bf16.mxu0 0
    %8506 = vmatpush1.bf16.msra.mxu0 0
    %8507 = vmatprep.subr.bf16.mxu0 0
    %8508 = vmatpush1.bf16.msra.mxu0 0
    %8509 = vmatprep.subr.bf16.mxu0 0
    %8510 = vmatpush1.bf16.msra.mxu0 0
    %8511 = vmatprep.subr.bf16.mxu0 0
    %8512 = vmatpush1.bf16.msra.mxu0 0
    %8513 = vmatprep.mubr.bf16.mxu0 0
    %8514 = vmatmul.mubr.bf16.gmra.mrb[0].mxu0 %v7700
    %v8515 = vpop.f32.mrb[0].mxu0
    %v8516 = vadd.f32 %v8475, %v8515
    %v8517 = vpop.f32.mrb[0].mxu0
    %v8518 = vadd.f32 %v8477, %v8517
    %v8519 = vpop.f32.mrb[0].mxu0
    %v8520 = vpop.f32.mrb[0].mxu0
    %8521 = vdwg.mxu0
    %8522 = vmatprep.subr.bf16.mxu0 %v5259
    %8523 = vmatpush1.bf16.msra.mxu0 %v5258
    %8524 = vmatprep.subr.bf16.mxu0 %v5284
    %8525 = vmatpush1.bf16.msra.mxu0 %v5283
    %8526 = vmatprep.subr.bf16.mxu0 %v5309
    %8527 = vmatpush1.bf16.msra.mxu0 %v5308
    %8528 = vmatprep.subr.bf16.mxu0 %v5334
    %8529 = vmatpush1.bf16.msra.mxu0 %v5333
    %8530 = vmatprep.subr.bf16.mxu0 %v5359
    %8531 = vmatpush1.bf16.msra.mxu0 %v5358
    %8532 = vmatprep.subr.bf16.mxu0 %v5384
    %8533 = vmatpush1.bf16.msra.mxu0 %v5383
    %8534 = vmatprep.subr.bf16.mxu0 %v5409
    %8535 = vmatpush1.bf16.msra.mxu0 %v5408
    %8536 = vmatprep.subr.bf16.mxu0 %v5434
    %8537 = vmatpush1.bf16.msra.mxu0 %v5433
    %8538 = vmatprep.subr.bf16.mxu0 %v5459
    %8539 = vmatpush1.bf16.msra.mxu0 %v5458
    %8540 = vmatprep.subr.bf16.mxu0 %v5484
    %8541 = vmatpush1.bf16.msra.mxu0 %v5483
    %8542 = vmatprep.subr.bf16.mxu0 %v5509
    %8543 = vmatpush1.bf16.msra.mxu0 %v5508
    %8544 = vmatprep.subr.bf16.mxu0 %v5534
    %8545 = vmatpush1.bf16.msra.mxu0 %v5533
    %8546 = vmatprep.subr.bf16.mxu0 %v5559
    %8547 = vmatpush1.bf16.msra.mxu0 %v5558
    %8548 = vmatprep.subr.bf16.mxu0 %v5584
    %8549 = vmatpush1.bf16.msra.mxu0 %v5583
    %8550 = vmatprep.subr.bf16.mxu0 %v5609
    %8551 = vmatpush1.bf16.msra.mxu0 %v5608
    %8552 = vmatprep.subr.bf16.mxu0 %v5634
    %8553 = vmatpush1.bf16.msra.mxu0 %v5633
    %8554 = vmatprep.mubr.bf16.mxu0 %v111
    %8555 = vmatmul.mubr.bf16.gmra.mrb[0].mxu0 %v110
    %v8556 = vpop.f32.mrb[0].mxu0
    %v8557 = vadd.f32 %v1442, %v8556
    %v8558 = vpop.f32.mrb[0].mxu0
    %v8559 = vadd.f32 %v1446, %v8558
    %v8560 = vpop.f32.mrb[0].mxu0
    %v8561 = vpop.f32.mrb[0].mxu0
    %8562 = vdwg.mxu0
    %8563 = vmatprep.subr.bf16.mxu0 %v5659
    %8564 = vmatpush1.bf16.msra.mxu0 %v5658
    %8565 = vmatprep.subr.bf16.mxu0 %v5684
    %8566 = vmatpush1.bf16.msra.mxu0 %v5683
    %8567 = vmatprep.subr.bf16.mxu0 %v5709
    %8568 = vmatpush1.bf16.msra.mxu0 %v5708
    %8569 = vmatprep.subr.bf16.mxu0 %v5734
    %8570 = vmatpush1.bf16.msra.mxu0 %v5733
    %8571 = vmatprep.subr.bf16.mxu0 %v5759
    %8572 = vmatpush1.bf16.msra.mxu0 %v5758
    %8573 = vmatprep.subr.bf16.mxu0 %v5784
    %8574 = vmatpush1.bf16.msra.mxu0 %v5783
    %8575 = vmatprep.subr.bf16.mxu0 %v5809
    %8576 = vmatpush1.bf16.msra.mxu0 %v5808
    %8577 = vmatprep.subr.bf16.mxu0 %v5834
    %8578 = vmatpush1.bf16.msra.mxu0 %v5833
    %8579 = vmatprep.subr.bf16.mxu0 %v5859
    %8580 = vmatpush1.bf16.msra.mxu0 %v5858
    %8581 = vmatprep.subr.bf16.mxu0 %v5884
    %8582 = vmatpush1.bf16.msra.mxu0 %v5883
    %8583 = vmatprep.subr.bf16.mxu0 %v5909
    %8584 = vmatpush1.bf16.msra.mxu0 %v5908
    %8585 = vmatprep.subr.bf16.mxu0 %v5934
    %8586 = vmatpush1.bf16.msra.mxu0 %v5933
    %8587 = vmatprep.subr.bf16.mxu0 %v5959
    %8588 = vmatpush1.bf16.msra.mxu0 %v5958
    %8589 = vmatprep.subr.bf16.mxu0 %v5984
    %8590 = vmatpush1.bf16.msra.mxu0 %v5983
    %8591 = vmatprep.subr.bf16.mxu0 %v6009
    %8592 = vmatpush1.bf16.msra.mxu0 %v6008
    %8593 = vmatprep.subr.bf16.mxu0 %v6034
    %8594 = vmatpush1.bf16.msra.mxu0 %v6033
    %8595 = vmatprep.mubr.bf16.mxu0 %v113
    %8596 = vmatmul.mubr.bf16.gmra.mrb[0].mxu0 %v112
    %v8597 = vpop.f32.mrb[0].mxu0
    %v8598 = vadd.f32 %v8557, %v8597
    %v8599 = vpop.f32.mrb[0].mxu0
    %v8600 = vadd.f32 %v8559, %v8599
    %v8601 = vpop.f32.mrb[0].mxu0
    %v8602 = vpop.f32.mrb[0].mxu0
    %8603 = vdwg.mxu0
    %8604 = vmatprep.subr.bf16.mxu0 %v6059
    %8605 = vmatpush1.bf16.msra.mxu0 %v6058
    %8606 = vmatprep.subr.bf16.mxu0 %v6084
    %8607 = vmatpush1.bf16.msra.mxu0 %v6083
    %8608 = vmatprep.subr.bf16.mxu0 %v6109
    %8609 = vmatpush1.bf16.msra.mxu0 %v6108
    %8610 = vmatprep.subr.bf16.mxu0 %v6134
    %8611 = vmatpush1.bf16.msra.mxu0 %v6133
    %8612 = vmatprep.subr.bf16.mxu0 %v6159
    %8613 = vmatpush1.bf16.msra.mxu0 %v6158
    %8614 = vmatprep.subr.bf16.mxu0 %v6184
    %8615 = vmatpush1.bf16.msra.mxu0 %v6183
    %8616 = vmatprep.subr.bf16.mxu0 %v6209
    %8617 = vmatpush1.bf16.msra.mxu0 %v6208
    %8618 = vmatprep.subr.bf16.mxu0 %v6234
    %8619 = vmatpush1.bf16.msra.mxu0 %v6233
    %8620 = vmatprep.subr.bf16.mxu0 %v6259
    %8621 = vmatpush1.bf16.msra.mxu0 %v6258
    %8622 = vmatprep.subr.bf16.mxu0 %v6284
    %8623 = vmatpush1.bf16.msra.mxu0 %v6283
    %8624 = vmatprep.subr.bf16.mxu0 %v6309
    %8625 = vmatpush1.bf16.msra.mxu0 %v6308
    %8626 = vmatprep.subr.bf16.mxu0 %v6334
    %8627 = vmatpush1.bf16.msra.mxu0 %v6333
    %8628 = vmatprep.subr.bf16.mxu0 %v6359
    %8629 = vmatpush1.bf16.msra.mxu0 %v6358
    %8630 = vmatprep.subr.bf16.mxu0 %v6384
    %8631 = vmatpush1.bf16.msra.mxu0 %v6383
    %8632 = vmatprep.subr.bf16.mxu0 %v6409
    %8633 = vmatpush1.bf16.msra.mxu0 %v6408
    %8634 = vmatprep.subr.bf16.mxu0 %v6434
    %8635 = vmatpush1.bf16.msra.mxu0 %v6433
    %8636 = vmatprep.mubr.bf16.mxu0 %v115
    %8637 = vmatmul.mubr.bf16.gmra.mrb[0].mxu0 %v114
    %v8638 = vpop.f32.mrb[0].mxu0
    %v8639 = vadd.f32 %v8598, %v8638
    %v8640 = vpop.f32.mrb[0].mxu0
    %v8641 = vadd.f32 %v8600, %v8640
    %v8642 = vpop.f32.mrb[0].mxu0
    %v8643 = vpop.f32.mrb[0].mxu0
    %8644 = vdwg.mxu0
    %8645 = vmatprep.subr.bf16.mxu0 %v6459
    %8646 = vmatpush1.bf16.msra.mxu0 %v6458
    %8647 = vmatprep.subr.bf16.mxu0 0
    %8648 = vmatpush1.bf16.msra.mxu0 0
    %8649 = vmatprep.subr.bf16.mxu0 0
    %8650 = vmatpush1.bf16.msra.mxu0 0
    %8651 = vmatprep.subr.bf16.mxu0 0
    %8652 = vmatpush1.bf16.msra.mxu0 0
    %8653 = vmatprep.subr.bf16.mxu0 0
    %8654 = vmatpush1.bf16.msra.mxu0 0
    %8655 = vmatprep.subr.bf16.mxu0 0
    %8656 = vmatpush1.bf16.msra.mxu0 0
    %8657 = vmatprep.subr.bf16.mxu0 0
    %8658 = vmatpush1.bf16.msra.mxu0 0
    %8659 = vmatprep.subr.bf16.mxu0 0
    %8660 = vmatpush1.bf16.msra.mxu0 0
    %8661 = vmatprep.subr.bf16.mxu0 0
    %8662 = vmatpush1.bf16.msra.mxu0 0
    %8663 = vmatprep.subr.bf16.mxu0 0
    %8664 = vmatpush1.bf16.msra.mxu0 0
    %8665 = vmatprep.subr.bf16.mxu0 0
    %8666 = vmatpush1.bf16.msra.mxu0 0
    %8667 = vmatprep.subr.bf16.mxu0 0
    %8668 = vmatpush1.bf16.msra.mxu0 0
    %8669 = vmatprep.subr.bf16.mxu0 0
    %8670 = vmatpush1.bf16.msra.mxu0 0
    %8671 = vmatprep.subr.bf16.mxu0 0
    %8672 = vmatpush1.bf16.msra.mxu0 0
    %8673 = vmatprep.subr.bf16.mxu0 0
    %8674 = vmatpush1.bf16.msra.mxu0 0
    %8675 = vmatprep.subr.bf16.mxu0 0
    %8676 = vmatpush1.bf16.msra.mxu0 0
    %8677 = vmatprep.mubr.bf16.mxu0 0
    %8678 = vmatmul.mubr.bf16.gmra.mrb[0].mxu0 %v7700
    %v8679 = vpop.f32.mrb[0].mxu0
    %v8680 = vadd.f32 %v8639, %v8679
    %v8681 = vpop.f32.mrb[0].mxu0
    %v8682 = vadd.f32 %v8641, %v8681
    %v8683 = vpop.f32.mrb[0].mxu0
    %v8684 = vpop.f32.mrb[0].mxu0
    %8685 = vdwg.mxu0
    %8686 = vmatprep.subr.bf16.mxu0 %v5261
    %8687 = vmatpush1.bf16.msra.mxu0 %v5260
    %8688 = vmatprep.subr.bf16.mxu0 %v5286
    %8689 = vmatpush1.bf16.msra.mxu0 %v5285
    %8690 = vmatprep.subr.bf16.mxu0 %v5311
    %8691 = vmatpush1.bf16.msra.mxu0 %v5310
    %8692 = vmatprep.subr.bf16.mxu0 %v5336
    %8693 = vmatpush1.bf16.msra.mxu0 %v5335
    %8694 = vmatprep.subr.bf16.mxu0 %v5361
    %8695 = vmatpush1.bf16.msra.mxu0 %v5360
    %8696 = vmatprep.subr.bf16.mxu0 %v5386
    %8697 = vmatpush1.bf16.msra.mxu0 %v5385
    %8698 = vmatprep.subr.bf16.mxu0 %v5411
    %8699 = vmatpush1.bf16.msra.mxu0 %v5410
    %8700 = vmatprep.subr.bf16.mxu0 %v5436
    %8701 = vmatpush1.bf16.msra.mxu0 %v5435
    %8702 = vmatprep.subr.bf16.mxu0 %v5461
    %8703 = vmatpush1.bf16.msra.mxu0 %v5460
    %8704 = vmatprep.subr.bf16.mxu0 %v5486
    %8705 = vmatpush1.bf16.msra.mxu0 %v5485
    %8706 = vmatprep.subr.bf16.mxu0 %v5511
    %8707 = vmatpush1.bf16.msra.mxu0 %v5510
    %8708 = vmatprep.subr.bf16.mxu0 %v5536
    %8709 = vmatpush1.bf16.msra.mxu0 %v5535
    %8710 = vmatprep.subr.bf16.mxu0 %v5561
    %8711 = vmatpush1.bf16.msra.mxu0 %v5560
    %8712 = vmatprep.subr.bf16.mxu0 %v5586
    %8713 = vmatpush1.bf16.msra.mxu0 %v5585
    %8714 = vmatprep.subr.bf16.mxu0 %v5611
    %8715 = vmatpush1.bf16.msra.mxu0 %v5610
    %8716 = vmatprep.subr.bf16.mxu0 %v5636
    %8717 = vmatpush1.bf16.msra.mxu0 %v5635
    %8718 = vmatprep.mubr.bf16.mxu0 %v111
    %8719 = vmatmul.mubr.bf16.gmra.mrb[0].mxu0 %v110
    %v8720 = vpop.f32.mrb[0].mxu0
    %v8721 = vadd.f32 %v1450, %v8720
    %v8722 = vpop.f32.mrb[0].mxu0
    %v8723 = vadd.f32 %v1454, %v8722
    %v8724 = vpop.f32.mrb[0].mxu0
    %v8725 = vpop.f32.mrb[0].mxu0
    %8726 = vdwg.mxu0
    %8727 = vmatprep.subr.bf16.mxu0 %v5661
    %8728 = vmatpush1.bf16.msra.mxu0 %v5660
    %8729 = vmatprep.subr.bf16.mxu0 %v5686
    %8730 = vmatpush1.bf16.msra.mxu0 %v5685
    %8731 = vmatprep.subr.bf16.mxu0 %v5711
    %8732 = vmatpush1.bf16.msra.mxu0 %v5710
    %8733 = vmatprep.subr.bf16.mxu0 %v5736
    %8734 = vmatpush1.bf16.msra.mxu0 %v5735
    %8735 = vmatprep.subr.bf16.mxu0 %v5761
    %8736 = vmatpush1.bf16.msra.mxu0 %v5760
    %8737 = vmatprep.subr.bf16.mxu0 %v5786
    %8738 = vmatpush1.bf16.msra.mxu0 %v5785
    %8739 = vmatprep.subr.bf16.mxu0 %v5811
    %8740 = vmatpush1.bf16.msra.mxu0 %v5810
    %8741 = vmatprep.subr.bf16.mxu0 %v5836
    %8742 = vmatpush1.bf16.msra.mxu0 %v5835
    %8743 = vmatprep.subr.bf16.mxu0 %v5861
    %8744 = vmatpush1.bf16.msra.mxu0 %v5860
    %8745 = vmatprep.subr.bf16.mxu0 %v5886
    %8746 = vmatpush1.bf16.msra.mxu0 %v5885
    %8747 = vmatprep.subr.bf16.mxu0 %v5911
    %8748 = vmatpush1.bf16.msra.mxu0 %v5910
    %8749 = vmatprep.subr.bf16.mxu0 %v5936
    %8750 = vmatpush1.bf16.msra.mxu0 %v5935
    %8751 = vmatprep.subr.bf16.mxu0 %v5961
    %8752 = vmatpush1.bf16.msra.mxu0 %v5960
    %8753 = vmatprep.subr.bf16.mxu0 %v5986
    %8754 = vmatpush1.bf16.msra.mxu0 %v5985
    %8755 = vmatprep.subr.bf16.mxu0 %v6011
    %8756 = vmatpush1.bf16.msra.mxu0 %v6010
    %8757 = vmatprep.subr.bf16.mxu0 %v6036
    %8758 = vmatpush1.bf16.msra.mxu0 %v6035
    %8759 = vmatprep.mubr.bf16.mxu0 %v113
    %8760 = vmatmul.mubr.bf16.gmra.mrb[0].mxu0 %v112
    %v8761 = vpop.f32.mrb[0].mxu0
    %v8762 = vadd.f32 %v8721, %v8761
    %v8763 = vpop.f32.mrb[0].mxu0
    %v8764 = vadd.f32 %v8723, %v8763
    %v8765 = vpop.f32.mrb[0].mxu0
    %v8766 = vpop.f32.mrb[0].mxu0
    %8767 = vdwg.mxu0
    %8768 = vmatprep.subr.bf16.mxu0 %v6061
    %8769 = vmatpush1.bf16.msra.mxu0 %v6060
    %8770 = vmatprep.subr.bf16.mxu0 %v6086
    %8771 = vmatpush1.bf16.msra.mxu0 %v6085
    %8772 = vmatprep.subr.bf16.mxu0 %v6111
    %8773 = vmatpush1.bf16.msra.mxu0 %v6110
    %8774 = vmatprep.subr.bf16.mxu0 %v6136
    %8775 = vmatpush1.bf16.msra.mxu0 %v6135
    %8776 = vmatprep.subr.bf16.mxu0 %v6161
    %8777 = vmatpush1.bf16.msra.mxu0 %v6160
    %8778 = vmatprep.subr.bf16.mxu0 %v6186
    %8779 = vmatpush1.bf16.msra.mxu0 %v6185
    %8780 = vmatprep.subr.bf16.mxu0 %v6211
    %8781 = vmatpush1.bf16.msra.mxu0 %v6210
    %8782 = vmatprep.subr.bf16.mxu0 %v6236
    %8783 = vmatpush1.bf16.msra.mxu0 %v6235
    %8784 = vmatprep.subr.bf16.mxu0 %v6261
    %8785 = vmatpush1.bf16.msra.mxu0 %v6260
    %8786 = vmatprep.subr.bf16.mxu0 %v6286
    %8787 = vmatpush1.bf16.msra.mxu0 %v6285
    %8788 = vmatprep.subr.bf16.mxu0 %v6311
    %8789 = vmatpush1.bf16.msra.mxu0 %v6310
    %8790 = vmatprep.subr.bf16.mxu0 %v6336
    %8791 = vmatpush1.bf16.msra.mxu0 %v6335
    %8792 = vmatprep.subr.bf16.mxu0 %v6361
    %8793 = vmatpush1.bf16.msra.mxu0 %v6360
    %8794 = vmatprep.subr.bf16.mxu0 %v6386
    %8795 = vmatpush1.bf16.msra.mxu0 %v6385
    %8796 = vmatprep.subr.bf16.mxu0 %v6411
    %8797 = vmatpush1.bf16.msra.mxu0 %v6410
    %8798 = vmatprep.subr.bf16.mxu0 %v6436
    %8799 = vmatpush1.bf16.msra.mxu0 %v6435
    %8800 = vmatprep.mubr.bf16.mxu0 %v115
    %8801 = vmatmul.mubr.bf16.gmra.mrb[0].mxu0 %v114
    %v8802 = vpop.f32.mrb[0].mxu0
    %v8803 = vadd.f32 %v8762, %v8802
    %v8804 = vpop.f32.mrb[0].mxu0
    %v8805 = vadd.f32 %v8764, %v8804
    %v8806 = vpop.f32.mrb[0].mxu0
    %v8807 = vpop.f32.mrb[0].mxu0
    %8808 = vdwg.mxu0
    %8809 = vmatprep.subr.bf16.mxu0 %v6461
    %8810 = vmatpush1.bf16.msra.mxu0 %v6460
    %8811 = vmatprep.subr.bf16.mxu0 0
    %8812 = vmatpush1.bf16.msra.mxu0 0
    %8813 = vmatprep.subr.bf16.mxu0 0
    %8814 = vmatpush1.bf16.msra.mxu0 0
    %8815 = vmatprep.subr.bf16.mxu0 0
    %8816 = vmatpush1.bf16.msra.mxu0 0
    %8817 = vmatprep.subr.bf16.mxu0 0
    %8818 = vmatpush1.bf16.msra.mxu0 0
    %8819 = vmatprep.subr.bf16.mxu0 0
    %8820 = vmatpush1.bf16.msra.mxu0 0
    %8821 = vmatprep.subr.bf16.mxu0 0
    %8822 = vmatpush1.bf16.msra.mxu0 0
    %8823 = vmatprep.subr.bf16.mxu0 0
    %8824 = vmatpush1.bf16.msra.mxu0 0
    %8825 = vmatprep.subr.bf16.mxu0 0
    %8826 = vmatpush1.bf16.msra.mxu0 0
    %8827 = vmatprep.subr.bf16.mxu0 0
    %8828 = vmatpush1.bf16.msra.mxu0 0
    %8829 = vmatprep.subr.bf16.mxu0 0
    %8830 = vmatpush1.bf16.msra.mxu0 0
    %8831 = vmatprep.subr.bf16.mxu0 0
    %8832 = vmatpush1.bf16.msra.mxu0 0
    %8833 = vmatprep.subr.bf16.mxu0 0
    %8834 = vmatpush1.bf16.msra.mxu0 0
    %8835 = vmatprep.subr.bf16.mxu0 0
    %8836 = vmatpush1.bf16.msra.mxu0 0
    %8837 = vmatprep.subr.bf16.mxu0 0
    %8838 = vmatpush1.bf16.msra.mxu0 0
    %8839 = vmatprep.subr.bf16.mxu0 0
    %8840 = vmatpush1.bf16.msra.mxu0 0
    %8841 = vmatprep.mubr.bf16.mxu0 0
    %8842 = vmatmul.mubr.bf16.gmra.mrb[0].mxu0 %v7700
    %v8843 = vpop.f32.mrb[0].mxu0
    %v8844 = vadd.f32 %v8803, %v8843
    %v8845 = vpop.f32.mrb[0].mxu0
    %v8846 = vadd.f32 %v8805, %v8845
    %v8847 = vpop.f32.mrb[0].mxu0
    %v8848 = vpop.f32.mrb[0].mxu0
    %8849 = vdwg.mxu0
    %8850 = vmatprep.subr.bf16.mxu0 %v5263
    %8851 = vmatpush1.bf16.msra.mxu0 %v5262
    %8852 = vmatprep.subr.bf16.mxu0 %v5288
    %8853 = vmatpush1.bf16.msra.mxu0 %v5287
    %8854 = vmatprep.subr.bf16.mxu0 %v5313
    %8855 = vmatpush1.bf16.msra.mxu0 %v5312
    %8856 = vmatprep.subr.bf16.mxu0 %v5338
    %8857 = vmatpush1.bf16.msra.mxu0 %v5337
    %8858 = vmatprep.subr.bf16.mxu0 %v5363
    %8859 = vmatpush1.bf16.msra.mxu0 %v5362
    %8860 = vmatprep.subr.bf16.mxu0 %v5388
    %8861 = vmatpush1.bf16.msra.mxu0 %v5387
    %8862 = vmatprep.subr.bf16.mxu0 %v5413
    %8863 = vmatpush1.bf16.msra.mxu0 %v5412
    %8864 = vmatprep.subr.bf16.mxu0 %v5438
    %8865 = vmatpush1.bf16.msra.mxu0 %v5437
    %8866 = vmatprep.subr.bf16.mxu0 %v5463
    %8867 = vmatpush1.bf16.msra.mxu0 %v5462
    %8868 = vmatprep.subr.bf16.mxu0 %v5488
    %8869 = vmatpush1.bf16.msra.mxu0 %v5487
    %8870 = vmatprep.subr.bf16.mxu0 %v5513
    %8871 = vmatpush1.bf16.msra.mxu0 %v5512
    %8872 = vmatprep.subr.bf16.mxu0 %v5538
    %8873 = vmatpush1.bf16.msra.mxu0 %v5537
    %8874 = vmatprep.subr.bf16.mxu0 %v5563
    %8875 = vmatpush1.bf16.msra.mxu0 %v5562
    %8876 = vmatprep.subr.bf16.mxu0 %v5588
    %8877 = vmatpush1.bf16.msra.mxu0 %v5587
    %8878 = vmatprep.subr.bf16.mxu0 %v5613
    %8879 = vmatpush1.bf16.msra.mxu0 %v5612
    %8880 = vmatprep.subr.bf16.mxu0 %v5638
    %8881 = vmatpush1.bf16.msra.mxu0 %v5637
    %8882 = vmatprep.mubr.bf16.mxu0 %v111
    %8883 = vmatmul.mubr.bf16.gmra.mrb[0].mxu0 %v110
    %v8884 = vpop.f32.mrb[0].mxu0
    %v8885 = vadd.f32 %v1458, %v8884
    %v8886 = vpop.f32.mrb[0].mxu0
    %v8887 = vadd.f32 %v1462, %v8886
    %v8888 = vpop.f32.mrb[0].mxu0
    %v8889 = vpop.f32.mrb[0].mxu0
    %8890 = vdwg.mxu0
    %8891 = vmatprep.subr.bf16.mxu0 %v5663
    %8892 = vmatpush1.bf16.msra.mxu0 %v5662
    %8893 = vmatprep.subr.bf16.mxu0 %v5688
    %8894 = vmatpush1.bf16.msra.mxu0 %v5687
    %8895 = vmatprep.subr.bf16.mxu0 %v5713
    %8896 = vmatpush1.bf16.msra.mxu0 %v5712
    %8897 = vmatprep.subr.bf16.mxu0 %v5738
    %8898 = vmatpush1.bf16.msra.mxu0 %v5737
    %8899 = vmatprep.subr.bf16.mxu0 %v5763
    %8900 = vmatpush1.bf16.msra.mxu0 %v5762
    %8901 = vmatprep.subr.bf16.mxu0 %v5788
    %8902 = vmatpush1.bf16.msra.mxu0 %v5787
    %8903 = vmatprep.subr.bf16.mxu0 %v5813
    %8904 = vmatpush1.bf16.msra.mxu0 %v5812
    %8905 = vmatprep.subr.bf16.mxu0 %v5838
    %8906 = vmatpush1.bf16.msra.mxu0 %v5837
    %8907 = vmatprep.subr.bf16.mxu0 %v5863
    %8908 = vmatpush1.bf16.msra.mxu0 %v5862
    %8909 = vmatprep.subr.bf16.mxu0 %v5888
    %8910 = vmatpush1.bf16.msra.mxu0 %v5887
    %8911 = vmatprep.subr.bf16.mxu0 %v5913
    %8912 = vmatpush1.bf16.msra.mxu0 %v5912
    %8913 = vmatprep.subr.bf16.mxu0 %v5938
    %8914 = vmatpush1.bf16.msra.mxu0 %v5937
    %8915 = vmatprep.subr.bf16.mxu0 %v5963
    %8916 = vmatpush1.bf16.msra.mxu0 %v5962
    %8917 = vmatprep.subr.bf16.mxu0 %v5988
    %8918 = vmatpush1.bf16.msra.mxu0 %v5987
    %8919 = vmatprep.subr.bf16.mxu0 %v6013
    %8920 = vmatpush1.bf16.msra.mxu0 %v6012
    %8921 = vmatprep.subr.bf16.mxu0 %v6038
    %8922 = vmatpush1.bf16.msra.mxu0 %v6037
    %8923 = vmatprep.mubr.bf16.mxu0 %v113
    %8924 = vmatmul.mubr.bf16.gmra.mrb[0].mxu0 %v112
    %v8925 = vpop.f32.mrb[0].mxu0
    %v8926 = vadd.f32 %v8885, %v8925
    %v8927 = vpop.f32.mrb[0].mxu0
    %v8928 = vadd.f32 %v8887, %v8927
    %v8929 = vpop.f32.mrb[0].mxu0
    %v8930 = vpop.f32.mrb[0].mxu0
    %8931 = vdwg.mxu0
    %8932 = vmatprep.subr.bf16.mxu0 %v6063
    %8933 = vmatpush1.bf16.msra.mxu0 %v6062
    %8934 = vmatprep.subr.bf16.mxu0 %v6088
    %8935 = vmatpush1.bf16.msra.mxu0 %v6087
    %8936 = vmatprep.subr.bf16.mxu0 %v6113
    %8937 = vmatpush1.bf16.msra.mxu0 %v6112
    %8938 = vmatprep.subr.bf16.mxu0 %v6138
    %8939 = vmatpush1.bf16.msra.mxu0 %v6137
    %8940 = vmatprep.subr.bf16.mxu0 %v6163
    %8941 = vmatpush1.bf16.msra.mxu0 %v6162
    %8942 = vmatprep.subr.bf16.mxu0 %v6188
    %8943 = vmatpush1.bf16.msra.mxu0 %v6187
    %8944 = vmatprep.subr.bf16.mxu0 %v6213
    %8945 = vmatpush1.bf16.msra.mxu0 %v6212
    %8946 = vmatprep.subr.bf16.mxu0 %v6238
    %8947 = vmatpush1.bf16.msra.mxu0 %v6237
    %8948 = vmatprep.subr.bf16.mxu0 %v6263
    %8949 = vmatpush1.bf16.msra.mxu0 %v6262
    %8950 = vmatprep.subr.bf16.mxu0 %v6288
    %8951 = vmatpush1.bf16.msra.mxu0 %v6287
    %8952 = vmatprep.subr.bf16.mxu0 %v6313
    %8953 = vmatpush1.bf16.msra.mxu0 %v6312
    %8954 = vmatprep.subr.bf16.mxu0 %v6338
    %8955 = vmatpush1.bf16.msra.mxu0 %v6337
    %8956 = vmatprep.subr.bf16.mxu0 %v6363
    %8957 = vmatpush1.bf16.msra.mxu0 %v6362
    %8958 = vmatprep.subr.bf16.mxu0 %v6388
    %8959 = vmatpush1.bf16.msra.mxu0 %v6387
    %8960 = vmatprep.subr.bf16.mxu0 %v6413
    %8961 = vmatpush1.bf16.msra.mxu0 %v6412
    %8962 = vmatprep.subr.bf16.mxu0 %v6438
    %8963 = vmatpush1.bf16.msra.mxu0 %v6437
    %8964 = vmatprep.mubr.bf16.mxu0 %v115
    %8965 = vmatmul.mubr.bf16.gmra.mrb[0].mxu0 %v114
    %v8966 = vpop.f32.mrb[0].mxu0
    %v8967 = vadd.f32 %v8926, %v8966
    %v8968 = vpop.f32.mrb[0].mxu0
    %v8969 = vadd.f32 %v8928, %v8968
    %v8970 = vpop.f32.mrb[0].mxu0
    %v8971 = vpop.f32.mrb[0].mxu0
    %8972 = vdwg.mxu0
    %8973 = vmatprep.subr.bf16.mxu0 %v6463
    %8974 = vmatpush1.bf16.msra.mxu0 %v6462
    %8975 = vmatprep.subr.bf16.mxu0 0
    %8976 = vmatpush1.bf16.msra.mxu0 0
    %8977 = vmatprep.subr.bf16.mxu0 0
    %8978 = vmatpush1.bf16.msra.mxu0 0
    %8979 = vmatprep.subr.bf16.mxu0 0
    %8980 = vmatpush1.bf16.msra.mxu0 0
    %8981 = vmatprep.subr.bf16.mxu0 0
    %8982 = vmatpush1.bf16.msra.mxu0 0
    %8983 = vmatprep.subr.bf16.mxu0 0
    %8984 = vmatpush1.bf16.msra.mxu0 0
    %8985 = vmatprep.subr.bf16.mxu0 0
    %8986 = vmatpush1.bf16.msra.mxu0 0
    %8987 = vmatprep.subr.bf16.mxu0 0
    %8988 = vmatpush1.bf16.msra.mxu0 0
    %8989 = vmatprep.subr.bf16.mxu0 0
    %8990 = vmatpush1.bf16.msra.mxu0 0
    %8991 = vmatprep.subr.bf16.mxu0 0
    %8992 = vmatpush1.bf16.msra.mxu0 0
    %8993 = vmatprep.subr.bf16.mxu0 0
    %8994 = vmatpush1.bf16.msra.mxu0 0
    %8995 = vmatprep.subr.bf16.mxu0 0
    %8996 = vmatpush1.bf16.msra.mxu0 0
    %8997 = vmatprep.subr.bf16.mxu0 0
    %8998 = vmatpush1.bf16.msra.mxu0 0
    %8999 = vmatprep.subr.bf16.mxu0 0
    %9000 = vmatpush1.bf16.msra.mxu0 0
    %9001 = vmatprep.subr.bf16.mxu0 0
    %9002 = vmatpush1.bf16.msra.mxu0 0
    %9003 = vmatprep.subr.bf16.mxu0 0
    %9004 = vmatpush1.bf16.msra.mxu0 0
    %9005 = vmatprep.mubr.bf16.mxu0 0
    %9006 = vmatmul.mubr.bf16.gmra.mrb[0].mxu0 %v7700
    %v9007 = vpop.f32.mrb[0].mxu0
    %v9008 = vadd.f32 %v8967, %v9007
    %v9009 = vpop.f32.mrb[0].mxu0
    %v9010 = vadd.f32 %v8969, %v9009
    %v9011 = vpop.f32.mrb[0].mxu0
    %v9012 = vpop.f32.mrb[0].mxu0
    %9013 = vdwg.mxu0
    %9014 = vmatprep.subr.bf16.mxu0 %v5265
    %9015 = vmatpush1.bf16.msra.mxu0 %v5264
    %9016 = vmatprep.subr.bf16.mxu0 %v5290
    %9017 = vmatpush1.bf16.msra.mxu0 %v5289
    %9018 = vmatprep.subr.bf16.mxu0 %v5315
    %9019 = vmatpush1.bf16.msra.mxu0 %v5314
    %9020 = vmatprep.subr.bf16.mxu0 %v5340
    %9021 = vmatpush1.bf16.msra.mxu0 %v5339
    %9022 = vmatprep.subr.bf16.mxu0 %v5365
    %9023 = vmatpush1.bf16.msra.mxu0 %v5364
    %9024 = vmatprep.subr.bf16.mxu0 %v5390
    %9025 = vmatpush1.bf16.msra.mxu0 %v5389
    %9026 = vmatprep.subr.bf16.mxu0 %v5415
    %9027 = vmatpush1.bf16.msra.mxu0 %v5414
    %9028 = vmatprep.subr.bf16.mxu0 %v5440
    %9029 = vmatpush1.bf16.msra.mxu0 %v5439
    %9030 = vmatprep.subr.bf16.mxu0 %v5465
    %9031 = vmatpush1.bf16.msra.mxu0 %v5464
    %9032 = vmatprep.subr.bf16.mxu0 %v5490
    %9033 = vmatpush1.bf16.msra.mxu0 %v5489
    %9034 = vmatprep.subr.bf16.mxu0 %v5515
    %9035 = vmatpush1.bf16.msra.mxu0 %v5514
    %9036 = vmatprep.subr.bf16.mxu0 %v5540
    %9037 = vmatpush1.bf16.msra.mxu0 %v5539
    %9038 = vmatprep.subr.bf16.mxu0 %v5565
    %9039 = vmatpush1.bf16.msra.mxu0 %v5564
    %9040 = vmatprep.subr.bf16.mxu0 %v5590
    %9041 = vmatpush1.bf16.msra.mxu0 %v5589
    %9042 = vmatprep.subr.bf16.mxu0 %v5615
    %9043 = vmatpush1.bf16.msra.mxu0 %v5614
    %9044 = vmatprep.subr.bf16.mxu0 %v5640
    %9045 = vmatpush1.bf16.msra.mxu0 %v5639
    %9046 = vmatprep.mubr.bf16.mxu0 %v111
    %9047 = vmatmul.mubr.bf16.gmra.mrb[0].mxu0 %v110
    %v9048 = vpop.f32.mrb[0].mxu0
    %v9049 = vadd.f32 %v1466, %v9048
    %v9050 = vpop.f32.mrb[0].mxu0
    %v9051 = vadd.f32 %v1470, %v9050
    %v9052 = vpop.f32.mrb[0].mxu0
    %v9053 = vpop.f32.mrb[0].mxu0
    %9054 = vdwg.mxu0
    %9055 = vmatprep.subr.bf16.mxu0 %v5665
    %9056 = vmatpush1.bf16.msra.mxu0 %v5664
    %9057 = vmatprep.subr.bf16.mxu0 %v5690
    %9058 = vmatpush1.bf16.msra.mxu0 %v5689
    %9059 = vmatprep.subr.bf16.mxu0 %v5715
    %9060 = vmatpush1.bf16.msra.mxu0 %v5714
    %9061 = vmatprep.subr.bf16.mxu0 %v5740
    %9062 = vmatpush1.bf16.msra.mxu0 %v5739
    %9063 = vmatprep.subr.bf16.mxu0 %v5765
    %9064 = vmatpush1.bf16.msra.mxu0 %v5764
    %9065 = vmatprep.subr.bf16.mxu0 %v5790
    %9066 = vmatpush1.bf16.msra.mxu0 %v5789
    %9067 = vmatprep.subr.bf16.mxu0 %v5815
    %9068 = vmatpush1.bf16.msra.mxu0 %v5814
    %9069 = vmatprep.subr.bf16.mxu0 %v5840
    %9070 = vmatpush1.bf16.msra.mxu0 %v5839
    %9071 = vmatprep.subr.bf16.mxu0 %v5865
    %9072 = vmatpush1.bf16.msra.mxu0 %v5864
    %9073 = vmatprep.subr.bf16.mxu0 %v5890
    %9074 = vmatpush1.bf16.msra.mxu0 %v5889
    %9075 = vmatprep.subr.bf16.mxu0 %v5915
    %9076 = vmatpush1.bf16.msra.mxu0 %v5914
    %9077 = vmatprep.subr.bf16.mxu0 %v5940
    %9078 = vmatpush1.bf16.msra.mxu0 %v5939
    %9079 = vmatprep.subr.bf16.mxu0 %v5965
    %9080 = vmatpush1.bf16.msra.mxu0 %v5964
    %9081 = vmatprep.subr.bf16.mxu0 %v5990
    %9082 = vmatpush1.bf16.msra.mxu0 %v5989
    %9083 = vmatprep.subr.bf16.mxu0 %v6015
    %9084 = vmatpush1.bf16.msra.mxu0 %v6014
    %9085 = vmatprep.subr.bf16.mxu0 %v6040
    %9086 = vmatpush1.bf16.msra.mxu0 %v6039
    %9087 = vmatprep.mubr.bf16.mxu0 %v113
    %9088 = vmatmul.mubr.bf16.gmra.mrb[0].mxu0 %v112
    %v9089 = vpop.f32.mrb[0].mxu0
    %v9090 = vadd.f32 %v9049, %v9089
    %v9091 = vpop.f32.mrb[0].mxu0
    %v9092 = vadd.f32 %v9051, %v9091
    %v9093 = vpop.f32.mrb[0].mxu0
    %v9094 = vpop.f32.mrb[0].mxu0
    %9095 = vdwg.mxu0
    %9096 = vmatprep.subr.bf16.mxu0 %v6065
    %9097 = vmatpush1.bf16.msra.mxu0 %v6064
    %9098 = vmatprep.subr.bf16.mxu0 %v6090
    %9099 = vmatpush1.bf16.msra.mxu0 %v6089
    %9100 = vmatprep.subr.bf16.mxu0 %v6115
    %9101 = vmatpush1.bf16.msra.mxu0 %v6114
    %9102 = vmatprep.subr.bf16.mxu0 %v6140
    %9103 = vmatpush1.bf16.msra.mxu0 %v6139
    %9104 = vmatprep.subr.bf16.mxu0 %v6165
    %9105 = vmatpush1.bf16.msra.mxu0 %v6164
    %9106 = vmatprep.subr.bf16.mxu0 %v6190
    %9107 = vmatpush1.bf16.msra.mxu0 %v6189
    %9108 = vmatprep.subr.bf16.mxu0 %v6215
    %9109 = vmatpush1.bf16.msra.mxu0 %v6214
    %9110 = vmatprep.subr.bf16.mxu0 %v6240
    %9111 = vmatpush1.bf16.msra.mxu0 %v6239
    %9112 = vmatprep.subr.bf16.mxu0 %v6265
    %9113 = vmatpush1.bf16.msra.mxu0 %v6264
    %9114 = vmatprep.subr.bf16.mxu0 %v6290
    %9115 = vmatpush1.bf16.msra.mxu0 %v6289
    %9116 = vmatprep.subr.bf16.mxu0 %v6315
    %9117 = vmatpush1.bf16.msra.mxu0 %v6314
    %9118 = vmatprep.subr.bf16.mxu0 %v6340
    %9119 = vmatpush1.bf16.msra.mxu0 %v6339
    %9120 = vmatprep.subr.bf16.mxu0 %v6365
    %9121 = vmatpush1.bf16.msra.mxu0 %v6364
    %9122 = vmatprep.subr.bf16.mxu0 %v6390
    %9123 = vmatpush1.bf16.msra.mxu0 %v6389
    %9124 = vmatprep.subr.bf16.mxu0 %v6415
    %9125 = vmatpush1.bf16.msra.mxu0 %v6414
    %9126 = vmatprep.subr.bf16.mxu0 %v6440
    %9127 = vmatpush1.bf16.msra.mxu0 %v6439
    %9128 = vmatprep.mubr.bf16.mxu0 %v115
    %9129 = vmatmul.mubr.bf16.gmra.mrb[0].mxu0 %v114
    %v9130 = vpop.f32.mrb[0].mxu0
    %v9131 = vadd.f32 %v9090, %v9130
    %v9132 = vpop.f32.mrb[0].mxu0
    %v9133 = vadd.f32 %v9092, %v9132
    %v9134 = vpop.f32.mrb[0].mxu0
    %v9135 = vpop.f32.mrb[0].mxu0
    %9136 = vdwg.mxu0
    %9137 = vmatprep.subr.bf16.mxu0 %v6465
    %9138 = vmatpush1.bf16.msra.mxu0 %v6464
    %9139 = vmatprep.subr.bf16.mxu0 0
    %9140 = vmatpush1.bf16.msra.mxu0 0
    %9141 = vmatprep.subr.bf16.mxu0 0
    %9142 = vmatpush1.bf16.msra.mxu0 0
    %9143 = vmatprep.subr.bf16.mxu0 0
    %9144 = vmatpush1.bf16.msra.mxu0 0
    %9145 = vmatprep.subr.bf16.mxu0 0
    %9146 = vmatpush1.bf16.msra.mxu0 0
    %9147 = vmatprep.subr.bf16.mxu0 0
    %9148 = vmatpush1.bf16.msra.mxu0 0
    %9149 = vmatprep.subr.bf16.mxu0 0
    %9150 = vmatpush1.bf16.msra.mxu0 0
    %9151 = vmatprep.subr.bf16.mxu0 0
    %9152 = vmatpush1.bf16.msra.mxu0 0
    %9153 = vmatprep.subr.bf16.mxu0 0
    %9154 = vmatpush1.bf16.msra.mxu0 0
    %9155 = vmatprep.subr.bf16.mxu0 0
    %9156 = vmatpush1.bf16.msra.mxu0 0
    %9157 = vmatprep.subr.bf16.mxu0 0
    %9158 = vmatpush1.bf16.msra.mxu0 0
    %9159 = vmatprep.subr.bf16.mxu0 0
    %9160 = vmatpush1.bf16.msra.mxu0 0
    %9161 = vmatprep.subr.bf16.mxu0 0
    %9162 = vmatpush1.bf16.msra.mxu0 0
    %9163 = vmatprep.subr.bf16.mxu0 0
    %9164 = vmatpush1.bf16.msra.mxu0 0
    %9165 = vmatprep.subr.bf16.mxu0 0
    %9166 = vmatpush1.bf16.msra.mxu0 0
    %9167 = vmatprep.subr.bf16.mxu0 0
    %9168 = vmatpush1.bf16.msra.mxu0 0
    %9169 = vmatprep.mubr.bf16.mxu0 0
    %9170 = vmatmul.mubr.bf16.gmra.mrb[0].mxu0 %v7700
    %v9171 = vpop.f32.mrb[0].mxu0
    %v9172 = vadd.f32 %v9131, %v9171
    %v9173 = vpop.f32.mrb[0].mxu0
    %v9174 = vadd.f32 %v9133, %v9173
    %v9175 = vpop.f32.mrb[0].mxu0
    %v9176 = vpop.f32.mrb[0].mxu0
    %9177 = vdwg.mxu0
    %9178 = vmatprep.subr.bf16.mxu0 %v5267
    %9179 = vmatpush1.bf16.msra.mxu0 %v5266
    %9180 = vmatprep.subr.bf16.mxu0 %v5292
    %9181 = vmatpush1.bf16.msra.mxu0 %v5291
    %9182 = vmatprep.subr.bf16.mxu0 %v5317
    %9183 = vmatpush1.bf16.msra.mxu0 %v5316
    %9184 = vmatprep.subr.bf16.mxu0 %v5342
    %9185 = vmatpush1.bf16.msra.mxu0 %v5341
    %9186 = vmatprep.subr.bf16.mxu0 %v5367
    %9187 = vmatpush1.bf16.msra.mxu0 %v5366
    %9188 = vmatprep.subr.bf16.mxu0 %v5392
    %9189 = vmatpush1.bf16.msra.mxu0 %v5391
    %9190 = vmatprep.subr.bf16.mxu0 %v5417
    %9191 = vmatpush1.bf16.msra.mxu0 %v5416
    %9192 = vmatprep.subr.bf16.mxu0 %v5442
    %9193 = vmatpush1.bf16.msra.mxu0 %v5441
    %9194 = vmatprep.subr.bf16.mxu0 %v5467
    %9195 = vmatpush1.bf16.msra.mxu0 %v5466
    %9196 = vmatprep.subr.bf16.mxu0 %v5492
    %9197 = vmatpush1.bf16.msra.mxu0 %v5491
    %9198 = vmatprep.subr.bf16.mxu0 %v5517
    %9199 = vmatpush1.bf16.msra.mxu0 %v5516
    %9200 = vmatprep.subr.bf16.mxu0 %v5542
    %9201 = vmatpush1.bf16.msra.mxu0 %v5541
    %9202 = vmatprep.subr.bf16.mxu0 %v5567
    %9203 = vmatpush1.bf16.msra.mxu0 %v5566
    %9204 = vmatprep.subr.bf16.mxu0 %v5592
    %9205 = vmatpush1.bf16.msra.mxu0 %v5591
    %9206 = vmatprep.subr.bf16.mxu0 %v5617
    %9207 = vmatpush1.bf16.msra.mxu0 %v5616
    %9208 = vmatprep.subr.bf16.mxu0 %v5642
    %9209 = vmatpush1.bf16.msra.mxu0 %v5641
    %9210 = vmatprep.mubr.bf16.mxu0 %v111
    %9211 = vmatmul.mubr.bf16.gmra.mrb[0].mxu0 %v110
    %v9212 = vpop.f32.mrb[0].mxu0
    %v9213 = vadd.f32 %v1474, %v9212
    %v9214 = vpop.f32.mrb[0].mxu0
    %v9215 = vadd.f32 %v1478, %v9214
    %v9216 = vpop.f32.mrb[0].mxu0
    %v9217 = vpop.f32.mrb[0].mxu0
    %9218 = vdwg.mxu0
    %9219 = vmatprep.subr.bf16.mxu0 %v5667
    %9220 = vmatpush1.bf16.msra.mxu0 %v5666
    %9221 = vmatprep.subr.bf16.mxu0 %v5692
    %9222 = vmatpush1.bf16.msra.mxu0 %v5691
    %9223 = vmatprep.subr.bf16.mxu0 %v5717
    %9224 = vmatpush1.bf16.msra.mxu0 %v5716
    %9225 = vmatprep.subr.bf16.mxu0 %v5742
    %9226 = vmatpush1.bf16.msra.mxu0 %v5741
    %9227 = vmatprep.subr.bf16.mxu0 %v5767
    %9228 = vmatpush1.bf16.msra.mxu0 %v5766
    %9229 = vmatprep.subr.bf16.mxu0 %v5792
    %9230 = vmatpush1.bf16.msra.mxu0 %v5791
    %9231 = vmatprep.subr.bf16.mxu0 %v5817
    %9232 = vmatpush1.bf16.msra.mxu0 %v5816
    %9233 = vmatprep.subr.bf16.mxu0 %v5842
    %9234 = vmatpush1.bf16.msra.mxu0 %v5841
    %9235 = vmatprep.subr.bf16.mxu0 %v5867
    %9236 = vmatpush1.bf16.msra.mxu0 %v5866
    %9237 = vmatprep.subr.bf16.mxu0 %v5892
    %9238 = vmatpush1.bf16.msra.mxu0 %v5891
    %9239 = vmatprep.subr.bf16.mxu0 %v5917
    %9240 = vmatpush1.bf16.msra.mxu0 %v5916
    %9241 = vmatprep.subr.bf16.mxu0 %v5942
    %9242 = vmatpush1.bf16.msra.mxu0 %v5941
    %9243 = vmatprep.subr.bf16.mxu0 %v5967
    %9244 = vmatpush1.bf16.msra.mxu0 %v5966
    %9245 = vmatprep.subr.bf16.mxu0 %v5992
    %9246 = vmatpush1.bf16.msra.mxu0 %v5991
    %9247 = vmatprep.subr.bf16.mxu0 %v6017
    %9248 = vmatpush1.bf16.msra.mxu0 %v6016
    %9249 = vmatprep.subr.bf16.mxu0 %v6042
    %9250 = vmatpush1.bf16.msra.mxu0 %v6041
    %9251 = vmatprep.mubr.bf16.mxu0 %v113
    %9252 = vmatmul.mubr.bf16.gmra.mrb[0].mxu0 %v112
    %v9253 = vpop.f32.mrb[0].mxu0
    %v9254 = vadd.f32 %v9213, %v9253
    %v9255 = vpop.f32.mrb[0].mxu0
    %v9256 = vadd.f32 %v9215, %v9255
    %v9257 = vpop.f32.mrb[0].mxu0
    %v9258 = vpop.f32.mrb[0].mxu0
    %9259 = vdwg.mxu0
    %9260 = vmatprep.subr.bf16.mxu0 %v6067
    %9261 = vmatpush1.bf16.msra.mxu0 %v6066
    %9262 = vmatprep.subr.bf16.mxu0 %v6092
    %9263 = vmatpush1.bf16.msra.mxu0 %v6091
    %9264 = vmatprep.subr.bf16.mxu0 %v6117
    %9265 = vmatpush1.bf16.msra.mxu0 %v6116
    %9266 = vmatprep.subr.bf16.mxu0 %v6142
    %9267 = vmatpush1.bf16.msra.mxu0 %v6141
    %9268 = vmatprep.subr.bf16.mxu0 %v6167
    %9269 = vmatpush1.bf16.msra.mxu0 %v6166
    %9270 = vmatprep.subr.bf16.mxu0 %v6192
    %9271 = vmatpush1.bf16.msra.mxu0 %v6191
    %9272 = vmatprep.subr.bf16.mxu0 %v6217
    %9273 = vmatpush1.bf16.msra.mxu0 %v6216
    %9274 = vmatprep.subr.bf16.mxu0 %v6242
    %9275 = vmatpush1.bf16.msra.mxu0 %v6241
    %9276 = vmatprep.subr.bf16.mxu0 %v6267
    %9277 = vmatpush1.bf16.msra.mxu0 %v6266
    %9278 = vmatprep.subr.bf16.mxu0 %v6292
    %9279 = vmatpush1.bf16.msra.mxu0 %v6291
    %9280 = vmatprep.subr.bf16.mxu0 %v6317
    %9281 = vmatpush1.bf16.msra.mxu0 %v6316
    %9282 = vmatprep.subr.bf16.mxu0 %v6342
    %9283 = vmatpush1.bf16.msra.mxu0 %v6341
    %9284 = vmatprep.subr.bf16.mxu0 %v6367
    %9285 = vmatpush1.bf16.msra.mxu0 %v6366
    %9286 = vmatprep.subr.bf16.mxu0 %v6392
    %9287 = vmatpush1.bf16.msra.mxu0 %v6391
    %9288 = vmatprep.subr.bf16.mxu0 %v6417
    %9289 = vmatpush1.bf16.msra.mxu0 %v6416
    %9290 = vmatprep.subr.bf16.mxu0 %v6442
    %9291 = vmatpush1.bf16.msra.mxu0 %v6441
    %9292 = vmatprep.mubr.bf16.mxu0 %v115
    %9293 = vmatmul.mubr.bf16.gmra.mrb[0].mxu0 %v114
    %v9294 = vpop.f32.mrb[0].mxu0
    %v9295 = vadd.f32 %v9254, %v9294
    %v9296 = vpop.f32.mrb[0].mxu0
    %v9297 = vadd.f32 %v9256, %v9296
    %v9298 = vpop.f32.mrb[0].mxu0
    %v9299 = vpop.f32.mrb[0].mxu0
    %9300 = vdwg.mxu0
    %9301 = vmatprep.subr.bf16.mxu0 %v6467
    %9302 = vmatpush1.bf16.msra.mxu0 %v6466
    %9303 = vmatprep.subr.bf16.mxu0 0
    %9304 = vmatpush1.bf16.msra.mxu0 0
    %9305 = vmatprep.subr.bf16.mxu0 0
    %9306 = vmatpush1.bf16.msra.mxu0 0
    %9307 = vmatprep.subr.bf16.mxu0 0
    %9308 = vmatpush1.bf16.msra.mxu0 0
    %9309 = vmatprep.subr.bf16.mxu0 0
    %9310 = vmatpush1.bf16.msra.mxu0 0
    %9311 = vmatprep.subr.bf16.mxu0 0
    %9312 = vmatpush1.bf16.msra.mxu0 0
    %9313 = vmatprep.subr.bf16.mxu0 0
    %9314 = vmatpush1.bf16.msra.mxu0 0
    %9315 = vmatprep.subr.bf16.mxu0 0
    %9316 = vmatpush1.bf16.msra.mxu0 0
    %9317 = vmatprep.subr.bf16.mxu0 0
    %9318 = vmatpush1.bf16.msra.mxu0 0
    %9319 = vmatprep.subr.bf16.mxu0 0
    %9320 = vmatpush1.bf16.msra.mxu0 0
    %9321 = vmatprep.subr.bf16.mxu0 0
    %9322 = vmatpush1.bf16.msra.mxu0 0
    %9323 = vmatprep.subr.bf16.mxu0 0
    %9324 = vmatpush1.bf16.msra.mxu0 0
    %9325 = vmatprep.subr.bf16.mxu0 0
    %9326 = vmatpush1.bf16.msra.mxu0 0
    %9327 = vmatprep.subr.bf16.mxu0 0
    %9328 = vmatpush1.bf16.msra.mxu0 0
    %9329 = vmatprep.subr.bf16.mxu0 0
    %9330 = vmatpush1.bf16.msra.mxu0 0
    %9331 = vmatprep.subr.bf16.mxu0 0
    %9332 = vmatpush1.bf16.msra.mxu0 0
    %9333 = vmatprep.mubr.bf16.mxu0 0
    %9334 = vmatmul.mubr.bf16.gmra.mrb[0].mxu0 %v7700
    %v9335 = vpop.f32.mrb[0].mxu0
    %v9336 = vadd.f32 %v9295, %v9335
    %v9337 = vpop.f32.mrb[0].mxu0
    %v9338 = vadd.f32 %v9297, %v9337
    %v9339 = vpop.f32.mrb[0].mxu0
    %v9340 = vpop.f32.mrb[0].mxu0
    %9341 = vdwg.mxu0
    %9342 = vmatprep.subr.bf16.mxu0 %v5269
    %9343 = vmatpush1.bf16.msra.mxu0 %v5268
    %9344 = vmatprep.subr.bf16.mxu0 %v5294
    %9345 = vmatpush1.bf16.msra.mxu0 %v5293
    %9346 = vmatprep.subr.bf16.mxu0 %v5319
    %9347 = vmatpush1.bf16.msra.mxu0 %v5318
    %9348 = vmatprep.subr.bf16.mxu0 %v5344
    %9349 = vmatpush1.bf16.msra.mxu0 %v5343
    %9350 = vmatprep.subr.bf16.mxu0 %v5369
    %9351 = vmatpush1.bf16.msra.mxu0 %v5368
    %9352 = vmatprep.subr.bf16.mxu0 %v5394
    %9353 = vmatpush1.bf16.msra.mxu0 %v5393
    %9354 = vmatprep.subr.bf16.mxu0 %v5419
    %9355 = vmatpush1.bf16.msra.mxu0 %v5418
    %9356 = vmatprep.subr.bf16.mxu0 %v5444
    %9357 = vmatpush1.bf16.msra.mxu0 %v5443
    %9358 = vmatprep.subr.bf16.mxu0 %v5469
    %9359 = vmatpush1.bf16.msra.mxu0 %v5468
    %9360 = vmatprep.subr.bf16.mxu0 %v5494
    %9361 = vmatpush1.bf16.msra.mxu0 %v5493
    %9362 = vmatprep.subr.bf16.mxu0 %v5519
    %9363 = vmatpush1.bf16.msra.mxu0 %v5518
    %9364 = vmatprep.subr.bf16.mxu0 %v5544
    %9365 = vmatpush1.bf16.msra.mxu0 %v5543
    %9366 = vmatprep.subr.bf16.mxu0 %v5569
    %9367 = vmatpush1.bf16.msra.mxu0 %v5568
    %9368 = vmatprep.subr.bf16.mxu0 %v5594
    %9369 = vmatpush1.bf16.msra.mxu0 %v5593
    %9370 = vmatprep.subr.bf16.mxu0 %v5619
    %9371 = vmatpush1.bf16.msra.mxu0 %v5618
    %9372 = vmatprep.subr.bf16.mxu0 %v5644
    %9373 = vmatpush1.bf16.msra.mxu0 %v5643
    %9374 = vmatprep.mubr.bf16.mxu0 %v111
    %9375 = vmatmul.mubr.bf16.gmra.mrb[0].mxu0 %v110
    %v9376 = vpop.f32.mrb[0].mxu0
    %v9377 = vadd.f32 %v1482, %v9376
    %v9378 = vpop.f32.mrb[0].mxu0
    %v9379 = vadd.f32 %v1486, %v9378
    %v9380 = vpop.f32.mrb[0].mxu0
    %v9381 = vpop.f32.mrb[0].mxu0
    %9382 = vdwg.mxu0
    %9383 = vmatprep.subr.bf16.mxu0 %v5669
    %9384 = vmatpush1.bf16.msra.mxu0 %v5668
    %9385 = vmatprep.subr.bf16.mxu0 %v5694
    %9386 = vmatpush1.bf16.msra.mxu0 %v5693
    %9387 = vmatprep.subr.bf16.mxu0 %v5719
    %9388 = vmatpush1.bf16.msra.mxu0 %v5718
    %9389 = vmatprep.subr.bf16.mxu0 %v5744
    %9390 = vmatpush1.bf16.msra.mxu0 %v5743
    %9391 = vmatprep.subr.bf16.mxu0 %v5769
    %9392 = vmatpush1.bf16.msra.mxu0 %v5768
    %9393 = vmatprep.subr.bf16.mxu0 %v5794
    %9394 = vmatpush1.bf16.msra.mxu0 %v5793
    %9395 = vmatprep.subr.bf16.mxu0 %v5819
    %9396 = vmatpush1.bf16.msra.mxu0 %v5818
    %9397 = vmatprep.subr.bf16.mxu0 %v5844
    %9398 = vmatpush1.bf16.msra.mxu0 %v5843
    %9399 = vmatprep.subr.bf16.mxu0 %v5869
    %9400 = vmatpush1.bf16.msra.mxu0 %v5868
    %9401 = vmatprep.subr.bf16.mxu0 %v5894
    %9402 = vmatpush1.bf16.msra.mxu0 %v5893
    %9403 = vmatprep.subr.bf16.mxu0 %v5919
    %9404 = vmatpush1.bf16.msra.mxu0 %v5918
    %9405 = vmatprep.subr.bf16.mxu0 %v5944
    %9406 = vmatpush1.bf16.msra.mxu0 %v5943
    %9407 = vmatprep.subr.bf16.mxu0 %v5969
    %9408 = vmatpush1.bf16.msra.mxu0 %v5968
    %9409 = vmatprep.subr.bf16.mxu0 %v5994
    %9410 = vmatpush1.bf16.msra.mxu0 %v5993
    %9411 = vmatprep.subr.bf16.mxu0 %v6019
    %9412 = vmatpush1.bf16.msra.mxu0 %v6018
    %9413 = vmatprep.subr.bf16.mxu0 %v6044
    %9414 = vmatpush1.bf16.msra.mxu0 %v6043
    %9415 = vmatprep.mubr.bf16.mxu0 %v113
    %9416 = vmatmul.mubr.bf16.gmra.mrb[0].mxu0 %v112
    %v9417 = vpop.f32.mrb[0].mxu0
    %v9418 = vadd.f32 %v9377, %v9417
    %v9419 = vpop.f32.mrb[0].mxu0
    %v9420 = vadd.f32 %v9379, %v9419
    %v9421 = vpop.f32.mrb[0].mxu0
    %v9422 = vpop.f32.mrb[0].mxu0
    %9423 = vdwg.mxu0
    %9424 = vmatprep.subr.bf16.mxu0 %v6069
    %9425 = vmatpush1.bf16.msra.mxu0 %v6068
    %9426 = vmatprep.subr.bf16.mxu0 %v6094
    %9427 = vmatpush1.bf16.msra.mxu0 %v6093
    %9428 = vmatprep.subr.bf16.mxu0 %v6119
    %9429 = vmatpush1.bf16.msra.mxu0 %v6118
    %9430 = vmatprep.subr.bf16.mxu0 %v6144
    %9431 = vmatpush1.bf16.msra.mxu0 %v6143
    %9432 = vmatprep.subr.bf16.mxu0 %v6169
    %9433 = vmatpush1.bf16.msra.mxu0 %v6168
    %9434 = vmatprep.subr.bf16.mxu0 %v6194
    %9435 = vmatpush1.bf16.msra.mxu0 %v6193
    %9436 = vmatprep.subr.bf16.mxu0 %v6219
    %9437 = vmatpush1.bf16.msra.mxu0 %v6218
    %9438 = vmatprep.subr.bf16.mxu0 %v6244
    %9439 = vmatpush1.bf16.msra.mxu0 %v6243
    %9440 = vmatprep.subr.bf16.mxu0 %v6269
    %9441 = vmatpush1.bf16.msra.mxu0 %v6268
    %9442 = vmatprep.subr.bf16.mxu0 %v6294
    %9443 = vmatpush1.bf16.msra.mxu0 %v6293
    %9444 = vmatprep.subr.bf16.mxu0 %v6319
    %9445 = vmatpush1.bf16.msra.mxu0 %v6318
    %9446 = vmatprep.subr.bf16.mxu0 %v6344
    %9447 = vmatpush1.bf16.msra.mxu0 %v6343
    %9448 = vmatprep.subr.bf16.mxu0 %v6369
    %9449 = vmatpush1.bf16.msra.mxu0 %v6368
    %9450 = vmatprep.subr.bf16.mxu0 %v6394
    %9451 = vmatpush1.bf16.msra.mxu0 %v6393
    %9452 = vmatprep.subr.bf16.mxu0 %v6419
    %9453 = vmatpush1.bf16.msra.mxu0 %v6418
    %9454 = vmatprep.subr.bf16.mxu0 %v6444
    %9455 = vmatpush1.bf16.msra.mxu0 %v6443
    %9456 = vmatprep.mubr.bf16.mxu0 %v115
    %9457 = vmatmul.mubr.bf16.gmra.mrb[0].mxu0 %v114
    %v9458 = vpop.f32.mrb[0].mxu0
    %v9459 = vadd.f32 %v9418, %v9458
    %v9460 = vpop.f32.mrb[0].mxu0
    %v9461 = vadd.f32 %v9420, %v9460
    %v9462 = vpop.f32.mrb[0].mxu0
    %v9463 = vpop.f32.mrb[0].mxu0
    %9464 = vdwg.mxu0
    %9465 = vmatprep.subr.bf16.mxu0 %v6469
    %9466 = vmatpush1.bf16.msra.mxu0 %v6468
    %9467 = vmatprep.subr.bf16.mxu0 0
    %9468 = vmatpush1.bf16.msra.mxu0 0
    %9469 = vmatprep.subr.bf16.mxu0 0
    %9470 = vmatpush1.bf16.msra.mxu0 0
    %9471 = vmatprep.subr.bf16.mxu0 0
    %9472 = vmatpush1.bf16.msra.mxu0 0
    %9473 = vmatprep.subr.bf16.mxu0 0
    %9474 = vmatpush1.bf16.msra.mxu0 0
    %9475 = vmatprep.subr.bf16.mxu0 0
    %9476 = vmatpush1.bf16.msra.mxu0 0
    %9477 = vmatprep.subr.bf16.mxu0 0
    %9478 = vmatpush1.bf16.msra.mxu0 0
    %9479 = vmatprep.subr.bf16.mxu0 0
    %9480 = vmatpush1.bf16.msra.mxu0 0
    %9481 = vmatprep.subr.bf16.mxu0 0
    %9482 = vmatpush1.bf16.msra.mxu0 0
    %9483 = vmatprep.subr.bf16.mxu0 0
    %9484 = vmatpush1.bf16.msra.mxu0 0
    %9485 = vmatprep.subr.bf16.mxu0 0
    %9486 = vmatpush1.bf16.msra.mxu0 0
    %9487 = vmatprep.subr.bf16.mxu0 0
    %9488 = vmatpush1.bf16.msra.mxu0 0
    %9489 = vmatprep.subr.bf16.mxu0 0
    %9490 = vmatpush1.bf16.msra.mxu0 0
    %9491 = vmatprep.subr.bf16.mxu0 0
    %9492 = vmatpush1.bf16.msra.mxu0 0
    %9493 = vmatprep.subr.bf16.mxu0 0
    %9494 = vmatpush1.bf16.msra.mxu0 0
    %9495 = vmatprep.subr.bf16.mxu0 0
    %9496 = vmatpush1.bf16.msra.mxu0 0
    %9497 = vmatprep.mubr.bf16.mxu0 0
    %9498 = vmatmul.mubr.bf16.gmra.mrb[0].mxu0 %v7700
    %v9499 = vpop.f32.mrb[0].mxu0
    %v9500 = vadd.f32 %v9459, %v9499
    %v9501 = vpop.f32.mrb[0].mxu0
    %v9502 = vadd.f32 %v9461, %v9501
    %v9503 = vpop.f32.mrb[0].mxu0
    %v9504 = vpop.f32.mrb[0].mxu0
    %9505 = vdwg.mxu0
    %9506 = vmatprep.subr.bf16.mxu0 %v5271
    %9507 = vmatpush1.bf16.msra.mxu0 %v5270
    %9508 = vmatprep.subr.bf16.mxu0 %v5296
    %9509 = vmatpush1.bf16.msra.mxu0 %v5295
    %9510 = vmatprep.subr.bf16.mxu0 %v5321
    %9511 = vmatpush1.bf16.msra.mxu0 %v5320
    %9512 = vmatprep.subr.bf16.mxu0 %v5346
    %9513 = vmatpush1.bf16.msra.mxu0 %v5345
    %9514 = vmatprep.subr.bf16.mxu0 %v5371
    %9515 = vmatpush1.bf16.msra.mxu0 %v5370
    %9516 = vmatprep.subr.bf16.mxu0 %v5396
    %9517 = vmatpush1.bf16.msra.mxu0 %v5395
    %9518 = vmatprep.subr.bf16.mxu0 %v5421
    %9519 = vmatpush1.bf16.msra.mxu0 %v5420
    %9520 = vmatprep.subr.bf16.mxu0 %v5446
    %9521 = vmatpush1.bf16.msra.mxu0 %v5445
    %9522 = vmatprep.subr.bf16.mxu0 %v5471
    %9523 = vmatpush1.bf16.msra.mxu0 %v5470
    %9524 = vmatprep.subr.bf16.mxu0 %v5496
    %9525 = vmatpush1.bf16.msra.mxu0 %v5495
    %9526 = vmatprep.subr.bf16.mxu0 %v5521
    %9527 = vmatpush1.bf16.msra.mxu0 %v5520
    %9528 = vmatprep.subr.bf16.mxu0 %v5546
    %9529 = vmatpush1.bf16.msra.mxu0 %v5545
    %9530 = vmatprep.subr.bf16.mxu0 %v5571
    %9531 = vmatpush1.bf16.msra.mxu0 %v5570
    %9532 = vmatprep.subr.bf16.mxu0 %v5596
    %9533 = vmatpush1.bf16.msra.mxu0 %v5595
    %9534 = vmatprep.subr.bf16.mxu0 %v5621
    %9535 = vmatpush1.bf16.msra.mxu0 %v5620
    %9536 = vmatprep.subr.bf16.mxu0 %v5646
    %9537 = vmatpush1.bf16.msra.mxu0 %v5645
    %9538 = vmatprep.mubr.bf16.mxu0 %v111
    %9539 = vmatmul.mubr.bf16.gmra.mrb[0].mxu0 %v110
    %v9540 = vpop.f32.mrb[0].mxu0
    %v9541 = vadd.f32 %v1490, %v9540
    %v9542 = vpop.f32.mrb[0].mxu0
    %v9543 = vadd.f32 %v1494, %v9542
    %v9544 = vpop.f32.mrb[0].mxu0
    %v9545 = vpop.f32.mrb[0].mxu0
    %9546 = vdwg.mxu0
    %9547 = vmatprep.subr.bf16.mxu0 %v5671
    %9548 = vmatpush1.bf16.msra.mxu0 %v5670
    %9549 = vmatprep.subr.bf16.mxu0 %v5696
    %9550 = vmatpush1.bf16.msra.mxu0 %v5695
    %9551 = vmatprep.subr.bf16.mxu0 %v5721
    %9552 = vmatpush1.bf16.msra.mxu0 %v5720
    %9553 = vmatprep.subr.bf16.mxu0 %v5746
    %9554 = vmatpush1.bf16.msra.mxu0 %v5745
    %9555 = vmatprep.subr.bf16.mxu0 %v5771
    %9556 = vmatpush1.bf16.msra.mxu0 %v5770
    %9557 = vmatprep.subr.bf16.mxu0 %v5796
    %9558 = vmatpush1.bf16.msra.mxu0 %v5795
    %9559 = vmatprep.subr.bf16.mxu0 %v5821
    %9560 = vmatpush1.bf16.msra.mxu0 %v5820
    %9561 = vmatprep.subr.bf16.mxu0 %v5846
    %9562 = vmatpush1.bf16.msra.mxu0 %v5845
    %9563 = vmatprep.subr.bf16.mxu0 %v5871
    %9564 = vmatpush1.bf16.msra.mxu0 %v5870
    %9565 = vmatprep.subr.bf16.mxu0 %v5896
    %9566 = vmatpush1.bf16.msra.mxu0 %v5895
    %9567 = vmatprep.subr.bf16.mxu0 %v5921
    %9568 = vmatpush1.bf16.msra.mxu0 %v5920
    %9569 = vmatprep.subr.bf16.mxu0 %v5946
    %9570 = vmatpush1.bf16.msra.mxu0 %v5945
    %9571 = vmatprep.subr.bf16.mxu0 %v5971
    %9572 = vmatpush1.bf16.msra.mxu0 %v5970
    %9573 = vmatprep.subr.bf16.mxu0 %v5996
    %9574 = vmatpush1.bf16.msra.mxu0 %v5995
    %9575 = vmatprep.subr.bf16.mxu0 %v6021
    %9576 = vmatpush1.bf16.msra.mxu0 %v6020
    %9577 = vmatprep.subr.bf16.mxu0 %v6046
    %9578 = vmatpush1.bf16.msra.mxu0 %v6045
    %9579 = vmatprep.mubr.bf16.mxu0 %v113
    %9580 = vmatmul.mubr.bf16.gmra.mrb[0].mxu0 %v112
    %v9581 = vpop.f32.mrb[0].mxu0
    %v9582 = vadd.f32 %v9541, %v9581
    %v9583 = vpop.f32.mrb[0].mxu0
    %v9584 = vadd.f32 %v9543, %v9583
    %v9585 = vpop.f32.mrb[0].mxu0
    %v9586 = vpop.f32.mrb[0].mxu0
    %9587 = vdwg.mxu0
    %9588 = vmatprep.subr.bf16.mxu0 %v6071
    %9589 = vmatpush1.bf16.msra.mxu0 %v6070
    %9590 = vmatprep.subr.bf16.mxu0 %v6096
    %9591 = vmatpush1.bf16.msra.mxu0 %v6095
    %9592 = vmatprep.subr.bf16.mxu0 %v6121
    %9593 = vmatpush1.bf16.msra.mxu0 %v6120
    %9594 = vmatprep.subr.bf16.mxu0 %v6146
    %9595 = vmatpush1.bf16.msra.mxu0 %v6145
    %9596 = vmatprep.subr.bf16.mxu0 %v6171
    %9597 = vmatpush1.bf16.msra.mxu0 %v6170
    %9598 = vmatprep.subr.bf16.mxu0 %v6196
    %9599 = vmatpush1.bf16.msra.mxu0 %v6195
    %9600 = vmatprep.subr.bf16.mxu0 %v6221
    %9601 = vmatpush1.bf16.msra.mxu0 %v6220
    %9602 = vmatprep.subr.bf16.mxu0 %v6246
    %9603 = vmatpush1.bf16.msra.mxu0 %v6245
    %9604 = vmatprep.subr.bf16.mxu0 %v6271
    %9605 = vmatpush1.bf16.msra.mxu0 %v6270
    %9606 = vmatprep.subr.bf16.mxu0 %v6296
    %9607 = vmatpush1.bf16.msra.mxu0 %v6295
    %9608 = vmatprep.subr.bf16.mxu0 %v6321
    %9609 = vmatpush1.bf16.msra.mxu0 %v6320
    %9610 = vmatprep.subr.bf16.mxu0 %v6346
    %9611 = vmatpush1.bf16.msra.mxu0 %v6345
    %9612 = vmatprep.subr.bf16.mxu0 %v6371
    %9613 = vmatpush1.bf16.msra.mxu0 %v6370
    %9614 = vmatprep.subr.bf16.mxu0 %v6396
    %9615 = vmatpush1.bf16.msra.mxu0 %v6395
    %9616 = vmatprep.subr.bf16.mxu0 %v6421
    %9617 = vmatpush1.bf16.msra.mxu0 %v6420
    %9618 = vmatprep.subr.bf16.mxu0 %v6446
    %9619 = vmatpush1.bf16.msra.mxu0 %v6445
    %9620 = vmatprep.mubr.bf16.mxu0 %v115
    %9621 = vmatmul.mubr.bf16.gmra.mrb[0].mxu0 %v114
    %v9622 = vpop.f32.mrb[0].mxu0
    %v9623 = vadd.f32 %v9582, %v9622
    %v9624 = vpop.f32.mrb[0].mxu0
    %v9625 = vadd.f32 %v9584, %v9624
    %v9626 = vpop.f32.mrb[0].mxu0
    %v9627 = vpop.f32.mrb[0].mxu0
    %9628 = vdwg.mxu0
    %9629 = vmatprep.subr.bf16.mxu0 %v6471
    %9630 = vmatpush1.bf16.msra.mxu0 %v6470
    %9631 = vmatprep.subr.bf16.mxu0 0
    %9632 = vmatpush1.bf16.msra.mxu0 0
    %9633 = vmatprep.subr.bf16.mxu0 0
    %9634 = vmatpush1.bf16.msra.mxu0 0
    %9635 = vmatprep.subr.bf16.mxu0 0
    %9636 = vmatpush1.bf16.msra.mxu0 0
    %9637 = vmatprep.subr.bf16.mxu0 0
    %9638 = vmatpush1.bf16.msra.mxu0 0
    %9639 = vmatprep.subr.bf16.mxu0 0
    %9640 = vmatpush1.bf16.msra.mxu0 0
    %9641 = vmatprep.subr.bf16.mxu0 0
    %9642 = vmatpush1.bf16.msra.mxu0 0
    %9643 = vmatprep.subr.bf16.mxu0 0
    %9644 = vmatpush1.bf16.msra.mxu0 0
    %9645 = vmatprep.subr.bf16.mxu0 0
    %9646 = vmatpush1.bf16.msra.mxu0 0
    %9647 = vmatprep.subr.bf16.mxu0 0
    %9648 = vmatpush1.bf16.msra.mxu0 0
    %9649 = vmatprep.subr.bf16.mxu0 0
    %9650 = vmatpush1.bf16.msra.mxu0 0
    %9651 = vmatprep.subr.bf16.mxu0 0
    %9652 = vmatpush1.bf16.msra.mxu0 0
    %9653 = vmatprep.subr.bf16.mxu0 0
    %9654 = vmatpush1.bf16.msra.mxu0 0
    %9655 = vmatprep.subr.bf16.mxu0 0
    %9656 = vmatpush1.bf16.msra.mxu0 0
    %9657 = vmatprep.subr.bf16.mxu0 0
    %9658 = vmatpush1.bf16.msra.mxu0 0
    %9659 = vmatprep.subr.bf16.mxu0 0
    %9660 = vmatpush1.bf16.msra.mxu0 0
    %9661 = vmatprep.mubr.bf16.mxu0 0
    %9662 = vmatmul.mubr.bf16.gmra.mrb[0].mxu0 %v7700
    %v9663 = vpop.f32.mrb[0].mxu0
    %v9664 = vadd.f32 %v9623, %v9663
    %v9665 = vpop.f32.mrb[0].mxu0
    %v9666 = vadd.f32 %v9625, %v9665
    %v9667 = vpop.f32.mrb[0].mxu0
    %v9668 = vpop.f32.mrb[0].mxu0
    %9669 = vdwg.mxu0
    %9670 = vmatprep.subr.bf16.mxu0 0
    %9671 = vmatpush1.bf16.msra.mxu0 %v5272
    %9672 = vmatprep.subr.bf16.mxu0 0
    %9673 = vmatpush1.bf16.msra.mxu0 %v5297
    %9674 = vmatprep.subr.bf16.mxu0 0
    %9675 = vmatpush1.bf16.msra.mxu0 %v5322
    %9676 = vmatprep.subr.bf16.mxu0 0
    %9677 = vmatpush1.bf16.msra.mxu0 %v5347
    %9678 = vmatprep.subr.bf16.mxu0 0
    %9679 = vmatpush1.bf16.msra.mxu0 %v5372
    %9680 = vmatprep.subr.bf16.mxu0 0
    %9681 = vmatpush1.bf16.msra.mxu0 %v5397
    %9682 = vmatprep.subr.bf16.mxu0 0
    %9683 = vmatpush1.bf16.msra.mxu0 %v5422
    %9684 = vmatprep.subr.bf16.mxu0 0
    %9685 = vmatpush1.bf16.msra.mxu0 %v5447
    %9686 = vmatprep.subr.bf16.mxu0 0
    %9687 = vmatpush1.bf16.msra.mxu0 %v5472
    %9688 = vmatprep.subr.bf16.mxu0 0
    %9689 = vmatpush1.bf16.msra.mxu0 %v5497
    %9690 = vmatprep.subr.bf16.mxu0 0
    %9691 = vmatpush1.bf16.msra.mxu0 %v5522
    %9692 = vmatprep.subr.bf16.mxu0 0
    %9693 = vmatpush1.bf16.msra.mxu0 %v5547
    %9694 = vmatprep.subr.bf16.mxu0 0
    %9695 = vmatpush1.bf16.msra.mxu0 %v5572
    %9696 = vmatprep.subr.bf16.mxu0 0
    %9697 = vmatpush1.bf16.msra.mxu0 %v5597
    %9698 = vmatprep.subr.bf16.mxu0 0
    %9699 = vmatpush1.bf16.msra.mxu0 %v5622
    %9700 = vmatprep.subr.bf16.mxu0 0
    %9701 = vmatpush1.bf16.msra.mxu0 %v5647
    %9702 = vmatprep.mubr.bf16.mxu0 %v111
    %9703 = vmatmul.mubr.bf16.gmra.mrb[0].mxu0 %v110
    %v9704 = vpop.f32.mrb[0].mxu0
    %v9705 = vadd.f32 %v1498, %v9704
    %v9706 = vpop.f32.mrb[0].mxu0
    %v9707 = vpop.f32.mrb[0].mxu0
    %v9708 = vpop.f32.mrb[0].mxu0
    %9709 = vdwg.mxu0
    %9710 = vmatprep.subr.bf16.mxu0 0
    %9711 = vmatpush1.bf16.msra.mxu0 %v5672
    %9712 = vmatprep.subr.bf16.mxu0 0
    %9713 = vmatpush1.bf16.msra.mxu0 %v5697
    %9714 = vmatprep.subr.bf16.mxu0 0
    %9715 = vmatpush1.bf16.msra.mxu0 %v5722
    %9716 = vmatprep.subr.bf16.mxu0 0
    %9717 = vmatpush1.bf16.msra.mxu0 %v5747
    %9718 = vmatprep.subr.bf16.mxu0 0
    %9719 = vmatpush1.bf16.msra.mxu0 %v5772
    %9720 = vmatprep.subr.bf16.mxu0 0
    %9721 = vmatpush1.bf16.msra.mxu0 %v5797
    %9722 = vmatprep.subr.bf16.mxu0 0
    %9723 = vmatpush1.bf16.msra.mxu0 %v5822
    %9724 = vmatprep.subr.bf16.mxu0 0
    %9725 = vmatpush1.bf16.msra.mxu0 %v5847
    %9726 = vmatprep.subr.bf16.mxu0 0
    %9727 = vmatpush1.bf16.msra.mxu0 %v5872
    %9728 = vmatprep.subr.bf16.mxu0 0
    %9729 = vmatpush1.bf16.msra.mxu0 %v5897
    %9730 = vmatprep.subr.bf16.mxu0 0
    %9731 = vmatpush1.bf16.msra.mxu0 %v5922
    %9732 = vmatprep.subr.bf16.mxu0 0
    %9733 = vmatpush1.bf16.msra.mxu0 %v5947
    %9734 = vmatprep.subr.bf16.mxu0 0
    %9735 = vmatpush1.bf16.msra.mxu0 %v5972
    %9736 = vmatprep.subr.bf16.mxu0 0
    %9737 = vmatpush1.bf16.msra.mxu0 %v5997
    %9738 = vmatprep.subr.bf16.mxu0 0
    %9739 = vmatpush1.bf16.msra.mxu0 %v6022
    %9740 = vmatprep.subr.bf16.mxu0 0
    %9741 = vmatpush1.bf16.msra.mxu0 %v6047
    %9742 = vmatprep.mubr.bf16.mxu0 %v113
    %9743 = vmatmul.mubr.bf16.gmra.mrb[0].mxu0 %v112
    %v9744 = vpop.f32.mrb[0].mxu0
    %v9745 = vadd.f32 %v9705, %v9744
    %v9746 = vpop.f32.mrb[0].mxu0
    %v9747 = vpop.f32.mrb[0].mxu0
    %v9748 = vpop.f32.mrb[0].mxu0
    %9749 = vdwg.mxu0
    %9750 = vmatprep.subr.bf16.mxu0 0
    %9751 = vmatpush1.bf16.msra.mxu0 %v6072
    %9752 = vmatprep.subr.bf16.mxu0 0
    %9753 = vmatpush1.bf16.msra.mxu0 %v6097
    %9754 = vmatprep.subr.bf16.mxu0 0
    %9755 = vmatpush1.bf16.msra.mxu0 %v6122
    %9756 = vmatprep.subr.bf16.mxu0 0
    %9757 = vmatpush1.bf16.msra.mxu0 %v6147
    %9758 = vmatprep.subr.bf16.mxu0 0
    %9759 = vmatpush1.bf16.msra.mxu0 %v6172
    %9760 = vmatprep.subr.bf16.mxu0 0
    %9761 = vmatpush1.bf16.msra.mxu0 %v6197
    %9762 = vmatprep.subr.bf16.mxu0 0
    %9763 = vmatpush1.bf16.msra.mxu0 %v6222
    %9764 = vmatprep.subr.bf16.mxu0 0
    %9765 = vmatpush1.bf16.msra.mxu0 %v6247
    %9766 = vmatprep.subr.bf16.mxu0 0
    %9767 = vmatpush1.bf16.msra.mxu0 %v6272
    %9768 = vmatprep.subr.bf16.mxu0 0
    %9769 = vmatpush1.bf16.msra.mxu0 %v6297
    %9770 = vmatprep.subr.bf16.mxu0 0
    %9771 = vmatpush1.bf16.msra.mxu0 %v6322
    %9772 = vmatprep.subr.bf16.mxu0 0
    %9773 = vmatpush1.bf16.msra.mxu0 %v6347
    %9774 = vmatprep.subr.bf16.mxu0 0
    %9775 = vmatpush1.bf16.msra.mxu0 %v6372
    %9776 = vmatprep.subr.bf16.mxu0 0
    %9777 = vmatpush1.bf16.msra.mxu0 %v6397
    %9778 = vmatprep.subr.bf16.mxu0 0
    %9779 = vmatpush1.bf16.msra.mxu0 %v6422
    %9780 = vmatprep.subr.bf16.mxu0 0
    %9781 = vmatpush1.bf16.msra.mxu0 %v6447
    %9782 = vmatprep.mubr.bf16.mxu0 %v115
    %9783 = vmatmul.mubr.bf16.gmra.mrb[0].mxu0 %v114
    %v9784 = vpop.f32.mrb[0].mxu0
    %v9785 = vadd.f32 %v9745, %v9784
    %v9786 = vpop.f32.mrb[0].mxu0
    %v9787 = vpop.f32.mrb[0].mxu0
    %v9788 = vpop.f32.mrb[0].mxu0
    %9789 = vdwg.mxu0
    %9790 = vmatprep.subr.bf16.mxu0 0
    %9791 = vmatpush1.bf16.msra.mxu0 %v6472
    %9792 = vmatprep.subr.bf16.mxu0 0
    %9793 = vmatpush1.bf16.msra.mxu0 0
    %9794 = vmatprep.subr.bf16.mxu0 0
    %9795 = vmatpush1.bf16.msra.mxu0 0
    %9796 = vmatprep.subr.bf16.mxu0 0
    %9797 = vmatpush1.bf16.msra.mxu0 0
    %9798 = vmatprep.subr.bf16.mxu0 0
    %9799 = vmatpush1.bf16.msra.mxu0 0
    %9800 = vmatprep.subr.bf16.mxu0 0
    %9801 = vmatpush1.bf16.msra.mxu0 0
    %9802 = vmatprep.subr.bf16.mxu0 0
    %9803 = vmatpush1.bf16.msra.mxu0 0
    %9804 = vmatprep.subr.bf16.mxu0 0
    %9805 = vmatpush1.bf16.msra.mxu0 0
    %9806 = vmatprep.subr.bf16.mxu0 0
    %9807 = vmatpush1.bf16.msra.mxu0 0
    %9808 = vmatprep.subr.bf16.mxu0 0
    %9809 = vmatpush1.bf16.msra.mxu0 0
    %9810 = vmatprep.subr.bf16.mxu0 0
    %9811 = vmatpush1.bf16.msra.mxu0 0
    %9812 = vmatprep.subr.bf16.mxu0 0
    %9813 = vmatpush1.bf16.msra.mxu0 0
    %9814 = vmatprep.subr.bf16.mxu0 0
    %9815 = vmatpush1.bf16.msra.mxu0 0
    %9816 = vmatprep.subr.bf16.mxu0 0
    %9817 = vmatpush1.bf16.msra.mxu0 0
    %9818 = vmatprep.subr.bf16.mxu0 0
    %9819 = vmatpush1.bf16.msra.mxu0 0
    %9820 = vmatprep.subr.bf16.mxu0 0
    %9821 = vmatpush1.bf16.msra.mxu0 0
    %9822 = vmatprep.mubr.bf16.mxu0 0
    %9823 = vmatmul.mubr.bf16.gmra.mrb[0].mxu0 %v7700
    %v9824 = vpop.f32.mrb[0].mxu0
    %v9825 = vadd.f32 %v9785, %v9824
    %v9826 = vpop.f32.mrb[0].mxu0
    %v9827 = vpop.f32.mrb[0].mxu0
    %v9828 = vpop.f32.mrb[0].mxu0
    %9829 = vdwg.mxu0
    %v9830 = vmax.f32 %v7860, 0.0
    %v9831 = vmax.f32 %v7862, 0.0
    %v9832 = vmax.f32 %v8024, 0.0
    %v9833 = vmax.f32 %v8026, 0.0
    %v9834 = vmax.f32 %v8188, 0.0
    %v9835 = vmax.f32 %v8190, 0.0
    %v9836 = vmax.f32 %v8352, 0.0
    %v9837 = vmax.f32 %v8354, 0.0
    %v9838 = vmax.f32 %v8516, 0.0
    %v9839 = vmax.f32 %v8518, 0.0
    %v9840 = vmax.f32 %v8680, 0.0
    %v9841 = vmax.f32 %v8682, 0.0
    %v9842 = vmax.f32 %v8844, 0.0
    %v9843 = vmax.f32 %v8846, 0.0
    %v9844 = vmax.f32 %v9008, 0.0
    %v9845 = vmax.f32 %v9010, 0.0
    %v9846 = vmax.f32 %v9172, 0.0
    %v9847 = vmax.f32 %v9174, 0.0
    %v9848 = vmax.f32 %v9336, 0.0
    %v9849 = vmax.f32 %v9338, 0.0
    %v9850 = vmax.f32 %v9500, 0.0
    %v9851 = vmax.f32 %v9502, 0.0
    %v9852 = vmax.f32 %v9664, 0.0
    %v9853 = vmax.f32 %v9666, 0.0
    %v9854 = vmax.f32 %v9825, 0.0
    %v9855 = vpack.c.bf16 %v9830, %v9830
    %v9856 = vpack.c.bf16 %v9831, %v9831
    %v9857 = vpack.c.bf16 %v9832, %v9832
    %v9858 = vpack.c.bf16 %v9833, %v9833
    %v9859 = vpack.c.bf16 %v9834, %v9834
    %v9860 = vpack.c.bf16 %v9835, %v9835
    %v9861 = vpack.c.bf16 %v9836, %v9836
    %v9862 = vpack.c.bf16 %v9837, %v9837
    %v9863 = vpack.c.bf16 %v9838, %v9838
    %v9864 = vpack.c.bf16 %v9839, %v9839
    %v9865 = vpack.c.bf16 %v9840, %v9840
    %v9866 = vpack.c.bf16 %v9841, %v9841
    %v9867 = vpack.c.bf16 %v9842, %v9842
    %v9868 = vpack.c.bf16 %v9843, %v9843
    %v9869 = vpack.c.bf16 %v9844, %v9844
    %v9870 = vpack.c.bf16 %v9845, %v9845
    %v9871 = vpack.c.bf16 %v9846, %v9846
    %v9872 = vpack.c.bf16 %v9847, %v9847
    %v9873 = vpack.c.bf16 %v9848, %v9848
    %v9874 = vpack.c.bf16 %v9849, %v9849
    %v9875 = vpack.c.bf16 %v9850, %v9850
    %v9876 = vpack.c.bf16 %v9851, %v9851
    %v9877 = vpack.c.bf16 %v9852, %v9852
    %v9878 = vpack.c.bf16 %v9853, %v9853
    %v9879 = vpack.c.bf16 %v9854, %v9854
    %v9880 = vld [vmem:[#allocation6] sm:$0xf]
    %v9881 = vld [vmem:[#allocation6 + $0x4] sm:$0xf]
    %v9882 = vld [vmem:[#allocation6 + $0x8] sm:$0xf]
    %v9883 = vld [vmem:[#allocation6 + $0xc] sm:$0xf]
    %v9884 = vld [vmem:[#allocation6 + $0x10] sm:$0xf]
    %v9885 = vld [vmem:[#allocation6 + $0x14] sm:$0xf]
    %v9886 = vld [vmem:[#allocation6 + $0x18] sm:$0xf]
    %v9887 = vld [vmem:[#allocation6 + $0x1c] sm:$0xf]
    %v9888 = vld [vmem:[#allocation6 + $0x20] sm:$0xf]
    %v9889 = vld [vmem:[#allocation6 + $0x24] sm:$0xf]
    %v9890 = vld [vmem:[#allocation6 + $0x28] sm:$0xf]
    %v9891 = vld [vmem:[#allocation6 + $0x2c] sm:$0xf]
    %v9892 = vld [vmem:[#allocation6 + $0x30] sm:$0xf]
    %v9893 = vld [vmem:[#allocation6 + $0x34] sm:$0xf]
    %v9894 = vld [vmem:[#allocation6 + $0x38] sm:$0xf]
    %v9895 = vld [vmem:[#allocation6 + $0x3c] sm:$0xf]
    %v9896 = vld [vmem:[#allocation6 + $0x40] sm:$0xf]
    %v9897 = vld [vmem:[#allocation6 + $0x44] sm:$0xf]
    %v9898 = vld [vmem:[#allocation6 + $0x48] sm:$0xf]
    %v9899 = vld [vmem:[#allocation6 + $0x4c] sm:$0xf]
    %v9900 = vld [vmem:[#allocation6 + $0x50] sm:$0xf]
    %v9901 = vld [vmem:[#allocation6 + $0x54] sm:$0xf]
    %v9902 = vld [vmem:[#allocation6 + $0x58] sm:$0xf]
    %v9903 = vld [vmem:[#allocation6 + $0x5c] sm:$0xf]
    %v9904 = vld [vmem:[#allocation6 + $0x60] sm:$0xf]
    %v9905 = vld [vmem:[#allocation6 + $0x64] sm:$0xf]
    %v9906 = vld [vmem:[#allocation6 + $0x68] sm:$0xf]
    %v9907 = vld [vmem:[#allocation6 + $0x6c] sm:$0xf]
    %v9908 = vld [vmem:[#allocation6 + $0x70] sm:$0xf]
    %v9909 = vld [vmem:[#allocation6 + $0x74] sm:$0xf]
    %v9910 = vld [vmem:[#allocation6 + $0x78] sm:$0xf]
    %v9911 = vld [vmem:[#allocation6 + $0x7c] sm:$0xf]
    %v9912 = vld [vmem:[#allocation6 + $0x80] sm:$0xf]
    %v9913 = vld [vmem:[#allocation6 + $0x84] sm:$0xf]
    %v9914 = vld [vmem:[#allocation6 + $0x88] sm:$0xf]
    %v9915 = vld [vmem:[#allocation6 + $0x8c] sm:$0xf]
    %v9916 = vld [vmem:[#allocation6 + $0x90] sm:$0xf]
    %v9917 = vld [vmem:[#allocation6 + $0x94] sm:$0xf]
    %v9918 = vld [vmem:[#allocation6 + $0x98] sm:$0xf]
    %v9919 = vld [vmem:[#allocation6 + $0x9c] sm:$0xf]
    %v9920 = vld [vmem:[#allocation6 + $0xa0] sm:$0xf]
    %v9921 = vld [vmem:[#allocation6 + $0xa4] sm:$0xf]
    %v9922 = vld [vmem:[#allocation6 + $0xa8] sm:$0xf]
    %v9923 = vld [vmem:[#allocation6 + $0xac] sm:$0xf]
    %v9924 = vld [vmem:[#allocation6 + $0xb0] sm:$0xf]
    %v9925 = vld [vmem:[#allocation6 + $0xb4] sm:$0xf]
    %v9926 = vld [vmem:[#allocation6 + $0xb8] sm:$0xf]
    %v9927 = vld [vmem:[#allocation6 + $0xbc] sm:$0xf]
    %v9928 = vld [vmem:[#allocation6 + $0xc0] sm:$0xf]
    %v9929 = vld [vmem:[#allocation6 + $0xc4] sm:$0xf]
    %v9930 = vld [vmem:[#allocation6 + $0xc8] sm:$0xf]
    %v9931 = vld [vmem:[#allocation6 + $0xcc] sm:$0xf]
    %v9932 = vld [vmem:[#allocation6 + $0xd0] sm:$0xf]
    %v9933 = vld [vmem:[#allocation6 + $0xd4] sm:$0xf]
    %v9934 = vld [vmem:[#allocation6 + $0xd8] sm:$0xf]
    %v9935 = vld [vmem:[#allocation6 + $0xdc] sm:$0xf]
    %v9936 = vld [vmem:[#allocation6 + $0xe0] sm:$0xf]
    %v9937 = vld [vmem:[#allocation6 + $0xe4] sm:$0xf]
    %v9938 = vld [vmem:[#allocation6 + $0xe8] sm:$0xf]
    %v9939 = vld [vmem:[#allocation6 + $0xec] sm:$0xf]
    %v9940 = vld [vmem:[#allocation6 + $0xf0] sm:$0xf]
    %v9941 = vld [vmem:[#allocation6 + $0xf4] sm:$0xf]
    %v9942 = vld [vmem:[#allocation6 + $0xf8] sm:$0xf]
    %v9943 = vld [vmem:[#allocation6 + $0xfc] sm:$0xf]
    %v9944 = vld [vmem:[#allocation6 + $0x100] sm:$0xf]
    %v9945 = vld [vmem:[#allocation6 + $0x104] sm:$0xf]
    %v9946 = vld [vmem:[#allocation6 + $0x108] sm:$0xf]
    %v9947 = vld [vmem:[#allocation6 + $0x10c] sm:$0xf]
    %v9948 = vld [vmem:[#allocation6 + $0x110] sm:$0xf]
    %v9949 = vld [vmem:[#allocation6 + $0x114] sm:$0xf]
    %v9950 = vld [vmem:[#allocation6 + $0x118] sm:$0xf]
    %v9951 = vld [vmem:[#allocation6 + $0x11c] sm:$0xf]
    %v9952 = vld [vmem:[#allocation6 + $0x120] sm:$0xf]
    %v9953 = vld [vmem:[#allocation6 + $0x124] sm:$0xf]
    %v9954 = vld [vmem:[#allocation6 + $0x128] sm:$0xf]
    %v9955 = vld [vmem:[#allocation6 + $0x12c] sm:$0xf]
    %v9956 = vld [vmem:[#allocation6 + $0x130] sm:$0xf]
    %v9957 = vld [vmem:[#allocation6 + $0x134] sm:$0xf]
    %v9958 = vld [vmem:[#allocation6 + $0x138] sm:$0xf]
    %v9959 = vld [vmem:[#allocation6 + $0x13c] sm:$0xf]
    %v9960 = vld [vmem:[#allocation6 + $0x140] sm:$0xf]
    %v9961 = vld [vmem:[#allocation6 + $0x144] sm:$0xf]
    %v9962 = vld [vmem:[#allocation6 + $0x148] sm:$0xf]
    %v9963 = vld [vmem:[#allocation6 + $0x14c] sm:$0xf]
    %v9964 = vld [vmem:[#allocation6 + $0x150] sm:$0xf]
    %v9965 = vld [vmem:[#allocation6 + $0x154] sm:$0xf]
    %v9966 = vld [vmem:[#allocation6 + $0x158] sm:$0xf]
    %v9967 = vld [vmem:[#allocation6 + $0x15c] sm:$0xf]
    %v9968 = vld [vmem:[#allocation6 + $0x160] sm:$0xf]
    %v9969 = vld [vmem:[#allocation6 + $0x164] sm:$0xf]
    %v9970 = vld [vmem:[#allocation6 + $0x168] sm:$0xf]
    %v9971 = vld [vmem:[#allocation6 + $0x16c] sm:$0xf]
    %v9972 = vld [vmem:[#allocation6 + $0x170] sm:$0xf]
    %v9973 = vld [vmem:[#allocation6 + $0x174] sm:$0xf]
    %v9974 = vld [vmem:[#allocation6 + $0x178] sm:$0xf]
    %v9975 = vld [vmem:[#allocation6 + $0x17c] sm:$0xf]
    %v9976 = vld [vmem:[#allocation6 + $0x180] sm:$0xf]
    %v9977 = vld [vmem:[#allocation6 + $0x184] sm:$0xf]
    %v9978 = vld [vmem:[#allocation6 + $0x188] sm:$0xf]
    %v9979 = vld [vmem:[#allocation6 + $0x18c] sm:$0xf]
    %v9980 = vld [vmem:[#allocation6 + $0x190] sm:$0xf]
    %v9981 = vld [vmem:[#allocation6 + $0x194] sm:$0xf]
    %v9982 = vld [vmem:[#allocation6 + $0x198] sm:$0xf]
    %v9983 = vld [vmem:[#allocation6 + $0x19c] sm:$0xf]
    %v9984 = vld [vmem:[#allocation6 + $0x1a0] sm:$0xf]
    %v9985 = vld [vmem:[#allocation6 + $0x1a4] sm:$0xf]
    %v9986 = vld [vmem:[#allocation6 + $0x1a8] sm:$0xf]
    %v9987 = vld [vmem:[#allocation6 + $0x1ac] sm:$0xf]
    %v9988 = vld [vmem:[#allocation6 + $0x1b0] sm:$0xf]
    %v9989 = vld [vmem:[#allocation6 + $0x1b4] sm:$0xf]
    %v9990 = vld [vmem:[#allocation6 + $0x1b8] sm:$0xf]
    %v9991 = vld [vmem:[#allocation6 + $0x1bc] sm:$0xf]
    %v9992 = vld [vmem:[#allocation6 + $0x1c0] sm:$0xf]
    %v9993 = vld [vmem:[#allocation6 + $0x1c4] sm:$0xf]
    %v9994 = vld [vmem:[#allocation6 + $0x1c8] sm:$0xf]
    %v9995 = vld [vmem:[#allocation6 + $0x1cc] sm:$0xf]
    %v9996 = vld [vmem:[#allocation6 + $0x1d0] sm:$0xf]
    %v9997 = vld [vmem:[#allocation6 + $0x1d4] sm:$0xf]
    %v9998 = vld [vmem:[#allocation6 + $0x1d8] sm:$0xf]
    %v9999 = vld [vmem:[#allocation6 + $0x1dc] sm:$0xf]
    %v10000 = vld [vmem:[#allocation6 + $0x1e0] sm:$0xf]
    %v10001 = vld [vmem:[#allocation6 + $0x1e4] sm:$0xf]
    %v10002 = vld [vmem:[#allocation6 + $0x1e8] sm:$0xf]
    %v10003 = vld [vmem:[#allocation6 + $0x1ec] sm:$0xf]
    %v10004 = vld [vmem:[#allocation6 + $0x1f0] sm:$0xf]
    %v10005 = vld [vmem:[#allocation6 + $0x1f4] sm:$0xf]
    %v10006 = vld [vmem:[#allocation6 + $0x1f8] sm:$0xf]
    %v10007 = vld [vmem:[#allocation6 + $0x1fc] sm:$0xf]
    %v10008 = vld [vmem:[#allocation6 + $0x200] sm:$0xf]
    %v10009 = vld [vmem:[#allocation6 + $0x204] sm:$0xf]
    %v10010 = vld [vmem:[#allocation6 + $0x208] sm:$0xf]
    %v10011 = vld [vmem:[#allocation6 + $0x20c] sm:$0xf]
    %v10012 = vld [vmem:[#allocation6 + $0x210] sm:$0xf]
    %v10013 = vld [vmem:[#allocation6 + $0x214] sm:$0xf]
    %v10014 = vld [vmem:[#allocation6 + $0x218] sm:$0xf]
    %v10015 = vld [vmem:[#allocation6 + $0x21c] sm:$0xf]
    %v10016 = vld [vmem:[#allocation6 + $0x220] sm:$0xf]
    %v10017 = vld [vmem:[#allocation6 + $0x224] sm:$0xf]
    %v10018 = vld [vmem:[#allocation6 + $0x228] sm:$0xf]
    %v10019 = vld [vmem:[#allocation6 + $0x22c] sm:$0xf]
    %v10020 = vld [vmem:[#allocation6 + $0x230] sm:$0xf]
    %v10021 = vld [vmem:[#allocation6 + $0x234] sm:$0xf]
    %v10022 = vld [vmem:[#allocation6 + $0x238] sm:$0xf]
    %v10023 = vld [vmem:[#allocation6 + $0x23c] sm:$0xf]
    %v10024 = vld [vmem:[#allocation6 + $0x240] sm:$0xf]
    %v10025 = vld [vmem:[#allocation6 + $0x244] sm:$0xf]
    %v10026 = vld [vmem:[#allocation6 + $0x248] sm:$0xf]
    %v10027 = vld [vmem:[#allocation6 + $0x24c] sm:$0xf]
    %v10028 = vld [vmem:[#allocation6 + $0x250] sm:$0xf]
    %v10029 = vld [vmem:[#allocation6 + $0x254] sm:$0xf]
    %v10030 = vld [vmem:[#allocation6 + $0x258] sm:$0xf]
    %v10031 = vld [vmem:[#allocation6 + $0x25c] sm:$0xf]
    %v10032 = vld [vmem:[#allocation6 + $0x260] sm:$0xf]
    %v10033 = vld [vmem:[#allocation6 + $0x264] sm:$0xf]
    %v10034 = vld [vmem:[#allocation6 + $0x268] sm:$0xf]
    %v10035 = vld [vmem:[#allocation6 + $0x26c] sm:$0xf]
    %v10036 = vld [vmem:[#allocation6 + $0x270] sm:$0xf]
    %v10037 = vld [vmem:[#allocation6 + $0x274] sm:$0xf]
    %v10038 = vld [vmem:[#allocation6 + $0x278] sm:$0xf]
    %v10039 = vld [vmem:[#allocation6 + $0x27c] sm:$0xf]
    %v10040 = vld [vmem:[#allocation6 + $0x280] sm:$0xf]
    %v10041 = vld [vmem:[#allocation6 + $0x284] sm:$0xf]
    %v10042 = vld [vmem:[#allocation6 + $0x288] sm:$0xf]
    %v10043 = vld [vmem:[#allocation6 + $0x28c] sm:$0xf]
    %v10044 = vld [vmem:[#allocation6 + $0x290] sm:$0xf]
    %v10045 = vld [vmem:[#allocation6 + $0x294] sm:$0xf]
    %v10046 = vld [vmem:[#allocation6 + $0x298] sm:$0xf]
    %v10047 = vld [vmem:[#allocation6 + $0x29c] sm:$0xf]
    %v10048 = vld [vmem:[#allocation6 + $0x2a0] sm:$0xf]
    %v10049 = vld [vmem:[#allocation6 + $0x2a4] sm:$0xf]
    %v10050 = vld [vmem:[#allocation6 + $0x2a8] sm:$0xf]
    %v10051 = vld [vmem:[#allocation6 + $0x2ac] sm:$0xf]
    %v10052 = vld [vmem:[#allocation6 + $0x2b0] sm:$0xf]
    %v10053 = vld [vmem:[#allocation6 + $0x2b4] sm:$0xf]
    %v10054 = vld [vmem:[#allocation6 + $0x2b8] sm:$0xf]
    %v10055 = vld [vmem:[#allocation6 + $0x2bc] sm:$0xf]
    %v10056 = vld [vmem:[#allocation6 + $0x2c0] sm:$0xf]
    %v10057 = vld [vmem:[#allocation6 + $0x2c4] sm:$0xf]
    %v10058 = vld [vmem:[#allocation6 + $0x2c8] sm:$0xf]
    %v10059 = vld [vmem:[#allocation6 + $0x2cc] sm:$0xf]
    %v10060 = vld [vmem:[#allocation6 + $0x2d0] sm:$0xf]
    %v10061 = vld [vmem:[#allocation6 + $0x2d4] sm:$0xf]
    %v10062 = vld [vmem:[#allocation6 + $0x2d8] sm:$0xf]
    %v10063 = vld [vmem:[#allocation6 + $0x2dc] sm:$0xf]
    %v10064 = vld [vmem:[#allocation6 + $0x2e0] sm:$0xf]
    %v10065 = vld [vmem:[#allocation6 + $0x2e4] sm:$0xf]
    %v10066 = vld [vmem:[#allocation6 + $0x2e8] sm:$0xf]
    %v10067 = vld [vmem:[#allocation6 + $0x2ec] sm:$0xf]
    %v10068 = vld [vmem:[#allocation6 + $0x2f0] sm:$0xf]
    %v10069 = vld [vmem:[#allocation6 + $0x2f4] sm:$0xf]
    %v10070 = vld [vmem:[#allocation6 + $0x2f8] sm:$0xf]
    %v10071 = vld [vmem:[#allocation6 + $0x2fc] sm:$0xf]
    %v10072 = vld [vmem:[#allocation6 + $0x300] sm:$0xf]
    %v10073 = vld [vmem:[#allocation6 + $0x304] sm:$0xf]
    %v10074 = vld [vmem:[#allocation6 + $0x308] sm:$0xf]
    %v10075 = vld [vmem:[#allocation6 + $0x30c] sm:$0xf]
    %v10076 = vld [vmem:[#allocation6 + $0x310] sm:$0xf]
    %v10077 = vld [vmem:[#allocation6 + $0x314] sm:$0xf]
    %v10078 = vld [vmem:[#allocation6 + $0x318] sm:$0xf]
    %v10079 = vld [vmem:[#allocation6 + $0x31c] sm:$0xf]
    %v10080 = vld [vmem:[#allocation6 + $0x320] sm:$0xf]
    %v10081 = vld [vmem:[#allocation6 + $0x324] sm:$0xf]
    %v10082 = vld [vmem:[#allocation6 + $0x328] sm:$0xf]
    %v10083 = vld [vmem:[#allocation6 + $0x32c] sm:$0xf]
    %v10084 = vld [vmem:[#allocation6 + $0x330] sm:$0xf]
    %v10085 = vld [vmem:[#allocation6 + $0x334] sm:$0xf]
    %v10086 = vld [vmem:[#allocation6 + $0x338] sm:$0xf]
    %v10087 = vld [vmem:[#allocation6 + $0x33c] sm:$0xf]
    %v10088 = vld [vmem:[#allocation6 + $0x340] sm:$0xf]
    %v10089 = vld [vmem:[#allocation6 + $0x344] sm:$0xf]
    %v10090 = vld [vmem:[#allocation6 + $0x348] sm:$0xf]
    %v10091 = vld [vmem:[#allocation6 + $0x34c] sm:$0xf]
    %v10092 = vld [vmem:[#allocation6 + $0x350] sm:$0xf]
    %v10093 = vld [vmem:[#allocation6 + $0x354] sm:$0xf]
    %v10094 = vld [vmem:[#allocation6 + $0x358] sm:$0xf]
    %v10095 = vld [vmem:[#allocation6 + $0x35c] sm:$0xf]
    %v10096 = vld [vmem:[#allocation6 + $0x360] sm:$0xf]
    %v10097 = vld [vmem:[#allocation6 + $0x364] sm:$0xf]
    %v10098 = vld [vmem:[#allocation6 + $0x368] sm:$0xf]
    %v10099 = vld [vmem:[#allocation6 + $0x36c] sm:$0xf]
    %v10100 = vld [vmem:[#allocation6 + $0x370] sm:$0xf]
    %v10101 = vld [vmem:[#allocation6 + $0x374] sm:$0xf]
    %v10102 = vld [vmem:[#allocation6 + $0x378] sm:$0xf]
    %v10103 = vld [vmem:[#allocation6 + $0x37c] sm:$0xf]
    %v10104 = vld [vmem:[#allocation6 + $0x380] sm:$0xf]
    %v10105 = vld [vmem:[#allocation6 + $0x384] sm:$0xf]
    %v10106 = vld [vmem:[#allocation6 + $0x388] sm:$0xf]
    %v10107 = vld [vmem:[#allocation6 + $0x38c] sm:$0xf]
    %v10108 = vld [vmem:[#allocation6 + $0x390] sm:$0xf]
    %v10109 = vld [vmem:[#allocation6 + $0x394] sm:$0xf]
    %v10110 = vld [vmem:[#allocation6 + $0x398] sm:$0xf]
    %v10111 = vld [vmem:[#allocation6 + $0x39c] sm:$0xf]
    %v10112 = vld [vmem:[#allocation6 + $0x3a0] sm:$0xf]
    %v10113 = vld [vmem:[#allocation6 + $0x3a4] sm:$0xf]
    %v10114 = vld [vmem:[#allocation6 + $0x3a8] sm:$0xf]
    %v10115 = vld [vmem:[#allocation6 + $0x3ac] sm:$0xf]
    %v10116 = vld [vmem:[#allocation6 + $0x3b0] sm:$0xf]
    %v10117 = vld [vmem:[#allocation6 + $0x3b4] sm:$0xf]
    %v10118 = vld [vmem:[#allocation6 + $0x3b8] sm:$0xf]
    %v10119 = vld [vmem:[#allocation6 + $0x3bc] sm:$0xf]
    %v10120 = vld [vmem:[#allocation6 + $0x3c0] sm:$0xf]
    %v10121 = vld [vmem:[#allocation6 + $0x3c4] sm:$0xf]
    %v10122 = vld [vmem:[#allocation6 + $0x3c8] sm:$0xf]
    %v10123 = vld [vmem:[#allocation6 + $0x3cc] sm:$0xf]
    %v10124 = vld [vmem:[#allocation6 + $0x3d0] sm:$0xf]
    %v10125 = vld [vmem:[#allocation6 + $0x3d4] sm:$0xf]
    %v10126 = vld [vmem:[#allocation6 + $0x3d8] sm:$0xf]
    %v10127 = vld [vmem:[#allocation6 + $0x3dc] sm:$0xf]
    %v10128 = vld [vmem:[#allocation6 + $0x3e0] sm:$0xf]
    %v10129 = vld [vmem:[#allocation6 + $0x3e4] sm:$0xf]
    %v10130 = vld [vmem:[#allocation6 + $0x3e8] sm:$0xf]
    %v10131 = vld [vmem:[#allocation6 + $0x3ec] sm:$0xf]
    %v10132 = vld [vmem:[#allocation6 + $0x3f0] sm:$0xf]
    %v10133 = vld [vmem:[#allocation6 + $0x3f4] sm:$0xf]
    %v10134 = vld [vmem:[#allocation6 + $0x3f8] sm:$0xf]
    %v10135 = vld [vmem:[#allocation6 + $0x3fc] sm:$0xf]
    %v10136 = vld [vmem:[#allocation6 + $0x400] sm:$0xf]
    %v10137 = vld [vmem:[#allocation6 + $0x404] sm:$0xf]
    %v10138 = vld [vmem:[#allocation6 + $0x408] sm:$0xf]
    %v10139 = vld [vmem:[#allocation6 + $0x40c] sm:$0xf]
    %v10140 = vld [vmem:[#allocation6 + $0x410] sm:$0xf]
    %v10141 = vld [vmem:[#allocation6 + $0x414] sm:$0xf]
    %v10142 = vld [vmem:[#allocation6 + $0x418] sm:$0xf]
    %v10143 = vld [vmem:[#allocation6 + $0x41c] sm:$0xf]
    %v10144 = vld [vmem:[#allocation6 + $0x420] sm:$0xf]
    %v10145 = vld [vmem:[#allocation6 + $0x424] sm:$0xf]
    %v10146 = vld [vmem:[#allocation6 + $0x428] sm:$0xf]
    %v10147 = vld [vmem:[#allocation6 + $0x42c] sm:$0xf]
    %v10148 = vld [vmem:[#allocation6 + $0x430] sm:$0xf]
    %v10149 = vld [vmem:[#allocation6 + $0x434] sm:$0xf]
    %v10150 = vld [vmem:[#allocation6 + $0x438] sm:$0xf]
    %v10151 = vld [vmem:[#allocation6 + $0x43c] sm:$0xf]
    %v10152 = vld [vmem:[#allocation6 + $0x440] sm:$0xf]
    %v10153 = vld [vmem:[#allocation6 + $0x444] sm:$0xf]
    %v10154 = vld [vmem:[#allocation6 + $0x448] sm:$0xf]
    %v10155 = vld [vmem:[#allocation6 + $0x44c] sm:$0xf]
    %v10156 = vld [vmem:[#allocation6 + $0x450] sm:$0xf]
    %v10157 = vld [vmem:[#allocation6 + $0x454] sm:$0xf]
    %v10158 = vld [vmem:[#allocation6 + $0x458] sm:$0xf]
    %v10159 = vld [vmem:[#allocation6 + $0x45c] sm:$0xf]
    %v10160 = vld [vmem:[#allocation6 + $0x460] sm:$0xf]
    %v10161 = vld [vmem:[#allocation6 + $0x464] sm:$0xf]
    %v10162 = vld [vmem:[#allocation6 + $0x468] sm:$0xf]
    %v10163 = vld [vmem:[#allocation6 + $0x46c] sm:$0xf]
    %v10164 = vld [vmem:[#allocation6 + $0x470] sm:$0xf]
    %v10165 = vld [vmem:[#allocation6 + $0x474] sm:$0xf]
    %v10166 = vld [vmem:[#allocation6 + $0x478] sm:$0xf]
    %v10167 = vld [vmem:[#allocation6 + $0x47c] sm:$0xf]
    %v10168 = vld [vmem:[#allocation6 + $0x480] sm:$0xf]
    %v10169 = vld [vmem:[#allocation6 + $0x484] sm:$0xf]
    %v10170 = vld [vmem:[#allocation6 + $0x488] sm:$0xf]
    %v10171 = vld [vmem:[#allocation6 + $0x48c] sm:$0xf]
    %v10172 = vld [vmem:[#allocation6 + $0x490] sm:$0xf]
    %v10173 = vld [vmem:[#allocation6 + $0x494] sm:$0xf]
    %v10174 = vld [vmem:[#allocation6 + $0x498] sm:$0xf]
    %v10175 = vld [vmem:[#allocation6 + $0x49c] sm:$0xf]
    %v10176 = vld [vmem:[#allocation6 + $0x4a0] sm:$0xf]
    %v10177 = vld [vmem:[#allocation6 + $0x4a4] sm:$0xf]
    %v10178 = vld [vmem:[#allocation6 + $0x4a8] sm:$0xf]
    %v10179 = vld [vmem:[#allocation6 + $0x4ac] sm:$0xf]
    %v10180 = vld [vmem:[#allocation6 + $0x4b0] sm:$0xf]
    %v10181 = vld [vmem:[#allocation6 + $0x4b4] sm:$0xf]
    %v10182 = vld [vmem:[#allocation6 + $0x4b8] sm:$0xf]
    %v10183 = vld [vmem:[#allocation6 + $0x4bc] sm:$0xf]
    %v10184 = vld [vmem:[#allocation6 + $0x4c0] sm:$0xf]
    %v10185 = vld [vmem:[#allocation6 + $0x4c4] sm:$0xf]
    %v10186 = vld [vmem:[#allocation6 + $0x4c8] sm:$0xf]
    %v10187 = vld [vmem:[#allocation6 + $0x4cc] sm:$0xf]
    %v10188 = vld [vmem:[#allocation6 + $0x4d0] sm:$0xf]
    %v10189 = vld [vmem:[#allocation6 + $0x4d4] sm:$0xf]
    %v10190 = vld [vmem:[#allocation6 + $0x4d8] sm:$0xf]
    %v10191 = vld [vmem:[#allocation6 + $0x4dc] sm:$0xf]
    %v10192 = vld [vmem:[#allocation6 + $0x4e0] sm:$0xf]
    %v10193 = vld [vmem:[#allocation6 + $0x4e4] sm:$0xf]
    %v10194 = vld [vmem:[#allocation6 + $0x4e8] sm:$0xf]
    %v10195 = vld [vmem:[#allocation6 + $0x4ec] sm:$0xf]
    %v10196 = vld [vmem:[#allocation6 + $0x4f0] sm:$0xf]
    %v10197 = vld [vmem:[#allocation6 + $0x4f4] sm:$0xf]
    %v10198 = vld [vmem:[#allocation6 + $0x4f8] sm:$0xf]
    %v10199 = vld [vmem:[#allocation6 + $0x4fc] sm:$0xf]
    %v10200 = vld [vmem:[#allocation6 + $0x500] sm:$0xf]
    %v10201 = vld [vmem:[#allocation6 + $0x504] sm:$0xf]
    %v10202 = vld [vmem:[#allocation6 + $0x508] sm:$0xf]
    %v10203 = vld [vmem:[#allocation6 + $0x50c] sm:$0xf]
    %v10204 = vld [vmem:[#allocation6 + $0x510] sm:$0xf]
    %v10205 = vld [vmem:[#allocation6 + $0x514] sm:$0xf]
    %v10206 = vld [vmem:[#allocation6 + $0x518] sm:$0xf]
    %v10207 = vld [vmem:[#allocation6 + $0x51c] sm:$0xf]
    %v10208 = vld [vmem:[#allocation6 + $0x520] sm:$0xf]
    %v10209 = vld [vmem:[#allocation6 + $0x524] sm:$0xf]
    %v10210 = vld [vmem:[#allocation6 + $0x528] sm:$0xf]
    %v10211 = vld [vmem:[#allocation6 + $0x52c] sm:$0xf]
    %v10212 = vld [vmem:[#allocation6 + $0x530] sm:$0xf]
    %v10213 = vld [vmem:[#allocation6 + $0x534] sm:$0xf]
    %v10214 = vld [vmem:[#allocation6 + $0x538] sm:$0xf]
    %v10215 = vld [vmem:[#allocation6 + $0x53c] sm:$0xf]
    %v10216 = vld [vmem:[#allocation6 + $0x540] sm:$0xf]
    %v10217 = vld [vmem:[#allocation6 + $0x544] sm:$0xf]
    %v10218 = vld [vmem:[#allocation6 + $0x548] sm:$0xf]
    %v10219 = vld [vmem:[#allocation6 + $0x54c] sm:$0xf]
    %v10220 = vld [vmem:[#allocation6 + $0x550] sm:$0xf]
    %v10221 = vld [vmem:[#allocation6 + $0x554] sm:$0xf]
    %v10222 = vld [vmem:[#allocation6 + $0x558] sm:$0xf]
    %v10223 = vld [vmem:[#allocation6 + $0x55c] sm:$0xf]
    %v10224 = vld [vmem:[#allocation6 + $0x560] sm:$0xf]
    %v10225 = vld [vmem:[#allocation6 + $0x564] sm:$0xf]
    %v10226 = vld [vmem:[#allocation6 + $0x568] sm:$0xf]
    %v10227 = vld [vmem:[#allocation6 + $0x56c] sm:$0xf]
    %v10228 = vld [vmem:[#allocation6 + $0x570] sm:$0xf]
    %v10229 = vld [vmem:[#allocation6 + $0x574] sm:$0xf]
    %v10230 = vld [vmem:[#allocation6 + $0x578] sm:$0xf]
    %v10231 = vld [vmem:[#allocation6 + $0x57c] sm:$0xf]
    %v10232 = vld [vmem:[#allocation6 + $0x580] sm:$0xf]
    %v10233 = vld [vmem:[#allocation6 + $0x584] sm:$0xf]
    %v10234 = vld [vmem:[#allocation6 + $0x588] sm:$0xf]
    %v10235 = vld [vmem:[#allocation6 + $0x58c] sm:$0xf]
    %v10236 = vld [vmem:[#allocation6 + $0x590] sm:$0xf]
    %v10237 = vld [vmem:[#allocation6 + $0x594] sm:$0xf]
    %v10238 = vld [vmem:[#allocation6 + $0x598] sm:$0xf]
    %v10239 = vld [vmem:[#allocation6 + $0x59c] sm:$0xf]
    %v10240 = vld [vmem:[#allocation6 + $0x5a0] sm:$0xf]
    %v10241 = vld [vmem:[#allocation6 + $0x5a4] sm:$0xf]
    %v10242 = vld [vmem:[#allocation6 + $0x5a8] sm:$0xf]
    %v10243 = vld [vmem:[#allocation6 + $0x5ac] sm:$0xf]
    %v10244 = vld [vmem:[#allocation6 + $0x5b0] sm:$0xf]
    %v10245 = vld [vmem:[#allocation6 + $0x5b4] sm:$0xf]
    %v10246 = vld [vmem:[#allocation6 + $0x5b8] sm:$0xf]
    %v10247 = vld [vmem:[#allocation6 + $0x5bc] sm:$0xf]
    %v10248 = vld [vmem:[#allocation6 + $0x5c0] sm:$0xf]
    %v10249 = vld [vmem:[#allocation6 + $0x5c4] sm:$0xf]
    %v10250 = vld [vmem:[#allocation6 + $0x5c8] sm:$0xf]
    %v10251 = vld [vmem:[#allocation6 + $0x5cc] sm:$0xf]
    %v10252 = vld [vmem:[#allocation6 + $0x5d0] sm:$0xf]
    %v10253 = vld [vmem:[#allocation6 + $0x5d4] sm:$0xf]
    %v10254 = vld [vmem:[#allocation6 + $0x5d8] sm:$0xf]
    %v10255 = vld [vmem:[#allocation6 + $0x5dc] sm:$0xf]
    %v10256 = vld [vmem:[#allocation6 + $0x5e0] sm:$0xf]
    %v10257 = vld [vmem:[#allocation6 + $0x5e4] sm:$0xf]
    %v10258 = vld [vmem:[#allocation6 + $0x5e8] sm:$0xf]
    %v10259 = vld [vmem:[#allocation6 + $0x5ec] sm:$0xf]
    %v10260 = vld [vmem:[#allocation6 + $0x5f0] sm:$0xf]
    %v10261 = vld [vmem:[#allocation6 + $0x5f4] sm:$0xf]
    %v10262 = vld [vmem:[#allocation6 + $0x5f8] sm:$0xf]
    %v10263 = vld [vmem:[#allocation6 + $0x5fc] sm:$0xf]
    %v10264 = vld [vmem:[#allocation6 + $0x600] sm:$0xf]
    %v10265 = vld [vmem:[#allocation6 + $0x604] sm:$0xf]
    %v10266 = vld [vmem:[#allocation6 + $0x608] sm:$0xf]
    %v10267 = vld [vmem:[#allocation6 + $0x60c] sm:$0xf]
    %v10268 = vld [vmem:[#allocation6 + $0x610] sm:$0xf]
    %v10269 = vld [vmem:[#allocation6 + $0x614] sm:$0xf]
    %v10270 = vld [vmem:[#allocation6 + $0x618] sm:$0xf]
    %v10271 = vld [vmem:[#allocation6 + $0x61c] sm:$0xf]
    %v10272 = vld [vmem:[#allocation6 + $0x620] sm:$0xf]
    %v10273 = vld [vmem:[#allocation6 + $0x624] sm:$0xf]
    %v10274 = vld [vmem:[#allocation6 + $0x628] sm:$0xf]
    %v10275 = vld [vmem:[#allocation6 + $0x62c] sm:$0xf]
    %v10276 = vld [vmem:[#allocation6 + $0x630] sm:$0xf]
    %v10277 = vld [vmem:[#allocation6 + $0x634] sm:$0xf]
    %v10278 = vld [vmem:[#allocation6 + $0x638] sm:$0xf]
    %v10279 = vld [vmem:[#allocation6 + $0x63c] sm:$0xf]
    %v10280 = vld [vmem:[#allocation7] sm:$0x1]
    %v10282 = vlaneseq
    %v10283 = vshrl.u32 %v10282, 7
    %v10284 = vsub.s32 0, %v10283
    %v10285 = vrot.slane %v10280, %v10284
    %v10687 = vunpack.c.l.b16 %v9880
    %v10688 = vunpack.c.l.b16 %v9881
    %v10689 = vunpack.c.l.b16 %v9882
    %v10690 = vunpack.c.l.b16 %v9883
    %v10691 = vunpack.c.l.b16 %v9884
    %v10692 = vunpack.c.l.b16 %v9885
    %v10693 = vunpack.c.l.b16 %v9886
    %v10694 = vunpack.c.l.b16 %v9887
    %v10695 = vunpack.c.l.b16 %v9888
    %v10696 = vunpack.c.l.b16 %v9889
    %v10697 = vunpack.c.l.b16 %v9890
    %v10698 = vunpack.c.l.b16 %v9891
    %v10699 = vunpack.c.l.b16 %v9892
    %v10700 = vunpack.c.l.b16 %v9893
    %v10701 = vunpack.c.l.b16 %v9894
    %v10702 = vunpack.c.l.b16 %v9895
    %v10703 = vunpack.c.l.b16 %v9896
    %v10704 = vunpack.c.l.b16 %v9897
    %v10705 = vunpack.c.l.b16 %v9898
    %v10706 = vunpack.c.l.b16 %v9899
    %v10707 = vunpack.c.l.b16 %v9900
    %v10708 = vunpack.c.l.b16 %v9901
    %v10709 = vunpack.c.l.b16 %v9902
    %v10710 = vunpack.c.l.b16 %v9903
    %v10711 = vunpack.c.l.b16 %v9904
    %v10712 = vunpack.c.l.b16 %v9905
    %v10713 = vunpack.c.l.b16 %v9906
    %v10714 = vunpack.c.l.b16 %v9907
    %v10715 = vunpack.c.l.b16 %v9908
    %v10716 = vunpack.c.l.b16 %v9909
    %v10717 = vunpack.c.l.b16 %v9910
    %v10718 = vunpack.c.l.b16 %v9911
    %v10719 = vunpack.c.l.b16 %v9912
    %v10720 = vunpack.c.l.b16 %v9913
    %v10721 = vunpack.c.l.b16 %v9914
    %v10722 = vunpack.c.l.b16 %v9915
    %v10723 = vunpack.c.l.b16 %v9916
    %v10724 = vunpack.c.l.b16 %v9917
    %v10725 = vunpack.c.l.b16 %v9918
    %v10726 = vunpack.c.l.b16 %v9919
    %v10727 = vunpack.c.l.b16 %v9920
    %v10728 = vunpack.c.l.b16 %v9921
    %v10729 = vunpack.c.l.b16 %v9922
    %v10730 = vunpack.c.l.b16 %v9923
    %v10731 = vunpack.c.l.b16 %v9924
    %v10732 = vunpack.c.l.b16 %v9925
    %v10733 = vunpack.c.l.b16 %v9926
    %v10734 = vunpack.c.l.b16 %v9927
    %v10735 = vunpack.c.l.b16 %v9928
    %v10736 = vunpack.c.l.b16 %v9929
    %v10737 = vunpack.c.l.b16 %v9930
    %v10738 = vunpack.c.l.b16 %v9931
    %v10739 = vunpack.c.l.b16 %v9932
    %v10740 = vunpack.c.l.b16 %v9933
    %v10741 = vunpack.c.l.b16 %v9934
    %v10742 = vunpack.c.l.b16 %v9935
    %v10743 = vunpack.c.l.b16 %v9936
    %v10744 = vunpack.c.l.b16 %v9937
    %v10745 = vunpack.c.l.b16 %v9938
    %v10746 = vunpack.c.l.b16 %v9939
    %v10747 = vunpack.c.l.b16 %v9940
    %v10748 = vunpack.c.l.b16 %v9941
    %v10749 = vunpack.c.l.b16 %v9942
    %v10750 = vunpack.c.l.b16 %v9943
    %v10751 = vunpack.c.l.b16 %v9944
    %v10752 = vunpack.c.l.b16 %v9945
    %v10753 = vunpack.c.l.b16 %v9946
    %v10754 = vunpack.c.l.b16 %v9947
    %v10755 = vunpack.c.l.b16 %v9948
    %v10756 = vunpack.c.l.b16 %v9949
    %v10757 = vunpack.c.l.b16 %v9950
    %v10758 = vunpack.c.l.b16 %v9951
    %v10759 = vunpack.c.l.b16 %v9952
    %v10760 = vunpack.c.l.b16 %v9953
    %v10761 = vunpack.c.l.b16 %v9954
    %v10762 = vunpack.c.l.b16 %v9955
    %v10763 = vunpack.c.l.b16 %v9956
    %v10764 = vunpack.c.l.b16 %v9957
    %v10765 = vunpack.c.l.b16 %v9958
    %v10766 = vunpack.c.l.b16 %v9959
    %v10767 = vunpack.c.l.b16 %v9960
    %v10768 = vunpack.c.l.b16 %v9961
    %v10769 = vunpack.c.l.b16 %v9962
    %v10770 = vunpack.c.l.b16 %v9963
    %v10771 = vunpack.c.l.b16 %v9964
    %v10772 = vunpack.c.l.b16 %v9965
    %v10773 = vunpack.c.l.b16 %v9966
    %v10774 = vunpack.c.l.b16 %v9967
    %v10775 = vunpack.c.l.b16 %v9968
    %v10776 = vunpack.c.l.b16 %v9969
    %v10777 = vunpack.c.l.b16 %v9970
    %v10778 = vunpack.c.l.b16 %v9971
    %v10779 = vunpack.c.l.b16 %v9972
    %v10780 = vunpack.c.l.b16 %v9973
    %v10781 = vunpack.c.l.b16 %v9974
    %v10782 = vunpack.c.l.b16 %v9975
    %v10783 = vunpack.c.l.b16 %v9976
    %v10784 = vunpack.c.l.b16 %v9977
    %v10785 = vunpack.c.l.b16 %v9978
    %v10786 = vunpack.c.l.b16 %v9979
    %v10787 = vunpack.c.l.b16 %v9980
    %v10788 = vunpack.c.l.b16 %v9981
    %v10789 = vunpack.c.l.b16 %v9982
    %v10790 = vunpack.c.l.b16 %v9983
    %v10791 = vunpack.c.l.b16 %v9984
    %v10792 = vunpack.c.l.b16 %v9985
    %v10793 = vunpack.c.l.b16 %v9986
    %v10794 = vunpack.c.l.b16 %v9987
    %v10795 = vunpack.c.l.b16 %v9988
    %v10796 = vunpack.c.l.b16 %v9989
    %v10797 = vunpack.c.l.b16 %v9990
    %v10798 = vunpack.c.l.b16 %v9991
    %v10799 = vunpack.c.l.b16 %v9992
    %v10800 = vunpack.c.l.b16 %v9993
    %v10801 = vunpack.c.l.b16 %v9994
    %v10802 = vunpack.c.l.b16 %v9995
    %v10803 = vunpack.c.l.b16 %v9996
    %v10804 = vunpack.c.l.b16 %v9997
    %v10805 = vunpack.c.l.b16 %v9998
    %v10806 = vunpack.c.l.b16 %v9999
    %v10807 = vunpack.c.l.b16 %v10000
    %v10808 = vunpack.c.l.b16 %v10001
    %v10809 = vunpack.c.l.b16 %v10002
    %v10810 = vunpack.c.l.b16 %v10003
    %v10811 = vunpack.c.l.b16 %v10004
    %v10812 = vunpack.c.l.b16 %v10005
    %v10813 = vunpack.c.l.b16 %v10006
    %v10814 = vunpack.c.l.b16 %v10007
    %v10815 = vunpack.c.l.b16 %v10008
    %v10816 = vunpack.c.l.b16 %v10009
    %v10817 = vunpack.c.l.b16 %v10010
    %v10818 = vunpack.c.l.b16 %v10011
    %v10819 = vunpack.c.l.b16 %v10012
    %v10820 = vunpack.c.l.b16 %v10013
    %v10821 = vunpack.c.l.b16 %v10014
    %v10822 = vunpack.c.l.b16 %v10015
    %v10823 = vunpack.c.l.b16 %v10016
    %v10824 = vunpack.c.l.b16 %v10017
    %v10825 = vunpack.c.l.b16 %v10018
    %v10826 = vunpack.c.l.b16 %v10019
    %v10827 = vunpack.c.l.b16 %v10020
    %v10828 = vunpack.c.l.b16 %v10021
    %v10829 = vunpack.c.l.b16 %v10022
    %v10830 = vunpack.c.l.b16 %v10023
    %v10831 = vunpack.c.l.b16 %v10024
    %v10832 = vunpack.c.l.b16 %v10025
    %v10833 = vunpack.c.l.b16 %v10026
    %v10834 = vunpack.c.l.b16 %v10027
    %v10835 = vunpack.c.l.b16 %v10028
    %v10836 = vunpack.c.l.b16 %v10029
    %v10837 = vunpack.c.l.b16 %v10030
    %v10838 = vunpack.c.l.b16 %v10031
    %v10839 = vunpack.c.l.b16 %v10032
    %v10840 = vunpack.c.l.b16 %v10033
    %v10841 = vunpack.c.l.b16 %v10034
    %v10842 = vunpack.c.l.b16 %v10035
    %v10843 = vunpack.c.l.b16 %v10036
    %v10844 = vunpack.c.l.b16 %v10037
    %v10845 = vunpack.c.l.b16 %v10038
    %v10846 = vunpack.c.l.b16 %v10039
    %v10847 = vunpack.c.l.b16 %v10040
    %v10848 = vunpack.c.l.b16 %v10041
    %v10849 = vunpack.c.l.b16 %v10042
    %v10850 = vunpack.c.l.b16 %v10043
    %v10851 = vunpack.c.l.b16 %v10044
    %v10852 = vunpack.c.l.b16 %v10045
    %v10853 = vunpack.c.l.b16 %v10046
    %v10854 = vunpack.c.l.b16 %v10047
    %v10855 = vunpack.c.l.b16 %v10048
    %v10856 = vunpack.c.l.b16 %v10049
    %v10857 = vunpack.c.l.b16 %v10050
    %v10858 = vunpack.c.l.b16 %v10051
    %v10859 = vunpack.c.l.b16 %v10052
    %v10860 = vunpack.c.l.b16 %v10053
    %v10861 = vunpack.c.l.b16 %v10054
    %v10862 = vunpack.c.l.b16 %v10055
    %v10863 = vunpack.c.l.b16 %v10056
    %v10864 = vunpack.c.l.b16 %v10057
    %v10865 = vunpack.c.l.b16 %v10058
    %v10866 = vunpack.c.l.b16 %v10059
    %v10867 = vunpack.c.l.b16 %v10060
    %v10868 = vunpack.c.l.b16 %v10061
    %v10869 = vunpack.c.l.b16 %v10062
    %v10870 = vunpack.c.l.b16 %v10063
    %v10871 = vunpack.c.l.b16 %v10064
    %v10872 = vunpack.c.l.b16 %v10065
    %v10873 = vunpack.c.l.b16 %v10066
    %v10874 = vunpack.c.l.b16 %v10067
    %v10875 = vunpack.c.l.b16 %v10068
    %v10876 = vunpack.c.l.b16 %v10069
    %v10877 = vunpack.c.l.b16 %v10070
    %v10878 = vunpack.c.l.b16 %v10071
    %v10879 = vunpack.c.l.b16 %v10072
    %v10880 = vunpack.c.l.b16 %v10073
    %v10881 = vunpack.c.l.b16 %v10074
    %v10882 = vunpack.c.l.b16 %v10075
    %v10883 = vunpack.c.l.b16 %v10076
    %v10884 = vunpack.c.l.b16 %v10077
    %v10885 = vunpack.c.l.b16 %v10078
    %v10886 = vunpack.c.l.b16 %v10079
    %v10887 = vunpack.c.l.b16 %v10080
    %v10888 = vunpack.c.l.b16 %v10081
    %v10889 = vunpack.c.l.b16 %v10082
    %v10890 = vunpack.c.l.b16 %v10083
    %v10891 = vunpack.c.l.b16 %v10084
    %v10892 = vunpack.c.l.b16 %v10085
    %v10893 = vunpack.c.l.b16 %v10086
    %v10894 = vunpack.c.l.b16 %v10087
    %v10895 = vunpack.c.l.b16 %v10088
    %v10896 = vunpack.c.l.b16 %v10089
    %v10897 = vunpack.c.l.b16 %v10090
    %v10898 = vunpack.c.l.b16 %v10091
    %v10899 = vunpack.c.l.b16 %v10092
    %v10900 = vunpack.c.l.b16 %v10093
    %v10901 = vunpack.c.l.b16 %v10094
    %v10902 = vunpack.c.l.b16 %v10095
    %v10903 = vunpack.c.l.b16 %v10096
    %v10904 = vunpack.c.l.b16 %v10097
    %v10905 = vunpack.c.l.b16 %v10098
    %v10906 = vunpack.c.l.b16 %v10099
    %v10907 = vunpack.c.l.b16 %v10100
    %v10908 = vunpack.c.l.b16 %v10101
    %v10909 = vunpack.c.l.b16 %v10102
    %v10910 = vunpack.c.l.b16 %v10103
    %v10911 = vunpack.c.l.b16 %v10104
    %v10912 = vunpack.c.l.b16 %v10105
    %v10913 = vunpack.c.l.b16 %v10106
    %v10914 = vunpack.c.l.b16 %v10107
    %v10915 = vunpack.c.l.b16 %v10108
    %v10916 = vunpack.c.l.b16 %v10109
    %v10917 = vunpack.c.l.b16 %v10110
    %v10918 = vunpack.c.l.b16 %v10111
    %v10919 = vunpack.c.l.b16 %v10112
    %v10920 = vunpack.c.l.b16 %v10113
    %v10921 = vunpack.c.l.b16 %v10114
    %v10922 = vunpack.c.l.b16 %v10115
    %v10923 = vunpack.c.l.b16 %v10116
    %v10924 = vunpack.c.l.b16 %v10117
    %v10925 = vunpack.c.l.b16 %v10118
    %v10926 = vunpack.c.l.b16 %v10119
    %v10927 = vunpack.c.l.b16 %v10120
    %v10928 = vunpack.c.l.b16 %v10121
    %v10929 = vunpack.c.l.b16 %v10122
    %v10930 = vunpack.c.l.b16 %v10123
    %v10931 = vunpack.c.l.b16 %v10124
    %v10932 = vunpack.c.l.b16 %v10125
    %v10933 = vunpack.c.l.b16 %v10126
    %v10934 = vunpack.c.l.b16 %v10127
    %v10935 = vunpack.c.l.b16 %v10128
    %v10936 = vunpack.c.l.b16 %v10129
    %v10937 = vunpack.c.l.b16 %v10130
    %v10938 = vunpack.c.l.b16 %v10131
    %v10939 = vunpack.c.l.b16 %v10132
    %v10940 = vunpack.c.l.b16 %v10133
    %v10941 = vunpack.c.l.b16 %v10134
    %v10942 = vunpack.c.l.b16 %v10135
    %v10943 = vunpack.c.l.b16 %v10136
    %v10944 = vunpack.c.l.b16 %v10137
    %v10945 = vunpack.c.l.b16 %v10138
    %v10946 = vunpack.c.l.b16 %v10139
    %v10947 = vunpack.c.l.b16 %v10140
    %v10948 = vunpack.c.l.b16 %v10141
    %v10949 = vunpack.c.l.b16 %v10142
    %v10950 = vunpack.c.l.b16 %v10143
    %v10951 = vunpack.c.l.b16 %v10144
    %v10952 = vunpack.c.l.b16 %v10145
    %v10953 = vunpack.c.l.b16 %v10146
    %v10954 = vunpack.c.l.b16 %v10147
    %v10955 = vunpack.c.l.b16 %v10148
    %v10956 = vunpack.c.l.b16 %v10149
    %v10957 = vunpack.c.l.b16 %v10150
    %v10958 = vunpack.c.l.b16 %v10151
    %v10959 = vunpack.c.l.b16 %v10152
    %v10960 = vunpack.c.l.b16 %v10153
    %v10961 = vunpack.c.l.b16 %v10154
    %v10962 = vunpack.c.l.b16 %v10155
    %v10963 = vunpack.c.l.b16 %v10156
    %v10964 = vunpack.c.l.b16 %v10157
    %v10965 = vunpack.c.l.b16 %v10158
    %v10966 = vunpack.c.l.b16 %v10159
    %v10967 = vunpack.c.l.b16 %v10160
    %v10968 = vunpack.c.l.b16 %v10161
    %v10969 = vunpack.c.l.b16 %v10162
    %v10970 = vunpack.c.l.b16 %v10163
    %v10971 = vunpack.c.l.b16 %v10164
    %v10972 = vunpack.c.l.b16 %v10165
    %v10973 = vunpack.c.l.b16 %v10166
    %v10974 = vunpack.c.l.b16 %v10167
    %v10975 = vunpack.c.l.b16 %v10168
    %v10976 = vunpack.c.l.b16 %v10169
    %v10977 = vunpack.c.l.b16 %v10170
    %v10978 = vunpack.c.l.b16 %v10171
    %v10979 = vunpack.c.l.b16 %v10172
    %v10980 = vunpack.c.l.b16 %v10173
    %v10981 = vunpack.c.l.b16 %v10174
    %v10982 = vunpack.c.l.b16 %v10175
    %v10983 = vunpack.c.l.b16 %v10176
    %v10984 = vunpack.c.l.b16 %v10177
    %v10985 = vunpack.c.l.b16 %v10178
    %v10986 = vunpack.c.l.b16 %v10179
    %v10987 = vunpack.c.l.b16 %v10180
    %v10988 = vunpack.c.l.b16 %v10181
    %v10989 = vunpack.c.l.b16 %v10182
    %v10990 = vunpack.c.l.b16 %v10183
    %v10991 = vunpack.c.l.b16 %v10184
    %v10992 = vunpack.c.l.b16 %v10185
    %v10993 = vunpack.c.l.b16 %v10186
    %v10994 = vunpack.c.l.b16 %v10187
    %v10995 = vunpack.c.l.b16 %v10188
    %v10996 = vunpack.c.l.b16 %v10189
    %v10997 = vunpack.c.l.b16 %v10190
    %v10998 = vunpack.c.l.b16 %v10191
    %v10999 = vunpack.c.l.b16 %v10192
    %v11000 = vunpack.c.l.b16 %v10193
    %v11001 = vunpack.c.l.b16 %v10194
    %v11002 = vunpack.c.l.b16 %v10195
    %v11003 = vunpack.c.l.b16 %v10196
    %v11004 = vunpack.c.l.b16 %v10197
    %v11005 = vunpack.c.l.b16 %v10198
    %v11006 = vunpack.c.l.b16 %v10199
    %v11007 = vunpack.c.l.b16 %v10200
    %v11008 = vunpack.c.l.b16 %v10201
    %v11009 = vunpack.c.l.b16 %v10202
    %v11010 = vunpack.c.l.b16 %v10203
    %v11011 = vunpack.c.l.b16 %v10204
    %v11012 = vunpack.c.l.b16 %v10205
    %v11013 = vunpack.c.l.b16 %v10206
    %v11014 = vunpack.c.l.b16 %v10207
    %v11015 = vunpack.c.l.b16 %v10208
    %v11016 = vunpack.c.l.b16 %v10209
    %v11017 = vunpack.c.l.b16 %v10210
    %v11018 = vunpack.c.l.b16 %v10211
    %v11019 = vunpack.c.l.b16 %v10212
    %v11020 = vunpack.c.l.b16 %v10213
    %v11021 = vunpack.c.l.b16 %v10214
    %v11022 = vunpack.c.l.b16 %v10215
    %v11023 = vunpack.c.l.b16 %v10216
    %v11024 = vunpack.c.l.b16 %v10217
    %v11025 = vunpack.c.l.b16 %v10218
    %v11026 = vunpack.c.l.b16 %v10219
    %v11027 = vunpack.c.l.b16 %v10220
    %v11028 = vunpack.c.l.b16 %v10221
    %v11029 = vunpack.c.l.b16 %v10222
    %v11030 = vunpack.c.l.b16 %v10223
    %v11031 = vunpack.c.l.b16 %v10224
    %v11032 = vunpack.c.l.b16 %v10225
    %v11033 = vunpack.c.l.b16 %v10226
    %v11034 = vunpack.c.l.b16 %v10227
    %v11035 = vunpack.c.l.b16 %v10228
    %v11036 = vunpack.c.l.b16 %v10229
    %v11037 = vunpack.c.l.b16 %v10230
    %v11038 = vunpack.c.l.b16 %v10231
    %v11039 = vunpack.c.l.b16 %v10232
    %v11040 = vunpack.c.l.b16 %v10233
    %v11041 = vunpack.c.l.b16 %v10234
    %v11042 = vunpack.c.l.b16 %v10235
    %v11043 = vunpack.c.l.b16 %v10236
    %v11044 = vunpack.c.l.b16 %v10237
    %v11045 = vunpack.c.l.b16 %v10238
    %v11046 = vunpack.c.l.b16 %v10239
    %v11047 = vunpack.c.l.b16 %v10240
    %v11048 = vunpack.c.l.b16 %v10241
    %v11049 = vunpack.c.l.b16 %v10242
    %v11050 = vunpack.c.l.b16 %v10243
    %v11051 = vunpack.c.l.b16 %v10244
    %v11052 = vunpack.c.l.b16 %v10245
    %v11053 = vunpack.c.l.b16 %v10246
    %v11054 = vunpack.c.l.b16 %v10247
    %v11055 = vunpack.c.l.b16 %v10248
    %v11056 = vunpack.c.l.b16 %v10249
    %v11057 = vunpack.c.l.b16 %v10250
    %v11058 = vunpack.c.l.b16 %v10251
    %v11059 = vunpack.c.l.b16 %v10252
    %v11060 = vunpack.c.l.b16 %v10253
    %v11061 = vunpack.c.l.b16 %v10254
    %v11062 = vunpack.c.l.b16 %v10255
    %v11063 = vunpack.c.l.b16 %v10256
    %v11064 = vunpack.c.l.b16 %v10257
    %v11065 = vunpack.c.l.b16 %v10258
    %v11066 = vunpack.c.l.b16 %v10259
    %v11067 = vunpack.c.l.b16 %v10260
    %v11068 = vunpack.c.l.b16 %v10261
    %v11069 = vunpack.c.l.b16 %v10262
    %v11070 = vunpack.c.l.b16 %v10263
    %v11071 = vunpack.c.l.b16 %v10264
    %v11072 = vunpack.c.l.b16 %v10265
    %v11073 = vunpack.c.l.b16 %v10266
    %v11074 = vunpack.c.l.b16 %v10267
    %v11075 = vunpack.c.l.b16 %v10268
    %v11076 = vunpack.c.l.b16 %v10269
    %v11077 = vunpack.c.l.b16 %v10270
    %v11078 = vunpack.c.l.b16 %v10271
    %v11079 = vunpack.c.l.b16 %v10272
    %v11080 = vunpack.c.l.b16 %v10273
    %v11081 = vunpack.c.l.b16 %v10274
    %v11082 = vunpack.c.l.b16 %v10275
    %v11083 = vunpack.c.l.b16 %v10276
    %v11084 = vunpack.c.l.b16 %v10277
    %v11085 = vunpack.c.l.b16 %v10278
    %v11086 = vunpack.c.l.b16 %v10279
    %v11087 = vpack.c.b16 %v10688, %v10687
    %v11088 = vpack.c.b16 %v10690, %v10689
    %v11089 = vpack.c.b16 %v10692, %v10691
    %v11090 = vpack.c.b16 %v10694, %v10693
    %v11091 = vpack.c.b16 %v10696, %v10695
    %v11092 = vpack.c.b16 %v10698, %v10697
    %v11093 = vpack.c.b16 %v10700, %v10699
    %v11094 = vpack.c.b16 %v10702, %v10701
    %v11095 = vpack.c.b16 %v10704, %v10703
    %v11096 = vpack.c.b16 %v10706, %v10705
    %v11097 = vpack.c.b16 %v10708, %v10707
    %v11098 = vpack.c.b16 %v10710, %v10709
    %v11099 = vpack.c.b16 %v10712, %v10711
    %v11100 = vpack.c.b16 %v10714, %v10713
    %v11101 = vpack.c.b16 %v10716, %v10715
    %v11102 = vpack.c.b16 %v10718, %v10717
    %v11103 = vpack.c.b16 %v10720, %v10719
    %v11104 = vpack.c.b16 %v10722, %v10721
    %v11105 = vpack.c.b16 %v10724, %v10723
    %v11106 = vpack.c.b16 %v10726, %v10725
    %v11107 = vpack.c.b16 %v10728, %v10727
    %v11108 = vpack.c.b16 %v10730, %v10729
    %v11109 = vpack.c.b16 %v10732, %v10731
    %v11110 = vpack.c.b16 %v10734, %v10733
    %v11111 = vpack.c.b16 %v10736, %v10735
    %v11112 = vpack.c.b16 %v10738, %v10737
    %v11113 = vpack.c.b16 %v10740, %v10739
    %v11114 = vpack.c.b16 %v10742, %v10741
    %v11115 = vpack.c.b16 %v10744, %v10743
    %v11116 = vpack.c.b16 %v10746, %v10745
    %v11117 = vpack.c.b16 %v10748, %v10747
    %v11118 = vpack.c.b16 %v10750, %v10749
    %v11119 = vpack.c.b16 %v10752, %v10751
    %v11120 = vpack.c.b16 %v10754, %v10753
    %v11121 = vpack.c.b16 %v10756, %v10755
    %v11122 = vpack.c.b16 %v10758, %v10757
    %v11123 = vpack.c.b16 %v10760, %v10759
    %v11124 = vpack.c.b16 %v10762, %v10761
    %v11125 = vpack.c.b16 %v10764, %v10763
    %v11126 = vpack.c.b16 %v10766, %v10765
    %v11127 = vpack.c.b16 %v10768, %v10767
    %v11128 = vpack.c.b16 %v10770, %v10769
    %v11129 = vpack.c.b16 %v10772, %v10771
    %v11130 = vpack.c.b16 %v10774, %v10773
    %v11131 = vpack.c.b16 %v10776, %v10775
    %v11132 = vpack.c.b16 %v10778, %v10777
    %v11133 = vpack.c.b16 %v10780, %v10779
    %v11134 = vpack.c.b16 %v10782, %v10781
    %v11135 = vpack.c.b16 %v10784, %v10783
    %v11136 = vpack.c.b16 %v10786, %v10785
    %v11137 = vpack.c.b16 %v10788, %v10787
    %v11138 = vpack.c.b16 %v10790, %v10789
    %v11139 = vpack.c.b16 %v10792, %v10791
    %v11140 = vpack.c.b16 %v10794, %v10793
    %v11141 = vpack.c.b16 %v10796, %v10795
    %v11142 = vpack.c.b16 %v10798, %v10797
    %v11143 = vpack.c.b16 %v10800, %v10799
    %v11144 = vpack.c.b16 %v10802, %v10801
    %v11145 = vpack.c.b16 %v10804, %v10803
    %v11146 = vpack.c.b16 %v10806, %v10805
    %v11147 = vpack.c.b16 %v10808, %v10807
    %v11148 = vpack.c.b16 %v10810, %v10809
    %v11149 = vpack.c.b16 %v10812, %v10811
    %v11150 = vpack.c.b16 %v10814, %v10813
    %v11151 = vpack.c.b16 %v10816, %v10815
    %v11152 = vpack.c.b16 %v10818, %v10817
    %v11153 = vpack.c.b16 %v10820, %v10819
    %v11154 = vpack.c.b16 %v10822, %v10821
    %v11155 = vpack.c.b16 %v10824, %v10823
    %v11156 = vpack.c.b16 %v10826, %v10825
    %v11157 = vpack.c.b16 %v10828, %v10827
    %v11158 = vpack.c.b16 %v10830, %v10829
    %v11159 = vpack.c.b16 %v10832, %v10831
    %v11160 = vpack.c.b16 %v10834, %v10833
    %v11161 = vpack.c.b16 %v10836, %v10835
    %v11162 = vpack.c.b16 %v10838, %v10837
    %v11163 = vpack.c.b16 %v10840, %v10839
    %v11164 = vpack.c.b16 %v10842, %v10841
    %v11165 = vpack.c.b16 %v10844, %v10843
    %v11166 = vpack.c.b16 %v10846, %v10845
    %v11167 = vpack.c.b16 %v10848, %v10847
    %v11168 = vpack.c.b16 %v10850, %v10849
    %v11169 = vpack.c.b16 %v10852, %v10851
    %v11170 = vpack.c.b16 %v10854, %v10853
    %v11171 = vpack.c.b16 %v10856, %v10855
    %v11172 = vpack.c.b16 %v10858, %v10857
    %v11173 = vpack.c.b16 %v10860, %v10859
    %v11174 = vpack.c.b16 %v10862, %v10861
    %v11175 = vpack.c.b16 %v10864, %v10863
    %v11176 = vpack.c.b16 %v10866, %v10865
    %v11177 = vpack.c.b16 %v10868, %v10867
    %v11178 = vpack.c.b16 %v10870, %v10869
    %v11179 = vpack.c.b16 %v10872, %v10871
    %v11180 = vpack.c.b16 %v10874, %v10873
    %v11181 = vpack.c.b16 %v10876, %v10875
    %v11182 = vpack.c.b16 %v10878, %v10877
    %v11183 = vpack.c.b16 %v10880, %v10879
    %v11184 = vpack.c.b16 %v10882, %v10881
    %v11185 = vpack.c.b16 %v10884, %v10883
    %v11186 = vpack.c.b16 %v10886, %v10885
    %v11187 = vpack.c.b16 %v10888, %v10887
    %v11188 = vpack.c.b16 %v10890, %v10889
    %v11189 = vpack.c.b16 %v10892, %v10891
    %v11190 = vpack.c.b16 %v10894, %v10893
    %v11191 = vpack.c.b16 %v10896, %v10895
    %v11192 = vpack.c.b16 %v10898, %v10897
    %v11193 = vpack.c.b16 %v10900, %v10899
    %v11194 = vpack.c.b16 %v10902, %v10901
    %v11195 = vpack.c.b16 %v10904, %v10903
    %v11196 = vpack.c.b16 %v10906, %v10905
    %v11197 = vpack.c.b16 %v10908, %v10907
    %v11198 = vpack.c.b16 %v10910, %v10909
    %v11199 = vpack.c.b16 %v10912, %v10911
    %v11200 = vpack.c.b16 %v10914, %v10913
    %v11201 = vpack.c.b16 %v10916, %v10915
    %v11202 = vpack.c.b16 %v10918, %v10917
    %v11203 = vpack.c.b16 %v10920, %v10919
    %v11204 = vpack.c.b16 %v10922, %v10921
    %v11205 = vpack.c.b16 %v10924, %v10923
    %v11206 = vpack.c.b16 %v10926, %v10925
    %v11207 = vpack.c.b16 %v10928, %v10927
    %v11208 = vpack.c.b16 %v10930, %v10929
    %v11209 = vpack.c.b16 %v10932, %v10931
    %v11210 = vpack.c.b16 %v10934, %v10933
    %v11211 = vpack.c.b16 %v10936, %v10935
    %v11212 = vpack.c.b16 %v10938, %v10937
    %v11213 = vpack.c.b16 %v10940, %v10939
    %v11214 = vpack.c.b16 %v10942, %v10941
    %v11215 = vpack.c.b16 %v10944, %v10943
    %v11216 = vpack.c.b16 %v10946, %v10945
    %v11217 = vpack.c.b16 %v10948, %v10947
    %v11218 = vpack.c.b16 %v10950, %v10949
    %v11219 = vpack.c.b16 %v10952, %v10951
    %v11220 = vpack.c.b16 %v10954, %v10953
    %v11221 = vpack.c.b16 %v10956, %v10955
    %v11222 = vpack.c.b16 %v10958, %v10957
    %v11223 = vpack.c.b16 %v10960, %v10959
    %v11224 = vpack.c.b16 %v10962, %v10961
    %v11225 = vpack.c.b16 %v10964, %v10963
    %v11226 = vpack.c.b16 %v10966, %v10965
    %v11227 = vpack.c.b16 %v10968, %v10967
    %v11228 = vpack.c.b16 %v10970, %v10969
    %v11229 = vpack.c.b16 %v10972, %v10971
    %v11230 = vpack.c.b16 %v10974, %v10973
    %v11231 = vpack.c.b16 %v10976, %v10975
    %v11232 = vpack.c.b16 %v10978, %v10977
    %v11233 = vpack.c.b16 %v10980, %v10979
    %v11234 = vpack.c.b16 %v10982, %v10981
    %v11235 = vpack.c.b16 %v10984, %v10983
    %v11236 = vpack.c.b16 %v10986, %v10985
    %v11237 = vpack.c.b16 %v10988, %v10987
    %v11238 = vpack.c.b16 %v10990, %v10989
    %v11239 = vpack.c.b16 %v10992, %v10991
    %v11240 = vpack.c.b16 %v10994, %v10993
    %v11241 = vpack.c.b16 %v10996, %v10995
    %v11242 = vpack.c.b16 %v10998, %v10997
    %v11243 = vpack.c.b16 %v11000, %v10999
    %v11244 = vpack.c.b16 %v11002, %v11001
    %v11245 = vpack.c.b16 %v11004, %v11003
    %v11246 = vpack.c.b16 %v11006, %v11005
    %v11247 = vpack.c.b16 %v11008, %v11007
    %v11248 = vpack.c.b16 %v11010, %v11009
    %v11249 = vpack.c.b16 %v11012, %v11011
    %v11250 = vpack.c.b16 %v11014, %v11013
    %v11251 = vpack.c.b16 %v11016, %v11015
    %v11252 = vpack.c.b16 %v11018, %v11017
    %v11253 = vpack.c.b16 %v11020, %v11019
    %v11254 = vpack.c.b16 %v11022, %v11021
    %v11255 = vpack.c.b16 %v11024, %v11023
    %v11256 = vpack.c.b16 %v11026, %v11025
    %v11257 = vpack.c.b16 %v11028, %v11027
    %v11258 = vpack.c.b16 %v11030, %v11029
    %v11259 = vpack.c.b16 %v11032, %v11031
    %v11260 = vpack.c.b16 %v11034, %v11033
    %v11261 = vpack.c.b16 %v11036, %v11035
    %v11262 = vpack.c.b16 %v11038, %v11037
    %v11263 = vpack.c.b16 %v11040, %v11039
    %v11264 = vpack.c.b16 %v11042, %v11041
    %v11265 = vpack.c.b16 %v11044, %v11043
    %v11266 = vpack.c.b16 %v11046, %v11045
    %v11267 = vpack.c.b16 %v11048, %v11047
    %v11268 = vpack.c.b16 %v11050, %v11049
    %v11269 = vpack.c.b16 %v11052, %v11051
    %v11270 = vpack.c.b16 %v11054, %v11053
    %v11271 = vpack.c.b16 %v11056, %v11055
    %v11272 = vpack.c.b16 %v11058, %v11057
    %v11273 = vpack.c.b16 %v11060, %v11059
    %v11274 = vpack.c.b16 %v11062, %v11061
    %v11275 = vpack.c.b16 %v11064, %v11063
    %v11276 = vpack.c.b16 %v11066, %v11065
    %v11277 = vpack.c.b16 %v11068, %v11067
    %v11278 = vpack.c.b16 %v11070, %v11069
    %v11279 = vpack.c.b16 %v11072, %v11071
    %v11280 = vpack.c.b16 %v11074, %v11073
    %v11281 = vpack.c.b16 %v11076, %v11075
    %v11282 = vpack.c.b16 %v11078, %v11077
    %v11283 = vpack.c.b16 %v11080, %v11079
    %v11284 = vpack.c.b16 %v11082, %v11081
    %v11285 = vpack.c.b16 %v11084, %v11083
    %v11286 = vpack.c.b16 %v11086, %v11085
    %11487 = vmatprep.subr.bf16.mxu0 0
    %11488 = vmatpush1.bf16.msra.mxu0 %v11087
    %11489 = vmatprep.subr.bf16.mxu0 0
    %11490 = vmatpush1.bf16.msra.mxu0 %v11088
    %11491 = vmatprep.subr.bf16.mxu0 0
    %11492 = vmatpush1.bf16.msra.mxu0 %v11089
    %11493 = vmatprep.subr.bf16.mxu0 0
    %11494 = vmatpush1.bf16.msra.mxu0 %v11090
    %11495 = vmatprep.subr.bf16.mxu0 0
    %11496 = vmatpush1.bf16.msra.mxu0 %v11091
    %11497 = vmatprep.subr.bf16.mxu0 0
    %11498 = vmatpush1.bf16.msra.mxu0 %v11092
    %11499 = vmatprep.subr.bf16.mxu0 0
    %11500 = vmatpush1.bf16.msra.mxu0 %v11093
    %11501 = vmatprep.subr.bf16.mxu0 0
    %11502 = vmatpush1.bf16.msra.mxu0 %v11094
    %11503 = vmatprep.subr.bf16.mxu0 0
    %11504 = vmatpush1.bf16.msra.mxu0 %v11095
    %11505 = vmatprep.subr.bf16.mxu0 0
    %11506 = vmatpush1.bf16.msra.mxu0 %v11096
    %11507 = vmatprep.subr.bf16.mxu0 0
    %11508 = vmatpush1.bf16.msra.mxu0 %v11097
    %11509 = vmatprep.subr.bf16.mxu0 0
    %11510 = vmatpush1.bf16.msra.mxu0 %v11098
    %11511 = vmatprep.subr.bf16.mxu0 0
    %11512 = vmatpush1.bf16.msra.mxu0 %v11099
    %11513 = vmatprep.subr.bf16.mxu0 0
    %11514 = vmatpush1.bf16.msra.mxu0 %v11100
    %11515 = vmatprep.subr.bf16.mxu0 0
    %11516 = vmatpush1.bf16.msra.mxu0 %v11101
    %11517 = vmatprep.subr.bf16.mxu0 0
    %11518 = vmatpush1.bf16.msra.mxu0 %v11102
    %11519 = vmatprep.mubr.bf16.mxu0 %v9856
    %11520 = vmatmul.mubr.bf16.gmra.mrb[0].mxu0 %v9855
    %v11521 = vpop.f32.mrb[0].mxu0
    %v11522 = vadd.f32 %v10285, %v11521
    %v11523 = vpop.f32.mrb[0].mxu0
    %v11524 = vpop.f32.mrb[0].mxu0
    %v11525 = vpop.f32.mrb[0].mxu0
    %11526 = vdwg.mxu0
    %11527 = vmatprep.subr.bf16.mxu0 0
    %11528 = vmatpush1.bf16.msra.mxu0 %v11103
    %11529 = vmatprep.subr.bf16.mxu0 0
    %11530 = vmatpush1.bf16.msra.mxu0 %v11104
    %11531 = vmatprep.subr.bf16.mxu0 0
    %11532 = vmatpush1.bf16.msra.mxu0 %v11105
    %11533 = vmatprep.subr.bf16.mxu0 0
    %11534 = vmatpush1.bf16.msra.mxu0 %v11106
    %11535 = vmatprep.subr.bf16.mxu0 0
    %11536 = vmatpush1.bf16.msra.mxu0 %v11107
    %11537 = vmatprep.subr.bf16.mxu0 0
    %11538 = vmatpush1.bf16.msra.mxu0 %v11108
    %11539 = vmatprep.subr.bf16.mxu0 0
    %11540 = vmatpush1.bf16.msra.mxu0 %v11109
    %11541 = vmatprep.subr.bf16.mxu0 0
    %11542 = vmatpush1.bf16.msra.mxu0 %v11110
    %11543 = vmatprep.subr.bf16.mxu0 0
    %11544 = vmatpush1.bf16.msra.mxu0 %v11111
    %11545 = vmatprep.subr.bf16.mxu0 0
    %11546 = vmatpush1.bf16.msra.mxu0 %v11112
    %11547 = vmatprep.subr.bf16.mxu0 0
    %11548 = vmatpush1.bf16.msra.mxu0 %v11113
    %11549 = vmatprep.subr.bf16.mxu0 0
    %11550 = vmatpush1.bf16.msra.mxu0 %v11114
    %11551 = vmatprep.subr.bf16.mxu0 0
    %11552 = vmatpush1.bf16.msra.mxu0 %v11115
    %11553 = vmatprep.subr.bf16.mxu0 0
    %11554 = vmatpush1.bf16.msra.mxu0 %v11116
    %11555 = vmatprep.subr.bf16.mxu0 0
    %11556 = vmatpush1.bf16.msra.mxu0 %v11117
    %11557 = vmatprep.subr.bf16.mxu0 0
    %11558 = vmatpush1.bf16.msra.mxu0 %v11118
    %11559 = vmatprep.mubr.bf16.mxu0 %v9858
    %11560 = vmatmul.mubr.bf16.gmra.mrb[0].mxu0 %v9857
    %v11561 = vpop.f32.mrb[0].mxu0
    %v11562 = vadd.f32 %v11522, %v11561
    %v11563 = vpop.f32.mrb[0].mxu0
    %v11564 = vpop.f32.mrb[0].mxu0
    %v11565 = vpop.f32.mrb[0].mxu0
    %11566 = vdwg.mxu0
    %11567 = vmatprep.subr.bf16.mxu0 0
    %11568 = vmatpush1.bf16.msra.mxu0 %v11119
    %11569 = vmatprep.subr.bf16.mxu0 0
    %11570 = vmatpush1.bf16.msra.mxu0 %v11120
    %11571 = vmatprep.subr.bf16.mxu0 0
    %11572 = vmatpush1.bf16.msra.mxu0 %v11121
    %11573 = vmatprep.subr.bf16.mxu0 0
    %11574 = vmatpush1.bf16.msra.mxu0 %v11122
    %11575 = vmatprep.subr.bf16.mxu0 0
    %11576 = vmatpush1.bf16.msra.mxu0 %v11123
    %11577 = vmatprep.subr.bf16.mxu0 0
    %11578 = vmatpush1.bf16.msra.mxu0 %v11124
    %11579 = vmatprep.subr.bf16.mxu0 0
    %11580 = vmatpush1.bf16.msra.mxu0 %v11125
    %11581 = vmatprep.subr.bf16.mxu0 0
    %11582 = vmatpush1.bf16.msra.mxu0 %v11126
    %11583 = vmatprep.subr.bf16.mxu0 0
    %11584 = vmatpush1.bf16.msra.mxu0 %v11127
    %11585 = vmatprep.subr.bf16.mxu0 0
    %11586 = vmatpush1.bf16.msra.mxu0 %v11128
    %11587 = vmatprep.subr.bf16.mxu0 0
    %11588 = vmatpush1.bf16.msra.mxu0 %v11129
    %11589 = vmatprep.subr.bf16.mxu0 0
    %11590 = vmatpush1.bf16.msra.mxu0 %v11130
    %11591 = vmatprep.subr.bf16.mxu0 0
    %11592 = vmatpush1.bf16.msra.mxu0 %v11131
    %11593 = vmatprep.subr.bf16.mxu0 0
    %11594 = vmatpush1.bf16.msra.mxu0 %v11132
    %11595 = vmatprep.subr.bf16.mxu0 0
    %11596 = vmatpush1.bf16.msra.mxu0 %v11133
    %11597 = vmatprep.subr.bf16.mxu0 0
    %11598 = vmatpush1.bf16.msra.mxu0 %v11134
    %11599 = vmatprep.mubr.bf16.mxu0 %v9860
    %11600 = vmatmul.mubr.bf16.gmra.mrb[0].mxu0 %v9859
    %v11601 = vpop.f32.mrb[0].mxu0
    %v11602 = vadd.f32 %v11562, %v11601
    %v11603 = vpop.f32.mrb[0].mxu0
    %v11604 = vpop.f32.mrb[0].mxu0
    %v11605 = vpop.f32.mrb[0].mxu0
    %11606 = vdwg.mxu0
    %11607 = vmatprep.subr.bf16.mxu0 0
    %11608 = vmatpush1.bf16.msra.mxu0 %v11135
    %11609 = vmatprep.subr.bf16.mxu0 0
    %11610 = vmatpush1.bf16.msra.mxu0 %v11136
    %11611 = vmatprep.subr.bf16.mxu0 0
    %11612 = vmatpush1.bf16.msra.mxu0 %v11137
    %11613 = vmatprep.subr.bf16.mxu0 0
    %11614 = vmatpush1.bf16.msra.mxu0 %v11138
    %11615 = vmatprep.subr.bf16.mxu0 0
    %11616 = vmatpush1.bf16.msra.mxu0 %v11139
    %11617 = vmatprep.subr.bf16.mxu0 0
    %11618 = vmatpush1.bf16.msra.mxu0 %v11140
    %11619 = vmatprep.subr.bf16.mxu0 0
    %11620 = vmatpush1.bf16.msra.mxu0 %v11141
    %11621 = vmatprep.subr.bf16.mxu0 0
    %11622 = vmatpush1.bf16.msra.mxu0 %v11142
    %11623 = vmatprep.subr.bf16.mxu0 0
    %11624 = vmatpush1.bf16.msra.mxu0 %v11143
    %11625 = vmatprep.subr.bf16.mxu0 0
    %11626 = vmatpush1.bf16.msra.mxu0 %v11144
    %11627 = vmatprep.subr.bf16.mxu0 0
    %11628 = vmatpush1.bf16.msra.mxu0 %v11145
    %11629 = vmatprep.subr.bf16.mxu0 0
    %11630 = vmatpush1.bf16.msra.mxu0 %v11146
    %11631 = vmatprep.subr.bf16.mxu0 0
    %11632 = vmatpush1.bf16.msra.mxu0 %v11147
    %11633 = vmatprep.subr.bf16.mxu0 0
    %11634 = vmatpush1.bf16.msra.mxu0 %v11148
    %11635 = vmatprep.subr.bf16.mxu0 0
    %11636 = vmatpush1.bf16.msra.mxu0 %v11149
    %11637 = vmatprep.subr.bf16.mxu0 0
    %11638 = vmatpush1.bf16.msra.mxu0 %v11150
    %11639 = vmatprep.mubr.bf16.mxu0 %v9862
    %11640 = vmatmul.mubr.bf16.gmra.mrb[0].mxu0 %v9861
    %v11641 = vpop.f32.mrb[0].mxu0
    %v11642 = vadd.f32 %v11602, %v11641
    %v11643 = vpop.f32.mrb[0].mxu0
    %v11644 = vpop.f32.mrb[0].mxu0
    %v11645 = vpop.f32.mrb[0].mxu0
    %11646 = vdwg.mxu0
    %11647 = vmatprep.subr.bf16.mxu0 0
    %11648 = vmatpush1.bf16.msra.mxu0 %v11151
    %11649 = vmatprep.subr.bf16.mxu0 0
    %11650 = vmatpush1.bf16.msra.mxu0 %v11152
    %11651 = vmatprep.subr.bf16.mxu0 0
    %11652 = vmatpush1.bf16.msra.mxu0 %v11153
    %11653 = vmatprep.subr.bf16.mxu0 0
    %11654 = vmatpush1.bf16.msra.mxu0 %v11154
    %11655 = vmatprep.subr.bf16.mxu0 0
    %11656 = vmatpush1.bf16.msra.mxu0 %v11155
    %11657 = vmatprep.subr.bf16.mxu0 0
    %11658 = vmatpush1.bf16.msra.mxu0 %v11156
    %11659 = vmatprep.subr.bf16.mxu0 0
    %11660 = vmatpush1.bf16.msra.mxu0 %v11157
    %11661 = vmatprep.subr.bf16.mxu0 0
    %11662 = vmatpush1.bf16.msra.mxu0 %v11158
    %11663 = vmatprep.subr.bf16.mxu0 0
    %11664 = vmatpush1.bf16.msra.mxu0 %v11159
    %11665 = vmatprep.subr.bf16.mxu0 0
    %11666 = vmatpush1.bf16.msra.mxu0 %v11160
    %11667 = vmatprep.subr.bf16.mxu0 0
    %11668 = vmatpush1.bf16.msra.mxu0 %v11161
    %11669 = vmatprep.subr.bf16.mxu0 0
    %11670 = vmatpush1.bf16.msra.mxu0 %v11162
    %11671 = vmatprep.subr.bf16.mxu0 0
    %11672 = vmatpush1.bf16.msra.mxu0 %v11163
    %11673 = vmatprep.subr.bf16.mxu0 0
    %11674 = vmatpush1.bf16.msra.mxu0 %v11164
    %11675 = vmatprep.subr.bf16.mxu0 0
    %11676 = vmatpush1.bf16.msra.mxu0 %v11165
    %11677 = vmatprep.subr.bf16.mxu0 0
    %11678 = vmatpush1.bf16.msra.mxu0 %v11166
    %11679 = vmatprep.mubr.bf16.mxu0 %v9864
    %11680 = vmatmul.mubr.bf16.gmra.mrb[0].mxu0 %v9863
    %v11681 = vpop.f32.mrb[0].mxu0
    %v11682 = vadd.f32 %v11642, %v11681
    %v11683 = vpop.f32.mrb[0].mxu0
    %v11684 = vpop.f32.mrb[0].mxu0
    %v11685 = vpop.f32.mrb[0].mxu0
    %11686 = vdwg.mxu0
    %11687 = vmatprep.subr.bf16.mxu0 0
    %11688 = vmatpush1.bf16.msra.mxu0 %v11167
    %11689 = vmatprep.subr.bf16.mxu0 0
    %11690 = vmatpush1.bf16.msra.mxu0 %v11168
    %11691 = vmatprep.subr.bf16.mxu0 0
    %11692 = vmatpush1.bf16.msra.mxu0 %v11169
    %11693 = vmatprep.subr.bf16.mxu0 0
    %11694 = vmatpush1.bf16.msra.mxu0 %v11170
    %11695 = vmatprep.subr.bf16.mxu0 0
    %11696 = vmatpush1.bf16.msra.mxu0 %v11171
    %11697 = vmatprep.subr.bf16.mxu0 0
    %11698 = vmatpush1.bf16.msra.mxu0 %v11172
    %11699 = vmatprep.subr.bf16.mxu0 0
    %11700 = vmatpush1.bf16.msra.mxu0 %v11173
    %11701 = vmatprep.subr.bf16.mxu0 0
    %11702 = vmatpush1.bf16.msra.mxu0 %v11174
    %11703 = vmatprep.subr.bf16.mxu0 0
    %11704 = vmatpush1.bf16.msra.mxu0 %v11175
    %11705 = vmatprep.subr.bf16.mxu0 0
    %11706 = vmatpush1.bf16.msra.mxu0 %v11176
    %11707 = vmatprep.subr.bf16.mxu0 0
    %11708 = vmatpush1.bf16.msra.mxu0 %v11177
    %11709 = vmatprep.subr.bf16.mxu0 0
    %11710 = vmatpush1.bf16.msra.mxu0 %v11178
    %11711 = vmatprep.subr.bf16.mxu0 0
    %11712 = vmatpush1.bf16.msra.mxu0 %v11179
    %11713 = vmatprep.subr.bf16.mxu0 0
    %11714 = vmatpush1.bf16.msra.mxu0 %v11180
    %11715 = vmatprep.subr.bf16.mxu0 0
    %11716 = vmatpush1.bf16.msra.mxu0 %v11181
    %11717 = vmatprep.subr.bf16.mxu0 0
    %11718 = vmatpush1.bf16.msra.mxu0 %v11182
    %11719 = vmatprep.mubr.bf16.mxu0 %v9866
    %11720 = vmatmul.mubr.bf16.gmra.mrb[0].mxu0 %v9865
    %v11721 = vpop.f32.mrb[0].mxu0
    %v11722 = vadd.f32 %v11682, %v11721
    %v11723 = vpop.f32.mrb[0].mxu0
    %v11724 = vpop.f32.mrb[0].mxu0
    %v11725 = vpop.f32.mrb[0].mxu0
    %11726 = vdwg.mxu0
    %11727 = vmatprep.subr.bf16.mxu0 0
    %11728 = vmatpush1.bf16.msra.mxu0 %v11183
    %11729 = vmatprep.subr.bf16.mxu0 0
    %11730 = vmatpush1.bf16.msra.mxu0 %v11184
    %11731 = vmatprep.subr.bf16.mxu0 0
    %11732 = vmatpush1.bf16.msra.mxu0 %v11185
    %11733 = vmatprep.subr.bf16.mxu0 0
    %11734 = vmatpush1.bf16.msra.mxu0 %v11186
    %11735 = vmatprep.subr.bf16.mxu0 0
    %11736 = vmatpush1.bf16.msra.mxu0 %v11187
    %11737 = vmatprep.subr.bf16.mxu0 0
    %11738 = vmatpush1.bf16.msra.mxu0 %v11188
    %11739 = vmatprep.subr.bf16.mxu0 0
    %11740 = vmatpush1.bf16.msra.mxu0 %v11189
    %11741 = vmatprep.subr.bf16.mxu0 0
    %11742 = vmatpush1.bf16.msra.mxu0 %v11190
    %11743 = vmatprep.subr.bf16.mxu0 0
    %11744 = vmatpush1.bf16.msra.mxu0 %v11191
    %11745 = vmatprep.subr.bf16.mxu0 0
    %11746 = vmatpush1.bf16.msra.mxu0 %v11192
    %11747 = vmatprep.subr.bf16.mxu0 0
    %11748 = vmatpush1.bf16.msra.mxu0 %v11193
    %11749 = vmatprep.subr.bf16.mxu0 0
    %11750 = vmatpush1.bf16.msra.mxu0 %v11194
    %11751 = vmatprep.subr.bf16.mxu0 0
    %11752 = vmatpush1.bf16.msra.mxu0 %v11195
    %11753 = vmatprep.subr.bf16.mxu0 0
    %11754 = vmatpush1.bf16.msra.mxu0 %v11196
    %11755 = vmatprep.subr.bf16.mxu0 0
    %11756 = vmatpush1.bf16.msra.mxu0 %v11197
    %11757 = vmatprep.subr.bf16.mxu0 0
    %11758 = vmatpush1.bf16.msra.mxu0 %v11198
    %11759 = vmatprep.mubr.bf16.mxu0 %v9868
    %11760 = vmatmul.mubr.bf16.gmra.mrb[0].mxu0 %v9867
    %v11761 = vpop.f32.mrb[0].mxu0
    %v11762 = vadd.f32 %v11722, %v11761
    %v11763 = vpop.f32.mrb[0].mxu0
    %v11764 = vpop.f32.mrb[0].mxu0
    %v11765 = vpop.f32.mrb[0].mxu0
    %11766 = vdwg.mxu0
    %11767 = vmatprep.subr.bf16.mxu0 0
    %11768 = vmatpush1.bf16.msra.mxu0 %v11199
    %11769 = vmatprep.subr.bf16.mxu0 0
    %11770 = vmatpush1.bf16.msra.mxu0 %v11200
    %11771 = vmatprep.subr.bf16.mxu0 0
    %11772 = vmatpush1.bf16.msra.mxu0 %v11201
    %11773 = vmatprep.subr.bf16.mxu0 0
    %11774 = vmatpush1.bf16.msra.mxu0 %v11202
    %11775 = vmatprep.subr.bf16.mxu0 0
    %11776 = vmatpush1.bf16.msra.mxu0 %v11203
    %11777 = vmatprep.subr.bf16.mxu0 0
    %11778 = vmatpush1.bf16.msra.mxu0 %v11204
    %11779 = vmatprep.subr.bf16.mxu0 0
    %11780 = vmatpush1.bf16.msra.mxu0 %v11205
    %11781 = vmatprep.subr.bf16.mxu0 0
    %11782 = vmatpush1.bf16.msra.mxu0 %v11206
    %11783 = vmatprep.subr.bf16.mxu0 0
    %11784 = vmatpush1.bf16.msra.mxu0 %v11207
    %11785 = vmatprep.subr.bf16.mxu0 0
    %11786 = vmatpush1.bf16.msra.mxu0 %v11208
    %11787 = vmatprep.subr.bf16.mxu0 0
    %11788 = vmatpush1.bf16.msra.mxu0 %v11209
    %11789 = vmatprep.subr.bf16.mxu0 0
    %11790 = vmatpush1.bf16.msra.mxu0 %v11210
    %11791 = vmatprep.subr.bf16.mxu0 0
    %11792 = vmatpush1.bf16.msra.mxu0 %v11211
    %11793 = vmatprep.subr.bf16.mxu0 0
    %11794 = vmatpush1.bf16.msra.mxu0 %v11212
    %11795 = vmatprep.subr.bf16.mxu0 0
    %11796 = vmatpush1.bf16.msra.mxu0 %v11213
    %11797 = vmatprep.subr.bf16.mxu0 0
    %11798 = vmatpush1.bf16.msra.mxu0 %v11214
    %11799 = vmatprep.mubr.bf16.mxu0 %v9870
    %11800 = vmatmul.mubr.bf16.gmra.mrb[0].mxu0 %v9869
    %v11801 = vpop.f32.mrb[0].mxu0
    %v11802 = vadd.f32 %v11762, %v11801
    %v11803 = vpop.f32.mrb[0].mxu0
    %v11804 = vpop.f32.mrb[0].mxu0
    %v11805 = vpop.f32.mrb[0].mxu0
    %11806 = vdwg.mxu0
    %11807 = vmatprep.subr.bf16.mxu0 0
    %11808 = vmatpush1.bf16.msra.mxu0 %v11215
    %11809 = vmatprep.subr.bf16.mxu0 0
    %11810 = vmatpush1.bf16.msra.mxu0 %v11216
    %11811 = vmatprep.subr.bf16.mxu0 0
    %11812 = vmatpush1.bf16.msra.mxu0 %v11217
    %11813 = vmatprep.subr.bf16.mxu0 0
    %11814 = vmatpush1.bf16.msra.mxu0 %v11218
    %11815 = vmatprep.subr.bf16.mxu0 0
    %11816 = vmatpush1.bf16.msra.mxu0 %v11219
    %11817 = vmatprep.subr.bf16.mxu0 0
    %11818 = vmatpush1.bf16.msra.mxu0 %v11220
    %11819 = vmatprep.subr.bf16.mxu0 0
    %11820 = vmatpush1.bf16.msra.mxu0 %v11221
    %11821 = vmatprep.subr.bf16.mxu0 0
    %11822 = vmatpush1.bf16.msra.mxu0 %v11222
    %11823 = vmatprep.subr.bf16.mxu0 0
    %11824 = vmatpush1.bf16.msra.mxu0 %v11223
    %11825 = vmatprep.subr.bf16.mxu0 0
    %11826 = vmatpush1.bf16.msra.mxu0 %v11224
    %11827 = vmatprep.subr.bf16.mxu0 0
    %11828 = vmatpush1.bf16.msra.mxu0 %v11225
    %11829 = vmatprep.subr.bf16.mxu0 0
    %11830 = vmatpush1.bf16.msra.mxu0 %v11226
    %11831 = vmatprep.subr.bf16.mxu0 0
    %11832 = vmatpush1.bf16.msra.mxu0 %v11227
    %11833 = vmatprep.subr.bf16.mxu0 0
    %11834 = vmatpush1.bf16.msra.mxu0 %v11228
    %11835 = vmatprep.subr.bf16.mxu0 0
    %11836 = vmatpush1.bf16.msra.mxu0 %v11229
    %11837 = vmatprep.subr.bf16.mxu0 0
    %11838 = vmatpush1.bf16.msra.mxu0 %v11230
    %11839 = vmatprep.mubr.bf16.mxu0 %v9872
    %11840 = vmatmul.mubr.bf16.gmra.mrb[0].mxu0 %v9871
    %v11841 = vpop.f32.mrb[0].mxu0
    %v11842 = vadd.f32 %v11802, %v11841
    %v11843 = vpop.f32.mrb[0].mxu0
    %v11844 = vpop.f32.mrb[0].mxu0
    %v11845 = vpop.f32.mrb[0].mxu0
    %11846 = vdwg.mxu0
    %11847 = vmatprep.subr.bf16.mxu0 0
    %11848 = vmatpush1.bf16.msra.mxu0 %v11231
    %11849 = vmatprep.subr.bf16.mxu0 0
    %11850 = vmatpush1.bf16.msra.mxu0 %v11232
    %11851 = vmatprep.subr.bf16.mxu0 0
    %11852 = vmatpush1.bf16.msra.mxu0 %v11233
    %11853 = vmatprep.subr.bf16.mxu0 0
    %11854 = vmatpush1.bf16.msra.mxu0 %v11234
    %11855 = vmatprep.subr.bf16.mxu0 0
    %11856 = vmatpush1.bf16.msra.mxu0 %v11235
    %11857 = vmatprep.subr.bf16.mxu0 0
    %11858 = vmatpush1.bf16.msra.mxu0 %v11236
    %11859 = vmatprep.subr.bf16.mxu0 0
    %11860 = vmatpush1.bf16.msra.mxu0 %v11237
    %11861 = vmatprep.subr.bf16.mxu0 0
    %11862 = vmatpush1.bf16.msra.mxu0 %v11238
    %11863 = vmatprep.subr.bf16.mxu0 0
    %11864 = vmatpush1.bf16.msra.mxu0 %v11239
    %11865 = vmatprep.subr.bf16.mxu0 0
    %11866 = vmatpush1.bf16.msra.mxu0 %v11240
    %11867 = vmatprep.subr.bf16.mxu0 0
    %11868 = vmatpush1.bf16.msra.mxu0 %v11241
    %11869 = vmatprep.subr.bf16.mxu0 0
    %11870 = vmatpush1.bf16.msra.mxu0 %v11242
    %11871 = vmatprep.subr.bf16.mxu0 0
    %11872 = vmatpush1.bf16.msra.mxu0 %v11243
    %11873 = vmatprep.subr.bf16.mxu0 0
    %11874 = vmatpush1.bf16.msra.mxu0 %v11244
    %11875 = vmatprep.subr.bf16.mxu0 0
    %11876 = vmatpush1.bf16.msra.mxu0 %v11245
    %11877 = vmatprep.subr.bf16.mxu0 0
    %11878 = vmatpush1.bf16.msra.mxu0 %v11246
    %11879 = vmatprep.mubr.bf16.mxu0 %v9874
    %11880 = vmatmul.mubr.bf16.gmra.mrb[0].mxu0 %v9873
    %v11881 = vpop.f32.mrb[0].mxu0
    %v11882 = vadd.f32 %v11842, %v11881
    %v11883 = vpop.f32.mrb[0].mxu0
    %v11884 = vpop.f32.mrb[0].mxu0
    %v11885 = vpop.f32.mrb[0].mxu0
    %11886 = vdwg.mxu0
    %11887 = vmatprep.subr.bf16.mxu0 0
    %11888 = vmatpush1.bf16.msra.mxu0 %v11247
    %11889 = vmatprep.subr.bf16.mxu0 0
    %11890 = vmatpush1.bf16.msra.mxu0 %v11248
    %11891 = vmatprep.subr.bf16.mxu0 0
    %11892 = vmatpush1.bf16.msra.mxu0 %v11249
    %11893 = vmatprep.subr.bf16.mxu0 0
    %11894 = vmatpush1.bf16.msra.mxu0 %v11250
    %11895 = vmatprep.subr.bf16.mxu0 0
    %11896 = vmatpush1.bf16.msra.mxu0 %v11251
    %11897 = vmatprep.subr.bf16.mxu0 0
    %11898 = vmatpush1.bf16.msra.mxu0 %v11252
    %11899 = vmatprep.subr.bf16.mxu0 0
    %11900 = vmatpush1.bf16.msra.mxu0 %v11253
    %11901 = vmatprep.subr.bf16.mxu0 0
    %11902 = vmatpush1.bf16.msra.mxu0 %v11254
    %11903 = vmatprep.subr.bf16.mxu0 0
    %11904 = vmatpush1.bf16.msra.mxu0 %v11255
    %11905 = vmatprep.subr.bf16.mxu0 0
    %11906 = vmatpush1.bf16.msra.mxu0 %v11256
    %11907 = vmatprep.subr.bf16.mxu0 0
    %11908 = vmatpush1.bf16.msra.mxu0 %v11257
    %11909 = vmatprep.subr.bf16.mxu0 0
    %11910 = vmatpush1.bf16.msra.mxu0 %v11258
    %11911 = vmatprep.subr.bf16.mxu0 0
    %11912 = vmatpush1.bf16.msra.mxu0 %v11259
    %11913 = vmatprep.subr.bf16.mxu0 0
    %11914 = vmatpush1.bf16.msra.mxu0 %v11260
    %11915 = vmatprep.subr.bf16.mxu0 0
    %11916 = vmatpush1.bf16.msra.mxu0 %v11261
    %11917 = vmatprep.subr.bf16.mxu0 0
    %11918 = vmatpush1.bf16.msra.mxu0 %v11262
    %11919 = vmatprep.mubr.bf16.mxu0 %v9876
    %11920 = vmatmul.mubr.bf16.gmra.mrb[0].mxu0 %v9875
    %v11921 = vpop.f32.mrb[0].mxu0
    %v11922 = vadd.f32 %v11882, %v11921
    %v11923 = vpop.f32.mrb[0].mxu0
    %v11924 = vpop.f32.mrb[0].mxu0
    %v11925 = vpop.f32.mrb[0].mxu0
    %11926 = vdwg.mxu0
    %11927 = vmatprep.subr.bf16.mxu0 0
    %11928 = vmatpush1.bf16.msra.mxu0 %v11263
    %11929 = vmatprep.subr.bf16.mxu0 0
    %11930 = vmatpush1.bf16.msra.mxu0 %v11264
    %11931 = vmatprep.subr.bf16.mxu0 0
    %11932 = vmatpush1.bf16.msra.mxu0 %v11265
    %11933 = vmatprep.subr.bf16.mxu0 0
    %11934 = vmatpush1.bf16.msra.mxu0 %v11266
    %11935 = vmatprep.subr.bf16.mxu0 0
    %11936 = vmatpush1.bf16.msra.mxu0 %v11267
    %11937 = vmatprep.subr.bf16.mxu0 0
    %11938 = vmatpush1.bf16.msra.mxu0 %v11268
    %11939 = vmatprep.subr.bf16.mxu0 0
    %11940 = vmatpush1.bf16.msra.mxu0 %v11269
    %11941 = vmatprep.subr.bf16.mxu0 0
    %11942 = vmatpush1.bf16.msra.mxu0 %v11270
    %11943 = vmatprep.subr.bf16.mxu0 0
    %11944 = vmatpush1.bf16.msra.mxu0 %v11271
    %11945 = vmatprep.subr.bf16.mxu0 0
    %11946 = vmatpush1.bf16.msra.mxu0 %v11272
    %11947 = vmatprep.subr.bf16.mxu0 0
    %11948 = vmatpush1.bf16.msra.mxu0 %v11273
    %11949 = vmatprep.subr.bf16.mxu0 0
    %11950 = vmatpush1.bf16.msra.mxu0 %v11274
    %11951 = vmatprep.subr.bf16.mxu0 0
    %11952 = vmatpush1.bf16.msra.mxu0 %v11275
    %11953 = vmatprep.subr.bf16.mxu0 0
    %11954 = vmatpush1.bf16.msra.mxu0 %v11276
    %11955 = vmatprep.subr.bf16.mxu0 0
    %11956 = vmatpush1.bf16.msra.mxu0 %v11277
    %11957 = vmatprep.subr.bf16.mxu0 0
    %11958 = vmatpush1.bf16.msra.mxu0 %v11278
    %11959 = vmatprep.mubr.bf16.mxu0 %v9878
    %11960 = vmatmul.mubr.bf16.gmra.mrb[0].mxu0 %v9877
    %v11961 = vpop.f32.mrb[0].mxu0
    %v11962 = vadd.f32 %v11922, %v11961
    %v11963 = vpop.f32.mrb[0].mxu0
    %v11964 = vpop.f32.mrb[0].mxu0
    %v11965 = vpop.f32.mrb[0].mxu0
    %11966 = vdwg.mxu0
    %11967 = vmatprep.subr.bf16.mxu0 0
    %11968 = vmatpush1.bf16.msra.mxu0 %v11279
    %11969 = vmatprep.subr.bf16.mxu0 0
    %11970 = vmatpush1.bf16.msra.mxu0 %v11280
    %11971 = vmatprep.subr.bf16.mxu0 0
    %11972 = vmatpush1.bf16.msra.mxu0 %v11281
    %11973 = vmatprep.subr.bf16.mxu0 0
    %11974 = vmatpush1.bf16.msra.mxu0 %v11282
    %11975 = vmatprep.subr.bf16.mxu0 0
    %11976 = vmatpush1.bf16.msra.mxu0 %v11283
    %11977 = vmatprep.subr.bf16.mxu0 0
    %11978 = vmatpush1.bf16.msra.mxu0 %v11284
    %11979 = vmatprep.subr.bf16.mxu0 0
    %11980 = vmatpush1.bf16.msra.mxu0 %v11285
    %11981 = vmatprep.subr.bf16.mxu0 0
    %11982 = vmatpush1.bf16.msra.mxu0 %v11286
    %11983 = vmatprep.subr.bf16.mxu0 0
    %11984 = vmatpush1.bf16.msra.mxu0 0
    %11985 = vmatprep.subr.bf16.mxu0 0
    %11986 = vmatpush1.bf16.msra.mxu0 0
    %11987 = vmatprep.subr.bf16.mxu0 0
    %11988 = vmatpush1.bf16.msra.mxu0 0
    %11989 = vmatprep.subr.bf16.mxu0 0
    %11990 = vmatpush1.bf16.msra.mxu0 0
    %11991 = vmatprep.subr.bf16.mxu0 0
    %11992 = vmatpush1.bf16.msra.mxu0 0
    %11993 = vmatprep.subr.bf16.mxu0 0
    %11994 = vmatpush1.bf16.msra.mxu0 0
    %11995 = vmatprep.subr.bf16.mxu0 0
    %11996 = vmatpush1.bf16.msra.mxu0 0
    %11997 = vmatprep.subr.bf16.mxu0 0
    %11998 = vmatpush1.bf16.msra.mxu0 0
    %11999 = vmatprep.mubr.bf16.mxu0 0
    %12000 = vmatmul.mubr.bf16.gmra.mrb[0].mxu0 %v9879
    %v12001 = vpop.f32.mrb[0].mxu0
    %v12002 = vadd.f32 %v11962, %v12001
    %v12003 = vpop.f32.mrb[0].mxu0
    %v12004 = vpop.f32.mrb[0].mxu0
    %v12005 = vpop.f32.mrb[0].mxu0
    %12006 = vdwg.mxu0
    %v12007 = vmax.f32 %v12002, 0.0
    %v12008 = vpack.c.bf16 %v12007, %v12007
    %v12009 = vld [vmem:[#allocation9] sm:$0xf]
    %v12010 = vld [vmem:[#allocation9 + $0x4] sm:$0xf]
    %v12011 = vld [vmem:[#allocation9 + $0x8] sm:$0xf]
    %v12012 = vld [vmem:[#allocation9 + $0xc] sm:$0xf]
    %v12013 = vld [vmem:[#allocation9 + $0x10] sm:$0xf]
    %v12014 = vld [vmem:[#allocation9 + $0x14] sm:$0xf]
    %v12015 = vld [vmem:[#allocation9 + $0x18] sm:$0xf]
    %v12016 = vld [vmem:[#allocation9 + $0x1c] sm:$0xf]
    %v12017 = vld [vmem:[#allocation9 + $0x20] sm:$0xf]
    %v12018 = vld [vmem:[#allocation9 + $0x24] sm:$0xf]
    %v12019 = vld [vmem:[#allocation9 + $0x28] sm:$0xf]
    %v12020 = vld [vmem:[#allocation9 + $0x2c] sm:$0xf]
    %v12021 = vld [vmem:[#allocation9 + $0x30] sm:$0xf]
    %v12022 = vld [vmem:[#allocation9 + $0x34] sm:$0xf]
    %v12023 = vld [vmem:[#allocation9 + $0x38] sm:$0xf]
    %v12024 = vld [vmem:[#allocation9 + $0x3c] sm:$0xf]
    %v12025 = vld [vmem:[#allocation10] sm:$0x1]
    %v12027 = vlaneseq
    %v12028 = vshrl.u32 %v12027, 7
    %v12029 = vsub.s32 0, %v12028
    %v12030 = vrot.slane %v12025, %v12029
    %v12048 = vunpack.c.l.b16 %v12009
    %v12049 = vunpack.c.l.b16 %v12010
    %v12050 = vunpack.c.l.b16 %v12011
    %v12051 = vunpack.c.l.b16 %v12012
    %v12052 = vunpack.c.l.b16 %v12013
    %v12053 = vunpack.c.l.b16 %v12014
    %v12054 = vunpack.c.l.b16 %v12015
    %v12055 = vunpack.c.l.b16 %v12016
    %v12056 = vunpack.c.l.b16 %v12017
    %v12057 = vunpack.c.l.b16 %v12018
    %v12058 = vunpack.c.l.b16 %v12019
    %v12059 = vunpack.c.l.b16 %v12020
    %v12060 = vunpack.c.l.b16 %v12021
    %v12061 = vunpack.c.l.b16 %v12022
    %v12062 = vunpack.c.l.b16 %v12023
    %v12063 = vunpack.c.l.b16 %v12024
    %v12064 = vpack.c.b16 %v12049, %v12048
    %v12065 = vpack.c.b16 %v12051, %v12050
    %v12066 = vpack.c.b16 %v12053, %v12052
    %v12067 = vpack.c.b16 %v12055, %v12054
    %v12068 = vpack.c.b16 %v12057, %v12056
    %v12069 = vpack.c.b16 %v12059, %v12058
    %v12070 = vpack.c.b16 %v12061, %v12060
    %v12071 = vpack.c.b16 %v12063, %v12062
    %12080 = vmatprep.subr.bf16.mxu0 0
    %12081 = vmatpush1.bf16.msra.mxu0 %v12064
    %12082 = vmatprep.subr.bf16.mxu0 0
    %12083 = vmatpush1.bf16.msra.mxu0 %v12065
    %12084 = vmatprep.subr.bf16.mxu0 0
    %12085 = vmatpush1.bf16.msra.mxu0 %v12066
    %12086 = vmatprep.subr.bf16.mxu0 0
    %12087 = vmatpush1.bf16.msra.mxu0 %v12067
    %12088 = vmatprep.subr.bf16.mxu0 0
    %12089 = vmatpush1.bf16.msra.mxu0 %v12068
    %12090 = vmatprep.subr.bf16.mxu0 0
    %12091 = vmatpush1.bf16.msra.mxu0 %v12069
    %12092 = vmatprep.subr.bf16.mxu0 0
    %12093 = vmatpush1.bf16.msra.mxu0 %v12070
    %12094 = vmatprep.subr.bf16.mxu0 0
    %12095 = vmatpush1.bf16.msra.mxu0 %v12071
    %12096 = vmatprep.subr.bf16.mxu0 0
    %12097 = vmatpush1.bf16.msra.mxu0 0
    %12098 = vmatprep.subr.bf16.mxu0 0
    %12099 = vmatpush1.bf16.msra.mxu0 0
    %12100 = vmatprep.subr.bf16.mxu0 0
    %12101 = vmatpush1.bf16.msra.mxu0 0
    %12102 = vmatprep.subr.bf16.mxu0 0
    %12103 = vmatpush1.bf16.msra.mxu0 0
    %12104 = vmatprep.subr.bf16.mxu0 0
    %12105 = vmatpush1.bf16.msra.mxu0 0
    %12106 = vmatprep.subr.bf16.mxu0 0
    %12107 = vmatpush1.bf16.msra.mxu0 0
    %12108 = vmatprep.subr.bf16.mxu0 0
    %12109 = vmatpush1.bf16.msra.mxu0 0
    %12110 = vmatprep.subr.bf16.mxu0 0
    %12111 = vmatpush1.bf16.msra.mxu0 0
    %12112 = vmatprep.mubr.bf16.mxu0 0
    %12113 = vmatmul.mubr.bf16.gmra.mrb[0].mxu0 %v12008
    %v12114 = vpop.f32.mrb[0].mxu0
    %v12115 = vadd.f32 %v12030, %v12114
    %v12116 = vpop.f32.mrb[0].mxu0
    %v12117 = vpop.f32.mrb[0].mxu0
    %v12118 = vpop.f32.mrb[0].mxu0
    %12119 = vdwg.mxu0
    %12120 = vst [vmem:[%s7] sm:$0xff] %v12115
    // Predicated region
    $region54: #{mnist_c2f_forward.1} parent=1 // pred_check
      _
    $region55: #{mnist_c2f_forward.1} parent=1 // pred_check_branch
      %12122 = sbr.rel (0) target = $region57
    $region56: #{mnist_c2f_forward.1} parent=1 // pred_region
      _
    $region57: #{mnist_c2f_forward.1} parent=1 // pred_fallthru
      _
    // Predicated region
    $region58: #{mnist_c2f_forward.1} parent=1 // pred_check
      _
    $region59: #{mnist_c2f_forward.1} parent=1 // pred_check_branch
      %12124 = sbr.rel (0) target = $region61
    $region60: #{mnist_c2f_forward.1} parent=1 // pred_region
      _
    $region61: #{mnist_c2f_forward.1} parent=1 // pred_fallthru
      _
    %12125 = vsyncpa [#allocation3], 1
    %12126 = vsyncpa [#allocation5], 1
    %12127 = vsyncpa [#allocation8], 1
    %12128 = vsyncpa [#allocation11], 1

</llo_original>
